<compile_context>
chip_gen: v7x
topology: tpu7x:2x2x1
jax: 0.10.0
libtpu: 0.0.40
codegen_flags: <defaults>
</compile_context>

<pallas_src>
import functools

import jax
import jax.numpy as jnp
from jax.experimental import pallas as pl
from jax.experimental.pallas import tpu as pltpu

# ----------------------------- model config (scaled-down ViT) -----------------
IMG_SIZE = 32
PATCH = 16
IN_CHANS = 3
EMBED_DIM = 128
DEPTH = 2
NUM_HEADS = 4
HEAD_DIM = EMBED_DIM // NUM_HEADS
MLP_DIM = 4 * EMBED_DIM
NUM_CLASSES = 4
HEAD_PAD = 128          # lane-dense classifier output (sliced to NUM_CLASSES outside)
SEQ_PAD = 8             # per-batch sequence rows padded to a sublane multiple
LN_EPS = 1e-6
MXU_DT = jnp.bfloat16   # MXU operand dtype; accumulation stays f32


# ----------------------------- in-kernel helpers -------------------------------
def _ln(x, gamma, beta):
    """LayerNorm over last dim of an f32 2-D value (eps=1e-6, like timm ViT)."""
    mean = jnp.mean(x, axis=-1, keepdims=True)
    var = jnp.mean((x - mean) ** 2, axis=-1, keepdims=True)
    return (x - mean) * jax.lax.rsqrt(var + LN_EPS) * gamma + beta


def _erf(z):
    """erf via Abramowitz-Stegun 7.1.26 (|err| < 1.5e-7): exp + VPU arithmetic only."""
    a1, a2, a3, a4, a5 = (0.254829592, -0.284496736, 1.421413741,
                          -1.453152027, 1.061405429)
    p = 0.3275911
    sign = jnp.where(z >= 0.0, 1.0, -1.0)
    az = jnp.abs(z)
    t = 1.0 / (1.0 + p * az)
    poly = ((((a5 * t + a4) * t + a3) * t + a2) * t + a1) * t
    return sign * (1.0 - poly * jnp.exp(-az * az))


def _gelu(x):
    """Exact (erf) GELU, matching torch nn.GELU default, f32 math."""
    return 0.5 * x * (1.0 + _erf(x * 0.7071067811865476))


def _dot(a, b):
    """bf16 MXU matmul with f32 accumulation."""
    return jnp.dot(a.astype(MXU_DT), b.astype(MXU_DT),
                   preferred_element_type=jnp.float32)


def _dot_t(a, b):
    """a @ b.T (contract last dims), bf16 MXU operands, f32 accumulation."""
    return jax.lax.dot_general(a.astype(MXU_DT), b.astype(MXU_DT),
                               (((1,), (1,)), ((), ())),
                               preferred_element_type=jnp.float32)


# ----------------------------- the single fused kernel -------------------------
def _forward_kernel(patches_ref, patch_w_ref, patch_b_ref, cls_ref, pos_ref,
                    ln1_g_ref, ln1_b_ref, qkv_w_ref, qkv_b_ref,
                    proj_w_ref, proj_b_ref, ln2_g_ref, ln2_b_ref,
                    fc1_w_ref, fc1_b_ref, fc2_w_ref, fc2_b_ref,
                    norm_g_ref, norm_b_ref, head_w_ref, head_b_ref,
                    o_ref, *, B, S, S_pad, NP, H, DH, depth, scale):
    f32 = jnp.float32
    D = H * DH

    # ---- patch embed: ONE matmul over all B*NP patches, then cls/pos assembly ----
    tok = _dot(patches_ref[...], patch_w_ref[...]) + patch_b_ref[...].astype(f32)
    pos = pos_ref[...].astype(f32)                       # (S, D)
    cls_row = cls_ref[...].astype(f32) + pos[0:1, :]     # (1, D)
    pos_tok = pos[1:S, :]                                # (NP, D)
    pad_rows = jnp.zeros((S_pad - S, D), f32)
    rows = []
    for b in range(B):
        rows.append(cls_row)
        rows.append(tok[b * NP:(b + 1) * NP, :] + pos_tok)
        rows.append(pad_rows)
    x = jnp.concatenate(rows, axis=0)                    # (B*S_pad, D)

    # key-padding mask (padded key rows excluded from softmax), shared by all blocks
    col = jax.lax.broadcasted_iota(jnp.int32, (S_pad, S_pad), 1)
    key_valid = col < S

    # ---- transformer blocks, statically unrolled, everything stays on-chip ----
    for d in range(depth):
        ln1_g = ln1_g_ref[d].astype(f32)
        ln1_b = ln1_b_ref[d].astype(f32)
        ln2_g = ln2_g_ref[d].astype(f32)
        ln2_b = ln2_b_ref[d].astype(f32)
        qkv_b = qkv_b_ref[d].astype(f32)
        proj_b = proj_b_ref[d].astype(f32)
        fc1_b = fc1_b_ref[d].astype(f32)
        fc2_b = fc2_b_ref[d].astype(f32)

        # LN1 + QKV projection
        h = _ln(x, ln1_g, ln1_b)
        qkv = _dot(h, qkv_w_ref[d]) + qkv_b              # (B*S_pad, 3D)
        q = qkv[:, 0:D]                                  # lane-tile-aligned splits
        k = qkv[:, D:2 * D]
        v = qkv[:, 2 * D:3 * D]

        # attention: unrolled over (batch, head); S_pad=8-row aligned tiles
        attn_rows = []
        for b in range(B):
            r0 = b * S_pad
            head_cols = []
            for hh in range(H):
                c0 = hh * DH
                qh = q[r0:r0 + S_pad, c0:c0 + DH]        # (S_pad, DH)
                kh = k[r0:r0 + S_pad, c0:c0 + DH]
                vh = v[r0:r0 + S_pad, c0:c0 + DH]
                s = _dot_t(qh, kh) * scale               # (S_pad, S_pad)
                s = jnp.where(key_valid, s, -1e30)
                s = s - jnp.max(s, axis=-1, keepdims=True)
                p = jnp.exp(s)
                p = p * pl.reciprocal(jnp.sum(p, axis=-1, keepdims=True),
                                      approx=True)
                head_cols.append(_dot(p, vh))            # (S_pad, DH)
            attn_rows.append(jnp.concatenate(head_cols, axis=1))
        attn = jnp.concatenate(attn_rows, axis=0)        # (B*S_pad, D)

        # output projection + residual
        x = x + _dot(attn, proj_w_ref[d]) + proj_b

        # LN2 + MLP (GELU) + residual
        h = _ln(x, ln2_g, ln2_b)
        h = _gelu(_dot(h, fc1_w_ref[d]) + fc1_b)
        x = x + _dot(h, fc2_w_ref[d]) + fc2_b

    # ---- final LayerNorm on the B cls tokens + padded classifier head ----
    cls_tok = jnp.concatenate([x[b * S_pad:b * S_pad + 1, :] for b in range(B)],
                              axis=0)                    # (B, D)
    h = _ln(cls_tok, norm_g_ref[...].astype(f32), norm_b_ref[...].astype(f32))
    logits = _dot(h, head_w_ref[...]) + head_b_ref[...].astype(f32)   # (B, HEAD_PAD)
    o_ref[...] = logits.astype(o_ref.dtype)


# ----------------------------- pallas_call wrapper -----------------------------
def _full(shape):
    return pl.BlockSpec(shape, lambda i, _n=len(shape): (0,) * _n)


def medvit_forward(x_img, params):
    """x_img: (B, 3, H, W) NCHW float32 -> logits (B, NUM_CLASSES)."""
    B, C, Himg, Wimg = x_img.shape
    p = PATCH
    Hp, Wp = Himg // p, Wimg // p
    NP = Hp * Wp
    S = NP + 1

    # Conv2d(k=p, s=p) == channel-major patch flatten (torch weight layout) + matmul.
    patches = x_img.reshape(B, C, Hp, p, Wp, p)
    patches = patches.transpose(0, 2, 4, 1, 3, 5).reshape(B * NP, C * p * p)

    blk = params["blocks"]
    inputs = (patches,
              params["patch_w"], params["patch_b"], params["cls"], params["pos"],
              blk["ln1_g"], blk["ln1_b"], blk["qkv_w"], blk["qkv_b"],
              blk["proj_w"], blk["proj_b"], blk["ln2_g"], blk["ln2_b"],
              blk["fc1_w"], blk["fc1_b"], blk["fc2_w"], blk["fc2_b"],
              params["norm_g"], params["norm_b"],
              params["head_w"], params["head_b"])

    kernel = functools.partial(_forward_kernel, B=B, S=S, S_pad=SEQ_PAD, NP=NP,
                               H=NUM_HEADS, DH=HEAD_DIM, depth=DEPTH,
                               scale=HEAD_DIM ** -0.5)
    logits_pad = pl.pallas_call(
        kernel,
        out_shape=jax.ShapeDtypeStruct((B, HEAD_PAD), jnp.float32),
        grid=(1,),
        in_specs=[_full(a.shape) for a in inputs],
        out_specs=_full((B, HEAD_PAD)),
        compiler_params=pltpu.CompilerParams(dimension_semantics=("arbitrary",)),
    )(*inputs)

    # nn.Dropout(0.4) is identity at inference.
    return logits_pad[:, :NUM_CLASSES]


# ----------------------------- parameter init ---------------------------------
def init_params(key):
    D = EMBED_DIM
    n_patches = (IMG_SIZE // PATCH) ** 2
    S = n_patches + 1

    def nrm(k, shape, std=0.02):
        return (std * jax.random.normal(k, shape)).astype(jnp.float32)

    keys = iter(jax.random.split(key, 4 + DEPTH * 4))
    params = {
        # matmul weights shipped as bf16 (halves HBM->VMEM DMA bytes)
        "patch_w": nrm(next(keys), (IN_CHANS * PATCH * PATCH, D)).astype(MXU_DT),
        "patch_b": jnp.zeros((1, D), jnp.float32),
        "cls": nrm(next(keys), (1, D)),
        "pos": nrm(next(keys), (S, D)),
        "norm_g": jnp.ones((1, D), jnp.float32),
        "norm_b": jnp.zeros((1, D), jnp.float32),
        "head_w": jnp.pad(nrm(next(keys), (D, NUM_CLASSES)),
                          ((0, 0), (0, HEAD_PAD - NUM_CLASSES))).astype(MXU_DT),
        "head_b": jnp.zeros((1, HEAD_PAD), jnp.float32),
    }
    qkv_w, proj_w, fc1_w, fc2_w = [], [], [], []
    for _ in range(DEPTH):
        qkv_w.append(nrm(next(keys), (D, 3 * D)))
        proj_w.append(nrm(next(keys), (D, D)))
        fc1_w.append(nrm(next(keys), (D, MLP_DIM)))
        fc2_w.append(nrm(next(keys), (MLP_DIM, D)))
    params["blocks"] = {
        "ln1_g": jnp.ones((DEPTH, 1, D), jnp.float32),
        "ln1_b": jnp.zeros((DEPTH, 1, D), jnp.float32),
        "qkv_w": jnp.stack(qkv_w).astype(MXU_DT),
        "qkv_b": jnp.zeros((DEPTH, 1, 3 * D), jnp.float32),
        "proj_w": jnp.stack(proj_w).astype(MXU_DT),
        "proj_b": jnp.zeros((DEPTH, 1, D), jnp.float32),
        "ln2_g": jnp.ones((DEPTH, 1, D), jnp.float32),
        "ln2_b": jnp.zeros((DEPTH, 1, D), jnp.float32),
        "fc1_w": jnp.stack(fc1_w).astype(MXU_DT),
        "fc1_b": jnp.zeros((DEPTH, 1, MLP_DIM), jnp.float32),
        "fc2_w": jnp.stack(fc2_w).astype(MXU_DT),
        "fc2_b": jnp.zeros((DEPTH, 1, D), jnp.float32),
    }
    return params


# ----------------------------- main --------------------------------------------
if __name__ == "__main__":
    key = jax.random.PRNGKey(0)
    k_x, k_p = jax.random.split(key)
    x = jax.random.normal(k_x, (2, IN_CHANS, IMG_SIZE, IMG_SIZE), dtype=jnp.float32)
    params = init_params(k_p)

    fwd = jax.jit(medvit_forward)
    logits = fwd(x, params)
    jax.block_until_ready(logits)
    assert logits.shape == (2, NUM_CLASSES)
    assert bool(jnp.all(jnp.isfinite(logits)))
    print("KERNEL_OK")
</pallas_src>

<mosaic_0001>
module attributes {stable_mosaic.version = 11 : i64} {
  func.func @_forward_kernel(%arg0: i32, %arg1: memref<8x768xf32, #tpu.memory_space<vmem>>, %arg2: memref<768x128xbf16, #tpu.memory_space<vmem>>, %arg3: memref<1x128xf32, #tpu.memory_space<vmem>>, %arg4: memref<1x128xf32, #tpu.memory_space<vmem>>, %arg5: memref<5x128xf32, #tpu.memory_space<vmem>>, %arg6: memref<2x1x128xf32, #tpu.memory_space<vmem>>, %arg7: memref<2x1x128xf32, #tpu.memory_space<vmem>>, %arg8: memref<2x128x384xbf16, #tpu.memory_space<vmem>>, %arg9: memref<2x1x384xf32, #tpu.memory_space<vmem>>, %arg10: memref<2x128x128xbf16, #tpu.memory_space<vmem>>, %arg11: memref<2x1x128xf32, #tpu.memory_space<vmem>>, %arg12: memref<2x1x128xf32, #tpu.memory_space<vmem>>, %arg13: memref<2x1x128xf32, #tpu.memory_space<vmem>>, %arg14: memref<2x128x512xbf16, #tpu.memory_space<vmem>>, %arg15: memref<2x1x512xf32, #tpu.memory_space<vmem>>, %arg16: memref<2x512x128xbf16, #tpu.memory_space<vmem>>, %arg17: memref<2x1x128xf32, #tpu.memory_space<vmem>>, %arg18: memref<1x128xf32, #tpu.memory_space<vmem>>, %arg19: memref<1x128xf32, #tpu.memory_space<vmem>>, %arg20: memref<128x128xbf16, #tpu.memory_space<vmem>>, %arg21: memref<1x128xf32, #tpu.memory_space<vmem>>, %arg22: memref<2x128xf32, #tpu.memory_space<vmem>>) attributes {dimension_semantics = [#tpu.dimension_semantics<arbitrary>], iteration_bounds = array<i64: 1>, scalar_prefetch = 0 : i64, scratch_operands = 0 : i64, tpu.core_type = #tpu.core_type<tc>, window_params = [{pipeline_mode = #tpu.pipeline_mode<synchronous>, transform_indices = @transform_0, window_bounds = array<i64: 8, 768>}, {pipeline_mode = #tpu.pipeline_mode<synchronous>, transform_indices = @transform_1, window_bounds = array<i64: 768, 128>}, {pipeline_mode = #tpu.pipeline_mode<synchronous>, transform_indices = @transform_2, window_bounds = array<i64: 1, 128>}, {pipeline_mode = #tpu.pipeline_mode<synchronous>, transform_indices = @transform_3, window_bounds = array<i64: 1, 128>}, {pipeline_mode = #tpu.pipeline_mode<synchronous>, transform_indices = @transform_4, window_bounds = array<i64: 5, 128>}, {pipeline_mode = #tpu.pipeline_mode<synchronous>, transform_indices = @transform_5, window_bounds = array<i64: 2, 1, 128>}, {pipeline_mode = #tpu.pipeline_mode<synchronous>, transform_indices = @transform_6, window_bounds = array<i64: 2, 1, 128>}, {pipeline_mode = #tpu.pipeline_mode<synchronous>, transform_indices = @transform_7, window_bounds = array<i64: 2, 128, 384>}, {pipeline_mode = #tpu.pipeline_mode<synchronous>, transform_indices = @transform_8, window_bounds = array<i64: 2, 1, 384>}, {pipeline_mode = #tpu.pipeline_mode<synchronous>, transform_indices = @transform_9, window_bounds = array<i64: 2, 128, 128>}, {pipeline_mode = #tpu.pipeline_mode<synchronous>, transform_indices = @transform_10, window_bounds = array<i64: 2, 1, 128>}, {pipeline_mode = #tpu.pipeline_mode<synchronous>, transform_indices = @transform_11, window_bounds = array<i64: 2, 1, 128>}, {pipeline_mode = #tpu.pipeline_mode<synchronous>, transform_indices = @transform_12, window_bounds = array<i64: 2, 1, 128>}, {pipeline_mode = #tpu.pipeline_mode<synchronous>, transform_indices = @transform_13, window_bounds = array<i64: 2, 128, 512>}, {pipeline_mode = #tpu.pipeline_mode<synchronous>, transform_indices = @transform_14, window_bounds = array<i64: 2, 1, 512>}, {pipeline_mode = #tpu.pipeline_mode<synchronous>, transform_indices = @transform_15, window_bounds = array<i64: 2, 512, 128>}, {pipeline_mode = #tpu.pipeline_mode<synchronous>, transform_indices = @transform_16, window_bounds = array<i64: 2, 1, 128>}, {pipeline_mode = #tpu.pipeline_mode<synchronous>, transform_indices = @transform_17, window_bounds = array<i64: 1, 128>}, {pipeline_mode = #tpu.pipeline_mode<synchronous>, transform_indices = @transform_18, window_bounds = array<i64: 1, 128>}, {pipeline_mode = #tpu.pipeline_mode<synchronous>, transform_indices = @transform_19, window_bounds = array<i64: 128, 128>}, {pipeline_mode = #tpu.pipeline_mode<synchronous>, transform_indices = @transform_20, window_bounds = array<i64: 1, 128>}, {pipeline_mode = #tpu.pipeline_mode<synchronous>, transform_indices = @transform_21, window_bounds = array<i64: 2, 128>}]} {
    %c0 = arith.constant 0 : index
    %c0_0 = arith.constant 0 : index
    %0 = vector.load %arg1[%c0, %c0_0] : memref<8x768xf32, #tpu.memory_space<vmem>>, vector<8x768xf32>
    %c0_1 = arith.constant 0 : index
    %c0_2 = arith.constant 0 : index
    %1 = vector.load %arg2[%c0_1, %c0_2] : memref<768x128xbf16, #tpu.memory_space<vmem>>, vector<768x128xbf16>
    %2 = arith.truncf %0 : vector<8x768xf32> to vector<8x768xbf16>
    %cst = arith.constant dense<0.000000e+00> : vector<8x128xf32>
    %3 = tpu.matmul %2, %1, %cst {dimension_numbers = #tpu.dot_dimension_numbers<[1], [0], [0], [1], [0, 0, 1, 1], [], []>} : vector<8x768xbf16>, vector<768x128xbf16>, vector<8x128xf32> -> vector<8x128xf32>
    %c0_3 = arith.constant 0 : index
    %c0_4 = arith.constant 0 : index
    %4 = vector.load %arg3[%c0_3, %c0_4] : memref<1x128xf32, #tpu.memory_space<vmem>>, vector<1x128xf32>
    %5 = vector.broadcast %4 : vector<1x128xf32> to vector<8x128xf32>
    %6 = arith.addf %3, %5 : vector<8x128xf32>
    %c0_5 = arith.constant 0 : index
    %c0_6 = arith.constant 0 : index
    %7 = vector.load %arg5[%c0_5, %c0_6] : memref<5x128xf32, #tpu.memory_space<vmem>>, vector<5x128xf32>
    %c0_7 = arith.constant 0 : index
    %c0_8 = arith.constant 0 : index
    %8 = vector.load %arg4[%c0_7, %c0_8] : memref<1x128xf32, #tpu.memory_space<vmem>>, vector<1x128xf32>
    %9 = vector.extract_strided_slice %7 {offsets = [0, 0], sizes = [1, 128], strides = [1, 1]} : vector<5x128xf32> to vector<1x128xf32>
    %10 = arith.addf %8, %9 : vector<1x128xf32>
    %11 = vector.extract_strided_slice %7 {offsets = [1, 0], sizes = [4, 128], strides = [1, 1]} : vector<5x128xf32> to vector<4x128xf32>
    %cst_9 = arith.constant 0.000000e+00 : f32
    %12 = vector.broadcast %cst_9 : f32 to vector<3x128xf32>
    %13 = vector.extract_strided_slice %6 {offsets = [0, 0], sizes = [4, 128], strides = [1, 1]} : vector<8x128xf32> to vector<4x128xf32>
    %14 = arith.addf %13, %11 : vector<4x128xf32>
    %15 = vector.extract_strided_slice %6 {offsets = [4, 0], sizes = [4, 128], strides = [1, 1]} : vector<8x128xf32> to vector<4x128xf32>
    %16 = arith.addf %15, %11 : vector<4x128xf32>
    %17 = tpu.concatenate %10, %14, %12, %10, %16, %12 in 0 : vector<1x128xf32>, vector<4x128xf32>, vector<3x128xf32>, vector<1x128xf32>, vector<4x128xf32>, vector<3x128xf32> -> vector<16x128xf32>
    %18 = tpu.iota {dimensions = array<i32: 1>} : vector<8x8xi32>
    %c5_i32 = arith.constant 5 : i32
    %19 = vector.broadcast %c5_i32 : i32 to vector<8x8xi32>
    %20 = arith.cmpi slt, %18, %19 : vector<8x8xi32>
    %c0_10 = arith.constant 0 : index
    %c0_11 = arith.constant 0 : index
    %c0_12 = arith.constant 0 : index
    %21 = vector.load %arg6[%c0_10, %c0_11, %c0_12] : memref<2x1x128xf32, #tpu.memory_space<vmem>>, vector<1x1x128xf32>
    %22 = vector.shape_cast %21 : vector<1x1x128xf32> to vector<1x128xf32>
    %c0_13 = arith.constant 0 : index
    %c0_14 = arith.constant 0 : index
    %c0_15 = arith.constant 0 : index
    %23 = vector.load %arg7[%c0_13, %c0_14, %c0_15] : memref<2x1x128xf32, #tpu.memory_space<vmem>>, vector<1x1x128xf32>
    %24 = vector.shape_cast %23 : vector<1x1x128xf32> to vector<1x128xf32>
    %c0_16 = arith.constant 0 : index
    %c0_17 = arith.constant 0 : index
    %c0_18 = arith.constant 0 : index
    %25 = vector.load %arg12[%c0_16, %c0_17, %c0_18] : memref<2x1x128xf32, #tpu.memory_space<vmem>>, vector<1x1x128xf32>
    %26 = vector.shape_cast %25 : vector<1x1x128xf32> to vector<1x128xf32>
    %c0_19 = arith.constant 0 : index
    %c0_20 = arith.constant 0 : index
    %c0_21 = arith.constant 0 : index
    %27 = vector.load %arg13[%c0_19, %c0_20, %c0_21] : memref<2x1x128xf32, #tpu.memory_space<vmem>>, vector<1x1x128xf32>
    %28 = vector.shape_cast %27 : vector<1x1x128xf32> to vector<1x128xf32>
    %c0_22 = arith.constant 0 : index
    %c0_23 = arith.constant 0 : index
    %c0_24 = arith.constant 0 : index
    %29 = vector.load %arg9[%c0_22, %c0_23, %c0_24] : memref<2x1x384xf32, #tpu.memory_space<vmem>>, vector<1x1x384xf32>
    %30 = vector.shape_cast %29 : vector<1x1x384xf32> to vector<1x384xf32>
    %c0_25 = arith.constant 0 : index
    %c0_26 = arith.constant 0 : index
    %c0_27 = arith.constant 0 : index
    %31 = vector.load %arg11[%c0_25, %c0_26, %c0_27] : memref<2x1x128xf32, #tpu.memory_space<vmem>>, vector<1x1x128xf32>
    %32 = vector.shape_cast %31 : vector<1x1x128xf32> to vector<1x128xf32>
    %c0_28 = arith.constant 0 : index
    %c0_29 = arith.constant 0 : index
    %c0_30 = arith.constant 0 : index
    %33 = vector.load %arg15[%c0_28, %c0_29, %c0_30] : memref<2x1x512xf32, #tpu.memory_space<vmem>>, vector<1x1x512xf32>
    %34 = vector.shape_cast %33 : vector<1x1x512xf32> to vector<1x512xf32>
    %c0_31 = arith.constant 0 : index
    %c0_32 = arith.constant 0 : index
    %c0_33 = arith.constant 0 : index
    %35 = vector.load %arg17[%c0_31, %c0_32, %c0_33] : memref<2x1x128xf32, #tpu.memory_space<vmem>>, vector<1x1x128xf32>
    %36 = vector.shape_cast %35 : vector<1x1x128xf32> to vector<1x128xf32>
    %cst_34 = arith.constant dense<0.000000e+00> : vector<16xf32>
    %37 = vector.multi_reduction <add>, %17, %cst_34 [1] : vector<16x128xf32> to vector<16xf32>
    %38 = vector.shape_cast %37 : vector<16xf32> to vector<16x1xf32>
    %cst_35 = arith.constant 1.280000e+02 : f32
    %39 = vector.broadcast %cst_35 : f32 to vector<16x1xf32>
    %40 = arith.divf %38, %39 : vector<16x1xf32>
    %41 = vector.broadcast %40 : vector<16x1xf32> to vector<16x128xf32>
    %42 = arith.subf %17, %41 : vector<16x128xf32>
    %43 = arith.mulf %42, %42 : vector<16x128xf32>
    %cst_36 = arith.constant dense<0.000000e+00> : vector<16xf32>
    %44 = vector.multi_reduction <add>, %43, %cst_36 [1] : vector<16x128xf32> to vector<16xf32>
    %45 = vector.shape_cast %44 : vector<16xf32> to vector<16x1xf32>
    %cst_37 = arith.constant 1.280000e+02 : f32
    %46 = vector.broadcast %cst_37 : f32 to vector<16x1xf32>
    %47 = arith.divf %45, %46 : vector<16x1xf32>
    %48 = vector.broadcast %40 : vector<16x1xf32> to vector<16x128xf32>
    %49 = arith.subf %17, %48 : vector<16x128xf32>
    %cst_38 = arith.constant 9.99999997E-7 : f32
    %50 = vector.broadcast %cst_38 : f32 to vector<16x1xf32>
    %51 = arith.addf %47, %50 : vector<16x1xf32>
    %52 = math.rsqrt %51 : vector<16x1xf32>
    %53 = vector.broadcast %52 : vector<16x1xf32> to vector<16x128xf32>
    %54 = arith.mulf %49, %53 : vector<16x128xf32>
    %55 = vector.broadcast %22 : vector<1x128xf32> to vector<16x128xf32>
    %56 = arith.mulf %54, %55 : vector<16x128xf32>
    %57 = vector.broadcast %24 : vector<1x128xf32> to vector<16x128xf32>
    %58 = arith.addf %56, %57 : vector<16x128xf32>
    %c0_39 = arith.constant 0 : index
    %c0_40 = arith.constant 0 : index
    %c0_41 = arith.constant 0 : index
    %59 = vector.load %arg8[%c0_39, %c0_40, %c0_41] : memref<2x128x384xbf16, #tpu.memory_space<vmem>>, vector<1x128x384xbf16>
    %60 = vector.shape_cast %59 : vector<1x128x384xbf16> to vector<128x384xbf16>
    %61 = arith.truncf %58 : vector<16x128xf32> to vector<16x128xbf16>
    %cst_42 = arith.constant dense<0.000000e+00> : vector<16x384xf32>
    %62 = tpu.matmul %61, %60, %cst_42 {dimension_numbers = #tpu.dot_dimension_numbers<[1], [0], [0], [1], [0, 0, 1, 1], [], []>} : vector<16x128xbf16>, vector<128x384xbf16>, vector<16x384xf32> -> vector<16x384xf32>
    %63 = vector.broadcast %30 : vector<1x384xf32> to vector<16x384xf32>
    %64 = arith.addf %62, %63 : vector<16x384xf32>
    %65 = vector.extract_strided_slice %64 {offsets = [0, 0], sizes = [16, 128], strides = [1, 1]} : vector<16x384xf32> to vector<16x128xf32>
    %66 = vector.extract_strided_slice %64 {offsets = [0, 128], sizes = [16, 128], strides = [1, 1]} : vector<16x384xf32> to vector<16x128xf32>
    %67 = vector.extract_strided_slice %64 {offsets = [0, 256], sizes = [16, 128], strides = [1, 1]} : vector<16x384xf32> to vector<16x128xf32>
    %68 = vector.extract_strided_slice %65 {offsets = [0, 0], sizes = [8, 32], strides = [1, 1]} : vector<16x128xf32> to vector<8x32xf32>
    %69 = vector.extract_strided_slice %66 {offsets = [0, 0], sizes = [8, 32], strides = [1, 1]} : vector<16x128xf32> to vector<8x32xf32>
    %70 = vector.extract_strided_slice %67 {offsets = [0, 0], sizes = [8, 32], strides = [1, 1]} : vector<16x128xf32> to vector<8x32xf32>
    %71 = arith.truncf %68 : vector<8x32xf32> to vector<8x32xbf16>
    %72 = arith.truncf %69 : vector<8x32xf32> to vector<8x32xbf16>
    %cst_43 = arith.constant dense<0.000000e+00> : vector<8x8xf32>
    %73 = tpu.matmul %71, %72, %cst_43 {dimension_numbers = #tpu.dot_dimension_numbers<[1], [1], [0], [0], [0, 0, 1, 0], [], []>} : vector<8x32xbf16>, vector<8x32xbf16>, vector<8x8xf32> -> vector<8x8xf32>
    %cst_44 = arith.constant 0.176776692 : f32
    %74 = vector.broadcast %cst_44 : f32 to vector<8x8xf32>
    %75 = arith.mulf %73, %74 : vector<8x8xf32>
    %cst_45 = arith.constant -1.000000e+30 : f32
    %76 = vector.broadcast %cst_45 : f32 to vector<8x8xf32>
    %77 = arith.select %20, %75, %76 : vector<8x8xi1>, vector<8x8xf32>
    %cst_46 = arith.constant dense<0xFF800000> : vector<8xf32>
    %78 = vector.multi_reduction <maximumf>, %77, %cst_46 [1] : vector<8x8xf32> to vector<8xf32>
    %79 = vector.shape_cast %78 : vector<8xf32> to vector<8x1xf32>
    %80 = vector.broadcast %79 : vector<8x1xf32> to vector<8x8xf32>
    %81 = arith.subf %77, %80 : vector<8x8xf32>
    %82 = math.exp %81 : vector<8x8xf32>
    %cst_47 = arith.constant dense<0.000000e+00> : vector<8xf32>
    %83 = vector.multi_reduction <add>, %82, %cst_47 [1] : vector<8x8xf32> to vector<8xf32>
    %84 = vector.shape_cast %83 : vector<8xf32> to vector<8x1xf32>
    %85 = tpu.reciprocal %84 {approx = true} : vector<8x1xf32> -> vector<8x1xf32>
    %86 = vector.broadcast %85 : vector<8x1xf32> to vector<8x8xf32>
    %87 = arith.mulf %82, %86 : vector<8x8xf32>
    %88 = arith.truncf %87 : vector<8x8xf32> to vector<8x8xbf16>
    %89 = arith.truncf %70 : vector<8x32xf32> to vector<8x32xbf16>
    %cst_48 = arith.constant dense<0.000000e+00> : vector<8x32xf32>
    %90 = tpu.matmul %88, %89, %cst_48 {dimension_numbers = #tpu.dot_dimension_numbers<[1], [0], [0], [1], [0, 0, 1, 1], [], []>} : vector<8x8xbf16>, vector<8x32xbf16>, vector<8x32xf32> -> vector<8x32xf32>
    %91 = vector.extract_strided_slice %65 {offsets = [0, 32], sizes = [8, 32], strides = [1, 1]} : vector<16x128xf32> to vector<8x32xf32>
    %92 = vector.extract_strided_slice %66 {offsets = [0, 32], sizes = [8, 32], strides = [1, 1]} : vector<16x128xf32> to vector<8x32xf32>
    %93 = vector.extract_strided_slice %67 {offsets = [0, 32], sizes = [8, 32], strides = [1, 1]} : vector<16x128xf32> to vector<8x32xf32>
    %94 = arith.truncf %91 : vector<8x32xf32> to vector<8x32xbf16>
    %95 = arith.truncf %92 : vector<8x32xf32> to vector<8x32xbf16>
    %cst_49 = arith.constant dense<0.000000e+00> : vector<8x8xf32>
    %96 = tpu.matmul %94, %95, %cst_49 {dimension_numbers = #tpu.dot_dimension_numbers<[1], [1], [0], [0], [0, 0, 1, 0], [], []>} : vector<8x32xbf16>, vector<8x32xbf16>, vector<8x8xf32> -> vector<8x8xf32>
    %cst_50 = arith.constant 0.176776692 : f32
    %97 = vector.broadcast %cst_50 : f32 to vector<8x8xf32>
    %98 = arith.mulf %96, %97 : vector<8x8xf32>
    %cst_51 = arith.constant -1.000000e+30 : f32
    %99 = vector.broadcast %cst_51 : f32 to vector<8x8xf32>
    %100 = arith.select %20, %98, %99 : vector<8x8xi1>, vector<8x8xf32>
    %cst_52 = arith.constant dense<0xFF800000> : vector<8xf32>
    %101 = vector.multi_reduction <maximumf>, %100, %cst_52 [1] : vector<8x8xf32> to vector<8xf32>
    %102 = vector.shape_cast %101 : vector<8xf32> to vector<8x1xf32>
    %103 = vector.broadcast %102 : vector<8x1xf32> to vector<8x8xf32>
    %104 = arith.subf %100, %103 : vector<8x8xf32>
    %105 = math.exp %104 : vector<8x8xf32>
    %cst_53 = arith.constant dense<0.000000e+00> : vector<8xf32>
    %106 = vector.multi_reduction <add>, %105, %cst_53 [1] : vector<8x8xf32> to vector<8xf32>
    %107 = vector.shape_cast %106 : vector<8xf32> to vector<8x1xf32>
    %108 = tpu.reciprocal %107 {approx = true} : vector<8x1xf32> -> vector<8x1xf32>
    %109 = vector.broadcast %108 : vector<8x1xf32> to vector<8x8xf32>
    %110 = arith.mulf %105, %109 : vector<8x8xf32>
    %111 = arith.truncf %110 : vector<8x8xf32> to vector<8x8xbf16>
    %112 = arith.truncf %93 : vector<8x32xf32> to vector<8x32xbf16>
    %cst_54 = arith.constant dense<0.000000e+00> : vector<8x32xf32>
    %113 = tpu.matmul %111, %112, %cst_54 {dimension_numbers = #tpu.dot_dimension_numbers<[1], [0], [0], [1], [0, 0, 1, 1], [], []>} : vector<8x8xbf16>, vector<8x32xbf16>, vector<8x32xf32> -> vector<8x32xf32>
    %114 = vector.extract_strided_slice %65 {offsets = [0, 64], sizes = [8, 32], strides = [1, 1]} : vector<16x128xf32> to vector<8x32xf32>
    %115 = vector.extract_strided_slice %66 {offsets = [0, 64], sizes = [8, 32], strides = [1, 1]} : vector<16x128xf32> to vector<8x32xf32>
    %116 = vector.extract_strided_slice %67 {offsets = [0, 64], sizes = [8, 32], strides = [1, 1]} : vector<16x128xf32> to vector<8x32xf32>
    %117 = arith.truncf %114 : vector<8x32xf32> to vector<8x32xbf16>
    %118 = arith.truncf %115 : vector<8x32xf32> to vector<8x32xbf16>
    %cst_55 = arith.constant dense<0.000000e+00> : vector<8x8xf32>
    %119 = tpu.matmul %117, %118, %cst_55 {dimension_numbers = #tpu.dot_dimension_numbers<[1], [1], [0], [0], [0, 0, 1, 0], [], []>} : vector<8x32xbf16>, vector<8x32xbf16>, vector<8x8xf32> -> vector<8x8xf32>
    %cst_56 = arith.constant 0.176776692 : f32
    %120 = vector.broadcast %cst_56 : f32 to vector<8x8xf32>
    %121 = arith.mulf %119, %120 : vector<8x8xf32>
    %cst_57 = arith.constant -1.000000e+30 : f32
    %122 = vector.broadcast %cst_57 : f32 to vector<8x8xf32>
    %123 = arith.select %20, %121, %122 : vector<8x8xi1>, vector<8x8xf32>
    %cst_58 = arith.constant dense<0xFF800000> : vector<8xf32>
    %124 = vector.multi_reduction <maximumf>, %123, %cst_58 [1] : vector<8x8xf32> to vector<8xf32>
    %125 = vector.shape_cast %124 : vector<8xf32> to vector<8x1xf32>
    %126 = vector.broadcast %125 : vector<8x1xf32> to vector<8x8xf32>
    %127 = arith.subf %123, %126 : vector<8x8xf32>
    %128 = math.exp %127 : vector<8x8xf32>
    %cst_59 = arith.constant dense<0.000000e+00> : vector<8xf32>
    %129 = vector.multi_reduction <add>, %128, %cst_59 [1] : vector<8x8xf32> to vector<8xf32>
    %130 = vector.shape_cast %129 : vector<8xf32> to vector<8x1xf32>
    %131 = tpu.reciprocal %130 {approx = true} : vector<8x1xf32> -> vector<8x1xf32>
    %132 = vector.broadcast %131 : vector<8x1xf32> to vector<8x8xf32>
    %133 = arith.mulf %128, %132 : vector<8x8xf32>
    %134 = arith.truncf %133 : vector<8x8xf32> to vector<8x8xbf16>
    %135 = arith.truncf %116 : vector<8x32xf32> to vector<8x32xbf16>
    %cst_60 = arith.constant dense<0.000000e+00> : vector<8x32xf32>
    %136 = tpu.matmul %134, %135, %cst_60 {dimension_numbers = #tpu.dot_dimension_numbers<[1], [0], [0], [1], [0, 0, 1, 1], [], []>} : vector<8x8xbf16>, vector<8x32xbf16>, vector<8x32xf32> -> vector<8x32xf32>
    %137 = vector.extract_strided_slice %65 {offsets = [0, 96], sizes = [8, 32], strides = [1, 1]} : vector<16x128xf32> to vector<8x32xf32>
    %138 = vector.extract_strided_slice %66 {offsets = [0, 96], sizes = [8, 32], strides = [1, 1]} : vector<16x128xf32> to vector<8x32xf32>
    %139 = vector.extract_strided_slice %67 {offsets = [0, 96], sizes = [8, 32], strides = [1, 1]} : vector<16x128xf32> to vector<8x32xf32>
    %140 = arith.truncf %137 : vector<8x32xf32> to vector<8x32xbf16>
    %141 = arith.truncf %138 : vector<8x32xf32> to vector<8x32xbf16>
    %cst_61 = arith.constant dense<0.000000e+00> : vector<8x8xf32>
    %142 = tpu.matmul %140, %141, %cst_61 {dimension_numbers = #tpu.dot_dimension_numbers<[1], [1], [0], [0], [0, 0, 1, 0], [], []>} : vector<8x32xbf16>, vector<8x32xbf16>, vector<8x8xf32> -> vector<8x8xf32>
    %cst_62 = arith.constant 0.176776692 : f32
    %143 = vector.broadcast %cst_62 : f32 to vector<8x8xf32>
    %144 = arith.mulf %142, %143 : vector<8x8xf32>
    %cst_63 = arith.constant -1.000000e+30 : f32
    %145 = vector.broadcast %cst_63 : f32 to vector<8x8xf32>
    %146 = arith.select %20, %144, %145 : vector<8x8xi1>, vector<8x8xf32>
    %cst_64 = arith.constant dense<0xFF800000> : vector<8xf32>
    %147 = vector.multi_reduction <maximumf>, %146, %cst_64 [1] : vector<8x8xf32> to vector<8xf32>
    %148 = vector.shape_cast %147 : vector<8xf32> to vector<8x1xf32>
    %149 = vector.broadcast %148 : vector<8x1xf32> to vector<8x8xf32>
    %150 = arith.subf %146, %149 : vector<8x8xf32>
    %151 = math.exp %150 : vector<8x8xf32>
    %cst_65 = arith.constant dense<0.000000e+00> : vector<8xf32>
    %152 = vector.multi_reduction <add>, %151, %cst_65 [1] : vector<8x8xf32> to vector<8xf32>
    %153 = vector.shape_cast %152 : vector<8xf32> to vector<8x1xf32>
    %154 = tpu.reciprocal %153 {approx = true} : vector<8x1xf32> -> vector<8x1xf32>
    %155 = vector.broadcast %154 : vector<8x1xf32> to vector<8x8xf32>
    %156 = arith.mulf %151, %155 : vector<8x8xf32>
    %157 = arith.truncf %156 : vector<8x8xf32> to vector<8x8xbf16>
    %158 = arith.truncf %139 : vector<8x32xf32> to vector<8x32xbf16>
    %cst_66 = arith.constant dense<0.000000e+00> : vector<8x32xf32>
    %159 = tpu.matmul %157, %158, %cst_66 {dimension_numbers = #tpu.dot_dimension_numbers<[1], [0], [0], [1], [0, 0, 1, 1], [], []>} : vector<8x8xbf16>, vector<8x32xbf16>, vector<8x32xf32> -> vector<8x32xf32>
    %160 = tpu.concatenate %90, %113, %136, %159 in 1 : vector<8x32xf32>, vector<8x32xf32>, vector<8x32xf32>, vector<8x32xf32> -> vector<8x128xf32>
    %161 = vector.extract_strided_slice %65 {offsets = [8, 0], sizes = [8, 32], strides = [1, 1]} : vector<16x128xf32> to vector<8x32xf32>
    %162 = vector.extract_strided_slice %66 {offsets = [8, 0], sizes = [8, 32], strides = [1, 1]} : vector<16x128xf32> to vector<8x32xf32>
    %163 = vector.extract_strided_slice %67 {offsets = [8, 0], sizes = [8, 32], strides = [1, 1]} : vector<16x128xf32> to vector<8x32xf32>
    %164 = arith.truncf %161 : vector<8x32xf32> to vector<8x32xbf16>
    %165 = arith.truncf %162 : vector<8x32xf32> to vector<8x32xbf16>
    %cst_67 = arith.constant dense<0.000000e+00> : vector<8x8xf32>
    %166 = tpu.matmul %164, %165, %cst_67 {dimension_numbers = #tpu.dot_dimension_numbers<[1], [1], [0], [0], [0, 0, 1, 0], [], []>} : vector<8x32xbf16>, vector<8x32xbf16>, vector<8x8xf32> -> vector<8x8xf32>
    %cst_68 = arith.constant 0.176776692 : f32
    %167 = vector.broadcast %cst_68 : f32 to vector<8x8xf32>
    %168 = arith.mulf %166, %167 : vector<8x8xf32>
    %cst_69 = arith.constant -1.000000e+30 : f32
    %169 = vector.broadcast %cst_69 : f32 to vector<8x8xf32>
    %170 = arith.select %20, %168, %169 : vector<8x8xi1>, vector<8x8xf32>
    %cst_70 = arith.constant dense<0xFF800000> : vector<8xf32>
    %171 = vector.multi_reduction <maximumf>, %170, %cst_70 [1] : vector<8x8xf32> to vector<8xf32>
    %172 = vector.shape_cast %171 : vector<8xf32> to vector<8x1xf32>
    %173 = vector.broadcast %172 : vector<8x1xf32> to vector<8x8xf32>
    %174 = arith.subf %170, %173 : vector<8x8xf32>
    %175 = math.exp %174 : vector<8x8xf32>
    %cst_71 = arith.constant dense<0.000000e+00> : vector<8xf32>
    %176 = vector.multi_reduction <add>, %175, %cst_71 [1] : vector<8x8xf32> to vector<8xf32>
    %177 = vector.shape_cast %176 : vector<8xf32> to vector<8x1xf32>
    %178 = tpu.reciprocal %177 {approx = true} : vector<8x1xf32> -> vector<8x1xf32>
    %179 = vector.broadcast %178 : vector<8x1xf32> to vector<8x8xf32>
    %180 = arith.mulf %175, %179 : vector<8x8xf32>
    %181 = arith.truncf %180 : vector<8x8xf32> to vector<8x8xbf16>
    %182 = arith.truncf %163 : vector<8x32xf32> to vector<8x32xbf16>
    %cst_72 = arith.constant dense<0.000000e+00> : vector<8x32xf32>
    %183 = tpu.matmul %181, %182, %cst_72 {dimension_numbers = #tpu.dot_dimension_numbers<[1], [0], [0], [1], [0, 0, 1, 1], [], []>} : vector<8x8xbf16>, vector<8x32xbf16>, vector<8x32xf32> -> vector<8x32xf32>
    %184 = vector.extract_strided_slice %65 {offsets = [8, 32], sizes = [8, 32], strides = [1, 1]} : vector<16x128xf32> to vector<8x32xf32>
    %185 = vector.extract_strided_slice %66 {offsets = [8, 32], sizes = [8, 32], strides = [1, 1]} : vector<16x128xf32> to vector<8x32xf32>
    %186 = vector.extract_strided_slice %67 {offsets = [8, 32], sizes = [8, 32], strides = [1, 1]} : vector<16x128xf32> to vector<8x32xf32>
    %187 = arith.truncf %184 : vector<8x32xf32> to vector<8x32xbf16>
    %188 = arith.truncf %185 : vector<8x32xf32> to vector<8x32xbf16>
    %cst_73 = arith.constant dense<0.000000e+00> : vector<8x8xf32>
    %189 = tpu.matmul %187, %188, %cst_73 {dimension_numbers = #tpu.dot_dimension_numbers<[1], [1], [0], [0], [0, 0, 1, 0], [], []>} : vector<8x32xbf16>, vector<8x32xbf16>, vector<8x8xf32> -> vector<8x8xf32>
    %cst_74 = arith.constant 0.176776692 : f32
    %190 = vector.broadcast %cst_74 : f32 to vector<8x8xf32>
    %191 = arith.mulf %189, %190 : vector<8x8xf32>
    %cst_75 = arith.constant -1.000000e+30 : f32
    %192 = vector.broadcast %cst_75 : f32 to vector<8x8xf32>
    %193 = arith.select %20, %191, %192 : vector<8x8xi1>, vector<8x8xf32>
    %cst_76 = arith.constant dense<0xFF800000> : vector<8xf32>
    %194 = vector.multi_reduction <maximumf>, %193, %cst_76 [1] : vector<8x8xf32> to vector<8xf32>
    %195 = vector.shape_cast %194 : vector<8xf32> to vector<8x1xf32>
    %196 = vector.broadcast %195 : vector<8x1xf32> to vector<8x8xf32>
    %197 = arith.subf %193, %196 : vector<8x8xf32>
    %198 = math.exp %197 : vector<8x8xf32>
    %cst_77 = arith.constant dense<0.000000e+00> : vector<8xf32>
    %199 = vector.multi_reduction <add>, %198, %cst_77 [1] : vector<8x8xf32> to vector<8xf32>
    %200 = vector.shape_cast %199 : vector<8xf32> to vector<8x1xf32>
    %201 = tpu.reciprocal %200 {approx = true} : vector<8x1xf32> -> vector<8x1xf32>
    %202 = vector.broadcast %201 : vector<8x1xf32> to vector<8x8xf32>
    %203 = arith.mulf %198, %202 : vector<8x8xf32>
    %204 = arith.truncf %203 : vector<8x8xf32> to vector<8x8xbf16>
    %205 = arith.truncf %186 : vector<8x32xf32> to vector<8x32xbf16>
    %cst_78 = arith.constant dense<0.000000e+00> : vector<8x32xf32>
    %206 = tpu.matmul %204, %205, %cst_78 {dimension_numbers = #tpu.dot_dimension_numbers<[1], [0], [0], [1], [0, 0, 1, 1], [], []>} : vector<8x8xbf16>, vector<8x32xbf16>, vector<8x32xf32> -> vector<8x32xf32>
    %207 = vector.extract_strided_slice %65 {offsets = [8, 64], sizes = [8, 32], strides = [1, 1]} : vector<16x128xf32> to vector<8x32xf32>
    %208 = vector.extract_strided_slice %66 {offsets = [8, 64], sizes = [8, 32], strides = [1, 1]} : vector<16x128xf32> to vector<8x32xf32>
    %209 = vector.extract_strided_slice %67 {offsets = [8, 64], sizes = [8, 32], strides = [1, 1]} : vector<16x128xf32> to vector<8x32xf32>
    %210 = arith.truncf %207 : vector<8x32xf32> to vector<8x32xbf16>
    %211 = arith.truncf %208 : vector<8x32xf32> to vector<8x32xbf16>
    %cst_79 = arith.constant dense<0.000000e+00> : vector<8x8xf32>
    %212 = tpu.matmul %210, %211, %cst_79 {dimension_numbers = #tpu.dot_dimension_numbers<[1], [1], [0], [0], [0, 0, 1, 0], [], []>} : vector<8x32xbf16>, vector<8x32xbf16>, vector<8x8xf32> -> vector<8x8xf32>
    %cst_80 = arith.constant 0.176776692 : f32
    %213 = vector.broadcast %cst_80 : f32 to vector<8x8xf32>
    %214 = arith.mulf %212, %213 : vector<8x8xf32>
    %cst_81 = arith.constant -1.000000e+30 : f32
    %215 = vector.broadcast %cst_81 : f32 to vector<8x8xf32>
    %216 = arith.select %20, %214, %215 : vector<8x8xi1>, vector<8x8xf32>
    %cst_82 = arith.constant dense<0xFF800000> : vector<8xf32>
    %217 = vector.multi_reduction <maximumf>, %216, %cst_82 [1] : vector<8x8xf32> to vector<8xf32>
    %218 = vector.shape_cast %217 : vector<8xf32> to vector<8x1xf32>
    %219 = vector.broadcast %218 : vector<8x1xf32> to vector<8x8xf32>
    %220 = arith.subf %216, %219 : vector<8x8xf32>
    %221 = math.exp %220 : vector<8x8xf32>
    %cst_83 = arith.constant dense<0.000000e+00> : vector<8xf32>
    %222 = vector.multi_reduction <add>, %221, %cst_83 [1] : vector<8x8xf32> to vector<8xf32>
    %223 = vector.shape_cast %222 : vector<8xf32> to vector<8x1xf32>
    %224 = tpu.reciprocal %223 {approx = true} : vector<8x1xf32> -> vector<8x1xf32>
    %225 = vector.broadcast %224 : vector<8x1xf32> to vector<8x8xf32>
    %226 = arith.mulf %221, %225 : vector<8x8xf32>
    %227 = arith.truncf %226 : vector<8x8xf32> to vector<8x8xbf16>
    %228 = arith.truncf %209 : vector<8x32xf32> to vector<8x32xbf16>
    %cst_84 = arith.constant dense<0.000000e+00> : vector<8x32xf32>
    %229 = tpu.matmul %227, %228, %cst_84 {dimension_numbers = #tpu.dot_dimension_numbers<[1], [0], [0], [1], [0, 0, 1, 1], [], []>} : vector<8x8xbf16>, vector<8x32xbf16>, vector<8x32xf32> -> vector<8x32xf32>
    %230 = vector.extract_strided_slice %65 {offsets = [8, 96], sizes = [8, 32], strides = [1, 1]} : vector<16x128xf32> to vector<8x32xf32>
    %231 = vector.extract_strided_slice %66 {offsets = [8, 96], sizes = [8, 32], strides = [1, 1]} : vector<16x128xf32> to vector<8x32xf32>
    %232 = vector.extract_strided_slice %67 {offsets = [8, 96], sizes = [8, 32], strides = [1, 1]} : vector<16x128xf32> to vector<8x32xf32>
    %233 = arith.truncf %230 : vector<8x32xf32> to vector<8x32xbf16>
    %234 = arith.truncf %231 : vector<8x32xf32> to vector<8x32xbf16>
    %cst_85 = arith.constant dense<0.000000e+00> : vector<8x8xf32>
    %235 = tpu.matmul %233, %234, %cst_85 {dimension_numbers = #tpu.dot_dimension_numbers<[1], [1], [0], [0], [0, 0, 1, 0], [], []>} : vector<8x32xbf16>, vector<8x32xbf16>, vector<8x8xf32> -> vector<8x8xf32>
    %cst_86 = arith.constant 0.176776692 : f32
    %236 = vector.broadcast %cst_86 : f32 to vector<8x8xf32>
    %237 = arith.mulf %235, %236 : vector<8x8xf32>
    %cst_87 = arith.constant -1.000000e+30 : f32
    %238 = vector.broadcast %cst_87 : f32 to vector<8x8xf32>
    %239 = arith.select %20, %237, %238 : vector<8x8xi1>, vector<8x8xf32>
    %cst_88 = arith.constant dense<0xFF800000> : vector<8xf32>
    %240 = vector.multi_reduction <maximumf>, %239, %cst_88 [1] : vector<8x8xf32> to vector<8xf32>
    %241 = vector.shape_cast %240 : vector<8xf32> to vector<8x1xf32>
    %242 = vector.broadcast %241 : vector<8x1xf32> to vector<8x8xf32>
    %243 = arith.subf %239, %242 : vector<8x8xf32>
    %244 = math.exp %243 : vector<8x8xf32>
    %cst_89 = arith.constant dense<0.000000e+00> : vector<8xf32>
    %245 = vector.multi_reduction <add>, %244, %cst_89 [1] : vector<8x8xf32> to vector<8xf32>
    %246 = vector.shape_cast %245 : vector<8xf32> to vector<8x1xf32>
    %247 = tpu.reciprocal %246 {approx = true} : vector<8x1xf32> -> vector<8x1xf32>
    %248 = vector.broadcast %247 : vector<8x1xf32> to vector<8x8xf32>
    %249 = arith.mulf %244, %248 : vector<8x8xf32>
    %250 = arith.truncf %249 : vector<8x8xf32> to vector<8x8xbf16>
    %251 = arith.truncf %232 : vector<8x32xf32> to vector<8x32xbf16>
    %cst_90 = arith.constant dense<0.000000e+00> : vector<8x32xf32>
    %252 = tpu.matmul %250, %251, %cst_90 {dimension_numbers = #tpu.dot_dimension_numbers<[1], [0], [0], [1], [0, 0, 1, 1], [], []>} : vector<8x8xbf16>, vector<8x32xbf16>, vector<8x32xf32> -> vector<8x32xf32>
    %253 = tpu.concatenate %183, %206, %229, %252 in 1 : vector<8x32xf32>, vector<8x32xf32>, vector<8x32xf32>, vector<8x32xf32> -> vector<8x128xf32>
    %254 = tpu.concatenate %160, %253 in 0 : vector<8x128xf32>, vector<8x128xf32> -> vector<16x128xf32>
    %c0_91 = arith.constant 0 : index
    %c0_92 = arith.constant 0 : index
    %c0_93 = arith.constant 0 : index
    %255 = vector.load %arg10[%c0_91, %c0_92, %c0_93] : memref<2x128x128xbf16, #tpu.memory_space<vmem>>, vector<1x128x128xbf16>
    %256 = vector.shape_cast %255 : vector<1x128x128xbf16> to vector<128x128xbf16>
    %257 = arith.truncf %254 : vector<16x128xf32> to vector<16x128xbf16>
    %cst_94 = arith.constant dense<0.000000e+00> : vector<16x128xf32>
    %258 = tpu.matmul %257, %256, %cst_94 {dimension_numbers = #tpu.dot_dimension_numbers<[1], [0], [0], [1], [0, 0, 1, 1], [], []>} : vector<16x128xbf16>, vector<128x128xbf16>, vector<16x128xf32> -> vector<16x128xf32>
    %259 = arith.addf %17, %258 : vector<16x128xf32>
    %260 = vector.broadcast %32 : vector<1x128xf32> to vector<16x128xf32>
    %261 = arith.addf %259, %260 : vector<16x128xf32>
    %cst_95 = arith.constant dense<0.000000e+00> : vector<16xf32>
    %262 = vector.multi_reduction <add>, %261, %cst_95 [1] : vector<16x128xf32> to vector<16xf32>
    %263 = vector.shape_cast %262 : vector<16xf32> to vector<16x1xf32>
    %cst_96 = arith.constant 1.280000e+02 : f32
    %264 = vector.broadcast %cst_96 : f32 to vector<16x1xf32>
    %265 = arith.divf %263, %264 : vector<16x1xf32>
    %266 = vector.broadcast %265 : vector<16x1xf32> to vector<16x128xf32>
    %267 = arith.subf %261, %266 : vector<16x128xf32>
    %268 = arith.mulf %267, %267 : vector<16x128xf32>
    %cst_97 = arith.constant dense<0.000000e+00> : vector<16xf32>
    %269 = vector.multi_reduction <add>, %268, %cst_97 [1] : vector<16x128xf32> to vector<16xf32>
    %270 = vector.shape_cast %269 : vector<16xf32> to vector<16x1xf32>
    %cst_98 = arith.constant 1.280000e+02 : f32
    %271 = vector.broadcast %cst_98 : f32 to vector<16x1xf32>
    %272 = arith.divf %270, %271 : vector<16x1xf32>
    %273 = vector.broadcast %265 : vector<16x1xf32> to vector<16x128xf32>
    %274 = arith.subf %261, %273 : vector<16x128xf32>
    %cst_99 = arith.constant 9.99999997E-7 : f32
    %275 = vector.broadcast %cst_99 : f32 to vector<16x1xf32>
    %276 = arith.addf %272, %275 : vector<16x1xf32>
    %277 = math.rsqrt %276 : vector<16x1xf32>
    %278 = vector.broadcast %277 : vector<16x1xf32> to vector<16x128xf32>
    %279 = arith.mulf %274, %278 : vector<16x128xf32>
    %280 = vector.broadcast %26 : vector<1x128xf32> to vector<16x128xf32>
    %281 = arith.mulf %279, %280 : vector<16x128xf32>
    %282 = vector.broadcast %28 : vector<1x128xf32> to vector<16x128xf32>
    %283 = arith.addf %281, %282 : vector<16x128xf32>
    %c0_100 = arith.constant 0 : index
    %c0_101 = arith.constant 0 : index
    %c0_102 = arith.constant 0 : index
    %284 = vector.load %arg14[%c0_100, %c0_101, %c0_102] : memref<2x128x512xbf16, #tpu.memory_space<vmem>>, vector<1x128x512xbf16>
    %285 = vector.shape_cast %284 : vector<1x128x512xbf16> to vector<128x512xbf16>
    %286 = arith.truncf %283 : vector<16x128xf32> to vector<16x128xbf16>
    %cst_103 = arith.constant dense<0.000000e+00> : vector<16x512xf32>
    %287 = tpu.matmul %286, %285, %cst_103 {dimension_numbers = #tpu.dot_dimension_numbers<[1], [0], [0], [1], [0, 0, 1, 1], [], []>} : vector<16x128xbf16>, vector<128x512xbf16>, vector<16x512xf32> -> vector<16x512xf32>
    %288 = vector.broadcast %34 : vector<1x512xf32> to vector<16x512xf32>
    %289 = arith.addf %287, %288 : vector<16x512xf32>
    %cst_104 = arith.constant 5.000000e-01 : f32
    %290 = vector.broadcast %cst_104 : f32 to vector<16x512xf32>
    %291 = arith.mulf %290, %289 : vector<16x512xf32>
    %cst_105 = arith.constant 0.707106769 : f32
    %292 = vector.broadcast %cst_105 : f32 to vector<16x512xf32>
    %293 = arith.mulf %289, %292 : vector<16x512xf32>
    %cst_106 = arith.constant 0.000000e+00 : f32
    %294 = vector.broadcast %cst_106 : f32 to vector<16x512xf32>
    %295 = arith.cmpf oge, %293, %294 : vector<16x512xf32>
    %cst_107 = arith.constant 1.000000e+00 : f32
    %cst_108 = arith.constant -1.000000e+00 : f32
    %296 = vector.broadcast %cst_107 : f32 to vector<16x512xf32>
    %297 = vector.broadcast %cst_108 : f32 to vector<16x512xf32>
    %298 = arith.select %295, %296, %297 : vector<16x512xi1>, vector<16x512xf32>
    %299 = math.absf %293 : vector<16x512xf32>
    %cst_109 = arith.constant 0.327591091 : f32
    %300 = vector.broadcast %cst_109 : f32 to vector<16x512xf32>
    %301 = arith.mulf %300, %299 : vector<16x512xf32>
    %cst_110 = arith.constant 1.000000e+00 : f32
    %302 = vector.broadcast %cst_110 : f32 to vector<16x512xf32>
    %303 = arith.addf %302, %301 : vector<16x512xf32>
    %cst_111 = arith.constant 1.000000e+00 : f32
    %304 = vector.broadcast %cst_111 : f32 to vector<16x512xf32>
    %305 = arith.divf %304, %303 : vector<16x512xf32>
    %cst_112 = arith.constant 1.06140542 : f32
    %306 = vector.broadcast %cst_112 : f32 to vector<16x512xf32>
    %307 = arith.mulf %306, %305 : vector<16x512xf32>
    %cst_113 = arith.constant -1.45315206 : f32
    %308 = vector.broadcast %cst_113 : f32 to vector<16x512xf32>
    %309 = arith.addf %307, %308 : vector<16x512xf32>
    %310 = arith.mulf %309, %305 : vector<16x512xf32>
    %cst_114 = arith.constant 1.42141378 : f32
    %311 = vector.broadcast %cst_114 : f32 to vector<16x512xf32>
    %312 = arith.addf %310, %311 : vector<16x512xf32>
    %313 = arith.mulf %312, %305 : vector<16x512xf32>
    %cst_115 = arith.constant -0.284496725 : f32
    %314 = vector.broadcast %cst_115 : f32 to vector<16x512xf32>
    %315 = arith.addf %313, %314 : vector<16x512xf32>
    %316 = arith.mulf %315, %305 : vector<16x512xf32>
    %cst_116 = arith.constant 0.254829586 : f32
    %317 = vector.broadcast %cst_116 : f32 to vector<16x512xf32>
    %318 = arith.addf %316, %317 : vector<16x512xf32>
    %319 = arith.mulf %318, %305 : vector<16x512xf32>
    %cst_117 = arith.constant 0.000000e+00 : f32
    %320 = vector.broadcast %cst_117 : f32 to vector<16x512xf32>
    %321 = arith.subf %320, %299 : vector<16x512xf32>
    %322 = arith.mulf %321, %299 : vector<16x512xf32>
    %323 = math.exp %322 : vector<16x512xf32>
    %324 = arith.mulf %319, %323 : vector<16x512xf32>
    %cst_118 = arith.constant 1.000000e+00 : f32
    %325 = vector.broadcast %cst_118 : f32 to vector<16x512xf32>
    %326 = arith.subf %325, %324 : vector<16x512xf32>
    %327 = arith.mulf %298, %326 : vector<16x512xf32>
    %cst_119 = arith.constant 1.000000e+00 : f32
    %328 = vector.broadcast %cst_119 : f32 to vector<16x512xf32>
    %329 = arith.addf %328, %327 : vector<16x512xf32>
    %330 = arith.mulf %291, %329 : vector<16x512xf32>
    %c0_120 = arith.constant 0 : index
    %c0_121 = arith.constant 0 : index
    %c0_122 = arith.constant 0 : index
    %331 = vector.load %arg16[%c0_120, %c0_121, %c0_122] : memref<2x512x128xbf16, #tpu.memory_space<vmem>>, vector<1x512x128xbf16>
    %332 = vector.shape_cast %331 : vector<1x512x128xbf16> to vector<512x128xbf16>
    %333 = arith.truncf %330 : vector<16x512xf32> to vector<16x512xbf16>
    %cst_123 = arith.constant dense<0.000000e+00> : vector<16x128xf32>
    %334 = tpu.matmul %333, %332, %cst_123 {dimension_numbers = #tpu.dot_dimension_numbers<[1], [0], [0], [1], [0, 0, 1, 1], [], []>} : vector<16x512xbf16>, vector<512x128xbf16>, vector<16x128xf32> -> vector<16x128xf32>
    %335 = arith.addf %261, %334 : vector<16x128xf32>
    %336 = vector.broadcast %36 : vector<1x128xf32> to vector<16x128xf32>
    %337 = arith.addf %335, %336 : vector<16x128xf32>
    %c1 = arith.constant 1 : index
    %c0_124 = arith.constant 0 : index
    %c0_125 = arith.constant 0 : index
    %338 = vector.load %arg6[%c1, %c0_124, %c0_125] : memref<2x1x128xf32, #tpu.memory_space<vmem>>, vector<1x1x128xf32>
    %339 = vector.shape_cast %338 : vector<1x1x128xf32> to vector<1x128xf32>
    %c1_126 = arith.constant 1 : index
    %c0_127 = arith.constant 0 : index
    %c0_128 = arith.constant 0 : index
    %340 = vector.load %arg7[%c1_126, %c0_127, %c0_128] : memref<2x1x128xf32, #tpu.memory_space<vmem>>, vector<1x1x128xf32>
    %341 = vector.shape_cast %340 : vector<1x1x128xf32> to vector<1x128xf32>
    %c1_129 = arith.constant 1 : index
    %c0_130 = arith.constant 0 : index
    %c0_131 = arith.constant 0 : index
    %342 = vector.load %arg12[%c1_129, %c0_130, %c0_131] : memref<2x1x128xf32, #tpu.memory_space<vmem>>, vector<1x1x128xf32>
    %343 = vector.shape_cast %342 : vector<1x1x128xf32> to vector<1x128xf32>
    %c1_132 = arith.constant 1 : index
    %c0_133 = arith.constant 0 : index
    %c0_134 = arith.constant 0 : index
    %344 = vector.load %arg13[%c1_132, %c0_133, %c0_134] : memref<2x1x128xf32, #tpu.memory_space<vmem>>, vector<1x1x128xf32>
    %345 = vector.shape_cast %344 : vector<1x1x128xf32> to vector<1x128xf32>
    %c1_135 = arith.constant 1 : index
    %c0_136 = arith.constant 0 : index
    %c0_137 = arith.constant 0 : index
    %346 = vector.load %arg9[%c1_135, %c0_136, %c0_137] : memref<2x1x384xf32, #tpu.memory_space<vmem>>, vector<1x1x384xf32>
    %347 = vector.shape_cast %346 : vector<1x1x384xf32> to vector<1x384xf32>
    %c1_138 = arith.constant 1 : index
    %c0_139 = arith.constant 0 : index
    %c0_140 = arith.constant 0 : index
    %348 = vector.load %arg11[%c1_138, %c0_139, %c0_140] : memref<2x1x128xf32, #tpu.memory_space<vmem>>, vector<1x1x128xf32>
    %349 = vector.shape_cast %348 : vector<1x1x128xf32> to vector<1x128xf32>
    %c1_141 = arith.constant 1 : index
    %c0_142 = arith.constant 0 : index
    %c0_143 = arith.constant 0 : index
    %350 = vector.load %arg15[%c1_141, %c0_142, %c0_143] : memref<2x1x512xf32, #tpu.memory_space<vmem>>, vector<1x1x512xf32>
    %351 = vector.shape_cast %350 : vector<1x1x512xf32> to vector<1x512xf32>
    %c1_144 = arith.constant 1 : index
    %c0_145 = arith.constant 0 : index
    %c0_146 = arith.constant 0 : index
    %352 = vector.load %arg17[%c1_144, %c0_145, %c0_146] : memref<2x1x128xf32, #tpu.memory_space<vmem>>, vector<1x1x128xf32>
    %353 = vector.shape_cast %352 : vector<1x1x128xf32> to vector<1x128xf32>
    %cst_147 = arith.constant dense<0.000000e+00> : vector<16xf32>
    %354 = vector.multi_reduction <add>, %337, %cst_147 [1] : vector<16x128xf32> to vector<16xf32>
    %355 = vector.shape_cast %354 : vector<16xf32> to vector<16x1xf32>
    %cst_148 = arith.constant 1.280000e+02 : f32
    %356 = vector.broadcast %cst_148 : f32 to vector<16x1xf32>
    %357 = arith.divf %355, %356 : vector<16x1xf32>
    %358 = vector.broadcast %357 : vector<16x1xf32> to vector<16x128xf32>
    %359 = arith.subf %337, %358 : vector<16x128xf32>
    %360 = arith.mulf %359, %359 : vector<16x128xf32>
    %cst_149 = arith.constant dense<0.000000e+00> : vector<16xf32>
    %361 = vector.multi_reduction <add>, %360, %cst_149 [1] : vector<16x128xf32> to vector<16xf32>
    %362 = vector.shape_cast %361 : vector<16xf32> to vector<16x1xf32>
    %cst_150 = arith.constant 1.280000e+02 : f32
    %363 = vector.broadcast %cst_150 : f32 to vector<16x1xf32>
    %364 = arith.divf %362, %363 : vector<16x1xf32>
    %365 = vector.broadcast %357 : vector<16x1xf32> to vector<16x128xf32>
    %366 = arith.subf %337, %365 : vector<16x128xf32>
    %cst_151 = arith.constant 9.99999997E-7 : f32
    %367 = vector.broadcast %cst_151 : f32 to vector<16x1xf32>
    %368 = arith.addf %364, %367 : vector<16x1xf32>
    %369 = math.rsqrt %368 : vector<16x1xf32>
    %370 = vector.broadcast %369 : vector<16x1xf32> to vector<16x128xf32>
    %371 = arith.mulf %366, %370 : vector<16x128xf32>
    %372 = vector.broadcast %339 : vector<1x128xf32> to vector<16x128xf32>
    %373 = arith.mulf %371, %372 : vector<16x128xf32>
    %374 = vector.broadcast %341 : vector<1x128xf32> to vector<16x128xf32>
    %375 = arith.addf %373, %374 : vector<16x128xf32>
    %c1_152 = arith.constant 1 : index
    %c0_153 = arith.constant 0 : index
    %c0_154 = arith.constant 0 : index
    %376 = vector.load %arg8[%c1_152, %c0_153, %c0_154] : memref<2x128x384xbf16, #tpu.memory_space<vmem>>, vector<1x128x384xbf16>
    %377 = vector.shape_cast %376 : vector<1x128x384xbf16> to vector<128x384xbf16>
    %378 = arith.truncf %375 : vector<16x128xf32> to vector<16x128xbf16>
    %cst_155 = arith.constant dense<0.000000e+00> : vector<16x384xf32>
    %379 = tpu.matmul %378, %377, %cst_155 {dimension_numbers = #tpu.dot_dimension_numbers<[1], [0], [0], [1], [0, 0, 1, 1], [], []>} : vector<16x128xbf16>, vector<128x384xbf16>, vector<16x384xf32> -> vector<16x384xf32>
    %380 = vector.broadcast %347 : vector<1x384xf32> to vector<16x384xf32>
    %381 = arith.addf %379, %380 : vector<16x384xf32>
    %382 = vector.extract_strided_slice %381 {offsets = [0, 0], sizes = [16, 128], strides = [1, 1]} : vector<16x384xf32> to vector<16x128xf32>
    %383 = vector.extract_strided_slice %381 {offsets = [0, 128], sizes = [16, 128], strides = [1, 1]} : vector<16x384xf32> to vector<16x128xf32>
    %384 = vector.extract_strided_slice %381 {offsets = [0, 256], sizes = [16, 128], strides = [1, 1]} : vector<16x384xf32> to vector<16x128xf32>
    %385 = vector.extract_strided_slice %382 {offsets = [0, 0], sizes = [8, 32], strides = [1, 1]} : vector<16x128xf32> to vector<8x32xf32>
    %386 = vector.extract_strided_slice %383 {offsets = [0, 0], sizes = [8, 32], strides = [1, 1]} : vector<16x128xf32> to vector<8x32xf32>
    %387 = vector.extract_strided_slice %384 {offsets = [0, 0], sizes = [8, 32], strides = [1, 1]} : vector<16x128xf32> to vector<8x32xf32>
    %388 = arith.truncf %385 : vector<8x32xf32> to vector<8x32xbf16>
    %389 = arith.truncf %386 : vector<8x32xf32> to vector<8x32xbf16>
    %cst_156 = arith.constant dense<0.000000e+00> : vector<8x8xf32>
    %390 = tpu.matmul %388, %389, %cst_156 {dimension_numbers = #tpu.dot_dimension_numbers<[1], [1], [0], [0], [0, 0, 1, 0], [], []>} : vector<8x32xbf16>, vector<8x32xbf16>, vector<8x8xf32> -> vector<8x8xf32>
    %cst_157 = arith.constant 0.176776692 : f32
    %391 = vector.broadcast %cst_157 : f32 to vector<8x8xf32>
    %392 = arith.mulf %390, %391 : vector<8x8xf32>
    %cst_158 = arith.constant -1.000000e+30 : f32
    %393 = vector.broadcast %cst_158 : f32 to vector<8x8xf32>
    %394 = arith.select %20, %392, %393 : vector<8x8xi1>, vector<8x8xf32>
    %cst_159 = arith.constant dense<0xFF800000> : vector<8xf32>
    %395 = vector.multi_reduction <maximumf>, %394, %cst_159 [1] : vector<8x8xf32> to vector<8xf32>
    %396 = vector.shape_cast %395 : vector<8xf32> to vector<8x1xf32>
    %397 = vector.broadcast %396 : vector<8x1xf32> to vector<8x8xf32>
    %398 = arith.subf %394, %397 : vector<8x8xf32>
    %399 = math.exp %398 : vector<8x8xf32>
    %cst_160 = arith.constant dense<0.000000e+00> : vector<8xf32>
    %400 = vector.multi_reduction <add>, %399, %cst_160 [1] : vector<8x8xf32> to vector<8xf32>
    %401 = vector.shape_cast %400 : vector<8xf32> to vector<8x1xf32>
    %402 = tpu.reciprocal %401 {approx = true} : vector<8x1xf32> -> vector<8x1xf32>
    %403 = vector.broadcast %402 : vector<8x1xf32> to vector<8x8xf32>
    %404 = arith.mulf %399, %403 : vector<8x8xf32>
    %405 = arith.truncf %404 : vector<8x8xf32> to vector<8x8xbf16>
    %406 = arith.truncf %387 : vector<8x32xf32> to vector<8x32xbf16>
    %cst_161 = arith.constant dense<0.000000e+00> : vector<8x32xf32>
    %407 = tpu.matmul %405, %406, %cst_161 {dimension_numbers = #tpu.dot_dimension_numbers<[1], [0], [0], [1], [0, 0, 1, 1], [], []>} : vector<8x8xbf16>, vector<8x32xbf16>, vector<8x32xf32> -> vector<8x32xf32>
    %408 = vector.extract_strided_slice %382 {offsets = [0, 32], sizes = [8, 32], strides = [1, 1]} : vector<16x128xf32> to vector<8x32xf32>
    %409 = vector.extract_strided_slice %383 {offsets = [0, 32], sizes = [8, 32], strides = [1, 1]} : vector<16x128xf32> to vector<8x32xf32>
    %410 = vector.extract_strided_slice %384 {offsets = [0, 32], sizes = [8, 32], strides = [1, 1]} : vector<16x128xf32> to vector<8x32xf32>
    %411 = arith.truncf %408 : vector<8x32xf32> to vector<8x32xbf16>
    %412 = arith.truncf %409 : vector<8x32xf32> to vector<8x32xbf16>
    %cst_162 = arith.constant dense<0.000000e+00> : vector<8x8xf32>
    %413 = tpu.matmul %411, %412, %cst_162 {dimension_numbers = #tpu.dot_dimension_numbers<[1], [1], [0], [0], [0, 0, 1, 0], [], []>} : vector<8x32xbf16>, vector<8x32xbf16>, vector<8x8xf32> -> vector<8x8xf32>
    %cst_163 = arith.constant 0.176776692 : f32
    %414 = vector.broadcast %cst_163 : f32 to vector<8x8xf32>
    %415 = arith.mulf %413, %414 : vector<8x8xf32>
    %cst_164 = arith.constant -1.000000e+30 : f32
    %416 = vector.broadcast %cst_164 : f32 to vector<8x8xf32>
    %417 = arith.select %20, %415, %416 : vector<8x8xi1>, vector<8x8xf32>
    %cst_165 = arith.constant dense<0xFF800000> : vector<8xf32>
    %418 = vector.multi_reduction <maximumf>, %417, %cst_165 [1] : vector<8x8xf32> to vector<8xf32>
    %419 = vector.shape_cast %418 : vector<8xf32> to vector<8x1xf32>
    %420 = vector.broadcast %419 : vector<8x1xf32> to vector<8x8xf32>
    %421 = arith.subf %417, %420 : vector<8x8xf32>
    %422 = math.exp %421 : vector<8x8xf32>
    %cst_166 = arith.constant dense<0.000000e+00> : vector<8xf32>
    %423 = vector.multi_reduction <add>, %422, %cst_166 [1] : vector<8x8xf32> to vector<8xf32>
    %424 = vector.shape_cast %423 : vector<8xf32> to vector<8x1xf32>
    %425 = tpu.reciprocal %424 {approx = true} : vector<8x1xf32> -> vector<8x1xf32>
    %426 = vector.broadcast %425 : vector<8x1xf32> to vector<8x8xf32>
    %427 = arith.mulf %422, %426 : vector<8x8xf32>
    %428 = arith.truncf %427 : vector<8x8xf32> to vector<8x8xbf16>
    %429 = arith.truncf %410 : vector<8x32xf32> to vector<8x32xbf16>
    %cst_167 = arith.constant dense<0.000000e+00> : vector<8x32xf32>
    %430 = tpu.matmul %428, %429, %cst_167 {dimension_numbers = #tpu.dot_dimension_numbers<[1], [0], [0], [1], [0, 0, 1, 1], [], []>} : vector<8x8xbf16>, vector<8x32xbf16>, vector<8x32xf32> -> vector<8x32xf32>
    %431 = vector.extract_strided_slice %382 {offsets = [0, 64], sizes = [8, 32], strides = [1, 1]} : vector<16x128xf32> to vector<8x32xf32>
    %432 = vector.extract_strided_slice %383 {offsets = [0, 64], sizes = [8, 32], strides = [1, 1]} : vector<16x128xf32> to vector<8x32xf32>
    %433 = vector.extract_strided_slice %384 {offsets = [0, 64], sizes = [8, 32], strides = [1, 1]} : vector<16x128xf32> to vector<8x32xf32>
    %434 = arith.truncf %431 : vector<8x32xf32> to vector<8x32xbf16>
    %435 = arith.truncf %432 : vector<8x32xf32> to vector<8x32xbf16>
    %cst_168 = arith.constant dense<0.000000e+00> : vector<8x8xf32>
    %436 = tpu.matmul %434, %435, %cst_168 {dimension_numbers = #tpu.dot_dimension_numbers<[1], [1], [0], [0], [0, 0, 1, 0], [], []>} : vector<8x32xbf16>, vector<8x32xbf16>, vector<8x8xf32> -> vector<8x8xf32>
    %cst_169 = arith.constant 0.176776692 : f32
    %437 = vector.broadcast %cst_169 : f32 to vector<8x8xf32>
    %438 = arith.mulf %436, %437 : vector<8x8xf32>
    %cst_170 = arith.constant -1.000000e+30 : f32
    %439 = vector.broadcast %cst_170 : f32 to vector<8x8xf32>
    %440 = arith.select %20, %438, %439 : vector<8x8xi1>, vector<8x8xf32>
    %cst_171 = arith.constant dense<0xFF800000> : vector<8xf32>
    %441 = vector.multi_reduction <maximumf>, %440, %cst_171 [1] : vector<8x8xf32> to vector<8xf32>
    %442 = vector.shape_cast %441 : vector<8xf32> to vector<8x1xf32>
    %443 = vector.broadcast %442 : vector<8x1xf32> to vector<8x8xf32>
    %444 = arith.subf %440, %443 : vector<8x8xf32>
    %445 = math.exp %444 : vector<8x8xf32>
    %cst_172 = arith.constant dense<0.000000e+00> : vector<8xf32>
    %446 = vector.multi_reduction <add>, %445, %cst_172 [1] : vector<8x8xf32> to vector<8xf32>
    %447 = vector.shape_cast %446 : vector<8xf32> to vector<8x1xf32>
    %448 = tpu.reciprocal %447 {approx = true} : vector<8x1xf32> -> vector<8x1xf32>
    %449 = vector.broadcast %448 : vector<8x1xf32> to vector<8x8xf32>
    %450 = arith.mulf %445, %449 : vector<8x8xf32>
    %451 = arith.truncf %450 : vector<8x8xf32> to vector<8x8xbf16>
    %452 = arith.truncf %433 : vector<8x32xf32> to vector<8x32xbf16>
    %cst_173 = arith.constant dense<0.000000e+00> : vector<8x32xf32>
    %453 = tpu.matmul %451, %452, %cst_173 {dimension_numbers = #tpu.dot_dimension_numbers<[1], [0], [0], [1], [0, 0, 1, 1], [], []>} : vector<8x8xbf16>, vector<8x32xbf16>, vector<8x32xf32> -> vector<8x32xf32>
    %454 = vector.extract_strided_slice %382 {offsets = [0, 96], sizes = [8, 32], strides = [1, 1]} : vector<16x128xf32> to vector<8x32xf32>
    %455 = vector.extract_strided_slice %383 {offsets = [0, 96], sizes = [8, 32], strides = [1, 1]} : vector<16x128xf32> to vector<8x32xf32>
    %456 = vector.extract_strided_slice %384 {offsets = [0, 96], sizes = [8, 32], strides = [1, 1]} : vector<16x128xf32> to vector<8x32xf32>
    %457 = arith.truncf %454 : vector<8x32xf32> to vector<8x32xbf16>
    %458 = arith.truncf %455 : vector<8x32xf32> to vector<8x32xbf16>
    %cst_174 = arith.constant dense<0.000000e+00> : vector<8x8xf32>
    %459 = tpu.matmul %457, %458, %cst_174 {dimension_numbers = #tpu.dot_dimension_numbers<[1], [1], [0], [0], [0, 0, 1, 0], [], []>} : vector<8x32xbf16>, vector<8x32xbf16>, vector<8x8xf32> -> vector<8x8xf32>
    %cst_175 = arith.constant 0.176776692 : f32
    %460 = vector.broadcast %cst_175 : f32 to vector<8x8xf32>
    %461 = arith.mulf %459, %460 : vector<8x8xf32>
    %cst_176 = arith.constant -1.000000e+30 : f32
    %462 = vector.broadcast %cst_176 : f32 to vector<8x8xf32>
    %463 = arith.select %20, %461, %462 : vector<8x8xi1>, vector<8x8xf32>
    %cst_177 = arith.constant dense<0xFF800000> : vector<8xf32>
    %464 = vector.multi_reduction <maximumf>, %463, %cst_177 [1] : vector<8x8xf32> to vector<8xf32>
    %465 = vector.shape_cast %464 : vector<8xf32> to vector<8x1xf32>
    %466 = vector.broadcast %465 : vector<8x1xf32> to vector<8x8xf32>
    %467 = arith.subf %463, %466 : vector<8x8xf32>
    %468 = math.exp %467 : vector<8x8xf32>
    %cst_178 = arith.constant dense<0.000000e+00> : vector<8xf32>
    %469 = vector.multi_reduction <add>, %468, %cst_178 [1] : vector<8x8xf32> to vector<8xf32>
    %470 = vector.shape_cast %469 : vector<8xf32> to vector<8x1xf32>
    %471 = tpu.reciprocal %470 {approx = true} : vector<8x1xf32> -> vector<8x1xf32>
    %472 = vector.broadcast %471 : vector<8x1xf32> to vector<8x8xf32>
    %473 = arith.mulf %468, %472 : vector<8x8xf32>
    %474 = arith.truncf %473 : vector<8x8xf32> to vector<8x8xbf16>
    %475 = arith.truncf %456 : vector<8x32xf32> to vector<8x32xbf16>
    %cst_179 = arith.constant dense<0.000000e+00> : vector<8x32xf32>
    %476 = tpu.matmul %474, %475, %cst_179 {dimension_numbers = #tpu.dot_dimension_numbers<[1], [0], [0], [1], [0, 0, 1, 1], [], []>} : vector<8x8xbf16>, vector<8x32xbf16>, vector<8x32xf32> -> vector<8x32xf32>
    %477 = tpu.concatenate %407, %430, %453, %476 in 1 : vector<8x32xf32>, vector<8x32xf32>, vector<8x32xf32>, vector<8x32xf32> -> vector<8x128xf32>
    %478 = vector.extract_strided_slice %382 {offsets = [8, 0], sizes = [8, 32], strides = [1, 1]} : vector<16x128xf32> to vector<8x32xf32>
    %479 = vector.extract_strided_slice %383 {offsets = [8, 0], sizes = [8, 32], strides = [1, 1]} : vector<16x128xf32> to vector<8x32xf32>
    %480 = vector.extract_strided_slice %384 {offsets = [8, 0], sizes = [8, 32], strides = [1, 1]} : vector<16x128xf32> to vector<8x32xf32>
    %481 = arith.truncf %478 : vector<8x32xf32> to vector<8x32xbf16>
    %482 = arith.truncf %479 : vector<8x32xf32> to vector<8x32xbf16>
    %cst_180 = arith.constant dense<0.000000e+00> : vector<8x8xf32>
    %483 = tpu.matmul %481, %482, %cst_180 {dimension_numbers = #tpu.dot_dimension_numbers<[1], [1], [0], [0], [0, 0, 1, 0], [], []>} : vector<8x32xbf16>, vector<8x32xbf16>, vector<8x8xf32> -> vector<8x8xf32>
    %cst_181 = arith.constant 0.176776692 : f32
    %484 = vector.broadcast %cst_181 : f32 to vector<8x8xf32>
    %485 = arith.mulf %483, %484 : vector<8x8xf32>
    %cst_182 = arith.constant -1.000000e+30 : f32
    %486 = vector.broadcast %cst_182 : f32 to vector<8x8xf32>
    %487 = arith.select %20, %485, %486 : vector<8x8xi1>, vector<8x8xf32>
    %cst_183 = arith.constant dense<0xFF800000> : vector<8xf32>
    %488 = vector.multi_reduction <maximumf>, %487, %cst_183 [1] : vector<8x8xf32> to vector<8xf32>
    %489 = vector.shape_cast %488 : vector<8xf32> to vector<8x1xf32>
    %490 = vector.broadcast %489 : vector<8x1xf32> to vector<8x8xf32>
    %491 = arith.subf %487, %490 : vector<8x8xf32>
    %492 = math.exp %491 : vector<8x8xf32>
    %cst_184 = arith.constant dense<0.000000e+00> : vector<8xf32>
    %493 = vector.multi_reduction <add>, %492, %cst_184 [1] : vector<8x8xf32> to vector<8xf32>
    %494 = vector.shape_cast %493 : vector<8xf32> to vector<8x1xf32>
    %495 = tpu.reciprocal %494 {approx = true} : vector<8x1xf32> -> vector<8x1xf32>
    %496 = vector.broadcast %495 : vector<8x1xf32> to vector<8x8xf32>
    %497 = arith.mulf %492, %496 : vector<8x8xf32>
    %498 = arith.truncf %497 : vector<8x8xf32> to vector<8x8xbf16>
    %499 = arith.truncf %480 : vector<8x32xf32> to vector<8x32xbf16>
    %cst_185 = arith.constant dense<0.000000e+00> : vector<8x32xf32>
    %500 = tpu.matmul %498, %499, %cst_185 {dimension_numbers = #tpu.dot_dimension_numbers<[1], [0], [0], [1], [0, 0, 1, 1], [], []>} : vector<8x8xbf16>, vector<8x32xbf16>, vector<8x32xf32> -> vector<8x32xf32>
    %501 = vector.extract_strided_slice %382 {offsets = [8, 32], sizes = [8, 32], strides = [1, 1]} : vector<16x128xf32> to vector<8x32xf32>
    %502 = vector.extract_strided_slice %383 {offsets = [8, 32], sizes = [8, 32], strides = [1, 1]} : vector<16x128xf32> to vector<8x32xf32>
    %503 = vector.extract_strided_slice %384 {offsets = [8, 32], sizes = [8, 32], strides = [1, 1]} : vector<16x128xf32> to vector<8x32xf32>
    %504 = arith.truncf %501 : vector<8x32xf32> to vector<8x32xbf16>
    %505 = arith.truncf %502 : vector<8x32xf32> to vector<8x32xbf16>
    %cst_186 = arith.constant dense<0.000000e+00> : vector<8x8xf32>
    %506 = tpu.matmul %504, %505, %cst_186 {dimension_numbers = #tpu.dot_dimension_numbers<[1], [1], [0], [0], [0, 0, 1, 0], [], []>} : vector<8x32xbf16>, vector<8x32xbf16>, vector<8x8xf32> -> vector<8x8xf32>
    %cst_187 = arith.constant 0.176776692 : f32
    %507 = vector.broadcast %cst_187 : f32 to vector<8x8xf32>
    %508 = arith.mulf %506, %507 : vector<8x8xf32>
    %cst_188 = arith.constant -1.000000e+30 : f32
    %509 = vector.broadcast %cst_188 : f32 to vector<8x8xf32>
    %510 = arith.select %20, %508, %509 : vector<8x8xi1>, vector<8x8xf32>
    %cst_189 = arith.constant dense<0xFF800000> : vector<8xf32>
    %511 = vector.multi_reduction <maximumf>, %510, %cst_189 [1] : vector<8x8xf32> to vector<8xf32>
    %512 = vector.shape_cast %511 : vector<8xf32> to vector<8x1xf32>
    %513 = vector.broadcast %512 : vector<8x1xf32> to vector<8x8xf32>
    %514 = arith.subf %510, %513 : vector<8x8xf32>
    %515 = math.exp %514 : vector<8x8xf32>
    %cst_190 = arith.constant dense<0.000000e+00> : vector<8xf32>
    %516 = vector.multi_reduction <add>, %515, %cst_190 [1] : vector<8x8xf32> to vector<8xf32>
    %517 = vector.shape_cast %516 : vector<8xf32> to vector<8x1xf32>
    %518 = tpu.reciprocal %517 {approx = true} : vector<8x1xf32> -> vector<8x1xf32>
    %519 = vector.broadcast %518 : vector<8x1xf32> to vector<8x8xf32>
    %520 = arith.mulf %515, %519 : vector<8x8xf32>
    %521 = arith.truncf %520 : vector<8x8xf32> to vector<8x8xbf16>
    %522 = arith.truncf %503 : vector<8x32xf32> to vector<8x32xbf16>
    %cst_191 = arith.constant dense<0.000000e+00> : vector<8x32xf32>
    %523 = tpu.matmul %521, %522, %cst_191 {dimension_numbers = #tpu.dot_dimension_numbers<[1], [0], [0], [1], [0, 0, 1, 1], [], []>} : vector<8x8xbf16>, vector<8x32xbf16>, vector<8x32xf32> -> vector<8x32xf32>
    %524 = vector.extract_strided_slice %382 {offsets = [8, 64], sizes = [8, 32], strides = [1, 1]} : vector<16x128xf32> to vector<8x32xf32>
    %525 = vector.extract_strided_slice %383 {offsets = [8, 64], sizes = [8, 32], strides = [1, 1]} : vector<16x128xf32> to vector<8x32xf32>
    %526 = vector.extract_strided_slice %384 {offsets = [8, 64], sizes = [8, 32], strides = [1, 1]} : vector<16x128xf32> to vector<8x32xf32>
    %527 = arith.truncf %524 : vector<8x32xf32> to vector<8x32xbf16>
    %528 = arith.truncf %525 : vector<8x32xf32> to vector<8x32xbf16>
    %cst_192 = arith.constant dense<0.000000e+00> : vector<8x8xf32>
    %529 = tpu.matmul %527, %528, %cst_192 {dimension_numbers = #tpu.dot_dimension_numbers<[1], [1], [0], [0], [0, 0, 1, 0], [], []>} : vector<8x32xbf16>, vector<8x32xbf16>, vector<8x8xf32> -> vector<8x8xf32>
    %cst_193 = arith.constant 0.176776692 : f32
    %530 = vector.broadcast %cst_193 : f32 to vector<8x8xf32>
    %531 = arith.mulf %529, %530 : vector<8x8xf32>
    %cst_194 = arith.constant -1.000000e+30 : f32
    %532 = vector.broadcast %cst_194 : f32 to vector<8x8xf32>
    %533 = arith.select %20, %531, %532 : vector<8x8xi1>, vector<8x8xf32>
    %cst_195 = arith.constant dense<0xFF800000> : vector<8xf32>
    %534 = vector.multi_reduction <maximumf>, %533, %cst_195 [1] : vector<8x8xf32> to vector<8xf32>
    %535 = vector.shape_cast %534 : vector<8xf32> to vector<8x1xf32>
    %536 = vector.broadcast %535 : vector<8x1xf32> to vector<8x8xf32>
    %537 = arith.subf %533, %536 : vector<8x8xf32>
    %538 = math.exp %537 : vector<8x8xf32>
    %cst_196 = arith.constant dense<0.000000e+00> : vector<8xf32>
    %539 = vector.multi_reduction <add>, %538, %cst_196 [1] : vector<8x8xf32> to vector<8xf32>
    %540 = vector.shape_cast %539 : vector<8xf32> to vector<8x1xf32>
    %541 = tpu.reciprocal %540 {approx = true} : vector<8x1xf32> -> vector<8x1xf32>
    %542 = vector.broadcast %541 : vector<8x1xf32> to vector<8x8xf32>
    %543 = arith.mulf %538, %542 : vector<8x8xf32>
    %544 = arith.truncf %543 : vector<8x8xf32> to vector<8x8xbf16>
    %545 = arith.truncf %526 : vector<8x32xf32> to vector<8x32xbf16>
    %cst_197 = arith.constant dense<0.000000e+00> : vector<8x32xf32>
    %546 = tpu.matmul %544, %545, %cst_197 {dimension_numbers = #tpu.dot_dimension_numbers<[1], [0], [0], [1], [0, 0, 1, 1], [], []>} : vector<8x8xbf16>, vector<8x32xbf16>, vector<8x32xf32> -> vector<8x32xf32>
    %547 = vector.extract_strided_slice %382 {offsets = [8, 96], sizes = [8, 32], strides = [1, 1]} : vector<16x128xf32> to vector<8x32xf32>
    %548 = vector.extract_strided_slice %383 {offsets = [8, 96], sizes = [8, 32], strides = [1, 1]} : vector<16x128xf32> to vector<8x32xf32>
    %549 = vector.extract_strided_slice %384 {offsets = [8, 96], sizes = [8, 32], strides = [1, 1]} : vector<16x128xf32> to vector<8x32xf32>
    %550 = arith.truncf %547 : vector<8x32xf32> to vector<8x32xbf16>
    %551 = arith.truncf %548 : vector<8x32xf32> to vector<8x32xbf16>
    %cst_198 = arith.constant dense<0.000000e+00> : vector<8x8xf32>
    %552 = tpu.matmul %550, %551, %cst_198 {dimension_numbers = #tpu.dot_dimension_numbers<[1], [1], [0], [0], [0, 0, 1, 0], [], []>} : vector<8x32xbf16>, vector<8x32xbf16>, vector<8x8xf32> -> vector<8x8xf32>
    %cst_199 = arith.constant 0.176776692 : f32
    %553 = vector.broadcast %cst_199 : f32 to vector<8x8xf32>
    %554 = arith.mulf %552, %553 : vector<8x8xf32>
    %cst_200 = arith.constant -1.000000e+30 : f32
    %555 = vector.broadcast %cst_200 : f32 to vector<8x8xf32>
    %556 = arith.select %20, %554, %555 : vector<8x8xi1>, vector<8x8xf32>
    %cst_201 = arith.constant dense<0xFF800000> : vector<8xf32>
    %557 = vector.multi_reduction <maximumf>, %556, %cst_201 [1] : vector<8x8xf32> to vector<8xf32>
    %558 = vector.shape_cast %557 : vector<8xf32> to vector<8x1xf32>
    %559 = vector.broadcast %558 : vector<8x1xf32> to vector<8x8xf32>
    %560 = arith.subf %556, %559 : vector<8x8xf32>
    %561 = math.exp %560 : vector<8x8xf32>
    %cst_202 = arith.constant dense<0.000000e+00> : vector<8xf32>
    %562 = vector.multi_reduction <add>, %561, %cst_202 [1] : vector<8x8xf32> to vector<8xf32>
    %563 = vector.shape_cast %562 : vector<8xf32> to vector<8x1xf32>
    %564 = tpu.reciprocal %563 {approx = true} : vector<8x1xf32> -> vector<8x1xf32>
    %565 = vector.broadcast %564 : vector<8x1xf32> to vector<8x8xf32>
    %566 = arith.mulf %561, %565 : vector<8x8xf32>
    %567 = arith.truncf %566 : vector<8x8xf32> to vector<8x8xbf16>
    %568 = arith.truncf %549 : vector<8x32xf32> to vector<8x32xbf16>
    %cst_203 = arith.constant dense<0.000000e+00> : vector<8x32xf32>
    %569 = tpu.matmul %567, %568, %cst_203 {dimension_numbers = #tpu.dot_dimension_numbers<[1], [0], [0], [1], [0, 0, 1, 1], [], []>} : vector<8x8xbf16>, vector<8x32xbf16>, vector<8x32xf32> -> vector<8x32xf32>
    %570 = tpu.concatenate %500, %523, %546, %569 in 1 : vector<8x32xf32>, vector<8x32xf32>, vector<8x32xf32>, vector<8x32xf32> -> vector<8x128xf32>
    %571 = tpu.concatenate %477, %570 in 0 : vector<8x128xf32>, vector<8x128xf32> -> vector<16x128xf32>
    %c1_204 = arith.constant 1 : index
    %c0_205 = arith.constant 0 : index
    %c0_206 = arith.constant 0 : index
    %572 = vector.load %arg10[%c1_204, %c0_205, %c0_206] : memref<2x128x128xbf16, #tpu.memory_space<vmem>>, vector<1x128x128xbf16>
    %573 = vector.shape_cast %572 : vector<1x128x128xbf16> to vector<128x128xbf16>
    %574 = arith.truncf %571 : vector<16x128xf32> to vector<16x128xbf16>
    %cst_207 = arith.constant dense<0.000000e+00> : vector<16x128xf32>
    %575 = tpu.matmul %574, %573, %cst_207 {dimension_numbers = #tpu.dot_dimension_numbers<[1], [0], [0], [1], [0, 0, 1, 1], [], []>} : vector<16x128xbf16>, vector<128x128xbf16>, vector<16x128xf32> -> vector<16x128xf32>
    %576 = arith.addf %337, %575 : vector<16x128xf32>
    %577 = vector.broadcast %349 : vector<1x128xf32> to vector<16x128xf32>
    %578 = arith.addf %576, %577 : vector<16x128xf32>
    %cst_208 = arith.constant dense<0.000000e+00> : vector<16xf32>
    %579 = vector.multi_reduction <add>, %578, %cst_208 [1] : vector<16x128xf32> to vector<16xf32>
    %580 = vector.shape_cast %579 : vector<16xf32> to vector<16x1xf32>
    %cst_209 = arith.constant 1.280000e+02 : f32
    %581 = vector.broadcast %cst_209 : f32 to vector<16x1xf32>
    %582 = arith.divf %580, %581 : vector<16x1xf32>
    %583 = vector.broadcast %582 : vector<16x1xf32> to vector<16x128xf32>
    %584 = arith.subf %578, %583 : vector<16x128xf32>
    %585 = arith.mulf %584, %584 : vector<16x128xf32>
    %cst_210 = arith.constant dense<0.000000e+00> : vector<16xf32>
    %586 = vector.multi_reduction <add>, %585, %cst_210 [1] : vector<16x128xf32> to vector<16xf32>
    %587 = vector.shape_cast %586 : vector<16xf32> to vector<16x1xf32>
    %cst_211 = arith.constant 1.280000e+02 : f32
    %588 = vector.broadcast %cst_211 : f32 to vector<16x1xf32>
    %589 = arith.divf %587, %588 : vector<16x1xf32>
    %590 = vector.broadcast %582 : vector<16x1xf32> to vector<16x128xf32>
    %591 = arith.subf %578, %590 : vector<16x128xf32>
    %cst_212 = arith.constant 9.99999997E-7 : f32
    %592 = vector.broadcast %cst_212 : f32 to vector<16x1xf32>
    %593 = arith.addf %589, %592 : vector<16x1xf32>
    %594 = math.rsqrt %593 : vector<16x1xf32>
    %595 = vector.broadcast %594 : vector<16x1xf32> to vector<16x128xf32>
    %596 = arith.mulf %591, %595 : vector<16x128xf32>
    %597 = vector.broadcast %343 : vector<1x128xf32> to vector<16x128xf32>
    %598 = arith.mulf %596, %597 : vector<16x128xf32>
    %599 = vector.broadcast %345 : vector<1x128xf32> to vector<16x128xf32>
    %600 = arith.addf %598, %599 : vector<16x128xf32>
    %c1_213 = arith.constant 1 : index
    %c0_214 = arith.constant 0 : index
    %c0_215 = arith.constant 0 : index
    %601 = vector.load %arg14[%c1_213, %c0_214, %c0_215] : memref<2x128x512xbf16, #tpu.memory_space<vmem>>, vector<1x128x512xbf16>
    %602 = vector.shape_cast %601 : vector<1x128x512xbf16> to vector<128x512xbf16>
    %603 = arith.truncf %600 : vector<16x128xf32> to vector<16x128xbf16>
    %cst_216 = arith.constant dense<0.000000e+00> : vector<16x512xf32>
    %604 = tpu.matmul %603, %602, %cst_216 {dimension_numbers = #tpu.dot_dimension_numbers<[1], [0], [0], [1], [0, 0, 1, 1], [], []>} : vector<16x128xbf16>, vector<128x512xbf16>, vector<16x512xf32> -> vector<16x512xf32>
    %605 = vector.broadcast %351 : vector<1x512xf32> to vector<16x512xf32>
    %606 = arith.addf %604, %605 : vector<16x512xf32>
    %cst_217 = arith.constant 5.000000e-01 : f32
    %607 = vector.broadcast %cst_217 : f32 to vector<16x512xf32>
    %608 = arith.mulf %607, %606 : vector<16x512xf32>
    %cst_218 = arith.constant 0.707106769 : f32
    %609 = vector.broadcast %cst_218 : f32 to vector<16x512xf32>
    %610 = arith.mulf %606, %609 : vector<16x512xf32>
    %cst_219 = arith.constant 0.000000e+00 : f32
    %611 = vector.broadcast %cst_219 : f32 to vector<16x512xf32>
    %612 = arith.cmpf oge, %610, %611 : vector<16x512xf32>
    %cst_220 = arith.constant 1.000000e+00 : f32
    %cst_221 = arith.constant -1.000000e+00 : f32
    %613 = vector.broadcast %cst_220 : f32 to vector<16x512xf32>
    %614 = vector.broadcast %cst_221 : f32 to vector<16x512xf32>
    %615 = arith.select %612, %613, %614 : vector<16x512xi1>, vector<16x512xf32>
    %616 = math.absf %610 : vector<16x512xf32>
    %cst_222 = arith.constant 0.327591091 : f32
    %617 = vector.broadcast %cst_222 : f32 to vector<16x512xf32>
    %618 = arith.mulf %617, %616 : vector<16x512xf32>
    %cst_223 = arith.constant 1.000000e+00 : f32
    %619 = vector.broadcast %cst_223 : f32 to vector<16x512xf32>
    %620 = arith.addf %619, %618 : vector<16x512xf32>
    %cst_224 = arith.constant 1.000000e+00 : f32
    %621 = vector.broadcast %cst_224 : f32 to vector<16x512xf32>
    %622 = arith.divf %621, %620 : vector<16x512xf32>
    %cst_225 = arith.constant 1.06140542 : f32
    %623 = vector.broadcast %cst_225 : f32 to vector<16x512xf32>
    %624 = arith.mulf %623, %622 : vector<16x512xf32>
    %cst_226 = arith.constant -1.45315206 : f32
    %625 = vector.broadcast %cst_226 : f32 to vector<16x512xf32>
    %626 = arith.addf %624, %625 : vector<16x512xf32>
    %627 = arith.mulf %626, %622 : vector<16x512xf32>
    %cst_227 = arith.constant 1.42141378 : f32
    %628 = vector.broadcast %cst_227 : f32 to vector<16x512xf32>
    %629 = arith.addf %627, %628 : vector<16x512xf32>
    %630 = arith.mulf %629, %622 : vector<16x512xf32>
    %cst_228 = arith.constant -0.284496725 : f32
    %631 = vector.broadcast %cst_228 : f32 to vector<16x512xf32>
    %632 = arith.addf %630, %631 : vector<16x512xf32>
    %633 = arith.mulf %632, %622 : vector<16x512xf32>
    %cst_229 = arith.constant 0.254829586 : f32
    %634 = vector.broadcast %cst_229 : f32 to vector<16x512xf32>
    %635 = arith.addf %633, %634 : vector<16x512xf32>
    %636 = arith.mulf %635, %622 : vector<16x512xf32>
    %cst_230 = arith.constant 0.000000e+00 : f32
    %637 = vector.broadcast %cst_230 : f32 to vector<16x512xf32>
    %638 = arith.subf %637, %616 : vector<16x512xf32>
    %639 = arith.mulf %638, %616 : vector<16x512xf32>
    %640 = math.exp %639 : vector<16x512xf32>
    %641 = arith.mulf %636, %640 : vector<16x512xf32>
    %cst_231 = arith.constant 1.000000e+00 : f32
    %642 = vector.broadcast %cst_231 : f32 to vector<16x512xf32>
    %643 = arith.subf %642, %641 : vector<16x512xf32>
    %644 = arith.mulf %615, %643 : vector<16x512xf32>
    %cst_232 = arith.constant 1.000000e+00 : f32
    %645 = vector.broadcast %cst_232 : f32 to vector<16x512xf32>
    %646 = arith.addf %645, %644 : vector<16x512xf32>
    %647 = arith.mulf %608, %646 : vector<16x512xf32>
    %c1_233 = arith.constant 1 : index
    %c0_234 = arith.constant 0 : index
    %c0_235 = arith.constant 0 : index
    %648 = vector.load %arg16[%c1_233, %c0_234, %c0_235] : memref<2x512x128xbf16, #tpu.memory_space<vmem>>, vector<1x512x128xbf16>
    %649 = vector.shape_cast %648 : vector<1x512x128xbf16> to vector<512x128xbf16>
    %650 = arith.truncf %647 : vector<16x512xf32> to vector<16x512xbf16>
    %cst_236 = arith.constant dense<0.000000e+00> : vector<16x128xf32>
    %651 = tpu.matmul %650, %649, %cst_236 {dimension_numbers = #tpu.dot_dimension_numbers<[1], [0], [0], [1], [0, 0, 1, 1], [], []>} : vector<16x512xbf16>, vector<512x128xbf16>, vector<16x128xf32> -> vector<16x128xf32>
    %652 = arith.addf %578, %651 : vector<16x128xf32>
    %653 = vector.broadcast %353 : vector<1x128xf32> to vector<16x128xf32>
    %654 = arith.addf %652, %653 : vector<16x128xf32>
    %655 = vector.extract_strided_slice %654 {offsets = [0, 0], sizes = [1, 128], strides = [1, 1]} : vector<16x128xf32> to vector<1x128xf32>
    %656 = vector.extract_strided_slice %654 {offsets = [8, 0], sizes = [1, 128], strides = [1, 1]} : vector<16x128xf32> to vector<1x128xf32>
    %657 = tpu.concatenate %655, %656 in 0 : vector<1x128xf32>, vector<1x128xf32> -> vector<2x128xf32>
    %c0_237 = arith.constant 0 : index
    %c0_238 = arith.constant 0 : index
    %658 = vector.load %arg18[%c0_237, %c0_238] : memref<1x128xf32, #tpu.memory_space<vmem>>, vector<1x128xf32>
    %c0_239 = arith.constant 0 : index
    %c0_240 = arith.constant 0 : index
    %659 = vector.load %arg19[%c0_239, %c0_240] : memref<1x128xf32, #tpu.memory_space<vmem>>, vector<1x128xf32>
    %cst_241 = arith.constant dense<0.000000e+00> : vector<2xf32>
    %660 = vector.multi_reduction <add>, %657, %cst_241 [1] : vector<2x128xf32> to vector<2xf32>
    %661 = vector.shape_cast %660 : vector<2xf32> to vector<2x1xf32>
    %cst_242 = arith.constant 1.280000e+02 : f32
    %662 = vector.broadcast %cst_242 : f32 to vector<2x1xf32>
    %663 = arith.divf %661, %662 : vector<2x1xf32>
    %664 = vector.broadcast %663 : vector<2x1xf32> to vector<2x128xf32>
    %665 = arith.subf %657, %664 : vector<2x128xf32>
    %666 = arith.mulf %665, %665 : vector<2x128xf32>
    %cst_243 = arith.constant dense<0.000000e+00> : vector<2xf32>
    %667 = vector.multi_reduction <add>, %666, %cst_243 [1] : vector<2x128xf32> to vector<2xf32>
    %668 = vector.shape_cast %667 : vector<2xf32> to vector<2x1xf32>
    %cst_244 = arith.constant 1.280000e+02 : f32
    %669 = vector.broadcast %cst_244 : f32 to vector<2x1xf32>
    %670 = arith.divf %668, %669 : vector<2x1xf32>
    %671 = vector.broadcast %663 : vector<2x1xf32> to vector<2x128xf32>
    %672 = arith.subf %657, %671 : vector<2x128xf32>
    %cst_245 = arith.constant 9.99999997E-7 : f32
    %673 = vector.broadcast %cst_245 : f32 to vector<2x1xf32>
    %674 = arith.addf %670, %673 : vector<2x1xf32>
    %675 = math.rsqrt %674 : vector<2x1xf32>
    %676 = vector.broadcast %675 : vector<2x1xf32> to vector<2x128xf32>
    %677 = arith.mulf %672, %676 : vector<2x128xf32>
    %678 = vector.broadcast %658 : vector<1x128xf32> to vector<2x128xf32>
    %679 = arith.mulf %677, %678 : vector<2x128xf32>
    %680 = vector.broadcast %659 : vector<1x128xf32> to vector<2x128xf32>
    %681 = arith.addf %679, %680 : vector<2x128xf32>
    %c0_246 = arith.constant 0 : index
    %c0_247 = arith.constant 0 : index
    %682 = vector.load %arg20[%c0_246, %c0_247] : memref<128x128xbf16, #tpu.memory_space<vmem>>, vector<128x128xbf16>
    %683 = arith.truncf %681 : vector<2x128xf32> to vector<2x128xbf16>
    %cst_248 = arith.constant dense<0.000000e+00> : vector<2x128xf32>
    %684 = tpu.matmul %683, %682, %cst_248 {dimension_numbers = #tpu.dot_dimension_numbers<[1], [0], [0], [1], [0, 0, 1, 1], [], []>} : vector<2x128xbf16>, vector<128x128xbf16>, vector<2x128xf32> -> vector<2x128xf32>
    %c0_249 = arith.constant 0 : index
    %c0_250 = arith.constant 0 : index
    %685 = vector.load %arg21[%c0_249, %c0_250] : memref<1x128xf32, #tpu.memory_space<vmem>>, vector<1x128xf32>
    %686 = vector.broadcast %685 : vector<1x128xf32> to vector<2x128xf32>
    %687 = arith.addf %684, %686 : vector<2x128xf32>
    %c0_251 = arith.constant 0 : index
    %c0_252 = arith.constant 0 : index
    %688 = vector.load %arg22[%c0_251, %c0_252] : memref<2x128xf32, #tpu.memory_space<vmem>>, vector<2x128xf32>
    tpu.vector_store %arg22[%c0_251, %c0_252], %687 {strides = array<i32>} : memref<2x128xf32, #tpu.memory_space<vmem>>, vector<2x128xf32>,
    return
  }
  func.func @transform_0(%arg0: i32) -> (i32, i32) {
    %c0_i32 = arith.constant 0 : i32
    %c0_i32_0 = arith.constant 0 : i32
    %c0_i32_1 = arith.constant 0 : i32
    return %c0_i32, %c0_i32_0 : i32, i32
  }
  func.func @transform_1(%arg0: i32) -> (i32, i32) {
    %c0_i32 = arith.constant 0 : i32
    %c0_i32_0 = arith.constant 0 : i32
    %c0_i32_1 = arith.constant 0 : i32
    return %c0_i32, %c0_i32_0 : i32, i32
  }
  func.func @transform_2(%arg0: i32) -> (i32, i32) {
    %c0_i32 = arith.constant 0 : i32
    %c0_i32_0 = arith.constant 0 : i32
    %c0_i32_1 = arith.constant 0 : i32
    return %c0_i32, %c0_i32_0 : i32, i32
  }
  func.func @transform_3(%arg0: i32) -> (i32, i32) {
    %c0_i32 = arith.constant 0 : i32
    %c0_i32_0 = arith.constant 0 : i32
    %c0_i32_1 = arith.constant 0 : i32
    return %c0_i32, %c0_i32_0 : i32, i32
  }
  func.func @transform_4(%arg0: i32) -> (i32, i32) {
    %c0_i32 = arith.constant 0 : i32
    %c0_i32_0 = arith.constant 0 : i32
    %c0_i32_1 = arith.constant 0 : i32
    return %c0_i32, %c0_i32_0 : i32, i32
  }
  func.func @transform_5(%arg0: i32) -> (i32, i32, i32) {
    %c0_i32 = arith.constant 0 : i32
    %c0_i32_0 = arith.constant 0 : i32
    %c0_i32_1 = arith.constant 0 : i32
    %c0_i32_2 = arith.constant 0 : i32
    return %c0_i32, %c0_i32_0, %c0_i32_1 : i32, i32, i32
  }
  func.func @transform_6(%arg0: i32) -> (i32, i32, i32) {
    %c0_i32 = arith.constant 0 : i32
    %c0_i32_0 = arith.constant 0 : i32
    %c0_i32_1 = arith.constant 0 : i32
    %c0_i32_2 = arith.constant 0 : i32
    return %c0_i32, %c0_i32_0, %c0_i32_1 : i32, i32, i32
  }
  func.func @transform_7(%arg0: i32) -> (i32, i32, i32) {
    %c0_i32 = arith.constant 0 : i32
    %c0_i32_0 = arith.constant 0 : i32
    %c0_i32_1 = arith.constant 0 : i32
    %c0_i32_2 = arith.constant 0 : i32
    return %c0_i32, %c0_i32_0, %c0_i32_1 : i32, i32, i32
  }
  func.func @transform_8(%arg0: i32) -> (i32, i32, i32) {
    %c0_i32 = arith.constant 0 : i32
    %c0_i32_0 = arith.constant 0 : i32
    %c0_i32_1 = arith.constant 0 : i32
    %c0_i32_2 = arith.constant 0 : i32
    return %c0_i32, %c0_i32_0, %c0_i32_1 : i32, i32, i32
  }
  func.func @transform_9(%arg0: i32) -> (i32, i32, i32) {
    %c0_i32 = arith.constant 0 : i32
    %c0_i32_0 = arith.constant 0 : i32
    %c0_i32_1 = arith.constant 0 : i32
    %c0_i32_2 = arith.constant 0 : i32
    return %c0_i32, %c0_i32_0, %c0_i32_1 : i32, i32, i32
  }
  func.func @transform_10(%arg0: i32) -> (i32, i32, i32) {
    %c0_i32 = arith.constant 0 : i32
    %c0_i32_0 = arith.constant 0 : i32
    %c0_i32_1 = arith.constant 0 : i32
    %c0_i32_2 = arith.constant 0 : i32
    return %c0_i32, %c0_i32_0, %c0_i32_1 : i32, i32, i32
  }
  func.func @transform_11(%arg0: i32) -> (i32, i32, i32) {
    %c0_i32 = arith.constant 0 : i32
    %c0_i32_0 = arith.constant 0 : i32
    %c0_i32_1 = arith.constant 0 : i32
    %c0_i32_2 = arith.constant 0 : i32
    return %c0_i32, %c0_i32_0, %c0_i32_1 : i32, i32, i32
  }
  func.func @transform_12(%arg0: i32) -> (i32, i32, i32) {
    %c0_i32 = arith.constant 0 : i32
    %c0_i32_0 = arith.constant 0 : i32
    %c0_i32_1 = arith.constant 0 : i32
    %c0_i32_2 = arith.constant 0 : i32
    return %c0_i32, %c0_i32_0, %c0_i32_1 : i32, i32, i32
  }
  func.func @transform_13(%arg0: i32) -> (i32, i32, i32) {
    %c0_i32 = arith.constant 0 : i32
    %c0_i32_0 = arith.constant 0 : i32
    %c0_i32_1 = arith.constant 0 : i32
    %c0_i32_2 = arith.constant 0 : i32
    return %c0_i32, %c0_i32_0, %c0_i32_1 : i32, i32, i32
  }
  func.func @transform_14(%arg0: i32) -> (i32, i32, i32) {
    %c0_i32 = arith.constant 0 : i32
    %c0_i32_0 = arith.constant 0 : i32
    %c0_i32_1 = arith.constant 0 : i32
    %c0_i32_2 = arith.constant 0 : i32
    return %c0_i32, %c0_i32_0, %c0_i32_1 : i32, i32, i32
  }
  func.func @transform_15(%arg0: i32) -> (i32, i32, i32) {
    %c0_i32 = arith.constant 0 : i32
    %c0_i32_0 = arith.constant 0 : i32
    %c0_i32_1 = arith.constant 0 : i32
    %c0_i32_2 = arith.constant 0 : i32
    return %c0_i32, %c0_i32_0, %c0_i32_1 : i32, i32, i32
  }
  func.func @transform_16(%arg0: i32) -> (i32, i32, i32) {
    %c0_i32 = arith.constant 0 : i32
    %c0_i32_0 = arith.constant 0 : i32
    %c0_i32_1 = arith.constant 0 : i32
    %c0_i32_2 = arith.constant 0 : i32
    return %c0_i32, %c0_i32_0, %c0_i32_1 : i32, i32, i32
  }
  func.func @transform_17(%arg0: i32) -> (i32, i32) {
    %c0_i32 = arith.constant 0 : i32
    %c0_i32_0 = arith.constant 0 : i32
    %c0_i32_1 = arith.constant 0 : i32
    return %c0_i32, %c0_i32_0 : i32, i32
  }
  func.func @transform_18(%arg0: i32) -> (i32, i32) {
    %c0_i32 = arith.constant 0 : i32
    %c0_i32_0 = arith.constant 0 : i32
    %c0_i32_1 = arith.constant 0 : i32
    return %c0_i32, %c0_i32_0 : i32, i32
  }
  func.func @transform_19(%arg0: i32) -> (i32, i32) {
    %c0_i32 = arith.constant 0 : i32
    %c0_i32_0 = arith.constant 0 : i32
    %c0_i32_1 = arith.constant 0 : i32
    return %c0_i32, %c0_i32_0 : i32, i32
  }
  func.func @transform_20(%arg0: i32) -> (i32, i32) {
    %c0_i32 = arith.constant 0 : i32
    %c0_i32_0 = arith.constant 0 : i32
    %c0_i32_1 = arith.constant 0 : i32
    return %c0_i32, %c0_i32_0 : i32, i32
  }
  func.func @transform_21(%arg0: i32) -> (i32, i32) {
    %c0_i32 = arith.constant 0 : i32
    %c0_i32_0 = arith.constant 0 : i32
    %c0_i32_1 = arith.constant 0 : i32
    return %c0_i32, %c0_i32_0 : i32, i32
  }
}

</mosaic_0001>

<llo_original>
// kernel: medvit_forward.1
$region0: #{medvit_forward.1}
  #allocation0 [shape = 'u32[]', space=smem, size = 0x4, offset = 0x4, fixed_abs, tag = 'smem constant byte address 0x4 - core index']
  #allocation1 [shape = 'u32[144,128]{1,0:T(1,128)}', space=vmem, size = 0x12000, scoped, tag = 'internal scratch']
  %s0 = inlined_call_operand.vmem [shape: f32[8,768], index: 0, kind: input, shape index: {}]
  %s1 = inlined_call_operand.vmem [shape: bf16[768,128], index: 1, kind: input, shape index: {}]
  %s2 = inlined_call_operand.vmem [shape: f32[1,128], index: 2, kind: input, shape index: {}]
  %s3 = inlined_call_operand.vmem [shape: f32[1,128], index: 3, kind: input, shape index: {}]
  %s4 = inlined_call_operand.vmem [shape: f32[5,128], index: 4, kind: input, shape index: {}]
  %s5 = inlined_call_operand.vmem [shape: f32[2,1,128], index: 5, kind: input, shape index: {}]
  %s6 = inlined_call_operand.hbm [shape: f32[2,1,128], index: 6, kind: input, shape index: {}]
  %s7 = inlined_call_operand.vmem [shape: bf16[2,128,384], index: 7, kind: input, shape index: {}]
  %s8 = inlined_call_operand.vmem [shape: f32[2,1,384], index: 8, kind: input, shape index: {}]
  %s9 = inlined_call_operand.hbm [shape: bf16[2,128,128], index: 9, kind: input, shape index: {}]
  %s10 = inlined_call_operand.hbm [shape: f32[2,1,128], index: 10, kind: input, shape index: {}]
  %s11 = inlined_call_operand.hbm [shape: f32[2,1,128], index: 11, kind: input, shape index: {}]
  %s12 = inlined_call_operand.hbm [shape: f32[2,1,128], index: 12, kind: input, shape index: {}]
  %s13 = inlined_call_operand.vmem [shape: bf16[2,128,512], index: 13, kind: input, shape index: {}]
  %s14 = inlined_call_operand.hbm [shape: f32[2,1,512], index: 14, kind: input, shape index: {}]
  %s15 = inlined_call_operand.vmem [shape: bf16[2,512,128], index: 15, kind: input, shape index: {}]
  %s16 = inlined_call_operand.hbm [shape: f32[2,1,128], index: 16, kind: input, shape index: {}]
  %s17 = inlined_call_operand.vmem [shape: f32[1,128], index: 17, kind: input, shape index: {}]
  %s18 = inlined_call_operand.vmem [shape: f32[1,128], index: 18, kind: input, shape index: {}]
  %s19 = inlined_call_operand.hbm [shape: bf16[128,128], index: 19, kind: input, shape index: {}]
  %s20 = inlined_call_operand.vmem [shape: f32[1,128], index: 20, kind: input, shape index: {}]
  %s21 = inlined_call_operand.hbm [shape: f32[2,128], index: 21, kind: output, shape index: {}]
  %s22 = sld [smem:[#allocation0]]
  $region126: #{medvit_forward.1} parent=0
    _
  %s24 = ssub.s32 1, %s22
  %s25 = scalar_select 0, %s24, %s22
  $region1: #{medvit_forward.1} parent=0
    #allocation2 [shape = 'u8[1024]{0}', space=vmem, size = 0x400, scoped, tag = 'input window, operand 6, single buffered']
    #allocation3 [shape = 's32[1]{0}', space=sflag, size = 0x4, scoped, tag = 'scoped memory for medvit_forward.1']
    #allocation4 [shape = 's32[1]{0}', space=sflag, size = 0x4, scoped, tag = 'scoped memory for medvit_forward.1']
    #allocation5 [shape = 'u8[65536]{0}', space=vmem, size = 0x10000, scoped, tag = 'input window, operand 9, single buffered']
    #allocation6 [shape = 's32[1]{0}', space=sflag, size = 0x4, scoped, tag = 'scoped memory for medvit_forward.1']
    #allocation7 [shape = 'u8[1024]{0}', space=vmem, size = 0x400, scoped, tag = 'input window, operand 10, single buffered']
    #allocation8 [shape = 'u8[1024]{0}', space=vmem, size = 0x400, scoped, tag = 'input window, operand 11, single buffered']
    #allocation9 [shape = 's32[1]{0}', space=sflag, size = 0x4, scoped, tag = 'scoped memory for medvit_forward.1']
    #allocation10 [shape = 'u8[1024]{0}', space=vmem, size = 0x400, scoped, tag = 'input window, operand 12, single buffered']
    #allocation11 [shape = 'u8[4096]{0}', space=vmem, size = 0x1000, scoped, tag = 'input window, operand 14, single buffered']
    #allocation12 [shape = 's32[1]{0}', space=sflag, size = 0x4, scoped, tag = 'scoped memory for medvit_forward.1']
    #allocation13 [shape = 'u8[1024]{0}', space=vmem, size = 0x400, scoped, tag = 'input window, operand 16, single buffered']
    #allocation14 [shape = 'u8[32768]{0}', space=vmem, size = 0x8000, scoped, tag = 'input window, operand 19, single buffered']
    #allocation15 [shape = 's32[1]{0}', space=sflag, size = 0x4, scoped, tag = 'scoped memory for medvit_forward.1']
    #allocation16 [shape = 'u8[1024]{0}', space=vmem, size = 0x400, scoped, tag = 'output window, operand 0, single buffered']
    %26 = vsyncpa [#allocation3], 0
    %27 = vsyncpa [#allocation6], 0
    %28 = vsyncpa [#allocation9], 0
    %29 = vsyncpa [#allocation12], 0
    %30 = vsyncpa [#allocation15], 0
    %31 = vsyncpa [#allocation4], 0
    // Predicated region
    $region2: #{medvit_forward.1} parent=1 // pred_check
      _
    $region3: #{medvit_forward.1} parent=1 // pred_check_branch
      %33 = sbr.rel (0) target = $region5
    $region4: #{medvit_forward.1} parent=1 // pred_region
      _
    $region5: #{medvit_forward.1} parent=1 // pred_fallthru
      _
    // Predicated region
    $region6: #{medvit_forward.1} parent=1 // pred_check
      _
    $region7: #{medvit_forward.1} parent=1 // pred_check_branch
      %35 = sbr.rel (0) target = $region9
    $region8: #{medvit_forward.1} parent=1 // pred_region
      _
    $region9: #{medvit_forward.1} parent=1 // pred_fallthru
      _
    // Predicated region
    $region10: #{medvit_forward.1} parent=1 // pred_check
      _
    $region11: #{medvit_forward.1} parent=1 // pred_check_branch
      %37 = sbr.rel (0) target = $region13
    $region12: #{medvit_forward.1} parent=1 // pred_region
      _
    $region13: #{medvit_forward.1} parent=1 // pred_fallthru
      _
    // Predicated region
    $region14: #{medvit_forward.1} parent=1 // pred_check
      _
    $region15: #{medvit_forward.1} parent=1 // pred_check_branch
      %39 = sbr.rel (0) target = $region17
    $region16: #{medvit_forward.1} parent=1 // pred_region
      _
    $region17: #{medvit_forward.1} parent=1 // pred_fallthru
      _
    // Predicated region
    $region18: #{medvit_forward.1} parent=1 // pred_check
      _
    $region19: #{medvit_forward.1} parent=1 // pred_check_branch
      %41 = sbr.rel (0) target = $region21
    $region20: #{medvit_forward.1} parent=1 // pred_region
      _
    $region21: #{medvit_forward.1} parent=1 // pred_fallthru
      _
    // Predicated region
    $region22: #{medvit_forward.1} parent=1 // pred_check
      _
    $region23: #{medvit_forward.1} parent=1 // pred_check_branch
      %43 = sbr.rel (0) target = $region25
    $region24: #{medvit_forward.1} parent=1 // pred_region
      _
    $region25: #{medvit_forward.1} parent=1 // pred_fallthru
      _
    // Predicated region
    $region26: #{medvit_forward.1} parent=1 // pred_check
      _
    $region27: #{medvit_forward.1} parent=1 // pred_check_branch
      %45 = sbr.rel (0) target = $region29
    $region28: #{medvit_forward.1} parent=1 // pred_region
      %s47 = ssub.s32 32, 32
      %48 = vsyncadd [#allocation3], %s47
      %s49 = sshll.u32 [#allocation2], 4
      %s50 = int_to_ptr.vmem [resolvable:$true] %s49
      %55 = dma.hbm_to_vmem [thread:$0]  %s6, 32, %s50, [#allocation3], 16, 16, 1
    $region29: #{medvit_forward.1} parent=1 // pred_fallthru
      _
    // Predicated region
    $region30: #{medvit_forward.1} parent=1 // pred_check
      _
    $region31: #{medvit_forward.1} parent=1 // pred_check_branch
      %57 = sbr.rel (0) target = $region33
    $region32: #{medvit_forward.1} parent=1 // pred_region
      _
    $region33: #{medvit_forward.1} parent=1 // pred_fallthru
      _
    // Predicated region
    $region34: #{medvit_forward.1} parent=1 // pred_check
      _
    $region35: #{medvit_forward.1} parent=1 // pred_check_branch
      %59 = sbr.rel (0) target = $region37
    $region36: #{medvit_forward.1} parent=1 // pred_region
      _
    $region37: #{medvit_forward.1} parent=1 // pred_fallthru
      _
    // Predicated region
    $region38: #{medvit_forward.1} parent=1 // pred_check
      _
    $region39: #{medvit_forward.1} parent=1 // pred_check_branch
      %61 = sbr.rel (0) target = $region41
    $region40: #{medvit_forward.1} parent=1 // pred_region
      %s63 = ssub.s32 2048, 2048
      %64 = vsyncadd [#allocation6], %s63
      %s65 = sshll.u32 [#allocation5], 4
      %s66 = int_to_ptr.vmem [resolvable:$true] %s65
      %71 = dma.hbm_to_vmem [thread:$0]  %s9, 2048, %s66, [#allocation6], 64, 64, 4
    $region41: #{medvit_forward.1} parent=1 // pred_fallthru
      _
    // Predicated region
    $region42: #{medvit_forward.1} parent=1 // pred_check
      _
    $region43: #{medvit_forward.1} parent=1 // pred_check_branch
      %73 = sbr.rel (0) target = $region45
    $region44: #{medvit_forward.1} parent=1 // pred_region
      %s75 = ssub.s32 32, 32
      %76 = vsyncadd [#allocation6], %s75
      %s77 = sshll.u32 [#allocation7], 4
      %s78 = int_to_ptr.vmem [resolvable:$true] %s77
      %83 = dma.hbm_to_vmem [thread:$0]  %s10, 32, %s78, [#allocation6], 16, 16, 1
    $region45: #{medvit_forward.1} parent=1 // pred_fallthru
      _
    // Predicated region
    $region46: #{medvit_forward.1} parent=1 // pred_check
      _
    $region47: #{medvit_forward.1} parent=1 // pred_check_branch
      %85 = sbr.rel (0) target = $region49
    $region48: #{medvit_forward.1} parent=1 // pred_region
      %s87 = ssub.s32 32, 32
      %88 = vsyncadd [#allocation9], %s87
      %s89 = sshll.u32 [#allocation8], 4
      %s90 = int_to_ptr.vmem [resolvable:$true] %s89
      %95 = dma.hbm_to_vmem [thread:$0]  %s11, 32, %s90, [#allocation9], 16, 16, 1
    $region49: #{medvit_forward.1} parent=1 // pred_fallthru
      _
    // Predicated region
    $region50: #{medvit_forward.1} parent=1 // pred_check
      _
    $region51: #{medvit_forward.1} parent=1 // pred_check_branch
      %97 = sbr.rel (0) target = $region53
    $region52: #{medvit_forward.1} parent=1 // pred_region
      %s99 = ssub.s32 32, 32
      %100 = vsyncadd [#allocation9], %s99
      %s101 = sshll.u32 [#allocation10], 4
      %s102 = int_to_ptr.vmem [resolvable:$true] %s101
      %107 = dma.hbm_to_vmem [thread:$0]  %s12, 32, %s102, [#allocation9], 16, 16, 1
    $region53: #{medvit_forward.1} parent=1 // pred_fallthru
      _
    // Predicated region
    $region54: #{medvit_forward.1} parent=1 // pred_check
      _
    $region55: #{medvit_forward.1} parent=1 // pred_check_branch
      %109 = sbr.rel (0) target = $region57
    $region56: #{medvit_forward.1} parent=1 // pred_region
      _
    $region57: #{medvit_forward.1} parent=1 // pred_fallthru
      _
    // Predicated region
    $region58: #{medvit_forward.1} parent=1 // pred_check
      _
    $region59: #{medvit_forward.1} parent=1 // pred_check_branch
      %111 = sbr.rel (0) target = $region61
    $region60: #{medvit_forward.1} parent=1 // pred_region
      %s113 = ssub.s32 128, 128
      %114 = vsyncadd [#allocation12], %s113
      %s115 = sshll.u32 [#allocation11], 4
      %s116 = int_to_ptr.vmem [resolvable:$true] %s115
      %121 = dma.hbm_to_vmem [thread:$0]  %s14, 128, %s116, [#allocation12], 64, 64, 4
    $region61: #{medvit_forward.1} parent=1 // pred_fallthru
      _
    // Predicated region
    $region62: #{medvit_forward.1} parent=1 // pred_check
      _
    $region63: #{medvit_forward.1} parent=1 // pred_check_branch
      %123 = sbr.rel (0) target = $region65
    $region64: #{medvit_forward.1} parent=1 // pred_region
      _
    $region65: #{medvit_forward.1} parent=1 // pred_fallthru
      _
    // Predicated region
    $region66: #{medvit_forward.1} parent=1 // pred_check
      _
    $region67: #{medvit_forward.1} parent=1 // pred_check_branch
      %125 = sbr.rel (0) target = $region69
    $region68: #{medvit_forward.1} parent=1 // pred_region
      %s127 = ssub.s32 32, 32
      %128 = vsyncadd [#allocation12], %s127
      %s129 = sshll.u32 [#allocation13], 4
      %s130 = int_to_ptr.vmem [resolvable:$true] %s129
      %135 = dma.hbm_to_vmem [thread:$0]  %s16, 32, %s130, [#allocation12], 16, 16, 1
    $region69: #{medvit_forward.1} parent=1 // pred_fallthru
      _
    // Predicated region
    $region70: #{medvit_forward.1} parent=1 // pred_check
      _
    $region71: #{medvit_forward.1} parent=1 // pred_check_branch
      %137 = sbr.rel (0) target = $region73
    $region72: #{medvit_forward.1} parent=1 // pred_region
      _
    $region73: #{medvit_forward.1} parent=1 // pred_fallthru
      _
    // Predicated region
    $region74: #{medvit_forward.1} parent=1 // pred_check
      _
    $region75: #{medvit_forward.1} parent=1 // pred_check_branch
      %139 = sbr.rel (0) target = $region77
    $region76: #{medvit_forward.1} parent=1 // pred_region
      _
    $region77: #{medvit_forward.1} parent=1 // pred_fallthru
      _
    // Predicated region
    $region78: #{medvit_forward.1} parent=1 // pred_check
      _
    $region79: #{medvit_forward.1} parent=1 // pred_check_branch
      %141 = sbr.rel (0) target = $region81
    $region80: #{medvit_forward.1} parent=1 // pred_region
      %s143 = ssub.s32 1024, 1024
      %144 = vsyncadd [#allocation15], %s143
      %s145 = sshll.u32 [#allocation14], 4
      %s146 = int_to_ptr.vmem [resolvable:$true] %s145
      %151 = dma.hbm_to_vmem [thread:$0]  %s19, 1024, %s146, [#allocation15], 64, 64, 4
    $region81: #{medvit_forward.1} parent=1 // pred_fallthru
      _
    // Predicated region
    $region82: #{medvit_forward.1} parent=1 // pred_check
      _
    $region83: #{medvit_forward.1} parent=1 // pred_check_branch
      %153 = sbr.rel (0) target = $region85
    $region84: #{medvit_forward.1} parent=1 // pred_region
      _
    $region85: #{medvit_forward.1} parent=1 // pred_fallthru
      _
    // Predicated region
    $region86: #{medvit_forward.1} parent=1 // pred_check
      _
    $region87: #{medvit_forward.1} parent=1 // pred_check_branch
      %155 = sbr.rel (0) target = $region89
    $region88: #{medvit_forward.1} parent=1 // pred_region
      %156 = dma.done [#allocation3], 32
    $region89: #{medvit_forward.1} parent=1 // pred_fallthru
      _
    // Predicated region
    $region90: #{medvit_forward.1} parent=1 // pred_check
      _
    $region91: #{medvit_forward.1} parent=1 // pred_check_branch
      %158 = sbr.rel (0) target = $region93
    $region92: #{medvit_forward.1} parent=1 // pred_region
      %159 = dma.done [#allocation6], 2048
    $region93: #{medvit_forward.1} parent=1 // pred_fallthru
      _
    // Predicated region
    $region94: #{medvit_forward.1} parent=1 // pred_check
      _
    $region95: #{medvit_forward.1} parent=1 // pred_check_branch
      %161 = sbr.rel (0) target = $region97
    $region96: #{medvit_forward.1} parent=1 // pred_region
      %162 = dma.done [#allocation6], 32
    $region97: #{medvit_forward.1} parent=1 // pred_fallthru
      _
    // Predicated region
    $region98: #{medvit_forward.1} parent=1 // pred_check
      _
    $region99: #{medvit_forward.1} parent=1 // pred_check_branch
      %164 = sbr.rel (0) target = $region101
    $region100: #{medvit_forward.1} parent=1 // pred_region
      %165 = dma.done [#allocation9], 32
    $region101: #{medvit_forward.1} parent=1 // pred_fallthru
      _
    // Predicated region
    $region102: #{medvit_forward.1} parent=1 // pred_check
      _
    $region103: #{medvit_forward.1} parent=1 // pred_check_branch
      %167 = sbr.rel (0) target = $region105
    $region104: #{medvit_forward.1} parent=1 // pred_region
      %168 = dma.done [#allocation9], 32
    $region105: #{medvit_forward.1} parent=1 // pred_fallthru
      _
    // Predicated region
    $region106: #{medvit_forward.1} parent=1 // pred_check
      _
    $region107: #{medvit_forward.1} parent=1 // pred_check_branch
      %170 = sbr.rel (0) target = $region109
    $region108: #{medvit_forward.1} parent=1 // pred_region
      %171 = dma.done [#allocation12], 128
    $region109: #{medvit_forward.1} parent=1 // pred_fallthru
      _
    // Predicated region
    $region110: #{medvit_forward.1} parent=1 // pred_check
      _
    $region111: #{medvit_forward.1} parent=1 // pred_check_branch
      %173 = sbr.rel (0) target = $region113
    $region112: #{medvit_forward.1} parent=1 // pred_region
      %174 = dma.done [#allocation12], 32
    $region113: #{medvit_forward.1} parent=1 // pred_fallthru
      _
    // Predicated region
    $region114: #{medvit_forward.1} parent=1 // pred_check
      _
    $region115: #{medvit_forward.1} parent=1 // pred_check_branch
      %176 = sbr.rel (0) target = $region117
    $region116: #{medvit_forward.1} parent=1 // pred_region
      %177 = dma.done [#allocation15], 1024
    $region117: #{medvit_forward.1} parent=1 // pred_fallthru
      _
    %v179 = vld [vmem:[%s0] sm:$0xff]
    %v180 = vld [vmem:[%s0 + $0x8] sm:$0xff]
    %v181 = vld [vmem:[%s0 + $0x10] sm:$0xff]
    %v182 = vld [vmem:[%s0 + $0x18] sm:$0xff]
    %v183 = vld [vmem:[%s0 + $0x20] sm:$0xff]
    %v184 = vld [vmem:[%s0 + $0x28] sm:$0xff]
    %v185 = vld [vmem:[%s1] sm:$0xf]
    %v186 = vld [vmem:[%s1 + $0x4] sm:$0xf]
    %v187 = vld [vmem:[%s1 + $0x8] sm:$0xf]
    %v188 = vld [vmem:[%s1 + $0xc] sm:$0xf]
    %v189 = vld [vmem:[%s1 + $0x10] sm:$0xf]
    %v190 = vld [vmem:[%s1 + $0x14] sm:$0xf]
    %v191 = vld [vmem:[%s1 + $0x18] sm:$0xf]
    %v192 = vld [vmem:[%s1 + $0x1c] sm:$0xf]
    %v193 = vld [vmem:[%s1 + $0x20] sm:$0xf]
    %v194 = vld [vmem:[%s1 + $0x24] sm:$0xf]
    %v195 = vld [vmem:[%s1 + $0x28] sm:$0xf]
    %v196 = vld [vmem:[%s1 + $0x2c] sm:$0xf]
    %v197 = vld [vmem:[%s1 + $0x30] sm:$0xf]
    %v198 = vld [vmem:[%s1 + $0x34] sm:$0xf]
    %v199 = vld [vmem:[%s1 + $0x38] sm:$0xf]
    %v200 = vld [vmem:[%s1 + $0x3c] sm:$0xf]
    %v201 = vld [vmem:[%s1 + $0x40] sm:$0xf]
    %v202 = vld [vmem:[%s1 + $0x44] sm:$0xf]
    %v203 = vld [vmem:[%s1 + $0x48] sm:$0xf]
    %v204 = vld [vmem:[%s1 + $0x4c] sm:$0xf]
    %v205 = vld [vmem:[%s1 + $0x50] sm:$0xf]
    %v206 = vld [vmem:[%s1 + $0x54] sm:$0xf]
    %v207 = vld [vmem:[%s1 + $0x58] sm:$0xf]
    %v208 = vld [vmem:[%s1 + $0x5c] sm:$0xf]
    %v209 = vld [vmem:[%s1 + $0x60] sm:$0xf]
    %v210 = vld [vmem:[%s1 + $0x64] sm:$0xf]
    %v211 = vld [vmem:[%s1 + $0x68] sm:$0xf]
    %v212 = vld [vmem:[%s1 + $0x6c] sm:$0xf]
    %v213 = vld [vmem:[%s1 + $0x70] sm:$0xf]
    %v214 = vld [vmem:[%s1 + $0x74] sm:$0xf]
    %v215 = vld [vmem:[%s1 + $0x78] sm:$0xf]
    %v216 = vld [vmem:[%s1 + $0x7c] sm:$0xf]
    %v217 = vld [vmem:[%s1 + $0x80] sm:$0xf]
    %v218 = vld [vmem:[%s1 + $0x84] sm:$0xf]
    %v219 = vld [vmem:[%s1 + $0x88] sm:$0xf]
    %v220 = vld [vmem:[%s1 + $0x8c] sm:$0xf]
    %v221 = vld [vmem:[%s1 + $0x90] sm:$0xf]
    %v222 = vld [vmem:[%s1 + $0x94] sm:$0xf]
    %v223 = vld [vmem:[%s1 + $0x98] sm:$0xf]
    %v224 = vld [vmem:[%s1 + $0x9c] sm:$0xf]
    %v225 = vld [vmem:[%s1 + $0xa0] sm:$0xf]
    %v226 = vld [vmem:[%s1 + $0xa4] sm:$0xf]
    %v227 = vld [vmem:[%s1 + $0xa8] sm:$0xf]
    %v228 = vld [vmem:[%s1 + $0xac] sm:$0xf]
    %v229 = vld [vmem:[%s1 + $0xb0] sm:$0xf]
    %v230 = vld [vmem:[%s1 + $0xb4] sm:$0xf]
    %v231 = vld [vmem:[%s1 + $0xb8] sm:$0xf]
    %v232 = vld [vmem:[%s1 + $0xbc] sm:$0xf]
    %v233 = vld [vmem:[%s1 + $0xc0] sm:$0xf]
    %v234 = vld [vmem:[%s1 + $0xc4] sm:$0xf]
    %v235 = vld [vmem:[%s1 + $0xc8] sm:$0xf]
    %v236 = vld [vmem:[%s1 + $0xcc] sm:$0xf]
    %v237 = vld [vmem:[%s1 + $0xd0] sm:$0xf]
    %v238 = vld [vmem:[%s1 + $0xd4] sm:$0xf]
    %v239 = vld [vmem:[%s1 + $0xd8] sm:$0xf]
    %v240 = vld [vmem:[%s1 + $0xdc] sm:$0xf]
    %v241 = vld [vmem:[%s1 + $0xe0] sm:$0xf]
    %v242 = vld [vmem:[%s1 + $0xe4] sm:$0xf]
    %v243 = vld [vmem:[%s1 + $0xe8] sm:$0xf]
    %v244 = vld [vmem:[%s1 + $0xec] sm:$0xf]
    %v245 = vld [vmem:[%s1 + $0xf0] sm:$0xf]
    %v246 = vld [vmem:[%s1 + $0xf4] sm:$0xf]
    %v247 = vld [vmem:[%s1 + $0xf8] sm:$0xf]
    %v248 = vld [vmem:[%s1 + $0xfc] sm:$0xf]
    %v249 = vld [vmem:[%s1 + $0x100] sm:$0xf]
    %v250 = vld [vmem:[%s1 + $0x104] sm:$0xf]
    %v251 = vld [vmem:[%s1 + $0x108] sm:$0xf]
    %v252 = vld [vmem:[%s1 + $0x10c] sm:$0xf]
    %v253 = vld [vmem:[%s1 + $0x110] sm:$0xf]
    %v254 = vld [vmem:[%s1 + $0x114] sm:$0xf]
    %v255 = vld [vmem:[%s1 + $0x118] sm:$0xf]
    %v256 = vld [vmem:[%s1 + $0x11c] sm:$0xf]
    %v257 = vld [vmem:[%s1 + $0x120] sm:$0xf]
    %v258 = vld [vmem:[%s1 + $0x124] sm:$0xf]
    %v259 = vld [vmem:[%s1 + $0x128] sm:$0xf]
    %v260 = vld [vmem:[%s1 + $0x12c] sm:$0xf]
    %v261 = vld [vmem:[%s1 + $0x130] sm:$0xf]
    %v262 = vld [vmem:[%s1 + $0x134] sm:$0xf]
    %v263 = vld [vmem:[%s1 + $0x138] sm:$0xf]
    %v264 = vld [vmem:[%s1 + $0x13c] sm:$0xf]
    %v265 = vld [vmem:[%s1 + $0x140] sm:$0xf]
    %v266 = vld [vmem:[%s1 + $0x144] sm:$0xf]
    %v267 = vld [vmem:[%s1 + $0x148] sm:$0xf]
    %v268 = vld [vmem:[%s1 + $0x14c] sm:$0xf]
    %v269 = vld [vmem:[%s1 + $0x150] sm:$0xf]
    %v270 = vld [vmem:[%s1 + $0x154] sm:$0xf]
    %v271 = vld [vmem:[%s1 + $0x158] sm:$0xf]
    %v272 = vld [vmem:[%s1 + $0x15c] sm:$0xf]
    %v273 = vld [vmem:[%s1 + $0x160] sm:$0xf]
    %v274 = vld [vmem:[%s1 + $0x164] sm:$0xf]
    %v275 = vld [vmem:[%s1 + $0x168] sm:$0xf]
    %v276 = vld [vmem:[%s1 + $0x16c] sm:$0xf]
    %v277 = vld [vmem:[%s1 + $0x170] sm:$0xf]
    %v278 = vld [vmem:[%s1 + $0x174] sm:$0xf]
    %v279 = vld [vmem:[%s1 + $0x178] sm:$0xf]
    %v280 = vld [vmem:[%s1 + $0x17c] sm:$0xf]
    %v281 = vpack.c.bf16 %v179, %v179
    %v282 = vpack.c.bf16 %v180, %v180
    %v283 = vpack.c.bf16 %v181, %v181
    %v284 = vpack.c.bf16 %v182, %v182
    %v285 = vpack.c.bf16 %v183, %v183
    %v286 = vpack.c.bf16 %v184, %v184
    %v287 = vld [vmem:[%s2] sm:$0x1]
    %v289 = vlaneseq
    %v290 = vshrl.u32 %v289, 7
    %v291 = vsub.s32 0, %v290
    %v292 = vrot.slane %v287, %v291
    %v390 = vunpack.c.l.b16 %v185
    %v391 = vunpack.c.l.b16 %v186
    %v392 = vunpack.c.l.b16 %v187
    %v393 = vunpack.c.l.b16 %v188
    %v394 = vunpack.c.l.b16 %v189
    %v395 = vunpack.c.l.b16 %v190
    %v396 = vunpack.c.l.b16 %v191
    %v397 = vunpack.c.l.b16 %v192
    %v398 = vunpack.c.l.b16 %v193
    %v399 = vunpack.c.l.b16 %v194
    %v400 = vunpack.c.l.b16 %v195
    %v401 = vunpack.c.l.b16 %v196
    %v402 = vunpack.c.l.b16 %v197
    %v403 = vunpack.c.l.b16 %v198
    %v404 = vunpack.c.l.b16 %v199
    %v405 = vunpack.c.l.b16 %v200
    %v406 = vunpack.c.l.b16 %v201
    %v407 = vunpack.c.l.b16 %v202
    %v408 = vunpack.c.l.b16 %v203
    %v409 = vunpack.c.l.b16 %v204
    %v410 = vunpack.c.l.b16 %v205
    %v411 = vunpack.c.l.b16 %v206
    %v412 = vunpack.c.l.b16 %v207
    %v413 = vunpack.c.l.b16 %v208
    %v414 = vunpack.c.l.b16 %v209
    %v415 = vunpack.c.l.b16 %v210
    %v416 = vunpack.c.l.b16 %v211
    %v417 = vunpack.c.l.b16 %v212
    %v418 = vunpack.c.l.b16 %v213
    %v419 = vunpack.c.l.b16 %v214
    %v420 = vunpack.c.l.b16 %v215
    %v421 = vunpack.c.l.b16 %v216
    %v422 = vunpack.c.l.b16 %v217
    %v423 = vunpack.c.l.b16 %v218
    %v424 = vunpack.c.l.b16 %v219
    %v425 = vunpack.c.l.b16 %v220
    %v426 = vunpack.c.l.b16 %v221
    %v427 = vunpack.c.l.b16 %v222
    %v428 = vunpack.c.l.b16 %v223
    %v429 = vunpack.c.l.b16 %v224
    %v430 = vunpack.c.l.b16 %v225
    %v431 = vunpack.c.l.b16 %v226
    %v432 = vunpack.c.l.b16 %v227
    %v433 = vunpack.c.l.b16 %v228
    %v434 = vunpack.c.l.b16 %v229
    %v435 = vunpack.c.l.b16 %v230
    %v436 = vunpack.c.l.b16 %v231
    %v437 = vunpack.c.l.b16 %v232
    %v438 = vunpack.c.l.b16 %v233
    %v439 = vunpack.c.l.b16 %v234
    %v440 = vunpack.c.l.b16 %v235
    %v441 = vunpack.c.l.b16 %v236
    %v442 = vunpack.c.l.b16 %v237
    %v443 = vunpack.c.l.b16 %v238
    %v444 = vunpack.c.l.b16 %v239
    %v445 = vunpack.c.l.b16 %v240
    %v446 = vunpack.c.l.b16 %v241
    %v447 = vunpack.c.l.b16 %v242
    %v448 = vunpack.c.l.b16 %v243
    %v449 = vunpack.c.l.b16 %v244
    %v450 = vunpack.c.l.b16 %v245
    %v451 = vunpack.c.l.b16 %v246
    %v452 = vunpack.c.l.b16 %v247
    %v453 = vunpack.c.l.b16 %v248
    %v454 = vunpack.c.l.b16 %v249
    %v455 = vunpack.c.l.b16 %v250
    %v456 = vunpack.c.l.b16 %v251
    %v457 = vunpack.c.l.b16 %v252
    %v458 = vunpack.c.l.b16 %v253
    %v459 = vunpack.c.l.b16 %v254
    %v460 = vunpack.c.l.b16 %v255
    %v461 = vunpack.c.l.b16 %v256
    %v462 = vunpack.c.l.b16 %v257
    %v463 = vunpack.c.l.b16 %v258
    %v464 = vunpack.c.l.b16 %v259
    %v465 = vunpack.c.l.b16 %v260
    %v466 = vunpack.c.l.b16 %v261
    %v467 = vunpack.c.l.b16 %v262
    %v468 = vunpack.c.l.b16 %v263
    %v469 = vunpack.c.l.b16 %v264
    %v470 = vunpack.c.l.b16 %v265
    %v471 = vunpack.c.l.b16 %v266
    %v472 = vunpack.c.l.b16 %v267
    %v473 = vunpack.c.l.b16 %v268
    %v474 = vunpack.c.l.b16 %v269
    %v475 = vunpack.c.l.b16 %v270
    %v476 = vunpack.c.l.b16 %v271
    %v477 = vunpack.c.l.b16 %v272
    %v478 = vunpack.c.l.b16 %v273
    %v479 = vunpack.c.l.b16 %v274
    %v480 = vunpack.c.l.b16 %v275
    %v481 = vunpack.c.l.b16 %v276
    %v482 = vunpack.c.l.b16 %v277
    %v483 = vunpack.c.l.b16 %v278
    %v484 = vunpack.c.l.b16 %v279
    %v485 = vunpack.c.l.b16 %v280
    %v486 = vpack.c.b16 %v391, %v390
    %v487 = vpack.c.b16 %v393, %v392
    %v488 = vpack.c.b16 %v395, %v394
    %v489 = vpack.c.b16 %v397, %v396
    %v490 = vpack.c.b16 %v399, %v398
    %v491 = vpack.c.b16 %v401, %v400
    %v492 = vpack.c.b16 %v403, %v402
    %v493 = vpack.c.b16 %v405, %v404
    %v494 = vpack.c.b16 %v407, %v406
    %v495 = vpack.c.b16 %v409, %v408
    %v496 = vpack.c.b16 %v411, %v410
    %v497 = vpack.c.b16 %v413, %v412
    %v498 = vpack.c.b16 %v415, %v414
    %v499 = vpack.c.b16 %v417, %v416
    %v500 = vpack.c.b16 %v419, %v418
    %v501 = vpack.c.b16 %v421, %v420
    %v502 = vpack.c.b16 %v423, %v422
    %v503 = vpack.c.b16 %v425, %v424
    %v504 = vpack.c.b16 %v427, %v426
    %v505 = vpack.c.b16 %v429, %v428
    %v506 = vpack.c.b16 %v431, %v430
    %v507 = vpack.c.b16 %v433, %v432
    %v508 = vpack.c.b16 %v435, %v434
    %v509 = vpack.c.b16 %v437, %v436
    %v510 = vpack.c.b16 %v439, %v438
    %v511 = vpack.c.b16 %v441, %v440
    %v512 = vpack.c.b16 %v443, %v442
    %v513 = vpack.c.b16 %v445, %v444
    %v514 = vpack.c.b16 %v447, %v446
    %v515 = vpack.c.b16 %v449, %v448
    %v516 = vpack.c.b16 %v451, %v450
    %v517 = vpack.c.b16 %v453, %v452
    %v518 = vpack.c.b16 %v455, %v454
    %v519 = vpack.c.b16 %v457, %v456
    %v520 = vpack.c.b16 %v459, %v458
    %v521 = vpack.c.b16 %v461, %v460
    %v522 = vpack.c.b16 %v463, %v462
    %v523 = vpack.c.b16 %v465, %v464
    %v524 = vpack.c.b16 %v467, %v466
    %v525 = vpack.c.b16 %v469, %v468
    %v526 = vpack.c.b16 %v471, %v470
    %v527 = vpack.c.b16 %v473, %v472
    %v528 = vpack.c.b16 %v475, %v474
    %v529 = vpack.c.b16 %v477, %v476
    %v530 = vpack.c.b16 %v479, %v478
    %v531 = vpack.c.b16 %v481, %v480
    %v532 = vpack.c.b16 %v483, %v482
    %v533 = vpack.c.b16 %v485, %v484
    %582 = vmatprep.subr.bf16.mxu0 0
    %583 = vmatpush1.bf16.msra.mxu0 %v486
    %584 = vmatprep.subr.bf16.mxu0 0
    %585 = vmatpush1.bf16.msra.mxu0 %v487
    %586 = vmatprep.subr.bf16.mxu0 0
    %587 = vmatpush1.bf16.msra.mxu0 %v488
    %588 = vmatprep.subr.bf16.mxu0 0
    %589 = vmatpush1.bf16.msra.mxu0 %v489
    %590 = vmatprep.subr.bf16.mxu0 0
    %591 = vmatpush1.bf16.msra.mxu0 %v490
    %592 = vmatprep.subr.bf16.mxu0 0
    %593 = vmatpush1.bf16.msra.mxu0 %v491
    %594 = vmatprep.subr.bf16.mxu0 0
    %595 = vmatpush1.bf16.msra.mxu0 %v492
    %596 = vmatprep.subr.bf16.mxu0 0
    %597 = vmatpush1.bf16.msra.mxu0 %v493
    %598 = vmatprep.subr.bf16.mxu0 0
    %599 = vmatpush1.bf16.msra.mxu0 %v494
    %600 = vmatprep.subr.bf16.mxu0 0
    %601 = vmatpush1.bf16.msra.mxu0 %v495
    %602 = vmatprep.subr.bf16.mxu0 0
    %603 = vmatpush1.bf16.msra.mxu0 %v496
    %604 = vmatprep.subr.bf16.mxu0 0
    %605 = vmatpush1.bf16.msra.mxu0 %v497
    %606 = vmatprep.subr.bf16.mxu0 0
    %607 = vmatpush1.bf16.msra.mxu0 %v498
    %608 = vmatprep.subr.bf16.mxu0 0
    %609 = vmatpush1.bf16.msra.mxu0 %v499
    %610 = vmatprep.subr.bf16.mxu0 0
    %611 = vmatpush1.bf16.msra.mxu0 %v500
    %612 = vmatprep.subr.bf16.mxu0 0
    %613 = vmatpush1.bf16.msra.mxu0 %v501
    %614 = vmatprep.mubr.bf16.mxu0 %v282
    %615 = vmatmul.mubr.bf16.gmra.mrb[0].mxu0 %v281
    %v616 = vpop.f32.mrb[0].mxu0
    %v617 = vadd.f32 %v292, %v616
    %v618 = vpop.f32.mrb[0].mxu0
    %v619 = vpop.f32.mrb[0].mxu0
    %v620 = vpop.f32.mrb[0].mxu0
    %621 = vdwg.mxu0
    %622 = vmatprep.subr.bf16.mxu0 0
    %623 = vmatpush1.bf16.msra.mxu0 %v502
    %624 = vmatprep.subr.bf16.mxu0 0
    %625 = vmatpush1.bf16.msra.mxu0 %v503
    %626 = vmatprep.subr.bf16.mxu0 0
    %627 = vmatpush1.bf16.msra.mxu0 %v504
    %628 = vmatprep.subr.bf16.mxu0 0
    %629 = vmatpush1.bf16.msra.mxu0 %v505
    %630 = vmatprep.subr.bf16.mxu0 0
    %631 = vmatpush1.bf16.msra.mxu0 %v506
    %632 = vmatprep.subr.bf16.mxu0 0
    %633 = vmatpush1.bf16.msra.mxu0 %v507
    %634 = vmatprep.subr.bf16.mxu0 0
    %635 = vmatpush1.bf16.msra.mxu0 %v508
    %636 = vmatprep.subr.bf16.mxu0 0
    %637 = vmatpush1.bf16.msra.mxu0 %v509
    %638 = vmatprep.subr.bf16.mxu0 0
    %639 = vmatpush1.bf16.msra.mxu0 %v510
    %640 = vmatprep.subr.bf16.mxu0 0
    %641 = vmatpush1.bf16.msra.mxu0 %v511
    %642 = vmatprep.subr.bf16.mxu0 0
    %643 = vmatpush1.bf16.msra.mxu0 %v512
    %644 = vmatprep.subr.bf16.mxu0 0
    %645 = vmatpush1.bf16.msra.mxu0 %v513
    %646 = vmatprep.subr.bf16.mxu0 0
    %647 = vmatpush1.bf16.msra.mxu0 %v514
    %648 = vmatprep.subr.bf16.mxu0 0
    %649 = vmatpush1.bf16.msra.mxu0 %v515
    %650 = vmatprep.subr.bf16.mxu0 0
    %651 = vmatpush1.bf16.msra.mxu0 %v516
    %652 = vmatprep.subr.bf16.mxu0 0
    %653 = vmatpush1.bf16.msra.mxu0 %v517
    %654 = vmatprep.mubr.bf16.mxu0 %v284
    %655 = vmatmul.mubr.bf16.gmra.mrb[0].mxu0 %v283
    %v656 = vpop.f32.mrb[0].mxu0
    %v657 = vadd.f32 %v617, %v656
    %v658 = vpop.f32.mrb[0].mxu0
    %v659 = vpop.f32.mrb[0].mxu0
    %v660 = vpop.f32.mrb[0].mxu0
    %661 = vdwg.mxu0
    %662 = vmatprep.subr.bf16.mxu0 0
    %663 = vmatpush1.bf16.msra.mxu0 %v518
    %664 = vmatprep.subr.bf16.mxu0 0
    %665 = vmatpush1.bf16.msra.mxu0 %v519
    %666 = vmatprep.subr.bf16.mxu0 0
    %667 = vmatpush1.bf16.msra.mxu0 %v520
    %668 = vmatprep.subr.bf16.mxu0 0
    %669 = vmatpush1.bf16.msra.mxu0 %v521
    %670 = vmatprep.subr.bf16.mxu0 0
    %671 = vmatpush1.bf16.msra.mxu0 %v522
    %672 = vmatprep.subr.bf16.mxu0 0
    %673 = vmatpush1.bf16.msra.mxu0 %v523
    %674 = vmatprep.subr.bf16.mxu0 0
    %675 = vmatpush1.bf16.msra.mxu0 %v524
    %676 = vmatprep.subr.bf16.mxu0 0
    %677 = vmatpush1.bf16.msra.mxu0 %v525
    %678 = vmatprep.subr.bf16.mxu0 0
    %679 = vmatpush1.bf16.msra.mxu0 %v526
    %680 = vmatprep.subr.bf16.mxu0 0
    %681 = vmatpush1.bf16.msra.mxu0 %v527
    %682 = vmatprep.subr.bf16.mxu0 0
    %683 = vmatpush1.bf16.msra.mxu0 %v528
    %684 = vmatprep.subr.bf16.mxu0 0
    %685 = vmatpush1.bf16.msra.mxu0 %v529
    %686 = vmatprep.subr.bf16.mxu0 0
    %687 = vmatpush1.bf16.msra.mxu0 %v530
    %688 = vmatprep.subr.bf16.mxu0 0
    %689 = vmatpush1.bf16.msra.mxu0 %v531
    %690 = vmatprep.subr.bf16.mxu0 0
    %691 = vmatpush1.bf16.msra.mxu0 %v532
    %692 = vmatprep.subr.bf16.mxu0 0
    %693 = vmatpush1.bf16.msra.mxu0 %v533
    %694 = vmatprep.mubr.bf16.mxu0 %v286
    %695 = vmatmul.mubr.bf16.gmra.mrb[0].mxu0 %v285
    %v696 = vpop.f32.mrb[0].mxu0
    %v697 = vadd.f32 %v657, %v696
    %v698 = vpop.f32.mrb[0].mxu0
    %v699 = vpop.f32.mrb[0].mxu0
    %v700 = vpop.f32.mrb[0].mxu0
    %701 = vdwg.mxu0
    %v702 = vld [vmem:[%s4] sm:$0x1f]
    %v703 = vld [vmem:[%s3] sm:$0x1]
    %v704 = vadd.f32 %v703, %v702
    %v706 = vrot.slane %v702, 1
    %v708 = vadd.f32 %v697, %v706
    %v709 = vrot.slane %v702, 5
    %v711 = vadd.f32 %v697, %v709
    %v713 = vrot.slane %v708, 7
    %v716 = vrot.slane %v711, 3
    %vm718 = vcmask 1040384
    %v719 = vsel %vm718, %v704, %v713
    %vm720 = vcmask 1044480
    %v721 = vsel %vm720, %v719, 0.0
    %v722 = vsel %vm718, %v704, %v716
    %v723 = vsel %vm720, %v722, 0.0
    %v724 = vlaneseq
    %v725 = vand.u32 %v724, 127
    %vm726 = vcmp.lt.s32.totalorder %v725, 5
    %v727 = vld [vmem:[%s5] sm:$0x1]
    %v728 = vld [vmem:[#allocation2] sm:$0x1]
    %v729 = vld [vmem:[#allocation8] sm:$0x1]
    %v730 = vld [vmem:[#allocation10] sm:$0x1]
    %v731 = vld [vmem:[%s8] sm:$0x7]
    %v732 = vld [vmem:[#allocation7] sm:$0x1]
    %v733 = vld [vmem:[#allocation11] sm:$0xf]
    %v734 = vld [vmem:[#allocation13] sm:$0x1]
    %735 = vadd.xlane.f32.xlu0 %v721
    %v736 = vpop.xlane.xlu0 %735
    %737 = vadd.xlane.f32.xlu0 %v723
    %v738 = vpop.xlane.xlu0 %737
    %v739 = vrcp.pop 128.0
    %v740 = vmul.f32 %v736, %v739
    %v741 = vmul.f32 %v738, %v739
    %v742 = vsub.f32 %v721, %v740
    %v743 = vsub.f32 %v723, %v741
    %v744 = vmul.f32 %v742, %v742
    %v745 = vmul.f32 %v743, %v743
    %746 = vadd.xlane.f32.xlu0 %v744
    %v747 = vpop.xlane.xlu0 %746
    %748 = vadd.xlane.f32.xlu0 %v745
    %v749 = vpop.xlane.xlu0 %748
    %v750 = vmul.f32 %v747, %v739
    %v751 = vmul.f32 %v749, %v739
    %v752 = vadd.f32 %v750, 1e-06
    %v753 = vadd.f32 %v751, 1e-06
    %v754 = vrsqrt.pop %v752
    %v755 = vrsqrt.pop %v753
    %v756 = vmul.f32 %v742, %v754
    %v757 = vmul.f32 %v743, %v755
    %v759 = vlaneseq
    %v760 = vshrl.u32 %v759, 7
    %v761 = vsub.s32 0, %v760
    %v762 = vrot.slane %v727, %v761
    %v764 = vmul.f32 %v756, %v762
    %v765 = vmul.f32 %v757, %v762
    %v767 = vlaneseq
    %v768 = vshrl.u32 %v767, 7
    %v769 = vsub.s32 0, %v768
    %v770 = vrot.slane %v728, %v769
    %v772 = vadd.f32 %v764, %v770
    %v773 = vadd.f32 %v765, %v770
    %v774 = vld [vmem:[%s7] sm:$0xff]
    %v775 = vld [vmem:[%s7 + $0x8] sm:$0xf]
    %v776 = vld [vmem:[%s7 + $0xc] sm:$0xff]
    %v777 = vld [vmem:[%s7 + $0x14] sm:$0xf]
    %v778 = vld [vmem:[%s7 + $0x18] sm:$0xff]
    %v779 = vld [vmem:[%s7 + $0x20] sm:$0xf]
    %v780 = vld [vmem:[%s7 + $0x24] sm:$0xff]
    %v781 = vld [vmem:[%s7 + $0x2c] sm:$0xf]
    %v782 = vld [vmem:[%s7 + $0x30] sm:$0xff]
    %v783 = vld [vmem:[%s7 + $0x38] sm:$0xf]
    %v784 = vld [vmem:[%s7 + $0x3c] sm:$0xff]
    %v785 = vld [vmem:[%s7 + $0x44] sm:$0xf]
    %v786 = vld [vmem:[%s7 + $0x48] sm:$0xff]
    %v787 = vld [vmem:[%s7 + $0x50] sm:$0xf]
    %v788 = vld [vmem:[%s7 + $0x54] sm:$0xff]
    %v789 = vld [vmem:[%s7 + $0x5c] sm:$0xf]
    %v790 = vld [vmem:[%s7 + $0x60] sm:$0xff]
    %v791 = vld [vmem:[%s7 + $0x68] sm:$0xf]
    %v792 = vld [vmem:[%s7 + $0x6c] sm:$0xff]
    %v793 = vld [vmem:[%s7 + $0x74] sm:$0xf]
    %v794 = vld [vmem:[%s7 + $0x78] sm:$0xff]
    %v795 = vld [vmem:[%s7 + $0x80] sm:$0xf]
    %v796 = vld [vmem:[%s7 + $0x84] sm:$0xff]
    %v797 = vld [vmem:[%s7 + $0x8c] sm:$0xf]
    %v798 = vld [vmem:[%s7 + $0x90] sm:$0xff]
    %v799 = vld [vmem:[%s7 + $0x98] sm:$0xf]
    %v800 = vld [vmem:[%s7 + $0x9c] sm:$0xff]
    %v801 = vld [vmem:[%s7 + $0xa4] sm:$0xf]
    %v802 = vld [vmem:[%s7 + $0xa8] sm:$0xff]
    %v803 = vld [vmem:[%s7 + $0xb0] sm:$0xf]
    %v804 = vld [vmem:[%s7 + $0xb4] sm:$0xff]
    %v805 = vld [vmem:[%s7 + $0xbc] sm:$0xf]
    %v806 = vpack.c.bf16 %v773, %v772
    %v808 = vlaneseq
    %v809 = vshrl.u32 %v808, 7
    %v810 = vsub.s32 0, %v809
    %v811 = vrot.slane %v731, %v810
    %v812 = vlaneseq
    %v813 = vshrl.u32 %v812, 7
    %v814 = vsub.s32 1, %v813
    %v815 = vrot.slane %v731, %v814
    %v816 = vlaneseq
    %v817 = vshrl.u32 %v816, 7
    %v818 = vsub.s32 2, %v817
    %v819 = vrot.slane %v731, %v818
    %v855 = vunpack.c.l.b16 %v774
    %v856 = vunpack.c.h.b16 %v774
    %v857 = vunpack.c.l.b16 %v775
    %v858 = vunpack.c.l.b16 %v776
    %v859 = vunpack.c.h.b16 %v776
    %v860 = vunpack.c.l.b16 %v777
    %v861 = vunpack.c.l.b16 %v778
    %v862 = vunpack.c.h.b16 %v778
    %v863 = vunpack.c.l.b16 %v779
    %v864 = vunpack.c.l.b16 %v780
    %v865 = vunpack.c.h.b16 %v780
    %v866 = vunpack.c.l.b16 %v781
    %v867 = vunpack.c.l.b16 %v782
    %v868 = vunpack.c.h.b16 %v782
    %v869 = vunpack.c.l.b16 %v783
    %v870 = vunpack.c.l.b16 %v784
    %v871 = vunpack.c.h.b16 %v784
    %v872 = vunpack.c.l.b16 %v785
    %v873 = vunpack.c.l.b16 %v786
    %v874 = vunpack.c.h.b16 %v786
    %v875 = vunpack.c.l.b16 %v787
    %v876 = vunpack.c.l.b16 %v788
    %v877 = vunpack.c.h.b16 %v788
    %v878 = vunpack.c.l.b16 %v789
    %v879 = vunpack.c.l.b16 %v790
    %v880 = vunpack.c.h.b16 %v790
    %v881 = vunpack.c.l.b16 %v791
    %v882 = vunpack.c.l.b16 %v792
    %v883 = vunpack.c.h.b16 %v792
    %v884 = vunpack.c.l.b16 %v793
    %v885 = vunpack.c.l.b16 %v794
    %v886 = vunpack.c.h.b16 %v794
    %v887 = vunpack.c.l.b16 %v795
    %v888 = vunpack.c.l.b16 %v796
    %v889 = vunpack.c.h.b16 %v796
    %v890 = vunpack.c.l.b16 %v797
    %v891 = vunpack.c.l.b16 %v798
    %v892 = vunpack.c.h.b16 %v798
    %v893 = vunpack.c.l.b16 %v799
    %v894 = vunpack.c.l.b16 %v800
    %v895 = vunpack.c.h.b16 %v800
    %v896 = vunpack.c.l.b16 %v801
    %v897 = vunpack.c.l.b16 %v802
    %v898 = vunpack.c.h.b16 %v802
    %v899 = vunpack.c.l.b16 %v803
    %v900 = vunpack.c.l.b16 %v804
    %v901 = vunpack.c.h.b16 %v804
    %v902 = vunpack.c.l.b16 %v805
    %v903 = vpack.c.b16 %v858, %v855
    %v904 = vpack.c.b16 %v859, %v856
    %v905 = vpack.c.b16 %v860, %v857
    %v906 = vpack.c.b16 %v864, %v861
    %v907 = vpack.c.b16 %v865, %v862
    %v908 = vpack.c.b16 %v866, %v863
    %v909 = vpack.c.b16 %v870, %v867
    %v910 = vpack.c.b16 %v871, %v868
    %v911 = vpack.c.b16 %v872, %v869
    %v912 = vpack.c.b16 %v876, %v873
    %v913 = vpack.c.b16 %v877, %v874
    %v914 = vpack.c.b16 %v878, %v875
    %v915 = vpack.c.b16 %v882, %v879
    %v916 = vpack.c.b16 %v883, %v880
    %v917 = vpack.c.b16 %v884, %v881
    %v918 = vpack.c.b16 %v888, %v885
    %v919 = vpack.c.b16 %v889, %v886
    %v920 = vpack.c.b16 %v890, %v887
    %v921 = vpack.c.b16 %v894, %v891
    %v922 = vpack.c.b16 %v895, %v892
    %v923 = vpack.c.b16 %v896, %v893
    %v924 = vpack.c.b16 %v900, %v897
    %v925 = vpack.c.b16 %v901, %v898
    %v926 = vpack.c.b16 %v902, %v899
    %951 = vmatprep.subr.bf16.mxu0 %v904
    %952 = vmatpush1.bf16.msra.mxu0 %v903
    %953 = vmatprep.subr.bf16.mxu0 %v907
    %954 = vmatpush1.bf16.msra.mxu0 %v906
    %955 = vmatprep.subr.bf16.mxu0 %v910
    %956 = vmatpush1.bf16.msra.mxu0 %v909
    %957 = vmatprep.subr.bf16.mxu0 %v913
    %958 = vmatpush1.bf16.msra.mxu0 %v912
    %959 = vmatprep.subr.bf16.mxu0 %v916
    %960 = vmatpush1.bf16.msra.mxu0 %v915
    %961 = vmatprep.subr.bf16.mxu0 %v919
    %962 = vmatpush1.bf16.msra.mxu0 %v918
    %963 = vmatprep.subr.bf16.mxu0 %v922
    %964 = vmatpush1.bf16.msra.mxu0 %v921
    %965 = vmatprep.subr.bf16.mxu0 %v925
    %966 = vmatpush1.bf16.msra.mxu0 %v924
    %967 = vmatprep.subr.bf16.mxu0 0
    %968 = vmatpush1.bf16.msra.mxu0 0
    %969 = vmatprep.subr.bf16.mxu0 0
    %970 = vmatpush1.bf16.msra.mxu0 0
    %971 = vmatprep.subr.bf16.mxu0 0
    %972 = vmatpush1.bf16.msra.mxu0 0
    %973 = vmatprep.subr.bf16.mxu0 0
    %974 = vmatpush1.bf16.msra.mxu0 0
    %975 = vmatprep.subr.bf16.mxu0 0
    %976 = vmatpush1.bf16.msra.mxu0 0
    %977 = vmatprep.subr.bf16.mxu0 0
    %978 = vmatpush1.bf16.msra.mxu0 0
    %979 = vmatprep.subr.bf16.mxu0 0
    %980 = vmatpush1.bf16.msra.mxu0 0
    %981 = vmatprep.subr.bf16.mxu0 0
    %982 = vmatpush1.bf16.msra.mxu0 0
    %983 = vmatprep.mubr.bf16.mxu0 0
    %984 = vmatmul.mubr.bf16.gmra.mrb[0].mxu0 %v806
    %v985 = vpop.f32.mrb[0].mxu0
    %v986 = vadd.f32 %v811, %v985
    %v987 = vpop.f32.mrb[0].mxu0
    %v988 = vadd.f32 %v815, %v987
    %v989 = vpop.f32.mrb[0].mxu0
    %v990 = vadd.f32 %v811, %v989
    %v991 = vpop.f32.mrb[0].mxu0
    %v992 = vadd.f32 %v815, %v991
    %993 = vdwg.mxu0
    %994 = vmatprep.subr.bf16.mxu0 0
    %995 = vmatpush1.bf16.msra.mxu0 %v905
    %996 = vmatprep.subr.bf16.mxu0 0
    %997 = vmatpush1.bf16.msra.mxu0 %v908
    %998 = vmatprep.subr.bf16.mxu0 0
    %999 = vmatpush1.bf16.msra.mxu0 %v911
    %1000 = vmatprep.subr.bf16.mxu0 0
    %1001 = vmatpush1.bf16.msra.mxu0 %v914
    %1002 = vmatprep.subr.bf16.mxu0 0
    %1003 = vmatpush1.bf16.msra.mxu0 %v917
    %1004 = vmatprep.subr.bf16.mxu0 0
    %1005 = vmatpush1.bf16.msra.mxu0 %v920
    %1006 = vmatprep.subr.bf16.mxu0 0
    %1007 = vmatpush1.bf16.msra.mxu0 %v923
    %1008 = vmatprep.subr.bf16.mxu0 0
    %1009 = vmatpush1.bf16.msra.mxu0 %v926
    %1010 = vmatprep.subr.bf16.mxu0 0
    %1011 = vmatpush1.bf16.msra.mxu0 0
    %1012 = vmatprep.subr.bf16.mxu0 0
    %1013 = vmatpush1.bf16.msra.mxu0 0
    %1014 = vmatprep.subr.bf16.mxu0 0
    %1015 = vmatpush1.bf16.msra.mxu0 0
    %1016 = vmatprep.subr.bf16.mxu0 0
    %1017 = vmatpush1.bf16.msra.mxu0 0
    %1018 = vmatprep.subr.bf16.mxu0 0
    %1019 = vmatpush1.bf16.msra.mxu0 0
    %1020 = vmatprep.subr.bf16.mxu0 0
    %1021 = vmatpush1.bf16.msra.mxu0 0
    %1022 = vmatprep.subr.bf16.mxu0 0
    %1023 = vmatpush1.bf16.msra.mxu0 0
    %1024 = vmatprep.subr.bf16.mxu0 0
    %1025 = vmatpush1.bf16.msra.mxu0 0
    %1026 = vmatprep.mubr.bf16.mxu0 0
    %1027 = vmatmul.mubr.bf16.gmra.mrb[0].mxu0 %v806
    %v1028 = vpop.f32.mrb[0].mxu0
    %v1029 = vadd.f32 %v819, %v1028
    %v1030 = vpop.f32.mrb[0].mxu0
    %v1031 = vpop.f32.mrb[0].mxu0
    %v1032 = vadd.f32 %v819, %v1031
    %v1033 = vpop.f32.mrb[0].mxu0
    %1034 = vdwg.mxu0
    %v1035 = vpack.c.bf16 %v986, %v986
    %v1036 = vpack.c.bf16 %v988, %v988
    %vm1037 = vcmask 261120
    %v1039 = vsel %vm1037, %v1035, 0
    %v1042 = vsel %vm1037, %v1036, 0
    %1044 = vmatprep.subr.bf16.mxu0 0
    %1045 = vmatpush1.bf16.xpose.msra.mxu0 %v1042
    %1046 = vmatprep.subr.bf16.mxu0 0
    %1047 = vmatpush1.bf16.xpose.msra.mxu0 0
    %1048 = vmatprep.subr.bf16.mxu0 0
    %1049 = vmatpush1.bf16.xpose.msra.mxu0 0
    %1050 = vmatprep.subr.bf16.mxu0 0
    %1051 = vmatpush1.bf16.xpose.msra.mxu0 0
    %1052 = vmatprep.subr.bf16.mxu0 0
    %1053 = vmatpush1.bf16.xpose.msra.mxu0 0
    %1054 = vmatprep.subr.bf16.mxu0 0
    %1055 = vmatpush1.bf16.xpose.msra.mxu0 0
    %1056 = vmatprep.subr.bf16.mxu0 0
    %1057 = vmatpush1.bf16.xpose.msra.mxu0 0
    %1058 = vmatprep.subr.bf16.mxu0 0
    %1059 = vmatpush1.bf16.xpose.msra.mxu0 0
    %1060 = vmatprep.subr.bf16.mxu0 0
    %1061 = vmatpush1.bf16.xpose.msra.mxu0 0
    %1062 = vmatprep.subr.bf16.mxu0 0
    %1063 = vmatpush1.bf16.xpose.msra.mxu0 0
    %1064 = vmatprep.subr.bf16.mxu0 0
    %1065 = vmatpush1.bf16.xpose.msra.mxu0 0
    %1066 = vmatprep.subr.bf16.mxu0 0
    %1067 = vmatpush1.bf16.xpose.msra.mxu0 0
    %1068 = vmatprep.subr.bf16.mxu0 0
    %1069 = vmatpush1.bf16.xpose.msra.mxu0 0
    %1070 = vmatprep.subr.bf16.mxu0 0
    %1071 = vmatpush1.bf16.xpose.msra.mxu0 0
    %1072 = vmatprep.subr.bf16.mxu0 0
    %1073 = vmatpush1.bf16.xpose.msra.mxu0 0
    %1074 = vmatprep.subr.bf16.mxu0 0
    %1075 = vmatpush1.bf16.xpose.msra.mxu0 0
    %1076 = vmatprep.mubr.bf16.mxu0 0
    %1077 = vmatmul.mubr.bf16.gmra.mrb[0].mxu0 %v1039
    %v1078 = vpop.f32.mrb[0].mxu0
    %v1079 = vadd.f32 0.0, %v1078
    %v1080 = vpop.f32.mrb[0].mxu0
    %v1081 = vpop.f32.mrb[0].mxu0
    %v1082 = vpop.f32.mrb[0].mxu0
    %1083 = vdwg.mxu0
    %v1084 = vmul.f32 %v1079, 0.17677669
    %v1085 = vsel %vm726, %v1084, -1e+30
    %vm1086 = vcmask 64512
    %v1087 = vsel %vm1086, %v1085, -inf
    %1088 = vmax.xlane.f32.xlu0 %v1087
    %v1089 = vpop.xlane.xlu0 %1088
    %v1090 = vsub.f32 %v1085, %v1089
    %v1091 = vmul.f32 %v1090, 1.442695
    %v1092 = vpow.pop %v1091
    %v1093 = vsel %vm1086, %v1092, 0.0
    %1094 = vadd.xlane.f32.xlu0 %v1093
    %v1095 = vpop.xlane.xlu0 %1094
    %v1096 = vrcp.pop %v1095
    %v1097 = vmul.f32 %v1092, %v1096
    %v1098 = vpack.c.bf16 %v1097, %v1097
    %v1099 = vpack.c.bf16 %v1029, %v1029
    %v1101 = vsel %vm1086, %v1098, 0
    %vm1103 = vcmask 1043456
    %v1105 = vsel %vm1103, %v1099, 0
    %1107 = vmatprep.subr.bf16.mxu0 0
    %1108 = vmatpush1.bf16.msra.mxu0 %v1105
    %1109 = vmatprep.subr.bf16.mxu0 0
    %1110 = vmatpush1.bf16.msra.mxu0 0
    %1111 = vmatprep.subr.bf16.mxu0 0
    %1112 = vmatpush1.bf16.msra.mxu0 0
    %1113 = vmatprep.subr.bf16.mxu0 0
    %1114 = vmatpush1.bf16.msra.mxu0 0
    %1115 = vmatprep.subr.bf16.mxu0 0
    %1116 = vmatpush1.bf16.msra.mxu0 0
    %1117 = vmatprep.subr.bf16.mxu0 0
    %1118 = vmatpush1.bf16.msra.mxu0 0
    %1119 = vmatprep.subr.bf16.mxu0 0
    %1120 = vmatpush1.bf16.msra.mxu0 0
    %1121 = vmatprep.subr.bf16.mxu0 0
    %1122 = vmatpush1.bf16.msra.mxu0 0
    %1123 = vmatprep.subr.bf16.mxu0 0
    %1124 = vmatpush1.bf16.msra.mxu0 0
    %1125 = vmatprep.subr.bf16.mxu0 0
    %1126 = vmatpush1.bf16.msra.mxu0 0
    %1127 = vmatprep.subr.bf16.mxu0 0
    %1128 = vmatpush1.bf16.msra.mxu0 0
    %1129 = vmatprep.subr.bf16.mxu0 0
    %1130 = vmatpush1.bf16.msra.mxu0 0
    %1131 = vmatprep.subr.bf16.mxu0 0
    %1132 = vmatpush1.bf16.msra.mxu0 0
    %1133 = vmatprep.subr.bf16.mxu0 0
    %1134 = vmatpush1.bf16.msra.mxu0 0
    %1135 = vmatprep.subr.bf16.mxu0 0
    %1136 = vmatpush1.bf16.msra.mxu0 0
    %1137 = vmatprep.subr.bf16.mxu0 0
    %1138 = vmatpush1.bf16.msra.mxu0 0
    %1139 = vmatprep.mubr.bf16.mxu0 0
    %1140 = vmatmul.mubr.bf16.gmra.mrb[0].mxu0 %v1101
    %v1141 = vpop.f32.mrb[0].mxu0
    %v1142 = vadd.f32 0.0, %v1141
    %v1143 = vpop.f32.mrb[0].mxu0
    %v1144 = vpop.f32.mrb[0].mxu0
    %v1145 = vpop.f32.mrb[0].mxu0
    %1146 = vdwg.mxu0
    %1148 = vrot.lane.b32.xlu0 %v1035, 96
    %v1149 = vpop.permute.xlu0 %1148
    %1151 = vrot.lane.b32.xlu0 %v1036, 96
    %v1152 = vpop.permute.xlu0 %1151
    %v1154 = vsel %vm1037, %v1149, 0
    %v1157 = vsel %vm1037, %v1152, 0
    %1159 = vmatprep.subr.bf16.mxu0 0
    %1160 = vmatpush1.bf16.xpose.msra.mxu0 %v1157
    %1161 = vmatprep.subr.bf16.mxu0 0
    %1162 = vmatpush1.bf16.xpose.msra.mxu0 0
    %1163 = vmatprep.subr.bf16.mxu0 0
    %1164 = vmatpush1.bf16.xpose.msra.mxu0 0
    %1165 = vmatprep.subr.bf16.mxu0 0
    %1166 = vmatpush1.bf16.xpose.msra.mxu0 0
    %1167 = vmatprep.subr.bf16.mxu0 0
    %1168 = vmatpush1.bf16.xpose.msra.mxu0 0
    %1169 = vmatprep.subr.bf16.mxu0 0
    %1170 = vmatpush1.bf16.xpose.msra.mxu0 0
    %1171 = vmatprep.subr.bf16.mxu0 0
    %1172 = vmatpush1.bf16.xpose.msra.mxu0 0
    %1173 = vmatprep.subr.bf16.mxu0 0
    %1174 = vmatpush1.bf16.xpose.msra.mxu0 0
    %1175 = vmatprep.subr.bf16.mxu0 0
    %1176 = vmatpush1.bf16.xpose.msra.mxu0 0
    %1177 = vmatprep.subr.bf16.mxu0 0
    %1178 = vmatpush1.bf16.xpose.msra.mxu0 0
    %1179 = vmatprep.subr.bf16.mxu0 0
    %1180 = vmatpush1.bf16.xpose.msra.mxu0 0
    %1181 = vmatprep.subr.bf16.mxu0 0
    %1182 = vmatpush1.bf16.xpose.msra.mxu0 0
    %1183 = vmatprep.subr.bf16.mxu0 0
    %1184 = vmatpush1.bf16.xpose.msra.mxu0 0
    %1185 = vmatprep.subr.bf16.mxu0 0
    %1186 = vmatpush1.bf16.xpose.msra.mxu0 0
    %1187 = vmatprep.subr.bf16.mxu0 0
    %1188 = vmatpush1.bf16.xpose.msra.mxu0 0
    %1189 = vmatprep.subr.bf16.mxu0 0
    %1190 = vmatpush1.bf16.xpose.msra.mxu0 0
    %1191 = vmatprep.mubr.bf16.mxu0 0
    %1192 = vmatmul.mubr.bf16.gmra.mrb[0].mxu0 %v1154
    %v1193 = vpop.f32.mrb[0].mxu0
    %v1194 = vadd.f32 0.0, %v1193
    %v1195 = vpop.f32.mrb[0].mxu0
    %v1196 = vpop.f32.mrb[0].mxu0
    %v1197 = vpop.f32.mrb[0].mxu0
    %1198 = vdwg.mxu0
    %v1199 = vmul.f32 %v1194, 0.17677669
    %v1200 = vsel %vm726, %v1199, -1e+30
    %v1201 = vsel %vm1086, %v1200, -inf
    %1202 = vmax.xlane.f32.xlu0 %v1201
    %v1203 = vpop.xlane.xlu0 %1202
    %v1204 = vsub.f32 %v1200, %v1203
    %v1205 = vmul.f32 %v1204, 1.442695
    %v1206 = vpow.pop %v1205
    %v1207 = vsel %vm1086, %v1206, 0.0
    %1208 = vadd.xlane.f32.xlu0 %v1207
    %v1209 = vpop.xlane.xlu0 %1208
    %v1210 = vrcp.pop %v1209
    %v1211 = vmul.f32 %v1206, %v1210
    %v1212 = vpack.c.bf16 %v1211, %v1211
    %1214 = vrot.lane.b32.xlu0 %v1099, 96
    %v1215 = vpop.permute.xlu0 %1214
    %v1217 = vsel %vm1086, %v1212, 0
    %v1220 = vsel %vm1103, %v1215, 0
    %1222 = vmatprep.subr.bf16.mxu0 0
    %1223 = vmatpush1.bf16.msra.mxu0 %v1220
    %1224 = vmatprep.subr.bf16.mxu0 0
    %1225 = vmatpush1.bf16.msra.mxu0 0
    %1226 = vmatprep.subr.bf16.mxu0 0
    %1227 = vmatpush1.bf16.msra.mxu0 0
    %1228 = vmatprep.subr.bf16.mxu0 0
    %1229 = vmatpush1.bf16.msra.mxu0 0
    %1230 = vmatprep.subr.bf16.mxu0 0
    %1231 = vmatpush1.bf16.msra.mxu0 0
    %1232 = vmatprep.subr.bf16.mxu0 0
    %1233 = vmatpush1.bf16.msra.mxu0 0
    %1234 = vmatprep.subr.bf16.mxu0 0
    %1235 = vmatpush1.bf16.msra.mxu0 0
    %1236 = vmatprep.subr.bf16.mxu0 0
    %1237 = vmatpush1.bf16.msra.mxu0 0
    %1238 = vmatprep.subr.bf16.mxu0 0
    %1239 = vmatpush1.bf16.msra.mxu0 0
    %1240 = vmatprep.subr.bf16.mxu0 0
    %1241 = vmatpush1.bf16.msra.mxu0 0
    %1242 = vmatprep.subr.bf16.mxu0 0
    %1243 = vmatpush1.bf16.msra.mxu0 0
    %1244 = vmatprep.subr.bf16.mxu0 0
    %1245 = vmatpush1.bf16.msra.mxu0 0
    %1246 = vmatprep.subr.bf16.mxu0 0
    %1247 = vmatpush1.bf16.msra.mxu0 0
    %1248 = vmatprep.subr.bf16.mxu0 0
    %1249 = vmatpush1.bf16.msra.mxu0 0
    %1250 = vmatprep.subr.bf16.mxu0 0
    %1251 = vmatpush1.bf16.msra.mxu0 0
    %1252 = vmatprep.subr.bf16.mxu0 0
    %1253 = vmatpush1.bf16.msra.mxu0 0
    %1254 = vmatprep.mubr.bf16.mxu0 0
    %1255 = vmatmul.mubr.bf16.gmra.mrb[0].mxu0 %v1217
    %v1256 = vpop.f32.mrb[0].mxu0
    %v1257 = vadd.f32 0.0, %v1256
    %v1258 = vpop.f32.mrb[0].mxu0
    %v1259 = vpop.f32.mrb[0].mxu0
    %v1260 = vpop.f32.mrb[0].mxu0
    %1261 = vdwg.mxu0
    %1262 = vrot.lane.b32.xlu0 %v1035, 64
    %v1263 = vpop.permute.xlu0 %1262
    %1264 = vrot.lane.b32.xlu0 %v1036, 64
    %v1265 = vpop.permute.xlu0 %1264
    %v1267 = vsel %vm1037, %v1263, 0
    %v1270 = vsel %vm1037, %v1265, 0
    %1272 = vmatprep.subr.bf16.mxu0 0
    %1273 = vmatpush1.bf16.xpose.msra.mxu0 %v1270
    %1274 = vmatprep.subr.bf16.mxu0 0
    %1275 = vmatpush1.bf16.xpose.msra.mxu0 0
    %1276 = vmatprep.subr.bf16.mxu0 0
    %1277 = vmatpush1.bf16.xpose.msra.mxu0 0
    %1278 = vmatprep.subr.bf16.mxu0 0
    %1279 = vmatpush1.bf16.xpose.msra.mxu0 0
    %1280 = vmatprep.subr.bf16.mxu0 0
    %1281 = vmatpush1.bf16.xpose.msra.mxu0 0
    %1282 = vmatprep.subr.bf16.mxu0 0
    %1283 = vmatpush1.bf16.xpose.msra.mxu0 0
    %1284 = vmatprep.subr.bf16.mxu0 0
    %1285 = vmatpush1.bf16.xpose.msra.mxu0 0
    %1286 = vmatprep.subr.bf16.mxu0 0
    %1287 = vmatpush1.bf16.xpose.msra.mxu0 0
    %1288 = vmatprep.subr.bf16.mxu0 0
    %1289 = vmatpush1.bf16.xpose.msra.mxu0 0
    %1290 = vmatprep.subr.bf16.mxu0 0
    %1291 = vmatpush1.bf16.xpose.msra.mxu0 0
    %1292 = vmatprep.subr.bf16.mxu0 0
    %1293 = vmatpush1.bf16.xpose.msra.mxu0 0
    %1294 = vmatprep.subr.bf16.mxu0 0
    %1295 = vmatpush1.bf16.xpose.msra.mxu0 0
    %1296 = vmatprep.subr.bf16.mxu0 0
    %1297 = vmatpush1.bf16.xpose.msra.mxu0 0
    %1298 = vmatprep.subr.bf16.mxu0 0
    %1299 = vmatpush1.bf16.xpose.msra.mxu0 0
    %1300 = vmatprep.subr.bf16.mxu0 0
    %1301 = vmatpush1.bf16.xpose.msra.mxu0 0
    %1302 = vmatprep.subr.bf16.mxu0 0
    %1303 = vmatpush1.bf16.xpose.msra.mxu0 0
    %1304 = vmatprep.mubr.bf16.mxu0 0
    %1305 = vmatmul.mubr.bf16.gmra.mrb[0].mxu0 %v1267
    %v1306 = vpop.f32.mrb[0].mxu0
    %v1307 = vadd.f32 0.0, %v1306
    %v1308 = vpop.f32.mrb[0].mxu0
    %v1309 = vpop.f32.mrb[0].mxu0
    %v1310 = vpop.f32.mrb[0].mxu0
    %1311 = vdwg.mxu0
    %v1312 = vmul.f32 %v1307, 0.17677669
    %v1313 = vsel %vm726, %v1312, -1e+30
    %v1314 = vsel %vm1086, %v1313, -inf
    %1315 = vmax.xlane.f32.xlu0 %v1314
    %v1316 = vpop.xlane.xlu0 %1315
    %v1317 = vsub.f32 %v1313, %v1316
    %v1318 = vmul.f32 %v1317, 1.442695
    %v1319 = vpow.pop %v1318
    %v1320 = vsel %vm1086, %v1319, 0.0
    %1321 = vadd.xlane.f32.xlu0 %v1320
    %v1322 = vpop.xlane.xlu0 %1321
    %v1323 = vrcp.pop %v1322
    %v1324 = vmul.f32 %v1319, %v1323
    %v1325 = vpack.c.bf16 %v1324, %v1324
    %1326 = vrot.lane.b32.xlu0 %v1099, 64
    %v1327 = vpop.permute.xlu0 %1326
    %v1329 = vsel %vm1086, %v1325, 0
    %v1332 = vsel %vm1103, %v1327, 0
    %1334 = vmatprep.subr.bf16.mxu0 0
    %1335 = vmatpush1.bf16.msra.mxu0 %v1332
    %1336 = vmatprep.subr.bf16.mxu0 0
    %1337 = vmatpush1.bf16.msra.mxu0 0
    %1338 = vmatprep.subr.bf16.mxu0 0
    %1339 = vmatpush1.bf16.msra.mxu0 0
    %1340 = vmatprep.subr.bf16.mxu0 0
    %1341 = vmatpush1.bf16.msra.mxu0 0
    %1342 = vmatprep.subr.bf16.mxu0 0
    %1343 = vmatpush1.bf16.msra.mxu0 0
    %1344 = vmatprep.subr.bf16.mxu0 0
    %1345 = vmatpush1.bf16.msra.mxu0 0
    %1346 = vmatprep.subr.bf16.mxu0 0
    %1347 = vmatpush1.bf16.msra.mxu0 0
    %1348 = vmatprep.subr.bf16.mxu0 0
    %1349 = vmatpush1.bf16.msra.mxu0 0
    %1350 = vmatprep.subr.bf16.mxu0 0
    %1351 = vmatpush1.bf16.msra.mxu0 0
    %1352 = vmatprep.subr.bf16.mxu0 0
    %1353 = vmatpush1.bf16.msra.mxu0 0
    %1354 = vmatprep.subr.bf16.mxu0 0
    %1355 = vmatpush1.bf16.msra.mxu0 0
    %1356 = vmatprep.subr.bf16.mxu0 0
    %1357 = vmatpush1.bf16.msra.mxu0 0
    %1358 = vmatprep.subr.bf16.mxu0 0
    %1359 = vmatpush1.bf16.msra.mxu0 0
    %1360 = vmatprep.subr.bf16.mxu0 0
    %1361 = vmatpush1.bf16.msra.mxu0 0
    %1362 = vmatprep.subr.bf16.mxu0 0
    %1363 = vmatpush1.bf16.msra.mxu0 0
    %1364 = vmatprep.subr.bf16.mxu0 0
    %1365 = vmatpush1.bf16.msra.mxu0 0
    %1366 = vmatprep.mubr.bf16.mxu0 0
    %1367 = vmatmul.mubr.bf16.gmra.mrb[0].mxu0 %v1329
    %v1368 = vpop.f32.mrb[0].mxu0
    %v1369 = vadd.f32 0.0, %v1368
    %v1370 = vpop.f32.mrb[0].mxu0
    %v1371 = vpop.f32.mrb[0].mxu0
    %v1372 = vpop.f32.mrb[0].mxu0
    %1373 = vdwg.mxu0
    %1374 = vrot.lane.b32.xlu0 %v1035, 32
    %v1375 = vpop.permute.xlu0 %1374
    %1376 = vrot.lane.b32.xlu0 %v1036, 32
    %v1377 = vpop.permute.xlu0 %1376
    %v1379 = vsel %vm1037, %v1375, 0
    %v1382 = vsel %vm1037, %v1377, 0
    %1384 = vmatprep.subr.bf16.mxu0 0
    %1385 = vmatpush1.bf16.xpose.msra.mxu0 %v1382
    %1386 = vmatprep.subr.bf16.mxu0 0
    %1387 = vmatpush1.bf16.xpose.msra.mxu0 0
    %1388 = vmatprep.subr.bf16.mxu0 0
    %1389 = vmatpush1.bf16.xpose.msra.mxu0 0
    %1390 = vmatprep.subr.bf16.mxu0 0
    %1391 = vmatpush1.bf16.xpose.msra.mxu0 0
    %1392 = vmatprep.subr.bf16.mxu0 0
    %1393 = vmatpush1.bf16.xpose.msra.mxu0 0
    %1394 = vmatprep.subr.bf16.mxu0 0
    %1395 = vmatpush1.bf16.xpose.msra.mxu0 0
    %1396 = vmatprep.subr.bf16.mxu0 0
    %1397 = vmatpush1.bf16.xpose.msra.mxu0 0
    %1398 = vmatprep.subr.bf16.mxu0 0
    %1399 = vmatpush1.bf16.xpose.msra.mxu0 0
    %1400 = vmatprep.subr.bf16.mxu0 0
    %1401 = vmatpush1.bf16.xpose.msra.mxu0 0
    %1402 = vmatprep.subr.bf16.mxu0 0
    %1403 = vmatpush1.bf16.xpose.msra.mxu0 0
    %1404 = vmatprep.subr.bf16.mxu0 0
    %1405 = vmatpush1.bf16.xpose.msra.mxu0 0
    %1406 = vmatprep.subr.bf16.mxu0 0
    %1407 = vmatpush1.bf16.xpose.msra.mxu0 0
    %1408 = vmatprep.subr.bf16.mxu0 0
    %1409 = vmatpush1.bf16.xpose.msra.mxu0 0
    %1410 = vmatprep.subr.bf16.mxu0 0
    %1411 = vmatpush1.bf16.xpose.msra.mxu0 0
    %1412 = vmatprep.subr.bf16.mxu0 0
    %1413 = vmatpush1.bf16.xpose.msra.mxu0 0
    %1414 = vmatprep.subr.bf16.mxu0 0
    %1415 = vmatpush1.bf16.xpose.msra.mxu0 0
    %1416 = vmatprep.mubr.bf16.mxu0 0
    %1417 = vmatmul.mubr.bf16.gmra.mrb[0].mxu0 %v1379
    %v1418 = vpop.f32.mrb[0].mxu0
    %v1419 = vadd.f32 0.0, %v1418
    %v1420 = vpop.f32.mrb[0].mxu0
    %v1421 = vpop.f32.mrb[0].mxu0
    %v1422 = vpop.f32.mrb[0].mxu0
    %1423 = vdwg.mxu0
    %v1424 = vmul.f32 %v1419, 0.17677669
    %v1425 = vsel %vm726, %v1424, -1e+30
    %v1426 = vsel %vm1086, %v1425, -inf
    %1427 = vmax.xlane.f32.xlu0 %v1426
    %v1428 = vpop.xlane.xlu0 %1427
    %v1429 = vsub.f32 %v1425, %v1428
    %v1430 = vmul.f32 %v1429, 1.442695
    %v1431 = vpow.pop %v1430
    %v1432 = vsel %vm1086, %v1431, 0.0
    %1433 = vadd.xlane.f32.xlu0 %v1432
    %v1434 = vpop.xlane.xlu0 %1433
    %v1435 = vrcp.pop %v1434
    %v1436 = vmul.f32 %v1431, %v1435
    %v1437 = vpack.c.bf16 %v1436, %v1436
    %1438 = vrot.lane.b32.xlu0 %v1099, 32
    %v1439 = vpop.permute.xlu0 %1438
    %v1441 = vsel %vm1086, %v1437, 0
    %v1444 = vsel %vm1103, %v1439, 0
    %1446 = vmatprep.subr.bf16.mxu0 0
    %1447 = vmatpush1.bf16.msra.mxu0 %v1444
    %1448 = vmatprep.subr.bf16.mxu0 0
    %1449 = vmatpush1.bf16.msra.mxu0 0
    %1450 = vmatprep.subr.bf16.mxu0 0
    %1451 = vmatpush1.bf16.msra.mxu0 0
    %1452 = vmatprep.subr.bf16.mxu0 0
    %1453 = vmatpush1.bf16.msra.mxu0 0
    %1454 = vmatprep.subr.bf16.mxu0 0
    %1455 = vmatpush1.bf16.msra.mxu0 0
    %1456 = vmatprep.subr.bf16.mxu0 0
    %1457 = vmatpush1.bf16.msra.mxu0 0
    %1458 = vmatprep.subr.bf16.mxu0 0
    %1459 = vmatpush1.bf16.msra.mxu0 0
    %1460 = vmatprep.subr.bf16.mxu0 0
    %1461 = vmatpush1.bf16.msra.mxu0 0
    %1462 = vmatprep.subr.bf16.mxu0 0
    %1463 = vmatpush1.bf16.msra.mxu0 0
    %1464 = vmatprep.subr.bf16.mxu0 0
    %1465 = vmatpush1.bf16.msra.mxu0 0
    %1466 = vmatprep.subr.bf16.mxu0 0
    %1467 = vmatpush1.bf16.msra.mxu0 0
    %1468 = vmatprep.subr.bf16.mxu0 0
    %1469 = vmatpush1.bf16.msra.mxu0 0
    %1470 = vmatprep.subr.bf16.mxu0 0
    %1471 = vmatpush1.bf16.msra.mxu0 0
    %1472 = vmatprep.subr.bf16.mxu0 0
    %1473 = vmatpush1.bf16.msra.mxu0 0
    %1474 = vmatprep.subr.bf16.mxu0 0
    %1475 = vmatpush1.bf16.msra.mxu0 0
    %1476 = vmatprep.subr.bf16.mxu0 0
    %1477 = vmatpush1.bf16.msra.mxu0 0
    %1478 = vmatprep.mubr.bf16.mxu0 0
    %1479 = vmatmul.mubr.bf16.gmra.mrb[0].mxu0 %v1441
    %v1480 = vpop.f32.mrb[0].mxu0
    %v1481 = vadd.f32 0.0, %v1480
    %v1482 = vpop.f32.mrb[0].mxu0
    %v1483 = vpop.f32.mrb[0].mxu0
    %v1484 = vpop.f32.mrb[0].mxu0
    %1485 = vdwg.mxu0
    %1487 = vrot.lane.b32.xlu0 %v1257, 32
    %v1488 = vpop.permute.xlu0 %1487
    %1491 = vrot.lane.b32.xlu0 %v1369, 64
    %v1492 = vpop.permute.xlu0 %1491
    %1495 = vrot.lane.b32.xlu0 %v1481, 96
    %v1496 = vpop.permute.xlu0 %1495
    %v1498 = vsel %vm1037, %v1142, %v1488
    %vm1499 = vcmask 523264
    %v1500 = vsel %vm1499, %v1498, %v1492
    %vm1501 = vcmask 785408
    %v1502 = vsel %vm1501, %v1500, %v1496
    %v1503 = vpack.c.bf16 %v990, %v990
    %v1504 = vpack.c.bf16 %v992, %v992
    %v1506 = vsel %vm1037, %v1503, 0
    %v1509 = vsel %vm1037, %v1504, 0
    %1511 = vmatprep.subr.bf16.mxu0 0
    %1512 = vmatpush1.bf16.xpose.msra.mxu0 %v1509
    %1513 = vmatprep.subr.bf16.mxu0 0
    %1514 = vmatpush1.bf16.xpose.msra.mxu0 0
    %1515 = vmatprep.subr.bf16.mxu0 0
    %1516 = vmatpush1.bf16.xpose.msra.mxu0 0
    %1517 = vmatprep.subr.bf16.mxu0 0
    %1518 = vmatpush1.bf16.xpose.msra.mxu0 0
    %1519 = vmatprep.subr.bf16.mxu0 0
    %1520 = vmatpush1.bf16.xpose.msra.mxu0 0
    %1521 = vmatprep.subr.bf16.mxu0 0
    %1522 = vmatpush1.bf16.xpose.msra.mxu0 0
    %1523 = vmatprep.subr.bf16.mxu0 0
    %1524 = vmatpush1.bf16.xpose.msra.mxu0 0
    %1525 = vmatprep.subr.bf16.mxu0 0
    %1526 = vmatpush1.bf16.xpose.msra.mxu0 0
    %1527 = vmatprep.subr.bf16.mxu0 0
    %1528 = vmatpush1.bf16.xpose.msra.mxu0 0
    %1529 = vmatprep.subr.bf16.mxu0 0
    %1530 = vmatpush1.bf16.xpose.msra.mxu0 0
    %1531 = vmatprep.subr.bf16.mxu0 0
    %1532 = vmatpush1.bf16.xpose.msra.mxu0 0
    %1533 = vmatprep.subr.bf16.mxu0 0
    %1534 = vmatpush1.bf16.xpose.msra.mxu0 0
    %1535 = vmatprep.subr.bf16.mxu0 0
    %1536 = vmatpush1.bf16.xpose.msra.mxu0 0
    %1537 = vmatprep.subr.bf16.mxu0 0
    %1538 = vmatpush1.bf16.xpose.msra.mxu0 0
    %1539 = vmatprep.subr.bf16.mxu0 0
    %1540 = vmatpush1.bf16.xpose.msra.mxu0 0
    %1541 = vmatprep.subr.bf16.mxu0 0
    %1542 = vmatpush1.bf16.xpose.msra.mxu0 0
    %1543 = vmatprep.mubr.bf16.mxu0 0
    %1544 = vmatmul.mubr.bf16.gmra.mrb[0].mxu0 %v1506
    %v1545 = vpop.f32.mrb[0].mxu0
    %v1546 = vadd.f32 0.0, %v1545
    %v1547 = vpop.f32.mrb[0].mxu0
    %v1548 = vpop.f32.mrb[0].mxu0
    %v1549 = vpop.f32.mrb[0].mxu0
    %1550 = vdwg.mxu0
    %v1551 = vmul.f32 %v1546, 0.17677669
    %v1552 = vsel %vm726, %v1551, -1e+30
    %v1553 = vsel %vm1086, %v1552, -inf
    %1554 = vmax.xlane.f32.xlu0 %v1553
    %v1555 = vpop.xlane.xlu0 %1554
    %v1556 = vsub.f32 %v1552, %v1555
    %v1557 = vmul.f32 %v1556, 1.442695
    %v1558 = vpow.pop %v1557
    %v1559 = vsel %vm1086, %v1558, 0.0
    %1560 = vadd.xlane.f32.xlu0 %v1559
    %v1561 = vpop.xlane.xlu0 %1560
    %v1562 = vrcp.pop %v1561
    %v1563 = vmul.f32 %v1558, %v1562
    %v1564 = vpack.c.bf16 %v1563, %v1563
    %v1565 = vpack.c.bf16 %v1032, %v1032
    %v1567 = vsel %vm1086, %v1564, 0
    %v1570 = vsel %vm1103, %v1565, 0
    %1572 = vmatprep.subr.bf16.mxu0 0
    %1573 = vmatpush1.bf16.msra.mxu0 %v1570
    %1574 = vmatprep.subr.bf16.mxu0 0
    %1575 = vmatpush1.bf16.msra.mxu0 0
    %1576 = vmatprep.subr.bf16.mxu0 0
    %1577 = vmatpush1.bf16.msra.mxu0 0
    %1578 = vmatprep.subr.bf16.mxu0 0
    %1579 = vmatpush1.bf16.msra.mxu0 0
    %1580 = vmatprep.subr.bf16.mxu0 0
    %1581 = vmatpush1.bf16.msra.mxu0 0
    %1582 = vmatprep.subr.bf16.mxu0 0
    %1583 = vmatpush1.bf16.msra.mxu0 0
    %1584 = vmatprep.subr.bf16.mxu0 0
    %1585 = vmatpush1.bf16.msra.mxu0 0
    %1586 = vmatprep.subr.bf16.mxu0 0
    %1587 = vmatpush1.bf16.msra.mxu0 0
    %1588 = vmatprep.subr.bf16.mxu0 0
    %1589 = vmatpush1.bf16.msra.mxu0 0
    %1590 = vmatprep.subr.bf16.mxu0 0
    %1591 = vmatpush1.bf16.msra.mxu0 0
    %1592 = vmatprep.subr.bf16.mxu0 0
    %1593 = vmatpush1.bf16.msra.mxu0 0
    %1594 = vmatprep.subr.bf16.mxu0 0
    %1595 = vmatpush1.bf16.msra.mxu0 0
    %1596 = vmatprep.subr.bf16.mxu0 0
    %1597 = vmatpush1.bf16.msra.mxu0 0
    %1598 = vmatprep.subr.bf16.mxu0 0
    %1599 = vmatpush1.bf16.msra.mxu0 0
    %1600 = vmatprep.subr.bf16.mxu0 0
    %1601 = vmatpush1.bf16.msra.mxu0 0
    %1602 = vmatprep.subr.bf16.mxu0 0
    %1603 = vmatpush1.bf16.msra.mxu0 0
    %1604 = vmatprep.mubr.bf16.mxu0 0
    %1605 = vmatmul.mubr.bf16.gmra.mrb[0].mxu0 %v1567
    %v1606 = vpop.f32.mrb[0].mxu0
    %v1607 = vadd.f32 0.0, %v1606
    %v1608 = vpop.f32.mrb[0].mxu0
    %v1609 = vpop.f32.mrb[0].mxu0
    %v1610 = vpop.f32.mrb[0].mxu0
    %1611 = vdwg.mxu0
    %1613 = vrot.lane.b32.xlu0 %v1503, 96
    %v1614 = vpop.permute.xlu0 %1613
    %1616 = vrot.lane.b32.xlu0 %v1504, 96
    %v1617 = vpop.permute.xlu0 %1616
    %v1619 = vsel %vm1037, %v1614, 0
    %v1622 = vsel %vm1037, %v1617, 0
    %1624 = vmatprep.subr.bf16.mxu0 0
    %1625 = vmatpush1.bf16.xpose.msra.mxu0 %v1622
    %1626 = vmatprep.subr.bf16.mxu0 0
    %1627 = vmatpush1.bf16.xpose.msra.mxu0 0
    %1628 = vmatprep.subr.bf16.mxu0 0
    %1629 = vmatpush1.bf16.xpose.msra.mxu0 0
    %1630 = vmatprep.subr.bf16.mxu0 0
    %1631 = vmatpush1.bf16.xpose.msra.mxu0 0
    %1632 = vmatprep.subr.bf16.mxu0 0
    %1633 = vmatpush1.bf16.xpose.msra.mxu0 0
    %1634 = vmatprep.subr.bf16.mxu0 0
    %1635 = vmatpush1.bf16.xpose.msra.mxu0 0
    %1636 = vmatprep.subr.bf16.mxu0 0
    %1637 = vmatpush1.bf16.xpose.msra.mxu0 0
    %1638 = vmatprep.subr.bf16.mxu0 0
    %1639 = vmatpush1.bf16.xpose.msra.mxu0 0
    %1640 = vmatprep.subr.bf16.mxu0 0
    %1641 = vmatpush1.bf16.xpose.msra.mxu0 0
    %1642 = vmatprep.subr.bf16.mxu0 0
    %1643 = vmatpush1.bf16.xpose.msra.mxu0 0
    %1644 = vmatprep.subr.bf16.mxu0 0
    %1645 = vmatpush1.bf16.xpose.msra.mxu0 0
    %1646 = vmatprep.subr.bf16.mxu0 0
    %1647 = vmatpush1.bf16.xpose.msra.mxu0 0
    %1648 = vmatprep.subr.bf16.mxu0 0
    %1649 = vmatpush1.bf16.xpose.msra.mxu0 0
    %1650 = vmatprep.subr.bf16.mxu0 0
    %1651 = vmatpush1.bf16.xpose.msra.mxu0 0
    %1652 = vmatprep.subr.bf16.mxu0 0
    %1653 = vmatpush1.bf16.xpose.msra.mxu0 0
    %1654 = vmatprep.subr.bf16.mxu0 0
    %1655 = vmatpush1.bf16.xpose.msra.mxu0 0
    %1656 = vmatprep.mubr.bf16.mxu0 0
    %1657 = vmatmul.mubr.bf16.gmra.mrb[0].mxu0 %v1619
    %v1658 = vpop.f32.mrb[0].mxu0
    %v1659 = vadd.f32 0.0, %v1658
    %v1660 = vpop.f32.mrb[0].mxu0
    %v1661 = vpop.f32.mrb[0].mxu0
    %v1662 = vpop.f32.mrb[0].mxu0
    %1663 = vdwg.mxu0
    %v1664 = vmul.f32 %v1659, 0.17677669
    %v1665 = vsel %vm726, %v1664, -1e+30
    %v1666 = vsel %vm1086, %v1665, -inf
    %1667 = vmax.xlane.f32.xlu0 %v1666
    %v1668 = vpop.xlane.xlu0 %1667
    %v1669 = vsub.f32 %v1665, %v1668
    %v1670 = vmul.f32 %v1669, 1.442695
    %v1671 = vpow.pop %v1670
    %v1672 = vsel %vm1086, %v1671, 0.0
    %1673 = vadd.xlane.f32.xlu0 %v1672
    %v1674 = vpop.xlane.xlu0 %1673
    %v1675 = vrcp.pop %v1674
    %v1676 = vmul.f32 %v1671, %v1675
    %v1677 = vpack.c.bf16 %v1676, %v1676
    %1679 = vrot.lane.b32.xlu0 %v1565, 96
    %v1680 = vpop.permute.xlu0 %1679
    %v1682 = vsel %vm1086, %v1677, 0
    %v1685 = vsel %vm1103, %v1680, 0
    %1687 = vmatprep.subr.bf16.mxu0 0
    %1688 = vmatpush1.bf16.msra.mxu0 %v1685
    %1689 = vmatprep.subr.bf16.mxu0 0
    %1690 = vmatpush1.bf16.msra.mxu0 0
    %1691 = vmatprep.subr.bf16.mxu0 0
    %1692 = vmatpush1.bf16.msra.mxu0 0
    %1693 = vmatprep.subr.bf16.mxu0 0
    %1694 = vmatpush1.bf16.msra.mxu0 0
    %1695 = vmatprep.subr.bf16.mxu0 0
    %1696 = vmatpush1.bf16.msra.mxu0 0
    %1697 = vmatprep.subr.bf16.mxu0 0
    %1698 = vmatpush1.bf16.msra.mxu0 0
    %1699 = vmatprep.subr.bf16.mxu0 0
    %1700 = vmatpush1.bf16.msra.mxu0 0
    %1701 = vmatprep.subr.bf16.mxu0 0
    %1702 = vmatpush1.bf16.msra.mxu0 0
    %1703 = vmatprep.subr.bf16.mxu0 0
    %1704 = vmatpush1.bf16.msra.mxu0 0
    %1705 = vmatprep.subr.bf16.mxu0 0
    %1706 = vmatpush1.bf16.msra.mxu0 0
    %1707 = vmatprep.subr.bf16.mxu0 0
    %1708 = vmatpush1.bf16.msra.mxu0 0
    %1709 = vmatprep.subr.bf16.mxu0 0
    %1710 = vmatpush1.bf16.msra.mxu0 0
    %1711 = vmatprep.subr.bf16.mxu0 0
    %1712 = vmatpush1.bf16.msra.mxu0 0
    %1713 = vmatprep.subr.bf16.mxu0 0
    %1714 = vmatpush1.bf16.msra.mxu0 0
    %1715 = vmatprep.subr.bf16.mxu0 0
    %1716 = vmatpush1.bf16.msra.mxu0 0
    %1717 = vmatprep.subr.bf16.mxu0 0
    %1718 = vmatpush1.bf16.msra.mxu0 0
    %1719 = vmatprep.mubr.bf16.mxu0 0
    %1720 = vmatmul.mubr.bf16.gmra.mrb[0].mxu0 %v1682
    %v1721 = vpop.f32.mrb[0].mxu0
    %v1722 = vadd.f32 0.0, %v1721
    %v1723 = vpop.f32.mrb[0].mxu0
    %v1724 = vpop.f32.mrb[0].mxu0
    %v1725 = vpop.f32.mrb[0].mxu0
    %1726 = vdwg.mxu0
    %1727 = vrot.lane.b32.xlu0 %v1503, 64
    %v1728 = vpop.permute.xlu0 %1727
    %1729 = vrot.lane.b32.xlu0 %v1504, 64
    %v1730 = vpop.permute.xlu0 %1729
    %v1732 = vsel %vm1037, %v1728, 0
    %v1735 = vsel %vm1037, %v1730, 0
    %1737 = vmatprep.subr.bf16.mxu0 0
    %1738 = vmatpush1.bf16.xpose.msra.mxu0 %v1735
    %1739 = vmatprep.subr.bf16.mxu0 0
    %1740 = vmatpush1.bf16.xpose.msra.mxu0 0
    %1741 = vmatprep.subr.bf16.mxu0 0
    %1742 = vmatpush1.bf16.xpose.msra.mxu0 0
    %1743 = vmatprep.subr.bf16.mxu0 0
    %1744 = vmatpush1.bf16.xpose.msra.mxu0 0
    %1745 = vmatprep.subr.bf16.mxu0 0
    %1746 = vmatpush1.bf16.xpose.msra.mxu0 0
    %1747 = vmatprep.subr.bf16.mxu0 0
    %1748 = vmatpush1.bf16.xpose.msra.mxu0 0
    %1749 = vmatprep.subr.bf16.mxu0 0
    %1750 = vmatpush1.bf16.xpose.msra.mxu0 0
    %1751 = vmatprep.subr.bf16.mxu0 0
    %1752 = vmatpush1.bf16.xpose.msra.mxu0 0
    %1753 = vmatprep.subr.bf16.mxu0 0
    %1754 = vmatpush1.bf16.xpose.msra.mxu0 0
    %1755 = vmatprep.subr.bf16.mxu0 0
    %1756 = vmatpush1.bf16.xpose.msra.mxu0 0
    %1757 = vmatprep.subr.bf16.mxu0 0
    %1758 = vmatpush1.bf16.xpose.msra.mxu0 0
    %1759 = vmatprep.subr.bf16.mxu0 0
    %1760 = vmatpush1.bf16.xpose.msra.mxu0 0
    %1761 = vmatprep.subr.bf16.mxu0 0
    %1762 = vmatpush1.bf16.xpose.msra.mxu0 0
    %1763 = vmatprep.subr.bf16.mxu0 0
    %1764 = vmatpush1.bf16.xpose.msra.mxu0 0
    %1765 = vmatprep.subr.bf16.mxu0 0
    %1766 = vmatpush1.bf16.xpose.msra.mxu0 0
    %1767 = vmatprep.subr.bf16.mxu0 0
    %1768 = vmatpush1.bf16.xpose.msra.mxu0 0
    %1769 = vmatprep.mubr.bf16.mxu0 0
    %1770 = vmatmul.mubr.bf16.gmra.mrb[0].mxu0 %v1732
    %v1771 = vpop.f32.mrb[0].mxu0
    %v1772 = vadd.f32 0.0, %v1771
    %v1773 = vpop.f32.mrb[0].mxu0
    %v1774 = vpop.f32.mrb[0].mxu0
    %v1775 = vpop.f32.mrb[0].mxu0
    %1776 = vdwg.mxu0
    %v1777 = vmul.f32 %v1772, 0.17677669
    %v1778 = vsel %vm726, %v1777, -1e+30
    %v1779 = vsel %vm1086, %v1778, -inf
    %1780 = vmax.xlane.f32.xlu0 %v1779
    %v1781 = vpop.xlane.xlu0 %1780
    %v1782 = vsub.f32 %v1778, %v1781
    %v1783 = vmul.f32 %v1782, 1.442695
    %v1784 = vpow.pop %v1783
    %v1785 = vsel %vm1086, %v1784, 0.0
    %1786 = vadd.xlane.f32.xlu0 %v1785
    %v1787 = vpop.xlane.xlu0 %1786
    %v1788 = vrcp.pop %v1787
    %v1789 = vmul.f32 %v1784, %v1788
    %v1790 = vpack.c.bf16 %v1789, %v1789
    %1791 = vrot.lane.b32.xlu0 %v1565, 64
    %v1792 = vpop.permute.xlu0 %1791
    %v1794 = vsel %vm1086, %v1790, 0
    %v1797 = vsel %vm1103, %v1792, 0
    %1799 = vmatprep.subr.bf16.mxu0 0
    %1800 = vmatpush1.bf16.msra.mxu0 %v1797
    %1801 = vmatprep.subr.bf16.mxu0 0
    %1802 = vmatpush1.bf16.msra.mxu0 0
    %1803 = vmatprep.subr.bf16.mxu0 0
    %1804 = vmatpush1.bf16.msra.mxu0 0
    %1805 = vmatprep.subr.bf16.mxu0 0
    %1806 = vmatpush1.bf16.msra.mxu0 0
    %1807 = vmatprep.subr.bf16.mxu0 0
    %1808 = vmatpush1.bf16.msra.mxu0 0
    %1809 = vmatprep.subr.bf16.mxu0 0
    %1810 = vmatpush1.bf16.msra.mxu0 0
    %1811 = vmatprep.subr.bf16.mxu0 0
    %1812 = vmatpush1.bf16.msra.mxu0 0
    %1813 = vmatprep.subr.bf16.mxu0 0
    %1814 = vmatpush1.bf16.msra.mxu0 0
    %1815 = vmatprep.subr.bf16.mxu0 0
    %1816 = vmatpush1.bf16.msra.mxu0 0
    %1817 = vmatprep.subr.bf16.mxu0 0
    %1818 = vmatpush1.bf16.msra.mxu0 0
    %1819 = vmatprep.subr.bf16.mxu0 0
    %1820 = vmatpush1.bf16.msra.mxu0 0
    %1821 = vmatprep.subr.bf16.mxu0 0
    %1822 = vmatpush1.bf16.msra.mxu0 0
    %1823 = vmatprep.subr.bf16.mxu0 0
    %1824 = vmatpush1.bf16.msra.mxu0 0
    %1825 = vmatprep.subr.bf16.mxu0 0
    %1826 = vmatpush1.bf16.msra.mxu0 0
    %1827 = vmatprep.subr.bf16.mxu0 0
    %1828 = vmatpush1.bf16.msra.mxu0 0
    %1829 = vmatprep.subr.bf16.mxu0 0
    %1830 = vmatpush1.bf16.msra.mxu0 0
    %1831 = vmatprep.mubr.bf16.mxu0 0
    %1832 = vmatmul.mubr.bf16.gmra.mrb[0].mxu0 %v1794
    %v1833 = vpop.f32.mrb[0].mxu0
    %v1834 = vadd.f32 0.0, %v1833
    %v1835 = vpop.f32.mrb[0].mxu0
    %v1836 = vpop.f32.mrb[0].mxu0
    %v1837 = vpop.f32.mrb[0].mxu0
    %1838 = vdwg.mxu0
    %1839 = vrot.lane.b32.xlu0 %v1503, 32
    %v1840 = vpop.permute.xlu0 %1839
    %1841 = vrot.lane.b32.xlu0 %v1504, 32
    %v1842 = vpop.permute.xlu0 %1841
    %v1844 = vsel %vm1037, %v1840, 0
    %v1847 = vsel %vm1037, %v1842, 0
    %1849 = vmatprep.subr.bf16.mxu0 0
    %1850 = vmatpush1.bf16.xpose.msra.mxu0 %v1847
    %1851 = vmatprep.subr.bf16.mxu0 0
    %1852 = vmatpush1.bf16.xpose.msra.mxu0 0
    %1853 = vmatprep.subr.bf16.mxu0 0
    %1854 = vmatpush1.bf16.xpose.msra.mxu0 0
    %1855 = vmatprep.subr.bf16.mxu0 0
    %1856 = vmatpush1.bf16.xpose.msra.mxu0 0
    %1857 = vmatprep.subr.bf16.mxu0 0
    %1858 = vmatpush1.bf16.xpose.msra.mxu0 0
    %1859 = vmatprep.subr.bf16.mxu0 0
    %1860 = vmatpush1.bf16.xpose.msra.mxu0 0
    %1861 = vmatprep.subr.bf16.mxu0 0
    %1862 = vmatpush1.bf16.xpose.msra.mxu0 0
    %1863 = vmatprep.subr.bf16.mxu0 0
    %1864 = vmatpush1.bf16.xpose.msra.mxu0 0
    %1865 = vmatprep.subr.bf16.mxu0 0
    %1866 = vmatpush1.bf16.xpose.msra.mxu0 0
    %1867 = vmatprep.subr.bf16.mxu0 0
    %1868 = vmatpush1.bf16.xpose.msra.mxu0 0
    %1869 = vmatprep.subr.bf16.mxu0 0
    %1870 = vmatpush1.bf16.xpose.msra.mxu0 0
    %1871 = vmatprep.subr.bf16.mxu0 0
    %1872 = vmatpush1.bf16.xpose.msra.mxu0 0
    %1873 = vmatprep.subr.bf16.mxu0 0
    %1874 = vmatpush1.bf16.xpose.msra.mxu0 0
    %1875 = vmatprep.subr.bf16.mxu0 0
    %1876 = vmatpush1.bf16.xpose.msra.mxu0 0
    %1877 = vmatprep.subr.bf16.mxu0 0
    %1878 = vmatpush1.bf16.xpose.msra.mxu0 0
    %1879 = vmatprep.subr.bf16.mxu0 0
    %1880 = vmatpush1.bf16.xpose.msra.mxu0 0
    %1881 = vmatprep.mubr.bf16.mxu0 0
    %1882 = vmatmul.mubr.bf16.gmra.mrb[0].mxu0 %v1844
    %v1883 = vpop.f32.mrb[0].mxu0
    %v1884 = vadd.f32 0.0, %v1883
    %v1885 = vpop.f32.mrb[0].mxu0
    %v1886 = vpop.f32.mrb[0].mxu0
    %v1887 = vpop.f32.mrb[0].mxu0
    %1888 = vdwg.mxu0
    %v1889 = vmul.f32 %v1884, 0.17677669
    %v1890 = vsel %vm726, %v1889, -1e+30
    %v1891 = vsel %vm1086, %v1890, -inf
    %1892 = vmax.xlane.f32.xlu0 %v1891
    %v1893 = vpop.xlane.xlu0 %1892
    %v1894 = vsub.f32 %v1890, %v1893
    %v1895 = vmul.f32 %v1894, 1.442695
    %v1896 = vpow.pop %v1895
    %v1897 = vsel %vm1086, %v1896, 0.0
    %1898 = vadd.xlane.f32.xlu0 %v1897
    %v1899 = vpop.xlane.xlu0 %1898
    %v1900 = vrcp.pop %v1899
    %v1901 = vmul.f32 %v1896, %v1900
    %v1902 = vpack.c.bf16 %v1901, %v1901
    %1903 = vrot.lane.b32.xlu0 %v1565, 32
    %v1904 = vpop.permute.xlu0 %1903
    %v1906 = vsel %vm1086, %v1902, 0
    %v1909 = vsel %vm1103, %v1904, 0
    %1911 = vmatprep.subr.bf16.mxu0 0
    %1912 = vmatpush1.bf16.msra.mxu0 %v1909
    %1913 = vmatprep.subr.bf16.mxu0 0
    %1914 = vmatpush1.bf16.msra.mxu0 0
    %1915 = vmatprep.subr.bf16.mxu0 0
    %1916 = vmatpush1.bf16.msra.mxu0 0
    %1917 = vmatprep.subr.bf16.mxu0 0
    %1918 = vmatpush1.bf16.msra.mxu0 0
    %1919 = vmatprep.subr.bf16.mxu0 0
    %1920 = vmatpush1.bf16.msra.mxu0 0
    %1921 = vmatprep.subr.bf16.mxu0 0
    %1922 = vmatpush1.bf16.msra.mxu0 0
    %1923 = vmatprep.subr.bf16.mxu0 0
    %1924 = vmatpush1.bf16.msra.mxu0 0
    %1925 = vmatprep.subr.bf16.mxu0 0
    %1926 = vmatpush1.bf16.msra.mxu0 0
    %1927 = vmatprep.subr.bf16.mxu0 0
    %1928 = vmatpush1.bf16.msra.mxu0 0
    %1929 = vmatprep.subr.bf16.mxu0 0
    %1930 = vmatpush1.bf16.msra.mxu0 0
    %1931 = vmatprep.subr.bf16.mxu0 0
    %1932 = vmatpush1.bf16.msra.mxu0 0
    %1933 = vmatprep.subr.bf16.mxu0 0
    %1934 = vmatpush1.bf16.msra.mxu0 0
    %1935 = vmatprep.subr.bf16.mxu0 0
    %1936 = vmatpush1.bf16.msra.mxu0 0
    %1937 = vmatprep.subr.bf16.mxu0 0
    %1938 = vmatpush1.bf16.msra.mxu0 0
    %1939 = vmatprep.subr.bf16.mxu0 0
    %1940 = vmatpush1.bf16.msra.mxu0 0
    %1941 = vmatprep.subr.bf16.mxu0 0
    %1942 = vmatpush1.bf16.msra.mxu0 0
    %1943 = vmatprep.mubr.bf16.mxu0 0
    %1944 = vmatmul.mubr.bf16.gmra.mrb[0].mxu0 %v1906
    %v1945 = vpop.f32.mrb[0].mxu0
    %v1946 = vadd.f32 0.0, %v1945
    %v1947 = vpop.f32.mrb[0].mxu0
    %v1948 = vpop.f32.mrb[0].mxu0
    %v1949 = vpop.f32.mrb[0].mxu0
    %1950 = vdwg.mxu0
    %1952 = vrot.lane.b32.xlu0 %v1722, 32
    %v1953 = vpop.permute.xlu0 %1952
    %1956 = vrot.lane.b32.xlu0 %v1834, 64
    %v1957 = vpop.permute.xlu0 %1956
    %1960 = vrot.lane.b32.xlu0 %v1946, 96
    %v1961 = vpop.permute.xlu0 %1960
    %v1963 = vsel %vm1037, %v1607, %v1953
    %v1964 = vsel %vm1499, %v1963, %v1957
    %v1965 = vsel %vm1501, %v1964, %v1961
    %v1966 = vld [vmem:[#allocation5] sm:$0xf]
    %v1967 = vld [vmem:[#allocation5 + $0x4] sm:$0xf]
    %v1968 = vld [vmem:[#allocation5 + $0x8] sm:$0xf]
    %v1969 = vld [vmem:[#allocation5 + $0xc] sm:$0xf]
    %v1970 = vld [vmem:[#allocation5 + $0x10] sm:$0xf]
    %v1971 = vld [vmem:[#allocation5 + $0x14] sm:$0xf]
    %v1972 = vld [vmem:[#allocation5 + $0x18] sm:$0xf]
    %v1973 = vld [vmem:[#allocation5 + $0x1c] sm:$0xf]
    %v1974 = vld [vmem:[#allocation5 + $0x20] sm:$0xf]
    %v1975 = vld [vmem:[#allocation5 + $0x24] sm:$0xf]
    %v1976 = vld [vmem:[#allocation5 + $0x28] sm:$0xf]
    %v1977 = vld [vmem:[#allocation5 + $0x2c] sm:$0xf]
    %v1978 = vld [vmem:[#allocation5 + $0x30] sm:$0xf]
    %v1979 = vld [vmem:[#allocation5 + $0x34] sm:$0xf]
    %v1980 = vld [vmem:[#allocation5 + $0x38] sm:$0xf]
    %v1981 = vld [vmem:[#allocation5 + $0x3c] sm:$0xf]
    %v1982 = vpack.c.bf16 %v1965, %v1502
    %v1999 = vunpack.c.l.b16 %v1966
    %v2000 = vunpack.c.l.b16 %v1967
    %v2001 = vunpack.c.l.b16 %v1968
    %v2002 = vunpack.c.l.b16 %v1969
    %v2003 = vunpack.c.l.b16 %v1970
    %v2004 = vunpack.c.l.b16 %v1971
    %v2005 = vunpack.c.l.b16 %v1972
    %v2006 = vunpack.c.l.b16 %v1973
    %v2007 = vunpack.c.l.b16 %v1974
    %v2008 = vunpack.c.l.b16 %v1975
    %v2009 = vunpack.c.l.b16 %v1976
    %v2010 = vunpack.c.l.b16 %v1977
    %v2011 = vunpack.c.l.b16 %v1978
    %v2012 = vunpack.c.l.b16 %v1979
    %v2013 = vunpack.c.l.b16 %v1980
    %v2014 = vunpack.c.l.b16 %v1981
    %v2015 = vpack.c.b16 %v2000, %v1999
    %v2016 = vpack.c.b16 %v2002, %v2001
    %v2017 = vpack.c.b16 %v2004, %v2003
    %v2018 = vpack.c.b16 %v2006, %v2005
    %v2019 = vpack.c.b16 %v2008, %v2007
    %v2020 = vpack.c.b16 %v2010, %v2009
    %v2021 = vpack.c.b16 %v2012, %v2011
    %v2022 = vpack.c.b16 %v2014, %v2013
    %2031 = vmatprep.subr.bf16.mxu0 0
    %2032 = vmatpush1.bf16.msra.mxu0 %v2015
    %2033 = vmatprep.subr.bf16.mxu0 0
    %2034 = vmatpush1.bf16.msra.mxu0 %v2016
    %2035 = vmatprep.subr.bf16.mxu0 0
    %2036 = vmatpush1.bf16.msra.mxu0 %v2017
    %2037 = vmatprep.subr.bf16.mxu0 0
    %2038 = vmatpush1.bf16.msra.mxu0 %v2018
    %2039 = vmatprep.subr.bf16.mxu0 0
    %2040 = vmatpush1.bf16.msra.mxu0 %v2019
    %2041 = vmatprep.subr.bf16.mxu0 0
    %2042 = vmatpush1.bf16.msra.mxu0 %v2020
    %2043 = vmatprep.subr.bf16.mxu0 0
    %2044 = vmatpush1.bf16.msra.mxu0 %v2021
    %2045 = vmatprep.subr.bf16.mxu0 0
    %2046 = vmatpush1.bf16.msra.mxu0 %v2022
    %2047 = vmatprep.subr.bf16.mxu0 0
    %2048 = vmatpush1.bf16.msra.mxu0 0
    %2049 = vmatprep.subr.bf16.mxu0 0
    %2050 = vmatpush1.bf16.msra.mxu0 0
    %2051 = vmatprep.subr.bf16.mxu0 0
    %2052 = vmatpush1.bf16.msra.mxu0 0
    %2053 = vmatprep.subr.bf16.mxu0 0
    %2054 = vmatpush1.bf16.msra.mxu0 0
    %2055 = vmatprep.subr.bf16.mxu0 0
    %2056 = vmatpush1.bf16.msra.mxu0 0
    %2057 = vmatprep.subr.bf16.mxu0 0
    %2058 = vmatpush1.bf16.msra.mxu0 0
    %2059 = vmatprep.subr.bf16.mxu0 0
    %2060 = vmatpush1.bf16.msra.mxu0 0
    %2061 = vmatprep.subr.bf16.mxu0 0
    %2062 = vmatpush1.bf16.msra.mxu0 0
    %2063 = vmatprep.mubr.bf16.mxu0 0
    %2064 = vmatmul.mubr.bf16.gmra.mrb[0].mxu0 %v1982
    %v2065 = vpop.f32.mrb[0].mxu0
    %v2066 = vadd.f32 0.0, %v2065
    %v2067 = vpop.f32.mrb[0].mxu0
    %v2068 = vpop.f32.mrb[0].mxu0
    %v2069 = vadd.f32 0.0, %v2068
    %v2070 = vpop.f32.mrb[0].mxu0
    %2071 = vdwg.mxu0
    %v2072 = vadd.f32 %v721, %v2066
    %v2073 = vadd.f32 %v723, %v2069
    %v2075 = vlaneseq
    %v2076 = vshrl.u32 %v2075, 7
    %v2077 = vsub.s32 0, %v2076
    %v2078 = vrot.slane %v732, %v2077
    %v2080 = vadd.f32 %v2072, %v2078
    %v2081 = vadd.f32 %v2073, %v2078
    %2082 = vadd.xlane.f32.xlu0 %v2080
    %v2083 = vpop.xlane.xlu0 %2082
    %2084 = vadd.xlane.f32.xlu0 %v2081
    %v2085 = vpop.xlane.xlu0 %2084
    %v2086 = vmul.f32 %v2083, %v739
    %v2087 = vmul.f32 %v2085, %v739
    %v2088 = vsub.f32 %v2080, %v2086
    %v2089 = vsub.f32 %v2081, %v2087
    %v2090 = vmul.f32 %v2088, %v2088
    %v2091 = vmul.f32 %v2089, %v2089
    %2092 = vadd.xlane.f32.xlu0 %v2090
    %v2093 = vpop.xlane.xlu0 %2092
    %2094 = vadd.xlane.f32.xlu0 %v2091
    %v2095 = vpop.xlane.xlu0 %2094
    %v2096 = vmul.f32 %v2093, %v739
    %v2097 = vmul.f32 %v2095, %v739
    %v2098 = vadd.f32 %v2096, 1e-06
    %v2099 = vadd.f32 %v2097, 1e-06
    %v2100 = vrsqrt.pop %v2098
    %v2101 = vrsqrt.pop %v2099
    %v2102 = vmul.f32 %v2088, %v2100
    %v2103 = vmul.f32 %v2089, %v2101
    %v2105 = vlaneseq
    %v2106 = vshrl.u32 %v2105, 7
    %v2107 = vsub.s32 0, %v2106
    %v2108 = vrot.slane %v729, %v2107
    %v2110 = vmul.f32 %v2102, %v2108
    %v2111 = vmul.f32 %v2103, %v2108
    %v2113 = vlaneseq
    %v2114 = vshrl.u32 %v2113, 7
    %v2115 = vsub.s32 0, %v2114
    %v2116 = vrot.slane %v730, %v2115
    %v2118 = vadd.f32 %v2110, %v2116
    %v2119 = vadd.f32 %v2111, %v2116
    %v2120 = vld [vmem:[%s13] sm:$0xff]
    %v2121 = vld [vmem:[%s13 + $0x8] sm:$0xff]
    %v2122 = vld [vmem:[%s13 + $0x10] sm:$0xff]
    %v2123 = vld [vmem:[%s13 + $0x18] sm:$0xff]
    %v2124 = vld [vmem:[%s13 + $0x20] sm:$0xff]
    %v2125 = vld [vmem:[%s13 + $0x28] sm:$0xff]
    %v2126 = vld [vmem:[%s13 + $0x30] sm:$0xff]
    %v2127 = vld [vmem:[%s13 + $0x38] sm:$0xff]
    %v2128 = vld [vmem:[%s13 + $0x40] sm:$0xff]
    %v2129 = vld [vmem:[%s13 + $0x48] sm:$0xff]
    %v2130 = vld [vmem:[%s13 + $0x50] sm:$0xff]
    %v2131 = vld [vmem:[%s13 + $0x58] sm:$0xff]
    %v2132 = vld [vmem:[%s13 + $0x60] sm:$0xff]
    %v2133 = vld [vmem:[%s13 + $0x68] sm:$0xff]
    %v2134 = vld [vmem:[%s13 + $0x70] sm:$0xff]
    %v2135 = vld [vmem:[%s13 + $0x78] sm:$0xff]
    %v2136 = vld [vmem:[%s13 + $0x80] sm:$0xff]
    %v2137 = vld [vmem:[%s13 + $0x88] sm:$0xff]
    %v2138 = vld [vmem:[%s13 + $0x90] sm:$0xff]
    %v2139 = vld [vmem:[%s13 + $0x98] sm:$0xff]
    %v2140 = vld [vmem:[%s13 + $0xa0] sm:$0xff]
    %v2141 = vld [vmem:[%s13 + $0xa8] sm:$0xff]
    %v2142 = vld [vmem:[%s13 + $0xb0] sm:$0xff]
    %v2143 = vld [vmem:[%s13 + $0xb8] sm:$0xff]
    %v2144 = vld [vmem:[%s13 + $0xc0] sm:$0xff]
    %v2145 = vld [vmem:[%s13 + $0xc8] sm:$0xff]
    %v2146 = vld [vmem:[%s13 + $0xd0] sm:$0xff]
    %v2147 = vld [vmem:[%s13 + $0xd8] sm:$0xff]
    %v2148 = vld [vmem:[%s13 + $0xe0] sm:$0xff]
    %v2149 = vld [vmem:[%s13 + $0xe8] sm:$0xff]
    %v2150 = vld [vmem:[%s13 + $0xf0] sm:$0xff]
    %v2151 = vld [vmem:[%s13 + $0xf8] sm:$0xff]
    %v2152 = vpack.c.bf16 %v2119, %v2118
    %v2154 = vlaneseq
    %v2155 = vshrl.u32 %v2154, 7
    %v2156 = vsub.s32 0, %v2155
    %v2157 = vrot.slane %v733, %v2156
    %v2158 = vlaneseq
    %v2159 = vshrl.u32 %v2158, 7
    %v2160 = vsub.s32 1, %v2159
    %v2161 = vrot.slane %v733, %v2160
    %v2162 = vlaneseq
    %v2163 = vshrl.u32 %v2162, 7
    %v2164 = vsub.s32 2, %v2163
    %v2165 = vrot.slane %v733, %v2164
    %v2166 = vlaneseq
    %v2167 = vshrl.u32 %v2166, 7
    %v2168 = vsub.s32 3, %v2167
    %v2169 = vrot.slane %v733, %v2168
    %v2206 = vunpack.c.l.b16 %v2120
    %v2207 = vunpack.c.h.b16 %v2120
    %v2208 = vunpack.c.l.b16 %v2121
    %v2209 = vunpack.c.h.b16 %v2121
    %v2210 = vunpack.c.l.b16 %v2122
    %v2211 = vunpack.c.h.b16 %v2122
    %v2212 = vunpack.c.l.b16 %v2123
    %v2213 = vunpack.c.h.b16 %v2123
    %v2214 = vunpack.c.l.b16 %v2124
    %v2215 = vunpack.c.h.b16 %v2124
    %v2216 = vunpack.c.l.b16 %v2125
    %v2217 = vunpack.c.h.b16 %v2125
    %v2218 = vunpack.c.l.b16 %v2126
    %v2219 = vunpack.c.h.b16 %v2126
    %v2220 = vunpack.c.l.b16 %v2127
    %v2221 = vunpack.c.h.b16 %v2127
    %v2222 = vunpack.c.l.b16 %v2128
    %v2223 = vunpack.c.h.b16 %v2128
    %v2224 = vunpack.c.l.b16 %v2129
    %v2225 = vunpack.c.h.b16 %v2129
    %v2226 = vunpack.c.l.b16 %v2130
    %v2227 = vunpack.c.h.b16 %v2130
    %v2228 = vunpack.c.l.b16 %v2131
    %v2229 = vunpack.c.h.b16 %v2131
    %v2230 = vunpack.c.l.b16 %v2132
    %v2231 = vunpack.c.h.b16 %v2132
    %v2232 = vunpack.c.l.b16 %v2133
    %v2233 = vunpack.c.h.b16 %v2133
    %v2234 = vunpack.c.l.b16 %v2134
    %v2235 = vunpack.c.h.b16 %v2134
    %v2236 = vunpack.c.l.b16 %v2135
    %v2237 = vunpack.c.h.b16 %v2135
    %v2238 = vunpack.c.l.b16 %v2136
    %v2239 = vunpack.c.h.b16 %v2136
    %v2240 = vunpack.c.l.b16 %v2137
    %v2241 = vunpack.c.h.b16 %v2137
    %v2242 = vunpack.c.l.b16 %v2138
    %v2243 = vunpack.c.h.b16 %v2138
    %v2244 = vunpack.c.l.b16 %v2139
    %v2245 = vunpack.c.h.b16 %v2139
    %v2246 = vunpack.c.l.b16 %v2140
    %v2247 = vunpack.c.h.b16 %v2140
    %v2248 = vunpack.c.l.b16 %v2141
    %v2249 = vunpack.c.h.b16 %v2141
    %v2250 = vunpack.c.l.b16 %v2142
    %v2251 = vunpack.c.h.b16 %v2142
    %v2252 = vunpack.c.l.b16 %v2143
    %v2253 = vunpack.c.h.b16 %v2143
    %v2254 = vunpack.c.l.b16 %v2144
    %v2255 = vunpack.c.h.b16 %v2144
    %v2256 = vunpack.c.l.b16 %v2145
    %v2257 = vunpack.c.h.b16 %v2145
    %v2258 = vunpack.c.l.b16 %v2146
    %v2259 = vunpack.c.h.b16 %v2146
    %v2260 = vunpack.c.l.b16 %v2147
    %v2261 = vunpack.c.h.b16 %v2147
    %v2262 = vunpack.c.l.b16 %v2148
    %v2263 = vunpack.c.h.b16 %v2148
    %v2264 = vunpack.c.l.b16 %v2149
    %v2265 = vunpack.c.h.b16 %v2149
    %v2266 = vunpack.c.l.b16 %v2150
    %v2267 = vunpack.c.h.b16 %v2150
    %v2268 = vunpack.c.l.b16 %v2151
    %v2269 = vunpack.c.h.b16 %v2151
    %v2270 = vpack.c.b16 %v2210, %v2206
    %v2271 = vpack.c.b16 %v2211, %v2207
    %v2272 = vpack.c.b16 %v2212, %v2208
    %v2273 = vpack.c.b16 %v2213, %v2209
    %v2274 = vpack.c.b16 %v2218, %v2214
    %v2275 = vpack.c.b16 %v2219, %v2215
    %v2276 = vpack.c.b16 %v2220, %v2216
    %v2277 = vpack.c.b16 %v2221, %v2217
    %v2278 = vpack.c.b16 %v2226, %v2222
    %v2279 = vpack.c.b16 %v2227, %v2223
    %v2280 = vpack.c.b16 %v2228, %v2224
    %v2281 = vpack.c.b16 %v2229, %v2225
    %v2282 = vpack.c.b16 %v2234, %v2230
    %v2283 = vpack.c.b16 %v2235, %v2231
    %v2284 = vpack.c.b16 %v2236, %v2232
    %v2285 = vpack.c.b16 %v2237, %v2233
    %v2286 = vpack.c.b16 %v2242, %v2238
    %v2287 = vpack.c.b16 %v2243, %v2239
    %v2288 = vpack.c.b16 %v2244, %v2240
    %v2289 = vpack.c.b16 %v2245, %v2241
    %v2290 = vpack.c.b16 %v2250, %v2246
    %v2291 = vpack.c.b16 %v2251, %v2247
    %v2292 = vpack.c.b16 %v2252, %v2248
    %v2293 = vpack.c.b16 %v2253, %v2249
    %v2294 = vpack.c.b16 %v2258, %v2254
    %v2295 = vpack.c.b16 %v2259, %v2255
    %v2296 = vpack.c.b16 %v2260, %v2256
    %v2297 = vpack.c.b16 %v2261, %v2257
    %v2298 = vpack.c.b16 %v2266, %v2262
    %v2299 = vpack.c.b16 %v2267, %v2263
    %v2300 = vpack.c.b16 %v2268, %v2264
    %v2301 = vpack.c.b16 %v2269, %v2265
    %2334 = vmatprep.subr.bf16.mxu0 %v2271
    %2335 = vmatpush1.bf16.msra.mxu0 %v2270
    %2336 = vmatprep.subr.bf16.mxu0 %v2275
    %2337 = vmatpush1.bf16.msra.mxu0 %v2274
    %2338 = vmatprep.subr.bf16.mxu0 %v2279
    %2339 = vmatpush1.bf16.msra.mxu0 %v2278
    %2340 = vmatprep.subr.bf16.mxu0 %v2283
    %2341 = vmatpush1.bf16.msra.mxu0 %v2282
    %2342 = vmatprep.subr.bf16.mxu0 %v2287
    %2343 = vmatpush1.bf16.msra.mxu0 %v2286
    %2344 = vmatprep.subr.bf16.mxu0 %v2291
    %2345 = vmatpush1.bf16.msra.mxu0 %v2290
    %2346 = vmatprep.subr.bf16.mxu0 %v2295
    %2347 = vmatpush1.bf16.msra.mxu0 %v2294
    %2348 = vmatprep.subr.bf16.mxu0 %v2299
    %2349 = vmatpush1.bf16.msra.mxu0 %v2298
    %2350 = vmatprep.subr.bf16.mxu0 0
    %2351 = vmatpush1.bf16.msra.mxu0 0
    %2352 = vmatprep.subr.bf16.mxu0 0
    %2353 = vmatpush1.bf16.msra.mxu0 0
    %2354 = vmatprep.subr.bf16.mxu0 0
    %2355 = vmatpush1.bf16.msra.mxu0 0
    %2356 = vmatprep.subr.bf16.mxu0 0
    %2357 = vmatpush1.bf16.msra.mxu0 0
    %2358 = vmatprep.subr.bf16.mxu0 0
    %2359 = vmatpush1.bf16.msra.mxu0 0
    %2360 = vmatprep.subr.bf16.mxu0 0
    %2361 = vmatpush1.bf16.msra.mxu0 0
    %2362 = vmatprep.subr.bf16.mxu0 0
    %2363 = vmatpush1.bf16.msra.mxu0 0
    %2364 = vmatprep.subr.bf16.mxu0 0
    %2365 = vmatpush1.bf16.msra.mxu0 0
    %2366 = vmatprep.mubr.bf16.mxu0 0
    %2367 = vmatmul.mubr.bf16.gmra.mrb[0].mxu0 %v2152
    %v2368 = vpop.f32.mrb[0].mxu0
    %v2369 = vadd.f32 %v2157, %v2368
    %v2370 = vpop.f32.mrb[0].mxu0
    %v2371 = vadd.f32 %v2161, %v2370
    %v2372 = vpop.f32.mrb[0].mxu0
    %v2373 = vadd.f32 %v2157, %v2372
    %v2374 = vpop.f32.mrb[0].mxu0
    %v2375 = vadd.f32 %v2161, %v2374
    %2376 = vdwg.mxu0
    %2377 = vmatprep.subr.bf16.mxu0 %v2273
    %2378 = vmatpush1.bf16.msra.mxu0 %v2272
    %2379 = vmatprep.subr.bf16.mxu0 %v2277
    %2380 = vmatpush1.bf16.msra.mxu0 %v2276
    %2381 = vmatprep.subr.bf16.mxu0 %v2281
    %2382 = vmatpush1.bf16.msra.mxu0 %v2280
    %2383 = vmatprep.subr.bf16.mxu0 %v2285
    %2384 = vmatpush1.bf16.msra.mxu0 %v2284
    %2385 = vmatprep.subr.bf16.mxu0 %v2289
    %2386 = vmatpush1.bf16.msra.mxu0 %v2288
    %2387 = vmatprep.subr.bf16.mxu0 %v2293
    %2388 = vmatpush1.bf16.msra.mxu0 %v2292
    %2389 = vmatprep.subr.bf16.mxu0 %v2297
    %2390 = vmatpush1.bf16.msra.mxu0 %v2296
    %2391 = vmatprep.subr.bf16.mxu0 %v2301
    %2392 = vmatpush1.bf16.msra.mxu0 %v2300
    %2393 = vmatprep.subr.bf16.mxu0 0
    %2394 = vmatpush1.bf16.msra.mxu0 0
    %2395 = vmatprep.subr.bf16.mxu0 0
    %2396 = vmatpush1.bf16.msra.mxu0 0
    %2397 = vmatprep.subr.bf16.mxu0 0
    %2398 = vmatpush1.bf16.msra.mxu0 0
    %2399 = vmatprep.subr.bf16.mxu0 0
    %2400 = vmatpush1.bf16.msra.mxu0 0
    %2401 = vmatprep.subr.bf16.mxu0 0
    %2402 = vmatpush1.bf16.msra.mxu0 0
    %2403 = vmatprep.subr.bf16.mxu0 0
    %2404 = vmatpush1.bf16.msra.mxu0 0
    %2405 = vmatprep.subr.bf16.mxu0 0
    %2406 = vmatpush1.bf16.msra.mxu0 0
    %2407 = vmatprep.subr.bf16.mxu0 0
    %2408 = vmatpush1.bf16.msra.mxu0 0
    %2409 = vmatprep.mubr.bf16.mxu0 0
    %2410 = vmatmul.mubr.bf16.gmra.mrb[0].mxu0 %v2152
    %v2411 = vpop.f32.mrb[0].mxu0
    %v2412 = vadd.f32 %v2165, %v2411
    %v2413 = vpop.f32.mrb[0].mxu0
    %v2414 = vadd.f32 %v2169, %v2413
    %v2415 = vpop.f32.mrb[0].mxu0
    %v2416 = vadd.f32 %v2165, %v2415
    %v2417 = vpop.f32.mrb[0].mxu0
    %v2418 = vadd.f32 %v2169, %v2417
    %2419 = vdwg.mxu0
    %v2420 = vmul.f32 %v2369, 0.5
    %v2421 = vmul.f32 %v2371, 0.5
    %v2422 = vmul.f32 %v2412, 0.5
    %v2423 = vmul.f32 %v2414, 0.5
    %v2424 = vmul.f32 %v2373, 0.5
    %v2425 = vmul.f32 %v2375, 0.5
    %v2426 = vmul.f32 %v2416, 0.5
    %v2427 = vmul.f32 %v2418, 0.5
    %v2428 = vmul.f32 %v2369, 0.70710677
    %v2429 = vmul.f32 %v2371, 0.70710677
    %v2430 = vmul.f32 %v2412, 0.70710677
    %v2431 = vmul.f32 %v2414, 0.70710677
    %v2432 = vmul.f32 %v2373, 0.70710677
    %v2433 = vmul.f32 %v2375, 0.70710677
    %v2434 = vmul.f32 %v2416, 0.70710677
    %v2435 = vmul.f32 %v2418, 0.70710677
    %vm2436 = vcmp.ge.f32.partialorder %v2428, 0.0
    %vm2437 = vcmp.ge.f32.partialorder %v2429, 0.0
    %vm2438 = vcmp.ge.f32.partialorder %v2430, 0.0
    %vm2439 = vcmp.ge.f32.partialorder %v2431, 0.0
    %vm2440 = vcmp.ge.f32.partialorder %v2432, 0.0
    %vm2441 = vcmp.ge.f32.partialorder %v2433, 0.0
    %vm2442 = vcmp.ge.f32.partialorder %v2434, 0.0
    %vm2443 = vcmp.ge.f32.partialorder %v2435, 0.0
    %v2444 = vsel %vm2436, 1.0, -1.0
    %v2445 = vsel %vm2437, 1.0, -1.0
    %v2446 = vsel %vm2438, 1.0, -1.0
    %v2447 = vsel %vm2439, 1.0, -1.0
    %v2448 = vsel %vm2440, 1.0, -1.0
    %v2449 = vsel %vm2441, 1.0, -1.0
    %v2450 = vsel %vm2442, 1.0, -1.0
    %v2451 = vsel %vm2443, 1.0, -1.0
    %v2452 = vand.u32 2147483647, %v2428
    %v2453 = vand.u32 2147483647, %v2429
    %v2454 = vand.u32 2147483647, %v2430
    %v2455 = vand.u32 2147483647, %v2431
    %v2456 = vand.u32 2147483647, %v2432
    %v2457 = vand.u32 2147483647, %v2433
    %v2458 = vand.u32 2147483647, %v2434
    %v2459 = vand.u32 2147483647, %v2435
    %v2460 = vmul.f32 %v2452, 0.3275911
    %v2461 = vmul.f32 %v2453, 0.3275911
    %v2462 = vmul.f32 %v2454, 0.3275911
    %v2463 = vmul.f32 %v2455, 0.3275911
    %v2464 = vmul.f32 %v2456, 0.3275911
    %v2465 = vmul.f32 %v2457, 0.3275911
    %v2466 = vmul.f32 %v2458, 0.3275911
    %v2467 = vmul.f32 %v2459, 0.3275911
    %v2468 = vadd.f32 %v2460, 1.0
    %v2469 = vadd.f32 %v2461, 1.0
    %v2470 = vadd.f32 %v2462, 1.0
    %v2471 = vadd.f32 %v2463, 1.0
    %v2472 = vadd.f32 %v2464, 1.0
    %v2473 = vadd.f32 %v2465, 1.0
    %v2474 = vadd.f32 %v2466, 1.0
    %v2475 = vadd.f32 %v2467, 1.0
    %v2476 = vrcp.pop %v2468
    %v2477 = vmul.f32 1.0, %v2476
    %v2478 = vrcp.pop %v2469
    %v2479 = vmul.f32 1.0, %v2478
    %v2480 = vrcp.pop %v2470
    %v2481 = vmul.f32 1.0, %v2480
    %v2482 = vrcp.pop %v2471
    %v2483 = vmul.f32 1.0, %v2482
    %v2484 = vrcp.pop %v2472
    %v2485 = vmul.f32 1.0, %v2484
    %v2486 = vrcp.pop %v2473
    %v2487 = vmul.f32 1.0, %v2486
    %v2488 = vrcp.pop %v2474
    %v2489 = vmul.f32 1.0, %v2488
    %v2490 = vrcp.pop %v2475
    %v2491 = vmul.f32 1.0, %v2490
    %v2492 = vmul.f32 %v2477, 1.0614054
    %v2493 = vmul.f32 %v2479, 1.0614054
    %v2494 = vmul.f32 %v2481, 1.0614054
    %v2495 = vmul.f32 %v2483, 1.0614054
    %v2496 = vmul.f32 %v2485, 1.0614054
    %v2497 = vmul.f32 %v2487, 1.0614054
    %v2498 = vmul.f32 %v2489, 1.0614054
    %v2499 = vmul.f32 %v2491, 1.0614054
    %v2500 = vadd.f32 %v2492, -1.4531521
    %v2501 = vadd.f32 %v2493, -1.4531521
    %v2502 = vadd.f32 %v2494, -1.4531521
    %v2503 = vadd.f32 %v2495, -1.4531521
    %v2504 = vadd.f32 %v2496, -1.4531521
    %v2505 = vadd.f32 %v2497, -1.4531521
    %v2506 = vadd.f32 %v2498, -1.4531521
    %v2507 = vadd.f32 %v2499, -1.4531521
    %v2508 = vmul.f32 %v2500, %v2477
    %v2509 = vmul.f32 %v2501, %v2479
    %v2510 = vmul.f32 %v2502, %v2481
    %v2511 = vmul.f32 %v2503, %v2483
    %v2512 = vmul.f32 %v2504, %v2485
    %v2513 = vmul.f32 %v2505, %v2487
    %v2514 = vmul.f32 %v2506, %v2489
    %v2515 = vmul.f32 %v2507, %v2491
    %v2516 = vadd.f32 %v2508, 1.4214138
    %v2517 = vadd.f32 %v2509, 1.4214138
    %v2518 = vadd.f32 %v2510, 1.4214138
    %v2519 = vadd.f32 %v2511, 1.4214138
    %v2520 = vadd.f32 %v2512, 1.4214138
    %v2521 = vadd.f32 %v2513, 1.4214138
    %v2522 = vadd.f32 %v2514, 1.4214138
    %v2523 = vadd.f32 %v2515, 1.4214138
    %v2524 = vmul.f32 %v2516, %v2477
    %v2525 = vmul.f32 %v2517, %v2479
    %v2526 = vmul.f32 %v2518, %v2481
    %v2527 = vmul.f32 %v2519, %v2483
    %v2528 = vmul.f32 %v2520, %v2485
    %v2529 = vmul.f32 %v2521, %v2487
    %v2530 = vmul.f32 %v2522, %v2489
    %v2531 = vmul.f32 %v2523, %v2491
    %v2532 = vadd.f32 %v2524, -0.28449672
    %v2533 = vadd.f32 %v2525, -0.28449672
    %v2534 = vadd.f32 %v2526, -0.28449672
    %v2535 = vadd.f32 %v2527, -0.28449672
    %v2536 = vadd.f32 %v2528, -0.28449672
    %v2537 = vadd.f32 %v2529, -0.28449672
    %v2538 = vadd.f32 %v2530, -0.28449672
    %v2539 = vadd.f32 %v2531, -0.28449672
    %v2540 = vmul.f32 %v2532, %v2477
    %v2541 = vmul.f32 %v2533, %v2479
    %v2542 = vmul.f32 %v2534, %v2481
    %v2543 = vmul.f32 %v2535, %v2483
    %v2544 = vmul.f32 %v2536, %v2485
    %v2545 = vmul.f32 %v2537, %v2487
    %v2546 = vmul.f32 %v2538, %v2489
    %v2547 = vmul.f32 %v2539, %v2491
    %v2548 = vadd.f32 %v2540, 0.2548296
    %v2549 = vadd.f32 %v2541, 0.2548296
    %v2550 = vadd.f32 %v2542, 0.2548296
    %v2551 = vadd.f32 %v2543, 0.2548296
    %v2552 = vadd.f32 %v2544, 0.2548296
    %v2553 = vadd.f32 %v2545, 0.2548296
    %v2554 = vadd.f32 %v2546, 0.2548296
    %v2555 = vadd.f32 %v2547, 0.2548296
    %v2556 = vmul.f32 %v2548, %v2477
    %v2557 = vmul.f32 %v2549, %v2479
    %v2558 = vmul.f32 %v2550, %v2481
    %v2559 = vmul.f32 %v2551, %v2483
    %v2560 = vmul.f32 %v2552, %v2485
    %v2561 = vmul.f32 %v2553, %v2487
    %v2562 = vmul.f32 %v2554, %v2489
    %v2563 = vmul.f32 %v2555, %v2491
    %v2564 = vsub.f32 0.0, %v2452
    %v2565 = vsub.f32 0.0, %v2453
    %v2566 = vsub.f32 0.0, %v2454
    %v2567 = vsub.f32 0.0, %v2455
    %v2568 = vsub.f32 0.0, %v2456
    %v2569 = vsub.f32 0.0, %v2457
    %v2570 = vsub.f32 0.0, %v2458
    %v2571 = vsub.f32 0.0, %v2459
    %v2572 = vmul.f32 %v2564, %v2452
    %v2573 = vmul.f32 %v2565, %v2453
    %v2574 = vmul.f32 %v2566, %v2454
    %v2575 = vmul.f32 %v2567, %v2455
    %v2576 = vmul.f32 %v2568, %v2456
    %v2577 = vmul.f32 %v2569, %v2457
    %v2578 = vmul.f32 %v2570, %v2458
    %v2579 = vmul.f32 %v2571, %v2459
    %v2580 = vmul.f32 %v2572, 1.442695
    %v2581 = vpow.pop %v2580
    %v2582 = vmul.f32 %v2573, 1.442695
    %v2583 = vpow.pop %v2582
    %v2584 = vmul.f32 %v2574, 1.442695
    %v2585 = vpow.pop %v2584
    %v2586 = vmul.f32 %v2575, 1.442695
    %v2587 = vpow.pop %v2586
    %v2588 = vmul.f32 %v2576, 1.442695
    %v2589 = vpow.pop %v2588
    %v2590 = vmul.f32 %v2577, 1.442695
    %v2591 = vpow.pop %v2590
    %v2592 = vmul.f32 %v2578, 1.442695
    %v2593 = vpow.pop %v2592
    %v2594 = vmul.f32 %v2579, 1.442695
    %v2595 = vpow.pop %v2594
    %v2596 = vmul.f32 %v2556, %v2581
    %v2597 = vmul.f32 %v2557, %v2583
    %v2598 = vmul.f32 %v2558, %v2585
    %v2599 = vmul.f32 %v2559, %v2587
    %v2600 = vmul.f32 %v2560, %v2589
    %v2601 = vmul.f32 %v2561, %v2591
    %v2602 = vmul.f32 %v2562, %v2593
    %v2603 = vmul.f32 %v2563, %v2595
    %v2604 = vsub.f32 1.0, %v2596
    %v2605 = vsub.f32 1.0, %v2597
    %v2606 = vsub.f32 1.0, %v2598
    %v2607 = vsub.f32 1.0, %v2599
    %v2608 = vsub.f32 1.0, %v2600
    %v2609 = vsub.f32 1.0, %v2601
    %v2610 = vsub.f32 1.0, %v2602
    %v2611 = vsub.f32 1.0, %v2603
    %v2612 = vmul.f32 %v2444, %v2604
    %v2613 = vmul.f32 %v2445, %v2605
    %v2614 = vmul.f32 %v2446, %v2606
    %v2615 = vmul.f32 %v2447, %v2607
    %v2616 = vmul.f32 %v2448, %v2608
    %v2617 = vmul.f32 %v2449, %v2609
    %v2618 = vmul.f32 %v2450, %v2610
    %v2619 = vmul.f32 %v2451, %v2611
    %v2620 = vadd.f32 %v2612, 1.0
    %v2621 = vadd.f32 %v2613, 1.0
    %v2622 = vadd.f32 %v2614, 1.0
    %v2623 = vadd.f32 %v2615, 1.0
    %v2624 = vadd.f32 %v2616, 1.0
    %v2625 = vadd.f32 %v2617, 1.0
    %v2626 = vadd.f32 %v2618, 1.0
    %v2627 = vadd.f32 %v2619, 1.0
    %v2628 = vmul.f32 %v2420, %v2620
    %v2629 = vmul.f32 %v2421, %v2621
    %v2630 = vmul.f32 %v2422, %v2622
    %v2631 = vmul.f32 %v2423, %v2623
    %v2632 = vmul.f32 %v2424, %v2624
    %v2633 = vmul.f32 %v2425, %v2625
    %v2634 = vmul.f32 %v2426, %v2626
    %v2635 = vmul.f32 %v2427, %v2627
    %v2636 = vld [vmem:[%s15] sm:$0xf]
    %v2637 = vld [vmem:[%s15 + $0x4] sm:$0xf]
    %v2638 = vld [vmem:[%s15 + $0x8] sm:$0xf]
    %v2639 = vld [vmem:[%s15 + $0xc] sm:$0xf]
    %v2640 = vld [vmem:[%s15 + $0x10] sm:$0xf]
    %v2641 = vld [vmem:[%s15 + $0x14] sm:$0xf]
    %v2642 = vld [vmem:[%s15 + $0x18] sm:$0xf]
    %v2643 = vld [vmem:[%s15 + $0x1c] sm:$0xf]
    %v2644 = vld [vmem:[%s15 + $0x20] sm:$0xf]
    %v2645 = vld [vmem:[%s15 + $0x24] sm:$0xf]
    %v2646 = vld [vmem:[%s15 + $0x28] sm:$0xf]
    %v2647 = vld [vmem:[%s15 + $0x2c] sm:$0xf]
    %v2648 = vld [vmem:[%s15 + $0x30] sm:$0xf]
    %v2649 = vld [vmem:[%s15 + $0x34] sm:$0xf]
    %v2650 = vld [vmem:[%s15 + $0x38] sm:$0xf]
    %v2651 = vld [vmem:[%s15 + $0x3c] sm:$0xf]
    %v2652 = vld [vmem:[%s15 + $0x40] sm:$0xf]
    %v2653 = vld [vmem:[%s15 + $0x44] sm:$0xf]
    %v2654 = vld [vmem:[%s15 + $0x48] sm:$0xf]
    %v2655 = vld [vmem:[%s15 + $0x4c] sm:$0xf]
    %v2656 = vld [vmem:[%s15 + $0x50] sm:$0xf]
    %v2657 = vld [vmem:[%s15 + $0x54] sm:$0xf]
    %v2658 = vld [vmem:[%s15 + $0x58] sm:$0xf]
    %v2659 = vld [vmem:[%s15 + $0x5c] sm:$0xf]
    %v2660 = vld [vmem:[%s15 + $0x60] sm:$0xf]
    %v2661 = vld [vmem:[%s15 + $0x64] sm:$0xf]
    %v2662 = vld [vmem:[%s15 + $0x68] sm:$0xf]
    %v2663 = vld [vmem:[%s15 + $0x6c] sm:$0xf]
    %v2664 = vld [vmem:[%s15 + $0x70] sm:$0xf]
    %v2665 = vld [vmem:[%s15 + $0x74] sm:$0xf]
    %v2666 = vld [vmem:[%s15 + $0x78] sm:$0xf]
    %v2667 = vld [vmem:[%s15 + $0x7c] sm:$0xf]
    %v2668 = vld [vmem:[%s15 + $0x80] sm:$0xf]
    %v2669 = vld [vmem:[%s15 + $0x84] sm:$0xf]
    %v2670 = vld [vmem:[%s15 + $0x88] sm:$0xf]
    %v2671 = vld [vmem:[%s15 + $0x8c] sm:$0xf]
    %v2672 = vld [vmem:[%s15 + $0x90] sm:$0xf]
    %v2673 = vld [vmem:[%s15 + $0x94] sm:$0xf]
    %v2674 = vld [vmem:[%s15 + $0x98] sm:$0xf]
    %v2675 = vld [vmem:[%s15 + $0x9c] sm:$0xf]
    %v2676 = vld [vmem:[%s15 + $0xa0] sm:$0xf]
    %v2677 = vld [vmem:[%s15 + $0xa4] sm:$0xf]
    %v2678 = vld [vmem:[%s15 + $0xa8] sm:$0xf]
    %v2679 = vld [vmem:[%s15 + $0xac] sm:$0xf]
    %v2680 = vld [vmem:[%s15 + $0xb0] sm:$0xf]
    %v2681 = vld [vmem:[%s15 + $0xb4] sm:$0xf]
    %v2682 = vld [vmem:[%s15 + $0xb8] sm:$0xf]
    %v2683 = vld [vmem:[%s15 + $0xbc] sm:$0xf]
    %v2684 = vld [vmem:[%s15 + $0xc0] sm:$0xf]
    %v2685 = vld [vmem:[%s15 + $0xc4] sm:$0xf]
    %v2686 = vld [vmem:[%s15 + $0xc8] sm:$0xf]
    %v2687 = vld [vmem:[%s15 + $0xcc] sm:$0xf]
    %v2688 = vld [vmem:[%s15 + $0xd0] sm:$0xf]
    %v2689 = vld [vmem:[%s15 + $0xd4] sm:$0xf]
    %v2690 = vld [vmem:[%s15 + $0xd8] sm:$0xf]
    %v2691 = vld [vmem:[%s15 + $0xdc] sm:$0xf]
    %v2692 = vld [vmem:[%s15 + $0xe0] sm:$0xf]
    %v2693 = vld [vmem:[%s15 + $0xe4] sm:$0xf]
    %v2694 = vld [vmem:[%s15 + $0xe8] sm:$0xf]
    %v2695 = vld [vmem:[%s15 + $0xec] sm:$0xf]
    %v2696 = vld [vmem:[%s15 + $0xf0] sm:$0xf]
    %v2697 = vld [vmem:[%s15 + $0xf4] sm:$0xf]
    %v2698 = vld [vmem:[%s15 + $0xf8] sm:$0xf]
    %v2699 = vld [vmem:[%s15 + $0xfc] sm:$0xf]
    %v2700 = vpack.c.bf16 %v2632, %v2628
    %v2701 = vpack.c.bf16 %v2633, %v2629
    %v2702 = vpack.c.bf16 %v2634, %v2630
    %v2703 = vpack.c.bf16 %v2635, %v2631
    %v2768 = vunpack.c.l.b16 %v2636
    %v2769 = vunpack.c.l.b16 %v2637
    %v2770 = vunpack.c.l.b16 %v2638
    %v2771 = vunpack.c.l.b16 %v2639
    %v2772 = vunpack.c.l.b16 %v2640
    %v2773 = vunpack.c.l.b16 %v2641
    %v2774 = vunpack.c.l.b16 %v2642
    %v2775 = vunpack.c.l.b16 %v2643
    %v2776 = vunpack.c.l.b16 %v2644
    %v2777 = vunpack.c.l.b16 %v2645
    %v2778 = vunpack.c.l.b16 %v2646
    %v2779 = vunpack.c.l.b16 %v2647
    %v2780 = vunpack.c.l.b16 %v2648
    %v2781 = vunpack.c.l.b16 %v2649
    %v2782 = vunpack.c.l.b16 %v2650
    %v2783 = vunpack.c.l.b16 %v2651
    %v2784 = vunpack.c.l.b16 %v2652
    %v2785 = vunpack.c.l.b16 %v2653
    %v2786 = vunpack.c.l.b16 %v2654
    %v2787 = vunpack.c.l.b16 %v2655
    %v2788 = vunpack.c.l.b16 %v2656
    %v2789 = vunpack.c.l.b16 %v2657
    %v2790 = vunpack.c.l.b16 %v2658
    %v2791 = vunpack.c.l.b16 %v2659
    %v2792 = vunpack.c.l.b16 %v2660
    %v2793 = vunpack.c.l.b16 %v2661
    %v2794 = vunpack.c.l.b16 %v2662
    %v2795 = vunpack.c.l.b16 %v2663
    %v2796 = vunpack.c.l.b16 %v2664
    %v2797 = vunpack.c.l.b16 %v2665
    %v2798 = vunpack.c.l.b16 %v2666
    %v2799 = vunpack.c.l.b16 %v2667
    %v2800 = vunpack.c.l.b16 %v2668
    %v2801 = vunpack.c.l.b16 %v2669
    %v2802 = vunpack.c.l.b16 %v2670
    %v2803 = vunpack.c.l.b16 %v2671
    %v2804 = vunpack.c.l.b16 %v2672
    %v2805 = vunpack.c.l.b16 %v2673
    %v2806 = vunpack.c.l.b16 %v2674
    %v2807 = vunpack.c.l.b16 %v2675
    %v2808 = vunpack.c.l.b16 %v2676
    %v2809 = vunpack.c.l.b16 %v2677
    %v2810 = vunpack.c.l.b16 %v2678
    %v2811 = vunpack.c.l.b16 %v2679
    %v2812 = vunpack.c.l.b16 %v2680
    %v2813 = vunpack.c.l.b16 %v2681
    %v2814 = vunpack.c.l.b16 %v2682
    %v2815 = vunpack.c.l.b16 %v2683
    %v2816 = vunpack.c.l.b16 %v2684
    %v2817 = vunpack.c.l.b16 %v2685
    %v2818 = vunpack.c.l.b16 %v2686
    %v2819 = vunpack.c.l.b16 %v2687
    %v2820 = vunpack.c.l.b16 %v2688
    %v2821 = vunpack.c.l.b16 %v2689
    %v2822 = vunpack.c.l.b16 %v2690
    %v2823 = vunpack.c.l.b16 %v2691
    %v2824 = vunpack.c.l.b16 %v2692
    %v2825 = vunpack.c.l.b16 %v2693
    %v2826 = vunpack.c.l.b16 %v2694
    %v2827 = vunpack.c.l.b16 %v2695
    %v2828 = vunpack.c.l.b16 %v2696
    %v2829 = vunpack.c.l.b16 %v2697
    %v2830 = vunpack.c.l.b16 %v2698
    %v2831 = vunpack.c.l.b16 %v2699
    %v2832 = vpack.c.b16 %v2769, %v2768
    %v2833 = vpack.c.b16 %v2771, %v2770
    %v2834 = vpack.c.b16 %v2773, %v2772
    %v2835 = vpack.c.b16 %v2775, %v2774
    %v2836 = vpack.c.b16 %v2777, %v2776
    %v2837 = vpack.c.b16 %v2779, %v2778
    %v2838 = vpack.c.b16 %v2781, %v2780
    %v2839 = vpack.c.b16 %v2783, %v2782
    %v2840 = vpack.c.b16 %v2785, %v2784
    %v2841 = vpack.c.b16 %v2787, %v2786
    %v2842 = vpack.c.b16 %v2789, %v2788
    %v2843 = vpack.c.b16 %v2791, %v2790
    %v2844 = vpack.c.b16 %v2793, %v2792
    %v2845 = vpack.c.b16 %v2795, %v2794
    %v2846 = vpack.c.b16 %v2797, %v2796
    %v2847 = vpack.c.b16 %v2799, %v2798
    %v2848 = vpack.c.b16 %v2801, %v2800
    %v2849 = vpack.c.b16 %v2803, %v2802
    %v2850 = vpack.c.b16 %v2805, %v2804
    %v2851 = vpack.c.b16 %v2807, %v2806
    %v2852 = vpack.c.b16 %v2809, %v2808
    %v2853 = vpack.c.b16 %v2811, %v2810
    %v2854 = vpack.c.b16 %v2813, %v2812
    %v2855 = vpack.c.b16 %v2815, %v2814
    %v2856 = vpack.c.b16 %v2817, %v2816
    %v2857 = vpack.c.b16 %v2819, %v2818
    %v2858 = vpack.c.b16 %v2821, %v2820
    %v2859 = vpack.c.b16 %v2823, %v2822
    %v2860 = vpack.c.b16 %v2825, %v2824
    %v2861 = vpack.c.b16 %v2827, %v2826
    %v2862 = vpack.c.b16 %v2829, %v2828
    %v2863 = vpack.c.b16 %v2831, %v2830
    %2896 = vmatprep.subr.bf16.mxu0 0
    %2897 = vmatpush1.bf16.msra.mxu0 %v2832
    %2898 = vmatprep.subr.bf16.mxu0 0
    %2899 = vmatpush1.bf16.msra.mxu0 %v2833
    %2900 = vmatprep.subr.bf16.mxu0 0
    %2901 = vmatpush1.bf16.msra.mxu0 %v2834
    %2902 = vmatprep.subr.bf16.mxu0 0
    %2903 = vmatpush1.bf16.msra.mxu0 %v2835
    %2904 = vmatprep.subr.bf16.mxu0 0
    %2905 = vmatpush1.bf16.msra.mxu0 %v2836
    %2906 = vmatprep.subr.bf16.mxu0 0
    %2907 = vmatpush1.bf16.msra.mxu0 %v2837
    %2908 = vmatprep.subr.bf16.mxu0 0
    %2909 = vmatpush1.bf16.msra.mxu0 %v2838
    %2910 = vmatprep.subr.bf16.mxu0 0
    %2911 = vmatpush1.bf16.msra.mxu0 %v2839
    %2912 = vmatprep.subr.bf16.mxu0 0
    %2913 = vmatpush1.bf16.msra.mxu0 %v2840
    %2914 = vmatprep.subr.bf16.mxu0 0
    %2915 = vmatpush1.bf16.msra.mxu0 %v2841
    %2916 = vmatprep.subr.bf16.mxu0 0
    %2917 = vmatpush1.bf16.msra.mxu0 %v2842
    %2918 = vmatprep.subr.bf16.mxu0 0
    %2919 = vmatpush1.bf16.msra.mxu0 %v2843
    %2920 = vmatprep.subr.bf16.mxu0 0
    %2921 = vmatpush1.bf16.msra.mxu0 %v2844
    %2922 = vmatprep.subr.bf16.mxu0 0
    %2923 = vmatpush1.bf16.msra.mxu0 %v2845
    %2924 = vmatprep.subr.bf16.mxu0 0
    %2925 = vmatpush1.bf16.msra.mxu0 %v2846
    %2926 = vmatprep.subr.bf16.mxu0 0
    %2927 = vmatpush1.bf16.msra.mxu0 %v2847
    %2928 = vmatprep.mubr.bf16.mxu0 %v2701
    %2929 = vmatmul.mubr.bf16.gmra.mrb[0].mxu0 %v2700
    %v2930 = vpop.f32.mrb[0].mxu0
    %v2931 = vadd.f32 0.0, %v2930
    %v2932 = vpop.f32.mrb[0].mxu0
    %v2933 = vpop.f32.mrb[0].mxu0
    %v2934 = vadd.f32 0.0, %v2933
    %v2935 = vpop.f32.mrb[0].mxu0
    %2936 = vdwg.mxu0
    %2937 = vmatprep.subr.bf16.mxu0 0
    %2938 = vmatpush1.bf16.msra.mxu0 %v2848
    %2939 = vmatprep.subr.bf16.mxu0 0
    %2940 = vmatpush1.bf16.msra.mxu0 %v2849
    %2941 = vmatprep.subr.bf16.mxu0 0
    %2942 = vmatpush1.bf16.msra.mxu0 %v2850
    %2943 = vmatprep.subr.bf16.mxu0 0
    %2944 = vmatpush1.bf16.msra.mxu0 %v2851
    %2945 = vmatprep.subr.bf16.mxu0 0
    %2946 = vmatpush1.bf16.msra.mxu0 %v2852
    %2947 = vmatprep.subr.bf16.mxu0 0
    %2948 = vmatpush1.bf16.msra.mxu0 %v2853
    %2949 = vmatprep.subr.bf16.mxu0 0
    %2950 = vmatpush1.bf16.msra.mxu0 %v2854
    %2951 = vmatprep.subr.bf16.mxu0 0
    %2952 = vmatpush1.bf16.msra.mxu0 %v2855
    %2953 = vmatprep.subr.bf16.mxu0 0
    %2954 = vmatpush1.bf16.msra.mxu0 %v2856
    %2955 = vmatprep.subr.bf16.mxu0 0
    %2956 = vmatpush1.bf16.msra.mxu0 %v2857
    %2957 = vmatprep.subr.bf16.mxu0 0
    %2958 = vmatpush1.bf16.msra.mxu0 %v2858
    %2959 = vmatprep.subr.bf16.mxu0 0
    %2960 = vmatpush1.bf16.msra.mxu0 %v2859
    %2961 = vmatprep.subr.bf16.mxu0 0
    %2962 = vmatpush1.bf16.msra.mxu0 %v2860
    %2963 = vmatprep.subr.bf16.mxu0 0
    %2964 = vmatpush1.bf16.msra.mxu0 %v2861
    %2965 = vmatprep.subr.bf16.mxu0 0
    %2966 = vmatpush1.bf16.msra.mxu0 %v2862
    %2967 = vmatprep.subr.bf16.mxu0 0
    %2968 = vmatpush1.bf16.msra.mxu0 %v2863
    %2969 = vmatprep.mubr.bf16.mxu0 %v2703
    %2970 = vmatmul.mubr.bf16.gmra.mrb[0].mxu0 %v2702
    %v2971 = vpop.f32.mrb[0].mxu0
    %v2972 = vadd.f32 %v2931, %v2971
    %v2973 = vpop.f32.mrb[0].mxu0
    %v2974 = vpop.f32.mrb[0].mxu0
    %v2975 = vadd.f32 %v2934, %v2974
    %v2976 = vpop.f32.mrb[0].mxu0
    %2977 = vdwg.mxu0
    %v2978 = vadd.f32 %v2080, %v2972
    %v2979 = vadd.f32 %v2081, %v2975
    %v2981 = vlaneseq
    %v2982 = vshrl.u32 %v2981, 7
    %v2983 = vsub.s32 0, %v2982
    %v2984 = vrot.slane %v734, %v2983
    %v2986 = vadd.f32 %v2978, %v2984
    %v2987 = vadd.f32 %v2979, %v2984
    %s2988 = scalar_lea.vmem %s5, 1
    %v2989 = vld [vmem:[%s2988] sm:$0x1]
    %s2990 = scalar_lea.vmem [#allocation2], 1
    %v2991 = vld [vmem:[%s2990] sm:$0x1]
    %s2992 = scalar_lea.vmem [#allocation8], 1
    %v2993 = vld [vmem:[%s2992] sm:$0x1]
    %s2994 = scalar_lea.vmem [#allocation10], 1
    %v2995 = vld [vmem:[%s2994] sm:$0x1]
    %s2996 = scalar_lea.vmem %s8, 3
    %v2997 = vld [vmem:[%s2996] sm:$0x7]
    %s2998 = scalar_lea.vmem [#allocation7], 1
    %v2999 = vld [vmem:[%s2998] sm:$0x1]
    %s3000 = scalar_lea.vmem [#allocation11], 4
    %v3001 = vld [vmem:[%s3000] sm:$0xf]
    %s3002 = scalar_lea.vmem [#allocation13], 1
    %v3003 = vld [vmem:[%s3002] sm:$0x1]
    %3004 = vadd.xlane.f32.xlu0 %v2986
    %v3005 = vpop.xlane.xlu0 %3004
    %3006 = vadd.xlane.f32.xlu0 %v2987
    %v3007 = vpop.xlane.xlu0 %3006
    %v3008 = vmul.f32 %v3005, %v739
    %v3009 = vmul.f32 %v3007, %v739
    %v3010 = vsub.f32 %v2986, %v3008
    %v3011 = vsub.f32 %v2987, %v3009
    %v3012 = vmul.f32 %v3010, %v3010
    %v3013 = vmul.f32 %v3011, %v3011
    %3014 = vadd.xlane.f32.xlu0 %v3012
    %v3015 = vpop.xlane.xlu0 %3014
    %3016 = vadd.xlane.f32.xlu0 %v3013
    %v3017 = vpop.xlane.xlu0 %3016
    %v3018 = vmul.f32 %v3015, %v739
    %v3019 = vmul.f32 %v3017, %v739
    %v3020 = vadd.f32 %v3018, 1e-06
    %v3021 = vadd.f32 %v3019, 1e-06
    %v3022 = vrsqrt.pop %v3020
    %v3023 = vrsqrt.pop %v3021
    %v3024 = vmul.f32 %v3010, %v3022
    %v3025 = vmul.f32 %v3011, %v3023
    %v3027 = vlaneseq
    %v3028 = vshrl.u32 %v3027, 7
    %v3029 = vsub.s32 0, %v3028
    %v3030 = vrot.slane %v2989, %v3029
    %v3032 = vmul.f32 %v3024, %v3030
    %v3033 = vmul.f32 %v3025, %v3030
    %v3035 = vlaneseq
    %v3036 = vshrl.u32 %v3035, 7
    %v3037 = vsub.s32 0, %v3036
    %v3038 = vrot.slane %v2991, %v3037
    %v3040 = vadd.f32 %v3032, %v3038
    %v3041 = vadd.f32 %v3033, %v3038
    %s3042 = scalar_lea.vmem %s7, 192
    %v3043 = vld [vmem:[%s3042] sm:$0xff]
    %v3044 = vld [vmem:[%s3042 + $0x8] sm:$0xf]
    %v3045 = vld [vmem:[%s3042 + $0xc] sm:$0xff]
    %v3046 = vld [vmem:[%s3042 + $0x14] sm:$0xf]
    %v3047 = vld [vmem:[%s3042 + $0x18] sm:$0xff]
    %v3048 = vld [vmem:[%s3042 + $0x20] sm:$0xf]
    %v3049 = vld [vmem:[%s3042 + $0x24] sm:$0xff]
    %v3050 = vld [vmem:[%s3042 + $0x2c] sm:$0xf]
    %v3051 = vld [vmem:[%s3042 + $0x30] sm:$0xff]
    %v3052 = vld [vmem:[%s3042 + $0x38] sm:$0xf]
    %v3053 = vld [vmem:[%s3042 + $0x3c] sm:$0xff]
    %v3054 = vld [vmem:[%s3042 + $0x44] sm:$0xf]
    %v3055 = vld [vmem:[%s3042 + $0x48] sm:$0xff]
    %v3056 = vld [vmem:[%s3042 + $0x50] sm:$0xf]
    %v3057 = vld [vmem:[%s3042 + $0x54] sm:$0xff]
    %v3058 = vld [vmem:[%s3042 + $0x5c] sm:$0xf]
    %v3059 = vld [vmem:[%s3042 + $0x60] sm:$0xff]
    %v3060 = vld [vmem:[%s3042 + $0x68] sm:$0xf]
    %v3061 = vld [vmem:[%s3042 + $0x6c] sm:$0xff]
    %v3062 = vld [vmem:[%s3042 + $0x74] sm:$0xf]
    %v3063 = vld [vmem:[%s3042 + $0x78] sm:$0xff]
    %v3064 = vld [vmem:[%s3042 + $0x80] sm:$0xf]
    %v3065 = vld [vmem:[%s3042 + $0x84] sm:$0xff]
    %v3066 = vld [vmem:[%s3042 + $0x8c] sm:$0xf]
    %v3067 = vld [vmem:[%s3042 + $0x90] sm:$0xff]
    %v3068 = vld [vmem:[%s3042 + $0x98] sm:$0xf]
    %v3069 = vld [vmem:[%s3042 + $0x9c] sm:$0xff]
    %v3070 = vld [vmem:[%s3042 + $0xa4] sm:$0xf]
    %v3071 = vld [vmem:[%s3042 + $0xa8] sm:$0xff]
    %v3072 = vld [vmem:[%s3042 + $0xb0] sm:$0xf]
    %v3073 = vld [vmem:[%s3042 + $0xb4] sm:$0xff]
    %v3074 = vld [vmem:[%s3042 + $0xbc] sm:$0xf]
    %v3075 = vpack.c.bf16 %v3041, %v3040
    %v3077 = vlaneseq
    %v3078 = vshrl.u32 %v3077, 7
    %v3079 = vsub.s32 0, %v3078
    %v3080 = vrot.slane %v2997, %v3079
    %v3081 = vlaneseq
    %v3082 = vshrl.u32 %v3081, 7
    %v3083 = vsub.s32 1, %v3082
    %v3084 = vrot.slane %v2997, %v3083
    %v3085 = vlaneseq
    %v3086 = vshrl.u32 %v3085, 7
    %v3087 = vsub.s32 2, %v3086
    %v3088 = vrot.slane %v2997, %v3087
    %v3124 = vunpack.c.l.b16 %v3043
    %v3125 = vunpack.c.h.b16 %v3043
    %v3126 = vunpack.c.l.b16 %v3044
    %v3127 = vunpack.c.l.b16 %v3045
    %v3128 = vunpack.c.h.b16 %v3045
    %v3129 = vunpack.c.l.b16 %v3046
    %v3130 = vunpack.c.l.b16 %v3047
    %v3131 = vunpack.c.h.b16 %v3047
    %v3132 = vunpack.c.l.b16 %v3048
    %v3133 = vunpack.c.l.b16 %v3049
    %v3134 = vunpack.c.h.b16 %v3049
    %v3135 = vunpack.c.l.b16 %v3050
    %v3136 = vunpack.c.l.b16 %v3051
    %v3137 = vunpack.c.h.b16 %v3051
    %v3138 = vunpack.c.l.b16 %v3052
    %v3139 = vunpack.c.l.b16 %v3053
    %v3140 = vunpack.c.h.b16 %v3053
    %v3141 = vunpack.c.l.b16 %v3054
    %v3142 = vunpack.c.l.b16 %v3055
    %v3143 = vunpack.c.h.b16 %v3055
    %v3144 = vunpack.c.l.b16 %v3056
    %v3145 = vunpack.c.l.b16 %v3057
    %v3146 = vunpack.c.h.b16 %v3057
    %v3147 = vunpack.c.l.b16 %v3058
    %v3148 = vunpack.c.l.b16 %v3059
    %v3149 = vunpack.c.h.b16 %v3059
    %v3150 = vunpack.c.l.b16 %v3060
    %v3151 = vunpack.c.l.b16 %v3061
    %v3152 = vunpack.c.h.b16 %v3061
    %v3153 = vunpack.c.l.b16 %v3062
    %v3154 = vunpack.c.l.b16 %v3063
    %v3155 = vunpack.c.h.b16 %v3063
    %v3156 = vunpack.c.l.b16 %v3064
    %v3157 = vunpack.c.l.b16 %v3065
    %v3158 = vunpack.c.h.b16 %v3065
    %v3159 = vunpack.c.l.b16 %v3066
    %v3160 = vunpack.c.l.b16 %v3067
    %v3161 = vunpack.c.h.b16 %v3067
    %v3162 = vunpack.c.l.b16 %v3068
    %v3163 = vunpack.c.l.b16 %v3069
    %v3164 = vunpack.c.h.b16 %v3069
    %v3165 = vunpack.c.l.b16 %v3070
    %v3166 = vunpack.c.l.b16 %v3071
    %v3167 = vunpack.c.h.b16 %v3071
    %v3168 = vunpack.c.l.b16 %v3072
    %v3169 = vunpack.c.l.b16 %v3073
    %v3170 = vunpack.c.h.b16 %v3073
    %v3171 = vunpack.c.l.b16 %v3074
    %v3172 = vpack.c.b16 %v3127, %v3124
    %v3173 = vpack.c.b16 %v3128, %v3125
    %v3174 = vpack.c.b16 %v3129, %v3126
    %v3175 = vpack.c.b16 %v3133, %v3130
    %v3176 = vpack.c.b16 %v3134, %v3131
    %v3177 = vpack.c.b16 %v3135, %v3132
    %v3178 = vpack.c.b16 %v3139, %v3136
    %v3179 = vpack.c.b16 %v3140, %v3137
    %v3180 = vpack.c.b16 %v3141, %v3138
    %v3181 = vpack.c.b16 %v3145, %v3142
    %v3182 = vpack.c.b16 %v3146, %v3143
    %v3183 = vpack.c.b16 %v3147, %v3144
    %v3184 = vpack.c.b16 %v3151, %v3148
    %v3185 = vpack.c.b16 %v3152, %v3149
    %v3186 = vpack.c.b16 %v3153, %v3150
    %v3187 = vpack.c.b16 %v3157, %v3154
    %v3188 = vpack.c.b16 %v3158, %v3155
    %v3189 = vpack.c.b16 %v3159, %v3156
    %v3190 = vpack.c.b16 %v3163, %v3160
    %v3191 = vpack.c.b16 %v3164, %v3161
    %v3192 = vpack.c.b16 %v3165, %v3162
    %v3193 = vpack.c.b16 %v3169, %v3166
    %v3194 = vpack.c.b16 %v3170, %v3167
    %v3195 = vpack.c.b16 %v3171, %v3168
    %3220 = vmatprep.subr.bf16.mxu0 %v3173
    %3221 = vmatpush1.bf16.msra.mxu0 %v3172
    %3222 = vmatprep.subr.bf16.mxu0 %v3176
    %3223 = vmatpush1.bf16.msra.mxu0 %v3175
    %3224 = vmatprep.subr.bf16.mxu0 %v3179
    %3225 = vmatpush1.bf16.msra.mxu0 %v3178
    %3226 = vmatprep.subr.bf16.mxu0 %v3182
    %3227 = vmatpush1.bf16.msra.mxu0 %v3181
    %3228 = vmatprep.subr.bf16.mxu0 %v3185
    %3229 = vmatpush1.bf16.msra.mxu0 %v3184
    %3230 = vmatprep.subr.bf16.mxu0 %v3188
    %3231 = vmatpush1.bf16.msra.mxu0 %v3187
    %3232 = vmatprep.subr.bf16.mxu0 %v3191
    %3233 = vmatpush1.bf16.msra.mxu0 %v3190
    %3234 = vmatprep.subr.bf16.mxu0 %v3194
    %3235 = vmatpush1.bf16.msra.mxu0 %v3193
    %3236 = vmatprep.subr.bf16.mxu0 0
    %3237 = vmatpush1.bf16.msra.mxu0 0
    %3238 = vmatprep.subr.bf16.mxu0 0
    %3239 = vmatpush1.bf16.msra.mxu0 0
    %3240 = vmatprep.subr.bf16.mxu0 0
    %3241 = vmatpush1.bf16.msra.mxu0 0
    %3242 = vmatprep.subr.bf16.mxu0 0
    %3243 = vmatpush1.bf16.msra.mxu0 0
    %3244 = vmatprep.subr.bf16.mxu0 0
    %3245 = vmatpush1.bf16.msra.mxu0 0
    %3246 = vmatprep.subr.bf16.mxu0 0
    %3247 = vmatpush1.bf16.msra.mxu0 0
    %3248 = vmatprep.subr.bf16.mxu0 0
    %3249 = vmatpush1.bf16.msra.mxu0 0
    %3250 = vmatprep.subr.bf16.mxu0 0
    %3251 = vmatpush1.bf16.msra.mxu0 0
    %3252 = vmatprep.mubr.bf16.mxu0 0
    %3253 = vmatmul.mubr.bf16.gmra.mrb[0].mxu0 %v3075
    %v3254 = vpop.f32.mrb[0].mxu0
    %v3255 = vadd.f32 %v3080, %v3254
    %v3256 = vpop.f32.mrb[0].mxu0
    %v3257 = vadd.f32 %v3084, %v3256
    %v3258 = vpop.f32.mrb[0].mxu0
    %v3259 = vadd.f32 %v3080, %v3258
    %v3260 = vpop.f32.mrb[0].mxu0
    %v3261 = vadd.f32 %v3084, %v3260
    %3262 = vdwg.mxu0
    %3263 = vmatprep.subr.bf16.mxu0 0
    %3264 = vmatpush1.bf16.msra.mxu0 %v3174
    %3265 = vmatprep.subr.bf16.mxu0 0
    %3266 = vmatpush1.bf16.msra.mxu0 %v3177
    %3267 = vmatprep.subr.bf16.mxu0 0
    %3268 = vmatpush1.bf16.msra.mxu0 %v3180
    %3269 = vmatprep.subr.bf16.mxu0 0
    %3270 = vmatpush1.bf16.msra.mxu0 %v3183
    %3271 = vmatprep.subr.bf16.mxu0 0
    %3272 = vmatpush1.bf16.msra.mxu0 %v3186
    %3273 = vmatprep.subr.bf16.mxu0 0
    %3274 = vmatpush1.bf16.msra.mxu0 %v3189
    %3275 = vmatprep.subr.bf16.mxu0 0
    %3276 = vmatpush1.bf16.msra.mxu0 %v3192
    %3277 = vmatprep.subr.bf16.mxu0 0
    %3278 = vmatpush1.bf16.msra.mxu0 %v3195
    %3279 = vmatprep.subr.bf16.mxu0 0
    %3280 = vmatpush1.bf16.msra.mxu0 0
    %3281 = vmatprep.subr.bf16.mxu0 0
    %3282 = vmatpush1.bf16.msra.mxu0 0
    %3283 = vmatprep.subr.bf16.mxu0 0
    %3284 = vmatpush1.bf16.msra.mxu0 0
    %3285 = vmatprep.subr.bf16.mxu0 0
    %3286 = vmatpush1.bf16.msra.mxu0 0
    %3287 = vmatprep.subr.bf16.mxu0 0
    %3288 = vmatpush1.bf16.msra.mxu0 0
    %3289 = vmatprep.subr.bf16.mxu0 0
    %3290 = vmatpush1.bf16.msra.mxu0 0
    %3291 = vmatprep.subr.bf16.mxu0 0
    %3292 = vmatpush1.bf16.msra.mxu0 0
    %3293 = vmatprep.subr.bf16.mxu0 0
    %3294 = vmatpush1.bf16.msra.mxu0 0
    %3295 = vmatprep.mubr.bf16.mxu0 0
    %3296 = vmatmul.mubr.bf16.gmra.mrb[0].mxu0 %v3075
    %v3297 = vpop.f32.mrb[0].mxu0
    %v3298 = vadd.f32 %v3088, %v3297
    %v3299 = vpop.f32.mrb[0].mxu0
    %v3300 = vpop.f32.mrb[0].mxu0
    %v3301 = vadd.f32 %v3088, %v3300
    %v3302 = vpop.f32.mrb[0].mxu0
    %3303 = vdwg.mxu0
    %v3304 = vpack.c.bf16 %v3255, %v3255
    %v3305 = vpack.c.bf16 %v3257, %v3257
    %v3307 = vsel %vm1037, %v3304, 0
    %v3310 = vsel %vm1037, %v3305, 0
    %3312 = vmatprep.subr.bf16.mxu0 0
    %3313 = vmatpush1.bf16.xpose.msra.mxu0 %v3310
    %3314 = vmatprep.subr.bf16.mxu0 0
    %3315 = vmatpush1.bf16.xpose.msra.mxu0 0
    %3316 = vmatprep.subr.bf16.mxu0 0
    %3317 = vmatpush1.bf16.xpose.msra.mxu0 0
    %3318 = vmatprep.subr.bf16.mxu0 0
    %3319 = vmatpush1.bf16.xpose.msra.mxu0 0
    %3320 = vmatprep.subr.bf16.mxu0 0
    %3321 = vmatpush1.bf16.xpose.msra.mxu0 0
    %3322 = vmatprep.subr.bf16.mxu0 0
    %3323 = vmatpush1.bf16.xpose.msra.mxu0 0
    %3324 = vmatprep.subr.bf16.mxu0 0
    %3325 = vmatpush1.bf16.xpose.msra.mxu0 0
    %3326 = vmatprep.subr.bf16.mxu0 0
    %3327 = vmatpush1.bf16.xpose.msra.mxu0 0
    %3328 = vmatprep.subr.bf16.mxu0 0
    %3329 = vmatpush1.bf16.xpose.msra.mxu0 0
    %3330 = vmatprep.subr.bf16.mxu0 0
    %3331 = vmatpush1.bf16.xpose.msra.mxu0 0
    %3332 = vmatprep.subr.bf16.mxu0 0
    %3333 = vmatpush1.bf16.xpose.msra.mxu0 0
    %3334 = vmatprep.subr.bf16.mxu0 0
    %3335 = vmatpush1.bf16.xpose.msra.mxu0 0
    %3336 = vmatprep.subr.bf16.mxu0 0
    %3337 = vmatpush1.bf16.xpose.msra.mxu0 0
    %3338 = vmatprep.subr.bf16.mxu0 0
    %3339 = vmatpush1.bf16.xpose.msra.mxu0 0
    %3340 = vmatprep.subr.bf16.mxu0 0
    %3341 = vmatpush1.bf16.xpose.msra.mxu0 0
    %3342 = vmatprep.subr.bf16.mxu0 0
    %3343 = vmatpush1.bf16.xpose.msra.mxu0 0
    %3344 = vmatprep.mubr.bf16.mxu0 0
    %3345 = vmatmul.mubr.bf16.gmra.mrb[0].mxu0 %v3307
    %v3346 = vpop.f32.mrb[0].mxu0
    %v3347 = vadd.f32 0.0, %v3346
    %v3348 = vpop.f32.mrb[0].mxu0
    %v3349 = vpop.f32.mrb[0].mxu0
    %v3350 = vpop.f32.mrb[0].mxu0
    %3351 = vdwg.mxu0
    %v3352 = vmul.f32 %v3347, 0.17677669
    %v3353 = vsel %vm726, %v3352, -1e+30
    %v3354 = vsel %vm1086, %v3353, -inf
    %3355 = vmax.xlane.f32.xlu0 %v3354
    %v3356 = vpop.xlane.xlu0 %3355
    %v3357 = vsub.f32 %v3353, %v3356
    %v3358 = vmul.f32 %v3357, 1.442695
    %v3359 = vpow.pop %v3358
    %v3360 = vsel %vm1086, %v3359, 0.0
    %3361 = vadd.xlane.f32.xlu0 %v3360
    %v3362 = vpop.xlane.xlu0 %3361
    %v3363 = vrcp.pop %v3362
    %v3364 = vmul.f32 %v3359, %v3363
    %v3365 = vpack.c.bf16 %v3364, %v3364
    %v3366 = vpack.c.bf16 %v3298, %v3298
    %v3368 = vsel %vm1086, %v3365, 0
    %v3371 = vsel %vm1103, %v3366, 0
    %3373 = vmatprep.subr.bf16.mxu0 0
    %3374 = vmatpush1.bf16.msra.mxu0 %v3371
    %3375 = vmatprep.subr.bf16.mxu0 0
    %3376 = vmatpush1.bf16.msra.mxu0 0
    %3377 = vmatprep.subr.bf16.mxu0 0
    %3378 = vmatpush1.bf16.msra.mxu0 0
    %3379 = vmatprep.subr.bf16.mxu0 0
    %3380 = vmatpush1.bf16.msra.mxu0 0
    %3381 = vmatprep.subr.bf16.mxu0 0
    %3382 = vmatpush1.bf16.msra.mxu0 0
    %3383 = vmatprep.subr.bf16.mxu0 0
    %3384 = vmatpush1.bf16.msra.mxu0 0
    %3385 = vmatprep.subr.bf16.mxu0 0
    %3386 = vmatpush1.bf16.msra.mxu0 0
    %3387 = vmatprep.subr.bf16.mxu0 0
    %3388 = vmatpush1.bf16.msra.mxu0 0
    %3389 = vmatprep.subr.bf16.mxu0 0
    %3390 = vmatpush1.bf16.msra.mxu0 0
    %3391 = vmatprep.subr.bf16.mxu0 0
    %3392 = vmatpush1.bf16.msra.mxu0 0
    %3393 = vmatprep.subr.bf16.mxu0 0
    %3394 = vmatpush1.bf16.msra.mxu0 0
    %3395 = vmatprep.subr.bf16.mxu0 0
    %3396 = vmatpush1.bf16.msra.mxu0 0
    %3397 = vmatprep.subr.bf16.mxu0 0
    %3398 = vmatpush1.bf16.msra.mxu0 0
    %3399 = vmatprep.subr.bf16.mxu0 0
    %3400 = vmatpush1.bf16.msra.mxu0 0
    %3401 = vmatprep.subr.bf16.mxu0 0
    %3402 = vmatpush1.bf16.msra.mxu0 0
    %3403 = vmatprep.subr.bf16.mxu0 0
    %3404 = vmatpush1.bf16.msra.mxu0 0
    %3405 = vmatprep.mubr.bf16.mxu0 0
    %3406 = vmatmul.mubr.bf16.gmra.mrb[0].mxu0 %v3368
    %v3407 = vpop.f32.mrb[0].mxu0
    %v3408 = vadd.f32 0.0, %v3407
    %v3409 = vpop.f32.mrb[0].mxu0
    %v3410 = vpop.f32.mrb[0].mxu0
    %v3411 = vpop.f32.mrb[0].mxu0
    %3412 = vdwg.mxu0
    %3414 = vrot.lane.b32.xlu0 %v3304, 96
    %v3415 = vpop.permute.xlu0 %3414
    %3417 = vrot.lane.b32.xlu0 %v3305, 96
    %v3418 = vpop.permute.xlu0 %3417
    %v3420 = vsel %vm1037, %v3415, 0
    %v3423 = vsel %vm1037, %v3418, 0
    %3425 = vmatprep.subr.bf16.mxu0 0
    %3426 = vmatpush1.bf16.xpose.msra.mxu0 %v3423
    %3427 = vmatprep.subr.bf16.mxu0 0
    %3428 = vmatpush1.bf16.xpose.msra.mxu0 0
    %3429 = vmatprep.subr.bf16.mxu0 0
    %3430 = vmatpush1.bf16.xpose.msra.mxu0 0
    %3431 = vmatprep.subr.bf16.mxu0 0
    %3432 = vmatpush1.bf16.xpose.msra.mxu0 0
    %3433 = vmatprep.subr.bf16.mxu0 0
    %3434 = vmatpush1.bf16.xpose.msra.mxu0 0
    %3435 = vmatprep.subr.bf16.mxu0 0
    %3436 = vmatpush1.bf16.xpose.msra.mxu0 0
    %3437 = vmatprep.subr.bf16.mxu0 0
    %3438 = vmatpush1.bf16.xpose.msra.mxu0 0
    %3439 = vmatprep.subr.bf16.mxu0 0
    %3440 = vmatpush1.bf16.xpose.msra.mxu0 0
    %3441 = vmatprep.subr.bf16.mxu0 0
    %3442 = vmatpush1.bf16.xpose.msra.mxu0 0
    %3443 = vmatprep.subr.bf16.mxu0 0
    %3444 = vmatpush1.bf16.xpose.msra.mxu0 0
    %3445 = vmatprep.subr.bf16.mxu0 0
    %3446 = vmatpush1.bf16.xpose.msra.mxu0 0
    %3447 = vmatprep.subr.bf16.mxu0 0
    %3448 = vmatpush1.bf16.xpose.msra.mxu0 0
    %3449 = vmatprep.subr.bf16.mxu0 0
    %3450 = vmatpush1.bf16.xpose.msra.mxu0 0
    %3451 = vmatprep.subr.bf16.mxu0 0
    %3452 = vmatpush1.bf16.xpose.msra.mxu0 0
    %3453 = vmatprep.subr.bf16.mxu0 0
    %3454 = vmatpush1.bf16.xpose.msra.mxu0 0
    %3455 = vmatprep.subr.bf16.mxu0 0
    %3456 = vmatpush1.bf16.xpose.msra.mxu0 0
    %3457 = vmatprep.mubr.bf16.mxu0 0
    %3458 = vmatmul.mubr.bf16.gmra.mrb[0].mxu0 %v3420
    %v3459 = vpop.f32.mrb[0].mxu0
    %v3460 = vadd.f32 0.0, %v3459
    %v3461 = vpop.f32.mrb[0].mxu0
    %v3462 = vpop.f32.mrb[0].mxu0
    %v3463 = vpop.f32.mrb[0].mxu0
    %3464 = vdwg.mxu0
    %v3465 = vmul.f32 %v3460, 0.17677669
    %v3466 = vsel %vm726, %v3465, -1e+30
    %v3467 = vsel %vm1086, %v3466, -inf
    %3468 = vmax.xlane.f32.xlu0 %v3467
    %v3469 = vpop.xlane.xlu0 %3468
    %v3470 = vsub.f32 %v3466, %v3469
    %v3471 = vmul.f32 %v3470, 1.442695
    %v3472 = vpow.pop %v3471
    %v3473 = vsel %vm1086, %v3472, 0.0
    %3474 = vadd.xlane.f32.xlu0 %v3473
    %v3475 = vpop.xlane.xlu0 %3474
    %v3476 = vrcp.pop %v3475
    %v3477 = vmul.f32 %v3472, %v3476
    %v3478 = vpack.c.bf16 %v3477, %v3477
    %3480 = vrot.lane.b32.xlu0 %v3366, 96
    %v3481 = vpop.permute.xlu0 %3480
    %v3483 = vsel %vm1086, %v3478, 0
    %v3486 = vsel %vm1103, %v3481, 0
    %3488 = vmatprep.subr.bf16.mxu0 0
    %3489 = vmatpush1.bf16.msra.mxu0 %v3486
    %3490 = vmatprep.subr.bf16.mxu0 0
    %3491 = vmatpush1.bf16.msra.mxu0 0
    %3492 = vmatprep.subr.bf16.mxu0 0
    %3493 = vmatpush1.bf16.msra.mxu0 0
    %3494 = vmatprep.subr.bf16.mxu0 0
    %3495 = vmatpush1.bf16.msra.mxu0 0
    %3496 = vmatprep.subr.bf16.mxu0 0
    %3497 = vmatpush1.bf16.msra.mxu0 0
    %3498 = vmatprep.subr.bf16.mxu0 0
    %3499 = vmatpush1.bf16.msra.mxu0 0
    %3500 = vmatprep.subr.bf16.mxu0 0
    %3501 = vmatpush1.bf16.msra.mxu0 0
    %3502 = vmatprep.subr.bf16.mxu0 0
    %3503 = vmatpush1.bf16.msra.mxu0 0
    %3504 = vmatprep.subr.bf16.mxu0 0
    %3505 = vmatpush1.bf16.msra.mxu0 0
    %3506 = vmatprep.subr.bf16.mxu0 0
    %3507 = vmatpush1.bf16.msra.mxu0 0
    %3508 = vmatprep.subr.bf16.mxu0 0
    %3509 = vmatpush1.bf16.msra.mxu0 0
    %3510 = vmatprep.subr.bf16.mxu0 0
    %3511 = vmatpush1.bf16.msra.mxu0 0
    %3512 = vmatprep.subr.bf16.mxu0 0
    %3513 = vmatpush1.bf16.msra.mxu0 0
    %3514 = vmatprep.subr.bf16.mxu0 0
    %3515 = vmatpush1.bf16.msra.mxu0 0
    %3516 = vmatprep.subr.bf16.mxu0 0
    %3517 = vmatpush1.bf16.msra.mxu0 0
    %3518 = vmatprep.subr.bf16.mxu0 0
    %3519 = vmatpush1.bf16.msra.mxu0 0
    %3520 = vmatprep.mubr.bf16.mxu0 0
    %3521 = vmatmul.mubr.bf16.gmra.mrb[0].mxu0 %v3483
    %v3522 = vpop.f32.mrb[0].mxu0
    %v3523 = vadd.f32 0.0, %v3522
    %v3524 = vpop.f32.mrb[0].mxu0
    %v3525 = vpop.f32.mrb[0].mxu0
    %v3526 = vpop.f32.mrb[0].mxu0
    %3527 = vdwg.mxu0
    %3528 = vrot.lane.b32.xlu0 %v3304, 64
    %v3529 = vpop.permute.xlu0 %3528
    %3530 = vrot.lane.b32.xlu0 %v3305, 64
    %v3531 = vpop.permute.xlu0 %3530
    %v3533 = vsel %vm1037, %v3529, 0
    %v3536 = vsel %vm1037, %v3531, 0
    %3538 = vmatprep.subr.bf16.mxu0 0
    %3539 = vmatpush1.bf16.xpose.msra.mxu0 %v3536
    %3540 = vmatprep.subr.bf16.mxu0 0
    %3541 = vmatpush1.bf16.xpose.msra.mxu0 0
    %3542 = vmatprep.subr.bf16.mxu0 0
    %3543 = vmatpush1.bf16.xpose.msra.mxu0 0
    %3544 = vmatprep.subr.bf16.mxu0 0
    %3545 = vmatpush1.bf16.xpose.msra.mxu0 0
    %3546 = vmatprep.subr.bf16.mxu0 0
    %3547 = vmatpush1.bf16.xpose.msra.mxu0 0
    %3548 = vmatprep.subr.bf16.mxu0 0
    %3549 = vmatpush1.bf16.xpose.msra.mxu0 0
    %3550 = vmatprep.subr.bf16.mxu0 0
    %3551 = vmatpush1.bf16.xpose.msra.mxu0 0
    %3552 = vmatprep.subr.bf16.mxu0 0
    %3553 = vmatpush1.bf16.xpose.msra.mxu0 0
    %3554 = vmatprep.subr.bf16.mxu0 0
    %3555 = vmatpush1.bf16.xpose.msra.mxu0 0
    %3556 = vmatprep.subr.bf16.mxu0 0
    %3557 = vmatpush1.bf16.xpose.msra.mxu0 0
    %3558 = vmatprep.subr.bf16.mxu0 0
    %3559 = vmatpush1.bf16.xpose.msra.mxu0 0
    %3560 = vmatprep.subr.bf16.mxu0 0
    %3561 = vmatpush1.bf16.xpose.msra.mxu0 0
    %3562 = vmatprep.subr.bf16.mxu0 0
    %3563 = vmatpush1.bf16.xpose.msra.mxu0 0
    %3564 = vmatprep.subr.bf16.mxu0 0
    %3565 = vmatpush1.bf16.xpose.msra.mxu0 0
    %3566 = vmatprep.subr.bf16.mxu0 0
    %3567 = vmatpush1.bf16.xpose.msra.mxu0 0
    %3568 = vmatprep.subr.bf16.mxu0 0
    %3569 = vmatpush1.bf16.xpose.msra.mxu0 0
    %3570 = vmatprep.mubr.bf16.mxu0 0
    %3571 = vmatmul.mubr.bf16.gmra.mrb[0].mxu0 %v3533
    %v3572 = vpop.f32.mrb[0].mxu0
    %v3573 = vadd.f32 0.0, %v3572
    %v3574 = vpop.f32.mrb[0].mxu0
    %v3575 = vpop.f32.mrb[0].mxu0
    %v3576 = vpop.f32.mrb[0].mxu0
    %3577 = vdwg.mxu0
    %v3578 = vmul.f32 %v3573, 0.17677669
    %v3579 = vsel %vm726, %v3578, -1e+30
    %v3580 = vsel %vm1086, %v3579, -inf
    %3581 = vmax.xlane.f32.xlu0 %v3580
    %v3582 = vpop.xlane.xlu0 %3581
    %v3583 = vsub.f32 %v3579, %v3582
    %v3584 = vmul.f32 %v3583, 1.442695
    %v3585 = vpow.pop %v3584
    %v3586 = vsel %vm1086, %v3585, 0.0
    %3587 = vadd.xlane.f32.xlu0 %v3586
    %v3588 = vpop.xlane.xlu0 %3587
    %v3589 = vrcp.pop %v3588
    %v3590 = vmul.f32 %v3585, %v3589
    %v3591 = vpack.c.bf16 %v3590, %v3590
    %3592 = vrot.lane.b32.xlu0 %v3366, 64
    %v3593 = vpop.permute.xlu0 %3592
    %v3595 = vsel %vm1086, %v3591, 0
    %v3598 = vsel %vm1103, %v3593, 0
    %3600 = vmatprep.subr.bf16.mxu0 0
    %3601 = vmatpush1.bf16.msra.mxu0 %v3598
    %3602 = vmatprep.subr.bf16.mxu0 0
    %3603 = vmatpush1.bf16.msra.mxu0 0
    %3604 = vmatprep.subr.bf16.mxu0 0
    %3605 = vmatpush1.bf16.msra.mxu0 0
    %3606 = vmatprep.subr.bf16.mxu0 0
    %3607 = vmatpush1.bf16.msra.mxu0 0
    %3608 = vmatprep.subr.bf16.mxu0 0
    %3609 = vmatpush1.bf16.msra.mxu0 0
    %3610 = vmatprep.subr.bf16.mxu0 0
    %3611 = vmatpush1.bf16.msra.mxu0 0
    %3612 = vmatprep.subr.bf16.mxu0 0
    %3613 = vmatpush1.bf16.msra.mxu0 0
    %3614 = vmatprep.subr.bf16.mxu0 0
    %3615 = vmatpush1.bf16.msra.mxu0 0
    %3616 = vmatprep.subr.bf16.mxu0 0
    %3617 = vmatpush1.bf16.msra.mxu0 0
    %3618 = vmatprep.subr.bf16.mxu0 0
    %3619 = vmatpush1.bf16.msra.mxu0 0
    %3620 = vmatprep.subr.bf16.mxu0 0
    %3621 = vmatpush1.bf16.msra.mxu0 0
    %3622 = vmatprep.subr.bf16.mxu0 0
    %3623 = vmatpush1.bf16.msra.mxu0 0
    %3624 = vmatprep.subr.bf16.mxu0 0
    %3625 = vmatpush1.bf16.msra.mxu0 0
    %3626 = vmatprep.subr.bf16.mxu0 0
    %3627 = vmatpush1.bf16.msra.mxu0 0
    %3628 = vmatprep.subr.bf16.mxu0 0
    %3629 = vmatpush1.bf16.msra.mxu0 0
    %3630 = vmatprep.subr.bf16.mxu0 0
    %3631 = vmatpush1.bf16.msra.mxu0 0
    %3632 = vmatprep.mubr.bf16.mxu0 0
    %3633 = vmatmul.mubr.bf16.gmra.mrb[0].mxu0 %v3595
    %v3634 = vpop.f32.mrb[0].mxu0
    %v3635 = vadd.f32 0.0, %v3634
    %v3636 = vpop.f32.mrb[0].mxu0
    %v3637 = vpop.f32.mrb[0].mxu0
    %v3638 = vpop.f32.mrb[0].mxu0
    %3639 = vdwg.mxu0
    %3640 = vrot.lane.b32.xlu0 %v3304, 32
    %v3641 = vpop.permute.xlu0 %3640
    %3642 = vrot.lane.b32.xlu0 %v3305, 32
    %v3643 = vpop.permute.xlu0 %3642
    %v3645 = vsel %vm1037, %v3641, 0
    %v3648 = vsel %vm1037, %v3643, 0
    %3650 = vmatprep.subr.bf16.mxu0 0
    %3651 = vmatpush1.bf16.xpose.msra.mxu0 %v3648
    %3652 = vmatprep.subr.bf16.mxu0 0
    %3653 = vmatpush1.bf16.xpose.msra.mxu0 0
    %3654 = vmatprep.subr.bf16.mxu0 0
    %3655 = vmatpush1.bf16.xpose.msra.mxu0 0
    %3656 = vmatprep.subr.bf16.mxu0 0
    %3657 = vmatpush1.bf16.xpose.msra.mxu0 0
    %3658 = vmatprep.subr.bf16.mxu0 0
    %3659 = vmatpush1.bf16.xpose.msra.mxu0 0
    %3660 = vmatprep.subr.bf16.mxu0 0
    %3661 = vmatpush1.bf16.xpose.msra.mxu0 0
    %3662 = vmatprep.subr.bf16.mxu0 0
    %3663 = vmatpush1.bf16.xpose.msra.mxu0 0
    %3664 = vmatprep.subr.bf16.mxu0 0
    %3665 = vmatpush1.bf16.xpose.msra.mxu0 0
    %3666 = vmatprep.subr.bf16.mxu0 0
    %3667 = vmatpush1.bf16.xpose.msra.mxu0 0
    %3668 = vmatprep.subr.bf16.mxu0 0
    %3669 = vmatpush1.bf16.xpose.msra.mxu0 0
    %3670 = vmatprep.subr.bf16.mxu0 0
    %3671 = vmatpush1.bf16.xpose.msra.mxu0 0
    %3672 = vmatprep.subr.bf16.mxu0 0
    %3673 = vmatpush1.bf16.xpose.msra.mxu0 0
    %3674 = vmatprep.subr.bf16.mxu0 0
    %3675 = vmatpush1.bf16.xpose.msra.mxu0 0
    %3676 = vmatprep.subr.bf16.mxu0 0
    %3677 = vmatpush1.bf16.xpose.msra.mxu0 0
    %3678 = vmatprep.subr.bf16.mxu0 0
    %3679 = vmatpush1.bf16.xpose.msra.mxu0 0
    %3680 = vmatprep.subr.bf16.mxu0 0
    %3681 = vmatpush1.bf16.xpose.msra.mxu0 0
    %3682 = vmatprep.mubr.bf16.mxu0 0
    %3683 = vmatmul.mubr.bf16.gmra.mrb[0].mxu0 %v3645
    %v3684 = vpop.f32.mrb[0].mxu0
    %v3685 = vadd.f32 0.0, %v3684
    %v3686 = vpop.f32.mrb[0].mxu0
    %v3687 = vpop.f32.mrb[0].mxu0
    %v3688 = vpop.f32.mrb[0].mxu0
    %3689 = vdwg.mxu0
    %v3690 = vmul.f32 %v3685, 0.17677669
    %v3691 = vsel %vm726, %v3690, -1e+30
    %v3692 = vsel %vm1086, %v3691, -inf
    %3693 = vmax.xlane.f32.xlu0 %v3692
    %v3694 = vpop.xlane.xlu0 %3693
    %v3695 = vsub.f32 %v3691, %v3694
    %v3696 = vmul.f32 %v3695, 1.442695
    %v3697 = vpow.pop %v3696
    %v3698 = vsel %vm1086, %v3697, 0.0
    %3699 = vadd.xlane.f32.xlu0 %v3698
    %v3700 = vpop.xlane.xlu0 %3699
    %v3701 = vrcp.pop %v3700
    %v3702 = vmul.f32 %v3697, %v3701
    %v3703 = vpack.c.bf16 %v3702, %v3702
    %3704 = vrot.lane.b32.xlu0 %v3366, 32
    %v3705 = vpop.permute.xlu0 %3704
    %v3707 = vsel %vm1086, %v3703, 0
    %v3710 = vsel %vm1103, %v3705, 0
    %3712 = vmatprep.subr.bf16.mxu0 0
    %3713 = vmatpush1.bf16.msra.mxu0 %v3710
    %3714 = vmatprep.subr.bf16.mxu0 0
    %3715 = vmatpush1.bf16.msra.mxu0 0
    %3716 = vmatprep.subr.bf16.mxu0 0
    %3717 = vmatpush1.bf16.msra.mxu0 0
    %3718 = vmatprep.subr.bf16.mxu0 0
    %3719 = vmatpush1.bf16.msra.mxu0 0
    %3720 = vmatprep.subr.bf16.mxu0 0
    %3721 = vmatpush1.bf16.msra.mxu0 0
    %3722 = vmatprep.subr.bf16.mxu0 0
    %3723 = vmatpush1.bf16.msra.mxu0 0
    %3724 = vmatprep.subr.bf16.mxu0 0
    %3725 = vmatpush1.bf16.msra.mxu0 0
    %3726 = vmatprep.subr.bf16.mxu0 0
    %3727 = vmatpush1.bf16.msra.mxu0 0
    %3728 = vmatprep.subr.bf16.mxu0 0
    %3729 = vmatpush1.bf16.msra.mxu0 0
    %3730 = vmatprep.subr.bf16.mxu0 0
    %3731 = vmatpush1.bf16.msra.mxu0 0
    %3732 = vmatprep.subr.bf16.mxu0 0
    %3733 = vmatpush1.bf16.msra.mxu0 0
    %3734 = vmatprep.subr.bf16.mxu0 0
    %3735 = vmatpush1.bf16.msra.mxu0 0
    %3736 = vmatprep.subr.bf16.mxu0 0
    %3737 = vmatpush1.bf16.msra.mxu0 0
    %3738 = vmatprep.subr.bf16.mxu0 0
    %3739 = vmatpush1.bf16.msra.mxu0 0
    %3740 = vmatprep.subr.bf16.mxu0 0
    %3741 = vmatpush1.bf16.msra.mxu0 0
    %3742 = vmatprep.subr.bf16.mxu0 0
    %3743 = vmatpush1.bf16.msra.mxu0 0
    %3744 = vmatprep.mubr.bf16.mxu0 0
    %3745 = vmatmul.mubr.bf16.gmra.mrb[0].mxu0 %v3707
    %v3746 = vpop.f32.mrb[0].mxu0
    %v3747 = vadd.f32 0.0, %v3746
    %v3748 = vpop.f32.mrb[0].mxu0
    %v3749 = vpop.f32.mrb[0].mxu0
    %v3750 = vpop.f32.mrb[0].mxu0
    %3751 = vdwg.mxu0
    %3753 = vrot.lane.b32.xlu0 %v3523, 32
    %v3754 = vpop.permute.xlu0 %3753
    %3757 = vrot.lane.b32.xlu0 %v3635, 64
    %v3758 = vpop.permute.xlu0 %3757
    %3761 = vrot.lane.b32.xlu0 %v3747, 96
    %v3762 = vpop.permute.xlu0 %3761
    %v3764 = vsel %vm1037, %v3408, %v3754
    %v3765 = vsel %vm1499, %v3764, %v3758
    %v3766 = vsel %vm1501, %v3765, %v3762
    %v3767 = vpack.c.bf16 %v3259, %v3259
    %v3768 = vpack.c.bf16 %v3261, %v3261
    %v3770 = vsel %vm1037, %v3767, 0
    %v3773 = vsel %vm1037, %v3768, 0
    %3775 = vmatprep.subr.bf16.mxu0 0
    %3776 = vmatpush1.bf16.xpose.msra.mxu0 %v3773
    %3777 = vmatprep.subr.bf16.mxu0 0
    %3778 = vmatpush1.bf16.xpose.msra.mxu0 0
    %3779 = vmatprep.subr.bf16.mxu0 0
    %3780 = vmatpush1.bf16.xpose.msra.mxu0 0
    %3781 = vmatprep.subr.bf16.mxu0 0
    %3782 = vmatpush1.bf16.xpose.msra.mxu0 0
    %3783 = vmatprep.subr.bf16.mxu0 0
    %3784 = vmatpush1.bf16.xpose.msra.mxu0 0
    %3785 = vmatprep.subr.bf16.mxu0 0
    %3786 = vmatpush1.bf16.xpose.msra.mxu0 0
    %3787 = vmatprep.subr.bf16.mxu0 0
    %3788 = vmatpush1.bf16.xpose.msra.mxu0 0
    %3789 = vmatprep.subr.bf16.mxu0 0
    %3790 = vmatpush1.bf16.xpose.msra.mxu0 0
    %3791 = vmatprep.subr.bf16.mxu0 0
    %3792 = vmatpush1.bf16.xpose.msra.mxu0 0
    %3793 = vmatprep.subr.bf16.mxu0 0
    %3794 = vmatpush1.bf16.xpose.msra.mxu0 0
    %3795 = vmatprep.subr.bf16.mxu0 0
    %3796 = vmatpush1.bf16.xpose.msra.mxu0 0
    %3797 = vmatprep.subr.bf16.mxu0 0
    %3798 = vmatpush1.bf16.xpose.msra.mxu0 0
    %3799 = vmatprep.subr.bf16.mxu0 0
    %3800 = vmatpush1.bf16.xpose.msra.mxu0 0
    %3801 = vmatprep.subr.bf16.mxu0 0
    %3802 = vmatpush1.bf16.xpose.msra.mxu0 0
    %3803 = vmatprep.subr.bf16.mxu0 0
    %3804 = vmatpush1.bf16.xpose.msra.mxu0 0
    %3805 = vmatprep.subr.bf16.mxu0 0
    %3806 = vmatpush1.bf16.xpose.msra.mxu0 0
    %3807 = vmatprep.mubr.bf16.mxu0 0
    %3808 = vmatmul.mubr.bf16.gmra.mrb[0].mxu0 %v3770
    %v3809 = vpop.f32.mrb[0].mxu0
    %v3810 = vadd.f32 0.0, %v3809
    %v3811 = vpop.f32.mrb[0].mxu0
    %v3812 = vpop.f32.mrb[0].mxu0
    %v3813 = vpop.f32.mrb[0].mxu0
    %3814 = vdwg.mxu0
    %v3815 = vmul.f32 %v3810, 0.17677669
    %v3816 = vsel %vm726, %v3815, -1e+30
    %v3817 = vsel %vm1086, %v3816, -inf
    %3818 = vmax.xlane.f32.xlu0 %v3817
    %v3819 = vpop.xlane.xlu0 %3818
    %v3820 = vsub.f32 %v3816, %v3819
    %v3821 = vmul.f32 %v3820, 1.442695
    %v3822 = vpow.pop %v3821
    %v3823 = vsel %vm1086, %v3822, 0.0
    %3824 = vadd.xlane.f32.xlu0 %v3823
    %v3825 = vpop.xlane.xlu0 %3824
    %v3826 = vrcp.pop %v3825
    %v3827 = vmul.f32 %v3822, %v3826
    %v3828 = vpack.c.bf16 %v3827, %v3827
    %v3829 = vpack.c.bf16 %v3301, %v3301
    %v3831 = vsel %vm1086, %v3828, 0
    %v3834 = vsel %vm1103, %v3829, 0
    %3836 = vmatprep.subr.bf16.mxu0 0
    %3837 = vmatpush1.bf16.msra.mxu0 %v3834
    %3838 = vmatprep.subr.bf16.mxu0 0
    %3839 = vmatpush1.bf16.msra.mxu0 0
    %3840 = vmatprep.subr.bf16.mxu0 0
    %3841 = vmatpush1.bf16.msra.mxu0 0
    %3842 = vmatprep.subr.bf16.mxu0 0
    %3843 = vmatpush1.bf16.msra.mxu0 0
    %3844 = vmatprep.subr.bf16.mxu0 0
    %3845 = vmatpush1.bf16.msra.mxu0 0
    %3846 = vmatprep.subr.bf16.mxu0 0
    %3847 = vmatpush1.bf16.msra.mxu0 0
    %3848 = vmatprep.subr.bf16.mxu0 0
    %3849 = vmatpush1.bf16.msra.mxu0 0
    %3850 = vmatprep.subr.bf16.mxu0 0
    %3851 = vmatpush1.bf16.msra.mxu0 0
    %3852 = vmatprep.subr.bf16.mxu0 0
    %3853 = vmatpush1.bf16.msra.mxu0 0
    %3854 = vmatprep.subr.bf16.mxu0 0
    %3855 = vmatpush1.bf16.msra.mxu0 0
    %3856 = vmatprep.subr.bf16.mxu0 0
    %3857 = vmatpush1.bf16.msra.mxu0 0
    %3858 = vmatprep.subr.bf16.mxu0 0
    %3859 = vmatpush1.bf16.msra.mxu0 0
    %3860 = vmatprep.subr.bf16.mxu0 0
    %3861 = vmatpush1.bf16.msra.mxu0 0
    %3862 = vmatprep.subr.bf16.mxu0 0
    %3863 = vmatpush1.bf16.msra.mxu0 0
    %3864 = vmatprep.subr.bf16.mxu0 0
    %3865 = vmatpush1.bf16.msra.mxu0 0
    %3866 = vmatprep.subr.bf16.mxu0 0
    %3867 = vmatpush1.bf16.msra.mxu0 0
    %3868 = vmatprep.mubr.bf16.mxu0 0
    %3869 = vmatmul.mubr.bf16.gmra.mrb[0].mxu0 %v3831
    %v3870 = vpop.f32.mrb[0].mxu0
    %v3871 = vadd.f32 0.0, %v3870
    %v3872 = vpop.f32.mrb[0].mxu0
    %v3873 = vpop.f32.mrb[0].mxu0
    %v3874 = vpop.f32.mrb[0].mxu0
    %3875 = vdwg.mxu0
    %3877 = vrot.lane.b32.xlu0 %v3767, 96
    %v3878 = vpop.permute.xlu0 %3877
    %3880 = vrot.lane.b32.xlu0 %v3768, 96
    %v3881 = vpop.permute.xlu0 %3880
    %v3883 = vsel %vm1037, %v3878, 0
    %v3886 = vsel %vm1037, %v3881, 0
    %3888 = vmatprep.subr.bf16.mxu0 0
    %3889 = vmatpush1.bf16.xpose.msra.mxu0 %v3886
    %3890 = vmatprep.subr.bf16.mxu0 0
    %3891 = vmatpush1.bf16.xpose.msra.mxu0 0
    %3892 = vmatprep.subr.bf16.mxu0 0
    %3893 = vmatpush1.bf16.xpose.msra.mxu0 0
    %3894 = vmatprep.subr.bf16.mxu0 0
    %3895 = vmatpush1.bf16.xpose.msra.mxu0 0
    %3896 = vmatprep.subr.bf16.mxu0 0
    %3897 = vmatpush1.bf16.xpose.msra.mxu0 0
    %3898 = vmatprep.subr.bf16.mxu0 0
    %3899 = vmatpush1.bf16.xpose.msra.mxu0 0
    %3900 = vmatprep.subr.bf16.mxu0 0
    %3901 = vmatpush1.bf16.xpose.msra.mxu0 0
    %3902 = vmatprep.subr.bf16.mxu0 0
    %3903 = vmatpush1.bf16.xpose.msra.mxu0 0
    %3904 = vmatprep.subr.bf16.mxu0 0
    %3905 = vmatpush1.bf16.xpose.msra.mxu0 0
    %3906 = vmatprep.subr.bf16.mxu0 0
    %3907 = vmatpush1.bf16.xpose.msra.mxu0 0
    %3908 = vmatprep.subr.bf16.mxu0 0
    %3909 = vmatpush1.bf16.xpose.msra.mxu0 0
    %3910 = vmatprep.subr.bf16.mxu0 0
    %3911 = vmatpush1.bf16.xpose.msra.mxu0 0
    %3912 = vmatprep.subr.bf16.mxu0 0
    %3913 = vmatpush1.bf16.xpose.msra.mxu0 0
    %3914 = vmatprep.subr.bf16.mxu0 0
    %3915 = vmatpush1.bf16.xpose.msra.mxu0 0
    %3916 = vmatprep.subr.bf16.mxu0 0
    %3917 = vmatpush1.bf16.xpose.msra.mxu0 0
    %3918 = vmatprep.subr.bf16.mxu0 0
    %3919 = vmatpush1.bf16.xpose.msra.mxu0 0
    %3920 = vmatprep.mubr.bf16.mxu0 0
    %3921 = vmatmul.mubr.bf16.gmra.mrb[0].mxu0 %v3883
    %v3922 = vpop.f32.mrb[0].mxu0
    %v3923 = vadd.f32 0.0, %v3922
    %v3924 = vpop.f32.mrb[0].mxu0
    %v3925 = vpop.f32.mrb[0].mxu0
    %v3926 = vpop.f32.mrb[0].mxu0
    %3927 = vdwg.mxu0
    %v3928 = vmul.f32 %v3923, 0.17677669
    %v3929 = vsel %vm726, %v3928, -1e+30
    %v3930 = vsel %vm1086, %v3929, -inf
    %3931 = vmax.xlane.f32.xlu0 %v3930
    %v3932 = vpop.xlane.xlu0 %3931
    %v3933 = vsub.f32 %v3929, %v3932
    %v3934 = vmul.f32 %v3933, 1.442695
    %v3935 = vpow.pop %v3934
    %v3936 = vsel %vm1086, %v3935, 0.0
    %3937 = vadd.xlane.f32.xlu0 %v3936
    %v3938 = vpop.xlane.xlu0 %3937
    %v3939 = vrcp.pop %v3938
    %v3940 = vmul.f32 %v3935, %v3939
    %v3941 = vpack.c.bf16 %v3940, %v3940
    %3943 = vrot.lane.b32.xlu0 %v3829, 96
    %v3944 = vpop.permute.xlu0 %3943
    %v3946 = vsel %vm1086, %v3941, 0
    %v3949 = vsel %vm1103, %v3944, 0
    %3951 = vmatprep.subr.bf16.mxu0 0
    %3952 = vmatpush1.bf16.msra.mxu0 %v3949
    %3953 = vmatprep.subr.bf16.mxu0 0
    %3954 = vmatpush1.bf16.msra.mxu0 0
    %3955 = vmatprep.subr.bf16.mxu0 0
    %3956 = vmatpush1.bf16.msra.mxu0 0
    %3957 = vmatprep.subr.bf16.mxu0 0
    %3958 = vmatpush1.bf16.msra.mxu0 0
    %3959 = vmatprep.subr.bf16.mxu0 0
    %3960 = vmatpush1.bf16.msra.mxu0 0
    %3961 = vmatprep.subr.bf16.mxu0 0
    %3962 = vmatpush1.bf16.msra.mxu0 0
    %3963 = vmatprep.subr.bf16.mxu0 0
    %3964 = vmatpush1.bf16.msra.mxu0 0
    %3965 = vmatprep.subr.bf16.mxu0 0
    %3966 = vmatpush1.bf16.msra.mxu0 0
    %3967 = vmatprep.subr.bf16.mxu0 0
    %3968 = vmatpush1.bf16.msra.mxu0 0
    %3969 = vmatprep.subr.bf16.mxu0 0
    %3970 = vmatpush1.bf16.msra.mxu0 0
    %3971 = vmatprep.subr.bf16.mxu0 0
    %3972 = vmatpush1.bf16.msra.mxu0 0
    %3973 = vmatprep.subr.bf16.mxu0 0
    %3974 = vmatpush1.bf16.msra.mxu0 0
    %3975 = vmatprep.subr.bf16.mxu0 0
    %3976 = vmatpush1.bf16.msra.mxu0 0
    %3977 = vmatprep.subr.bf16.mxu0 0
    %3978 = vmatpush1.bf16.msra.mxu0 0
    %3979 = vmatprep.subr.bf16.mxu0 0
    %3980 = vmatpush1.bf16.msra.mxu0 0
    %3981 = vmatprep.subr.bf16.mxu0 0
    %3982 = vmatpush1.bf16.msra.mxu0 0
    %3983 = vmatprep.mubr.bf16.mxu0 0
    %3984 = vmatmul.mubr.bf16.gmra.mrb[0].mxu0 %v3946
    %v3985 = vpop.f32.mrb[0].mxu0
    %v3986 = vadd.f32 0.0, %v3985
    %v3987 = vpop.f32.mrb[0].mxu0
    %v3988 = vpop.f32.mrb[0].mxu0
    %v3989 = vpop.f32.mrb[0].mxu0
    %3990 = vdwg.mxu0
    %3991 = vrot.lane.b32.xlu0 %v3767, 64
    %v3992 = vpop.permute.xlu0 %3991
    %3993 = vrot.lane.b32.xlu0 %v3768, 64
    %v3994 = vpop.permute.xlu0 %3993
    %v3996 = vsel %vm1037, %v3992, 0
    %v3999 = vsel %vm1037, %v3994, 0
    %4001 = vmatprep.subr.bf16.mxu0 0
    %4002 = vmatpush1.bf16.xpose.msra.mxu0 %v3999
    %4003 = vmatprep.subr.bf16.mxu0 0
    %4004 = vmatpush1.bf16.xpose.msra.mxu0 0
    %4005 = vmatprep.subr.bf16.mxu0 0
    %4006 = vmatpush1.bf16.xpose.msra.mxu0 0
    %4007 = vmatprep.subr.bf16.mxu0 0
    %4008 = vmatpush1.bf16.xpose.msra.mxu0 0
    %4009 = vmatprep.subr.bf16.mxu0 0
    %4010 = vmatpush1.bf16.xpose.msra.mxu0 0
    %4011 = vmatprep.subr.bf16.mxu0 0
    %4012 = vmatpush1.bf16.xpose.msra.mxu0 0
    %4013 = vmatprep.subr.bf16.mxu0 0
    %4014 = vmatpush1.bf16.xpose.msra.mxu0 0
    %4015 = vmatprep.subr.bf16.mxu0 0
    %4016 = vmatpush1.bf16.xpose.msra.mxu0 0
    %4017 = vmatprep.subr.bf16.mxu0 0
    %4018 = vmatpush1.bf16.xpose.msra.mxu0 0
    %4019 = vmatprep.subr.bf16.mxu0 0
    %4020 = vmatpush1.bf16.xpose.msra.mxu0 0
    %4021 = vmatprep.subr.bf16.mxu0 0
    %4022 = vmatpush1.bf16.xpose.msra.mxu0 0
    %4023 = vmatprep.subr.bf16.mxu0 0
    %4024 = vmatpush1.bf16.xpose.msra.mxu0 0
    %4025 = vmatprep.subr.bf16.mxu0 0
    %4026 = vmatpush1.bf16.xpose.msra.mxu0 0
    %4027 = vmatprep.subr.bf16.mxu0 0
    %4028 = vmatpush1.bf16.xpose.msra.mxu0 0
    %4029 = vmatprep.subr.bf16.mxu0 0
    %4030 = vmatpush1.bf16.xpose.msra.mxu0 0
    %4031 = vmatprep.subr.bf16.mxu0 0
    %4032 = vmatpush1.bf16.xpose.msra.mxu0 0
    %4033 = vmatprep.mubr.bf16.mxu0 0
    %4034 = vmatmul.mubr.bf16.gmra.mrb[0].mxu0 %v3996
    %v4035 = vpop.f32.mrb[0].mxu0
    %v4036 = vadd.f32 0.0, %v4035
    %v4037 = vpop.f32.mrb[0].mxu0
    %v4038 = vpop.f32.mrb[0].mxu0
    %v4039 = vpop.f32.mrb[0].mxu0
    %4040 = vdwg.mxu0
    %v4041 = vmul.f32 %v4036, 0.17677669
    %v4042 = vsel %vm726, %v4041, -1e+30
    %v4043 = vsel %vm1086, %v4042, -inf
    %4044 = vmax.xlane.f32.xlu0 %v4043
    %v4045 = vpop.xlane.xlu0 %4044
    %v4046 = vsub.f32 %v4042, %v4045
    %v4047 = vmul.f32 %v4046, 1.442695
    %v4048 = vpow.pop %v4047
    %v4049 = vsel %vm1086, %v4048, 0.0
    %4050 = vadd.xlane.f32.xlu0 %v4049
    %v4051 = vpop.xlane.xlu0 %4050
    %v4052 = vrcp.pop %v4051
    %v4053 = vmul.f32 %v4048, %v4052
    %v4054 = vpack.c.bf16 %v4053, %v4053
    %4055 = vrot.lane.b32.xlu0 %v3829, 64
    %v4056 = vpop.permute.xlu0 %4055
    %v4058 = vsel %vm1086, %v4054, 0
    %v4061 = vsel %vm1103, %v4056, 0
    %4063 = vmatprep.subr.bf16.mxu0 0
    %4064 = vmatpush1.bf16.msra.mxu0 %v4061
    %4065 = vmatprep.subr.bf16.mxu0 0
    %4066 = vmatpush1.bf16.msra.mxu0 0
    %4067 = vmatprep.subr.bf16.mxu0 0
    %4068 = vmatpush1.bf16.msra.mxu0 0
    %4069 = vmatprep.subr.bf16.mxu0 0
    %4070 = vmatpush1.bf16.msra.mxu0 0
    %4071 = vmatprep.subr.bf16.mxu0 0
    %4072 = vmatpush1.bf16.msra.mxu0 0
    %4073 = vmatprep.subr.bf16.mxu0 0
    %4074 = vmatpush1.bf16.msra.mxu0 0
    %4075 = vmatprep.subr.bf16.mxu0 0
    %4076 = vmatpush1.bf16.msra.mxu0 0
    %4077 = vmatprep.subr.bf16.mxu0 0
    %4078 = vmatpush1.bf16.msra.mxu0 0
    %4079 = vmatprep.subr.bf16.mxu0 0
    %4080 = vmatpush1.bf16.msra.mxu0 0
    %4081 = vmatprep.subr.bf16.mxu0 0
    %4082 = vmatpush1.bf16.msra.mxu0 0
    %4083 = vmatprep.subr.bf16.mxu0 0
    %4084 = vmatpush1.bf16.msra.mxu0 0
    %4085 = vmatprep.subr.bf16.mxu0 0
    %4086 = vmatpush1.bf16.msra.mxu0 0
    %4087 = vmatprep.subr.bf16.mxu0 0
    %4088 = vmatpush1.bf16.msra.mxu0 0
    %4089 = vmatprep.subr.bf16.mxu0 0
    %4090 = vmatpush1.bf16.msra.mxu0 0
    %4091 = vmatprep.subr.bf16.mxu0 0
    %4092 = vmatpush1.bf16.msra.mxu0 0
    %4093 = vmatprep.subr.bf16.mxu0 0
    %4094 = vmatpush1.bf16.msra.mxu0 0
    %4095 = vmatprep.mubr.bf16.mxu0 0
    %4096 = vmatmul.mubr.bf16.gmra.mrb[0].mxu0 %v4058
    %v4097 = vpop.f32.mrb[0].mxu0
    %v4098 = vadd.f32 0.0, %v4097
    %v4099 = vpop.f32.mrb[0].mxu0
    %v4100 = vpop.f32.mrb[0].mxu0
    %v4101 = vpop.f32.mrb[0].mxu0
    %4102 = vdwg.mxu0
    %4103 = vrot.lane.b32.xlu0 %v3767, 32
    %v4104 = vpop.permute.xlu0 %4103
    %4105 = vrot.lane.b32.xlu0 %v3768, 32
    %v4106 = vpop.permute.xlu0 %4105
    %v4108 = vsel %vm1037, %v4104, 0
    %v4111 = vsel %vm1037, %v4106, 0
    %4113 = vmatprep.subr.bf16.mxu0 0
    %4114 = vmatpush1.bf16.xpose.msra.mxu0 %v4111
    %4115 = vmatprep.subr.bf16.mxu0 0
    %4116 = vmatpush1.bf16.xpose.msra.mxu0 0
    %4117 = vmatprep.subr.bf16.mxu0 0
    %4118 = vmatpush1.bf16.xpose.msra.mxu0 0
    %4119 = vmatprep.subr.bf16.mxu0 0
    %4120 = vmatpush1.bf16.xpose.msra.mxu0 0
    %4121 = vmatprep.subr.bf16.mxu0 0
    %4122 = vmatpush1.bf16.xpose.msra.mxu0 0
    %4123 = vmatprep.subr.bf16.mxu0 0
    %4124 = vmatpush1.bf16.xpose.msra.mxu0 0
    %4125 = vmatprep.subr.bf16.mxu0 0
    %4126 = vmatpush1.bf16.xpose.msra.mxu0 0
    %4127 = vmatprep.subr.bf16.mxu0 0
    %4128 = vmatpush1.bf16.xpose.msra.mxu0 0
    %4129 = vmatprep.subr.bf16.mxu0 0
    %4130 = vmatpush1.bf16.xpose.msra.mxu0 0
    %4131 = vmatprep.subr.bf16.mxu0 0
    %4132 = vmatpush1.bf16.xpose.msra.mxu0 0
    %4133 = vmatprep.subr.bf16.mxu0 0
    %4134 = vmatpush1.bf16.xpose.msra.mxu0 0
    %4135 = vmatprep.subr.bf16.mxu0 0
    %4136 = vmatpush1.bf16.xpose.msra.mxu0 0
    %4137 = vmatprep.subr.bf16.mxu0 0
    %4138 = vmatpush1.bf16.xpose.msra.mxu0 0
    %4139 = vmatprep.subr.bf16.mxu0 0
    %4140 = vmatpush1.bf16.xpose.msra.mxu0 0
    %4141 = vmatprep.subr.bf16.mxu0 0
    %4142 = vmatpush1.bf16.xpose.msra.mxu0 0
    %4143 = vmatprep.subr.bf16.mxu0 0
    %4144 = vmatpush1.bf16.xpose.msra.mxu0 0
    %4145 = vmatprep.mubr.bf16.mxu0 0
    %4146 = vmatmul.mubr.bf16.gmra.mrb[0].mxu0 %v4108
    %v4147 = vpop.f32.mrb[0].mxu0
    %v4148 = vadd.f32 0.0, %v4147
    %v4149 = vpop.f32.mrb[0].mxu0
    %v4150 = vpop.f32.mrb[0].mxu0
    %v4151 = vpop.f32.mrb[0].mxu0
    %4152 = vdwg.mxu0
    %v4153 = vmul.f32 %v4148, 0.17677669
    %v4154 = vsel %vm726, %v4153, -1e+30
    %v4155 = vsel %vm1086, %v4154, -inf
    %4156 = vmax.xlane.f32.xlu0 %v4155
    %v4157 = vpop.xlane.xlu0 %4156
    %v4158 = vsub.f32 %v4154, %v4157
    %v4159 = vmul.f32 %v4158, 1.442695
    %v4160 = vpow.pop %v4159
    %v4161 = vsel %vm1086, %v4160, 0.0
    %4162 = vadd.xlane.f32.xlu0 %v4161
    %v4163 = vpop.xlane.xlu0 %4162
    %v4164 = vrcp.pop %v4163
    %v4165 = vmul.f32 %v4160, %v4164
    %v4166 = vpack.c.bf16 %v4165, %v4165
    %4167 = vrot.lane.b32.xlu0 %v3829, 32
    %v4168 = vpop.permute.xlu0 %4167
    %v4170 = vsel %vm1086, %v4166, 0
    %v4173 = vsel %vm1103, %v4168, 0
    %4175 = vmatprep.subr.bf16.mxu0 0
    %4176 = vmatpush1.bf16.msra.mxu0 %v4173
    %4177 = vmatprep.subr.bf16.mxu0 0
    %4178 = vmatpush1.bf16.msra.mxu0 0
    %4179 = vmatprep.subr.bf16.mxu0 0
    %4180 = vmatpush1.bf16.msra.mxu0 0
    %4181 = vmatprep.subr.bf16.mxu0 0
    %4182 = vmatpush1.bf16.msra.mxu0 0
    %4183 = vmatprep.subr.bf16.mxu0 0
    %4184 = vmatpush1.bf16.msra.mxu0 0
    %4185 = vmatprep.subr.bf16.mxu0 0
    %4186 = vmatpush1.bf16.msra.mxu0 0
    %4187 = vmatprep.subr.bf16.mxu0 0
    %4188 = vmatpush1.bf16.msra.mxu0 0
    %4189 = vmatprep.subr.bf16.mxu0 0
    %4190 = vmatpush1.bf16.msra.mxu0 0
    %4191 = vmatprep.subr.bf16.mxu0 0
    %4192 = vmatpush1.bf16.msra.mxu0 0
    %4193 = vmatprep.subr.bf16.mxu0 0
    %4194 = vmatpush1.bf16.msra.mxu0 0
    %4195 = vmatprep.subr.bf16.mxu0 0
    %4196 = vmatpush1.bf16.msra.mxu0 0
    %4197 = vmatprep.subr.bf16.mxu0 0
    %4198 = vmatpush1.bf16.msra.mxu0 0
    %4199 = vmatprep.subr.bf16.mxu0 0
    %4200 = vmatpush1.bf16.msra.mxu0 0
    %4201 = vmatprep.subr.bf16.mxu0 0
    %4202 = vmatpush1.bf16.msra.mxu0 0
    %4203 = vmatprep.subr.bf16.mxu0 0
    %4204 = vmatpush1.bf16.msra.mxu0 0
    %4205 = vmatprep.subr.bf16.mxu0 0
    %4206 = vmatpush1.bf16.msra.mxu0 0
    %4207 = vmatprep.mubr.bf16.mxu0 0
    %4208 = vmatmul.mubr.bf16.gmra.mrb[0].mxu0 %v4170
    %v4209 = vpop.f32.mrb[0].mxu0
    %v4210 = vadd.f32 0.0, %v4209
    %v4211 = vpop.f32.mrb[0].mxu0
    %v4212 = vpop.f32.mrb[0].mxu0
    %v4213 = vpop.f32.mrb[0].mxu0
    %4214 = vdwg.mxu0
    %4216 = vrot.lane.b32.xlu0 %v3986, 32
    %v4217 = vpop.permute.xlu0 %4216
    %4220 = vrot.lane.b32.xlu0 %v4098, 64
    %v4221 = vpop.permute.xlu0 %4220
    %4224 = vrot.lane.b32.xlu0 %v4210, 96
    %v4225 = vpop.permute.xlu0 %4224
    %v4227 = vsel %vm1037, %v3871, %v4217
    %v4228 = vsel %vm1499, %v4227, %v4221
    %v4229 = vsel %vm1501, %v4228, %v4225
    %s4230 = scalar_lea.vmem [#allocation5], 64
    %v4231 = vld [vmem:[%s4230] sm:$0xf]
    %v4232 = vld [vmem:[%s4230 + $0x4] sm:$0xf]
    %v4233 = vld [vmem:[%s4230 + $0x8] sm:$0xf]
    %v4234 = vld [vmem:[%s4230 + $0xc] sm:$0xf]
    %v4235 = vld [vmem:[%s4230 + $0x10] sm:$0xf]
    %v4236 = vld [vmem:[%s4230 + $0x14] sm:$0xf]
    %v4237 = vld [vmem:[%s4230 + $0x18] sm:$0xf]
    %v4238 = vld [vmem:[%s4230 + $0x1c] sm:$0xf]
    %v4239 = vld [vmem:[%s4230 + $0x20] sm:$0xf]
    %v4240 = vld [vmem:[%s4230 + $0x24] sm:$0xf]
    %v4241 = vld [vmem:[%s4230 + $0x28] sm:$0xf]
    %v4242 = vld [vmem:[%s4230 + $0x2c] sm:$0xf]
    %v4243 = vld [vmem:[%s4230 + $0x30] sm:$0xf]
    %v4244 = vld [vmem:[%s4230 + $0x34] sm:$0xf]
    %v4245 = vld [vmem:[%s4230 + $0x38] sm:$0xf]
    %v4246 = vld [vmem:[%s4230 + $0x3c] sm:$0xf]
    %v4247 = vpack.c.bf16 %v4229, %v3766
    %v4264 = vunpack.c.l.b16 %v4231
    %v4265 = vunpack.c.l.b16 %v4232
    %v4266 = vunpack.c.l.b16 %v4233
    %v4267 = vunpack.c.l.b16 %v4234
    %v4268 = vunpack.c.l.b16 %v4235
    %v4269 = vunpack.c.l.b16 %v4236
    %v4270 = vunpack.c.l.b16 %v4237
    %v4271 = vunpack.c.l.b16 %v4238
    %v4272 = vunpack.c.l.b16 %v4239
    %v4273 = vunpack.c.l.b16 %v4240
    %v4274 = vunpack.c.l.b16 %v4241
    %v4275 = vunpack.c.l.b16 %v4242
    %v4276 = vunpack.c.l.b16 %v4243
    %v4277 = vunpack.c.l.b16 %v4244
    %v4278 = vunpack.c.l.b16 %v4245
    %v4279 = vunpack.c.l.b16 %v4246
    %v4280 = vpack.c.b16 %v4265, %v4264
    %v4281 = vpack.c.b16 %v4267, %v4266
    %v4282 = vpack.c.b16 %v4269, %v4268
    %v4283 = vpack.c.b16 %v4271, %v4270
    %v4284 = vpack.c.b16 %v4273, %v4272
    %v4285 = vpack.c.b16 %v4275, %v4274
    %v4286 = vpack.c.b16 %v4277, %v4276
    %v4287 = vpack.c.b16 %v4279, %v4278
    %4296 = vmatprep.subr.bf16.mxu0 0
    %4297 = vmatpush1.bf16.msra.mxu0 %v4280
    %4298 = vmatprep.subr.bf16.mxu0 0
    %4299 = vmatpush1.bf16.msra.mxu0 %v4281
    %4300 = vmatprep.subr.bf16.mxu0 0
    %4301 = vmatpush1.bf16.msra.mxu0 %v4282
    %4302 = vmatprep.subr.bf16.mxu0 0
    %4303 = vmatpush1.bf16.msra.mxu0 %v4283
    %4304 = vmatprep.subr.bf16.mxu0 0
    %4305 = vmatpush1.bf16.msra.mxu0 %v4284
    %4306 = vmatprep.subr.bf16.mxu0 0
    %4307 = vmatpush1.bf16.msra.mxu0 %v4285
    %4308 = vmatprep.subr.bf16.mxu0 0
    %4309 = vmatpush1.bf16.msra.mxu0 %v4286
    %4310 = vmatprep.subr.bf16.mxu0 0
    %4311 = vmatpush1.bf16.msra.mxu0 %v4287
    %4312 = vmatprep.subr.bf16.mxu0 0
    %4313 = vmatpush1.bf16.msra.mxu0 0
    %4314 = vmatprep.subr.bf16.mxu0 0
    %4315 = vmatpush1.bf16.msra.mxu0 0
    %4316 = vmatprep.subr.bf16.mxu0 0
    %4317 = vmatpush1.bf16.msra.mxu0 0
    %4318 = vmatprep.subr.bf16.mxu0 0
    %4319 = vmatpush1.bf16.msra.mxu0 0
    %4320 = vmatprep.subr.bf16.mxu0 0
    %4321 = vmatpush1.bf16.msra.mxu0 0
    %4322 = vmatprep.subr.bf16.mxu0 0
    %4323 = vmatpush1.bf16.msra.mxu0 0
    %4324 = vmatprep.subr.bf16.mxu0 0
    %4325 = vmatpush1.bf16.msra.mxu0 0
    %4326 = vmatprep.subr.bf16.mxu0 0
    %4327 = vmatpush1.bf16.msra.mxu0 0
    %4328 = vmatprep.mubr.bf16.mxu0 0
    %4329 = vmatmul.mubr.bf16.gmra.mrb[0].mxu0 %v4247
    %v4330 = vpop.f32.mrb[0].mxu0
    %v4331 = vadd.f32 0.0, %v4330
    %v4332 = vpop.f32.mrb[0].mxu0
    %v4333 = vpop.f32.mrb[0].mxu0
    %v4334 = vadd.f32 0.0, %v4333
    %v4335 = vpop.f32.mrb[0].mxu0
    %4336 = vdwg.mxu0
    %v4337 = vadd.f32 %v2986, %v4331
    %v4338 = vadd.f32 %v2987, %v4334
    %v4340 = vlaneseq
    %v4341 = vshrl.u32 %v4340, 7
    %v4342 = vsub.s32 0, %v4341
    %v4343 = vrot.slane %v2999, %v4342
    %v4345 = vadd.f32 %v4337, %v4343
    %v4346 = vadd.f32 %v4338, %v4343
    %4347 = vadd.xlane.f32.xlu0 %v4345
    %v4348 = vpop.xlane.xlu0 %4347
    %4349 = vadd.xlane.f32.xlu0 %v4346
    %v4350 = vpop.xlane.xlu0 %4349
    %v4351 = vmul.f32 %v4348, %v739
    %v4352 = vmul.f32 %v4350, %v739
    %v4353 = vsub.f32 %v4345, %v4351
    %v4354 = vsub.f32 %v4346, %v4352
    %v4355 = vmul.f32 %v4353, %v4353
    %v4356 = vmul.f32 %v4354, %v4354
    %4357 = vadd.xlane.f32.xlu0 %v4355
    %v4358 = vpop.xlane.xlu0 %4357
    %4359 = vadd.xlane.f32.xlu0 %v4356
    %v4360 = vpop.xlane.xlu0 %4359
    %v4361 = vmul.f32 %v4358, %v739
    %v4362 = vmul.f32 %v4360, %v739
    %v4363 = vadd.f32 %v4361, 1e-06
    %v4364 = vadd.f32 %v4362, 1e-06
    %v4365 = vrsqrt.pop %v4363
    %v4366 = vrsqrt.pop %v4364
    %v4367 = vmul.f32 %v4353, %v4365
    %v4368 = vmul.f32 %v4354, %v4366
    %v4370 = vlaneseq
    %v4371 = vshrl.u32 %v4370, 7
    %v4372 = vsub.s32 0, %v4371
    %v4373 = vrot.slane %v2993, %v4372
    %v4375 = vmul.f32 %v4367, %v4373
    %v4376 = vmul.f32 %v4368, %v4373
    %v4378 = vlaneseq
    %v4379 = vshrl.u32 %v4378, 7
    %v4380 = vsub.s32 0, %v4379
    %v4381 = vrot.slane %v2995, %v4380
    %v4383 = vadd.f32 %v4375, %v4381
    %v4384 = vadd.f32 %v4376, %v4381
    %s4385 = scalar_lea.vmem %s13, 256
    %v4386 = vld [vmem:[%s4385] sm:$0xff]
    %v4387 = vld [vmem:[%s4385 + $0x8] sm:$0xff]
    %v4388 = vld [vmem:[%s4385 + $0x10] sm:$0xff]
    %v4389 = vld [vmem:[%s4385 + $0x18] sm:$0xff]
    %v4390 = vld [vmem:[%s4385 + $0x20] sm:$0xff]
    %v4391 = vld [vmem:[%s4385 + $0x28] sm:$0xff]
    %v4392 = vld [vmem:[%s4385 + $0x30] sm:$0xff]
    %v4393 = vld [vmem:[%s4385 + $0x38] sm:$0xff]
    %v4394 = vld [vmem:[%s4385 + $0x40] sm:$0xff]
    %v4395 = vld [vmem:[%s4385 + $0x48] sm:$0xff]
    %v4396 = vld [vmem:[%s4385 + $0x50] sm:$0xff]
    %v4397 = vld [vmem:[%s4385 + $0x58] sm:$0xff]
    %v4398 = vld [vmem:[%s4385 + $0x60] sm:$0xff]
    %v4399 = vld [vmem:[%s4385 + $0x68] sm:$0xff]
    %v4400 = vld [vmem:[%s4385 + $0x70] sm:$0xff]
    %v4401 = vld [vmem:[%s4385 + $0x78] sm:$0xff]
    %v4402 = vld [vmem:[%s4385 + $0x80] sm:$0xff]
    %v4403 = vld [vmem:[%s4385 + $0x88] sm:$0xff]
    %v4404 = vld [vmem:[%s4385 + $0x90] sm:$0xff]
    %v4405 = vld [vmem:[%s4385 + $0x98] sm:$0xff]
    %v4406 = vld [vmem:[%s4385 + $0xa0] sm:$0xff]
    %v4407 = vld [vmem:[%s4385 + $0xa8] sm:$0xff]
    %v4408 = vld [vmem:[%s4385 + $0xb0] sm:$0xff]
    %v4409 = vld [vmem:[%s4385 + $0xb8] sm:$0xff]
    %v4410 = vld [vmem:[%s4385 + $0xc0] sm:$0xff]
    %v4411 = vld [vmem:[%s4385 + $0xc8] sm:$0xff]
    %v4412 = vld [vmem:[%s4385 + $0xd0] sm:$0xff]
    %v4413 = vld [vmem:[%s4385 + $0xd8] sm:$0xff]
    %v4414 = vld [vmem:[%s4385 + $0xe0] sm:$0xff]
    %v4415 = vld [vmem:[%s4385 + $0xe8] sm:$0xff]
    %v4416 = vld [vmem:[%s4385 + $0xf0] sm:$0xff]
    %v4417 = vld [vmem:[%s4385 + $0xf8] sm:$0xff]
    %v4418 = vpack.c.bf16 %v4384, %v4383
    %v4420 = vlaneseq
    %v4421 = vshrl.u32 %v4420, 7
    %v4422 = vsub.s32 0, %v4421
    %v4423 = vrot.slane %v3001, %v4422
    %v4424 = vlaneseq
    %v4425 = vshrl.u32 %v4424, 7
    %v4426 = vsub.s32 1, %v4425
    %v4427 = vrot.slane %v3001, %v4426
    %v4428 = vlaneseq
    %v4429 = vshrl.u32 %v4428, 7
    %v4430 = vsub.s32 2, %v4429
    %v4431 = vrot.slane %v3001, %v4430
    %v4432 = vlaneseq
    %v4433 = vshrl.u32 %v4432, 7
    %v4434 = vsub.s32 3, %v4433
    %v4435 = vrot.slane %v3001, %v4434
    %v4472 = vunpack.c.l.b16 %v4386
    %v4473 = vunpack.c.h.b16 %v4386
    %v4474 = vunpack.c.l.b16 %v4387
    %v4475 = vunpack.c.h.b16 %v4387
    %v4476 = vunpack.c.l.b16 %v4388
    %v4477 = vunpack.c.h.b16 %v4388
    %v4478 = vunpack.c.l.b16 %v4389
    %v4479 = vunpack.c.h.b16 %v4389
    %v4480 = vunpack.c.l.b16 %v4390
    %v4481 = vunpack.c.h.b16 %v4390
    %v4482 = vunpack.c.l.b16 %v4391
    %v4483 = vunpack.c.h.b16 %v4391
    %v4484 = vunpack.c.l.b16 %v4392
    %v4485 = vunpack.c.h.b16 %v4392
    %v4486 = vunpack.c.l.b16 %v4393
    %v4487 = vunpack.c.h.b16 %v4393
    %v4488 = vunpack.c.l.b16 %v4394
    %v4489 = vunpack.c.h.b16 %v4394
    %v4490 = vunpack.c.l.b16 %v4395
    %v4491 = vunpack.c.h.b16 %v4395
    %v4492 = vunpack.c.l.b16 %v4396
    %v4493 = vunpack.c.h.b16 %v4396
    %v4494 = vunpack.c.l.b16 %v4397
    %v4495 = vunpack.c.h.b16 %v4397
    %v4496 = vunpack.c.l.b16 %v4398
    %v4497 = vunpack.c.h.b16 %v4398
    %v4498 = vunpack.c.l.b16 %v4399
    %v4499 = vunpack.c.h.b16 %v4399
    %v4500 = vunpack.c.l.b16 %v4400
    %v4501 = vunpack.c.h.b16 %v4400
    %v4502 = vunpack.c.l.b16 %v4401
    %v4503 = vunpack.c.h.b16 %v4401
    %v4504 = vunpack.c.l.b16 %v4402
    %v4505 = vunpack.c.h.b16 %v4402
    %v4506 = vunpack.c.l.b16 %v4403
    %v4507 = vunpack.c.h.b16 %v4403
    %v4508 = vunpack.c.l.b16 %v4404
    %v4509 = vunpack.c.h.b16 %v4404
    %v4510 = vunpack.c.l.b16 %v4405
    %v4511 = vunpack.c.h.b16 %v4405
    %v4512 = vunpack.c.l.b16 %v4406
    %v4513 = vunpack.c.h.b16 %v4406
    %v4514 = vunpack.c.l.b16 %v4407
    %v4515 = vunpack.c.h.b16 %v4407
    %v4516 = vunpack.c.l.b16 %v4408
    %v4517 = vunpack.c.h.b16 %v4408
    %v4518 = vunpack.c.l.b16 %v4409
    %v4519 = vunpack.c.h.b16 %v4409
    %v4520 = vunpack.c.l.b16 %v4410
    %v4521 = vunpack.c.h.b16 %v4410
    %v4522 = vunpack.c.l.b16 %v4411
    %v4523 = vunpack.c.h.b16 %v4411
    %v4524 = vunpack.c.l.b16 %v4412
    %v4525 = vunpack.c.h.b16 %v4412
    %v4526 = vunpack.c.l.b16 %v4413
    %v4527 = vunpack.c.h.b16 %v4413
    %v4528 = vunpack.c.l.b16 %v4414
    %v4529 = vunpack.c.h.b16 %v4414
    %v4530 = vunpack.c.l.b16 %v4415
    %v4531 = vunpack.c.h.b16 %v4415
    %v4532 = vunpack.c.l.b16 %v4416
    %v4533 = vunpack.c.h.b16 %v4416
    %v4534 = vunpack.c.l.b16 %v4417
    %v4535 = vunpack.c.h.b16 %v4417
    %v4536 = vpack.c.b16 %v4476, %v4472
    %v4537 = vpack.c.b16 %v4477, %v4473
    %v4538 = vpack.c.b16 %v4478, %v4474
    %v4539 = vpack.c.b16 %v4479, %v4475
    %v4540 = vpack.c.b16 %v4484, %v4480
    %v4541 = vpack.c.b16 %v4485, %v4481
    %v4542 = vpack.c.b16 %v4486, %v4482
    %v4543 = vpack.c.b16 %v4487, %v4483
    %v4544 = vpack.c.b16 %v4492, %v4488
    %v4545 = vpack.c.b16 %v4493, %v4489
    %v4546 = vpack.c.b16 %v4494, %v4490
    %v4547 = vpack.c.b16 %v4495, %v4491
    %v4548 = vpack.c.b16 %v4500, %v4496
    %v4549 = vpack.c.b16 %v4501, %v4497
    %v4550 = vpack.c.b16 %v4502, %v4498
    %v4551 = vpack.c.b16 %v4503, %v4499
    %v4552 = vpack.c.b16 %v4508, %v4504
    %v4553 = vpack.c.b16 %v4509, %v4505
    %v4554 = vpack.c.b16 %v4510, %v4506
    %v4555 = vpack.c.b16 %v4511, %v4507
    %v4556 = vpack.c.b16 %v4516, %v4512
    %v4557 = vpack.c.b16 %v4517, %v4513
    %v4558 = vpack.c.b16 %v4518, %v4514
    %v4559 = vpack.c.b16 %v4519, %v4515
    %v4560 = vpack.c.b16 %v4524, %v4520
    %v4561 = vpack.c.b16 %v4525, %v4521
    %v4562 = vpack.c.b16 %v4526, %v4522
    %v4563 = vpack.c.b16 %v4527, %v4523
    %v4564 = vpack.c.b16 %v4532, %v4528
    %v4565 = vpack.c.b16 %v4533, %v4529
    %v4566 = vpack.c.b16 %v4534, %v4530
    %v4567 = vpack.c.b16 %v4535, %v4531
    %4600 = vmatprep.subr.bf16.mxu0 %v4537
    %4601 = vmatpush1.bf16.msra.mxu0 %v4536
    %4602 = vmatprep.subr.bf16.mxu0 %v4541
    %4603 = vmatpush1.bf16.msra.mxu0 %v4540
    %4604 = vmatprep.subr.bf16.mxu0 %v4545
    %4605 = vmatpush1.bf16.msra.mxu0 %v4544
    %4606 = vmatprep.subr.bf16.mxu0 %v4549
    %4607 = vmatpush1.bf16.msra.mxu0 %v4548
    %4608 = vmatprep.subr.bf16.mxu0 %v4553
    %4609 = vmatpush1.bf16.msra.mxu0 %v4552
    %4610 = vmatprep.subr.bf16.mxu0 %v4557
    %4611 = vmatpush1.bf16.msra.mxu0 %v4556
    %4612 = vmatprep.subr.bf16.mxu0 %v4561
    %4613 = vmatpush1.bf16.msra.mxu0 %v4560
    %4614 = vmatprep.subr.bf16.mxu0 %v4565
    %4615 = vmatpush1.bf16.msra.mxu0 %v4564
    %4616 = vmatprep.subr.bf16.mxu0 0
    %4617 = vmatpush1.bf16.msra.mxu0 0
    %4618 = vmatprep.subr.bf16.mxu0 0
    %4619 = vmatpush1.bf16.msra.mxu0 0
    %4620 = vmatprep.subr.bf16.mxu0 0
    %4621 = vmatpush1.bf16.msra.mxu0 0
    %4622 = vmatprep.subr.bf16.mxu0 0
    %4623 = vmatpush1.bf16.msra.mxu0 0
    %4624 = vmatprep.subr.bf16.mxu0 0
    %4625 = vmatpush1.bf16.msra.mxu0 0
    %4626 = vmatprep.subr.bf16.mxu0 0
    %4627 = vmatpush1.bf16.msra.mxu0 0
    %4628 = vmatprep.subr.bf16.mxu0 0
    %4629 = vmatpush1.bf16.msra.mxu0 0
    %4630 = vmatprep.subr.bf16.mxu0 0
    %4631 = vmatpush1.bf16.msra.mxu0 0
    %4632 = vmatprep.mubr.bf16.mxu0 0
    %4633 = vmatmul.mubr.bf16.gmra.mrb[0].mxu0 %v4418
    %v4634 = vpop.f32.mrb[0].mxu0
    %v4635 = vadd.f32 %v4423, %v4634
    %v4636 = vpop.f32.mrb[0].mxu0
    %v4637 = vadd.f32 %v4427, %v4636
    %v4638 = vpop.f32.mrb[0].mxu0
    %v4639 = vadd.f32 %v4423, %v4638
    %v4640 = vpop.f32.mrb[0].mxu0
    %v4641 = vadd.f32 %v4427, %v4640
    %4642 = vdwg.mxu0
    %4643 = vmatprep.subr.bf16.mxu0 %v4539
    %4644 = vmatpush1.bf16.msra.mxu0 %v4538
    %4645 = vmatprep.subr.bf16.mxu0 %v4543
    %4646 = vmatpush1.bf16.msra.mxu0 %v4542
    %4647 = vmatprep.subr.bf16.mxu0 %v4547
    %4648 = vmatpush1.bf16.msra.mxu0 %v4546
    %4649 = vmatprep.subr.bf16.mxu0 %v4551
    %4650 = vmatpush1.bf16.msra.mxu0 %v4550
    %4651 = vmatprep.subr.bf16.mxu0 %v4555
    %4652 = vmatpush1.bf16.msra.mxu0 %v4554
    %4653 = vmatprep.subr.bf16.mxu0 %v4559
    %4654 = vmatpush1.bf16.msra.mxu0 %v4558
    %4655 = vmatprep.subr.bf16.mxu0 %v4563
    %4656 = vmatpush1.bf16.msra.mxu0 %v4562
    %4657 = vmatprep.subr.bf16.mxu0 %v4567
    %4658 = vmatpush1.bf16.msra.mxu0 %v4566
    %4659 = vmatprep.subr.bf16.mxu0 0
    %4660 = vmatpush1.bf16.msra.mxu0 0
    %4661 = vmatprep.subr.bf16.mxu0 0
    %4662 = vmatpush1.bf16.msra.mxu0 0
    %4663 = vmatprep.subr.bf16.mxu0 0
    %4664 = vmatpush1.bf16.msra.mxu0 0
    %4665 = vmatprep.subr.bf16.mxu0 0
    %4666 = vmatpush1.bf16.msra.mxu0 0
    %4667 = vmatprep.subr.bf16.mxu0 0
    %4668 = vmatpush1.bf16.msra.mxu0 0
    %4669 = vmatprep.subr.bf16.mxu0 0
    %4670 = vmatpush1.bf16.msra.mxu0 0
    %4671 = vmatprep.subr.bf16.mxu0 0
    %4672 = vmatpush1.bf16.msra.mxu0 0
    %4673 = vmatprep.subr.bf16.mxu0 0
    %4674 = vmatpush1.bf16.msra.mxu0 0
    %4675 = vmatprep.mubr.bf16.mxu0 0
    %4676 = vmatmul.mubr.bf16.gmra.mrb[0].mxu0 %v4418
    %v4677 = vpop.f32.mrb[0].mxu0
    %v4678 = vadd.f32 %v4431, %v4677
    %v4679 = vpop.f32.mrb[0].mxu0
    %v4680 = vadd.f32 %v4435, %v4679
    %v4681 = vpop.f32.mrb[0].mxu0
    %v4682 = vadd.f32 %v4431, %v4681
    %v4683 = vpop.f32.mrb[0].mxu0
    %v4684 = vadd.f32 %v4435, %v4683
    %4685 = vdwg.mxu0
    %v4686 = vmul.f32 %v4635, 0.5
    %v4687 = vmul.f32 %v4637, 0.5
    %v4688 = vmul.f32 %v4678, 0.5
    %v4689 = vmul.f32 %v4680, 0.5
    %v4690 = vmul.f32 %v4639, 0.5
    %v4691 = vmul.f32 %v4641, 0.5
    %v4692 = vmul.f32 %v4682, 0.5
    %v4693 = vmul.f32 %v4684, 0.5
    %v4694 = vmul.f32 %v4635, 0.70710677
    %v4695 = vmul.f32 %v4637, 0.70710677
    %v4696 = vmul.f32 %v4678, 0.70710677
    %v4697 = vmul.f32 %v4680, 0.70710677
    %v4698 = vmul.f32 %v4639, 0.70710677
    %v4699 = vmul.f32 %v4641, 0.70710677
    %v4700 = vmul.f32 %v4682, 0.70710677
    %v4701 = vmul.f32 %v4684, 0.70710677
    %vm4702 = vcmp.ge.f32.partialorder %v4694, 0.0
    %vm4703 = vcmp.ge.f32.partialorder %v4695, 0.0
    %vm4704 = vcmp.ge.f32.partialorder %v4696, 0.0
    %vm4705 = vcmp.ge.f32.partialorder %v4697, 0.0
    %vm4706 = vcmp.ge.f32.partialorder %v4698, 0.0
    %vm4707 = vcmp.ge.f32.partialorder %v4699, 0.0
    %vm4708 = vcmp.ge.f32.partialorder %v4700, 0.0
    %vm4709 = vcmp.ge.f32.partialorder %v4701, 0.0
    %v4710 = vsel %vm4702, 1.0, -1.0
    %v4711 = vsel %vm4703, 1.0, -1.0
    %v4712 = vsel %vm4704, 1.0, -1.0
    %v4713 = vsel %vm4705, 1.0, -1.0
    %v4714 = vsel %vm4706, 1.0, -1.0
    %v4715 = vsel %vm4707, 1.0, -1.0
    %v4716 = vsel %vm4708, 1.0, -1.0
    %v4717 = vsel %vm4709, 1.0, -1.0
    %v4718 = vand.u32 2147483647, %v4694
    %v4719 = vand.u32 2147483647, %v4695
    %v4720 = vand.u32 2147483647, %v4696
    %v4721 = vand.u32 2147483647, %v4697
    %v4722 = vand.u32 2147483647, %v4698
    %v4723 = vand.u32 2147483647, %v4699
    %v4724 = vand.u32 2147483647, %v4700
    %v4725 = vand.u32 2147483647, %v4701
    %v4726 = vmul.f32 %v4718, 0.3275911
    %v4727 = vmul.f32 %v4719, 0.3275911
    %v4728 = vmul.f32 %v4720, 0.3275911
    %v4729 = vmul.f32 %v4721, 0.3275911
    %v4730 = vmul.f32 %v4722, 0.3275911
    %v4731 = vmul.f32 %v4723, 0.3275911
    %v4732 = vmul.f32 %v4724, 0.3275911
    %v4733 = vmul.f32 %v4725, 0.3275911
    %v4734 = vadd.f32 %v4726, 1.0
    %v4735 = vadd.f32 %v4727, 1.0
    %v4736 = vadd.f32 %v4728, 1.0
    %v4737 = vadd.f32 %v4729, 1.0
    %v4738 = vadd.f32 %v4730, 1.0
    %v4739 = vadd.f32 %v4731, 1.0
    %v4740 = vadd.f32 %v4732, 1.0
    %v4741 = vadd.f32 %v4733, 1.0
    %v4742 = vrcp.pop %v4734
    %v4743 = vmul.f32 1.0, %v4742
    %v4744 = vrcp.pop %v4735
    %v4745 = vmul.f32 1.0, %v4744
    %v4746 = vrcp.pop %v4736
    %v4747 = vmul.f32 1.0, %v4746
    %v4748 = vrcp.pop %v4737
    %v4749 = vmul.f32 1.0, %v4748
    %v4750 = vrcp.pop %v4738
    %v4751 = vmul.f32 1.0, %v4750
    %v4752 = vrcp.pop %v4739
    %v4753 = vmul.f32 1.0, %v4752
    %v4754 = vrcp.pop %v4740
    %v4755 = vmul.f32 1.0, %v4754
    %v4756 = vrcp.pop %v4741
    %v4757 = vmul.f32 1.0, %v4756
    %v4758 = vmul.f32 %v4743, 1.0614054
    %v4759 = vmul.f32 %v4745, 1.0614054
    %v4760 = vmul.f32 %v4747, 1.0614054
    %v4761 = vmul.f32 %v4749, 1.0614054
    %v4762 = vmul.f32 %v4751, 1.0614054
    %v4763 = vmul.f32 %v4753, 1.0614054
    %v4764 = vmul.f32 %v4755, 1.0614054
    %v4765 = vmul.f32 %v4757, 1.0614054
    %v4766 = vadd.f32 %v4758, -1.4531521
    %v4767 = vadd.f32 %v4759, -1.4531521
    %v4768 = vadd.f32 %v4760, -1.4531521
    %v4769 = vadd.f32 %v4761, -1.4531521
    %v4770 = vadd.f32 %v4762, -1.4531521
    %v4771 = vadd.f32 %v4763, -1.4531521
    %v4772 = vadd.f32 %v4764, -1.4531521
    %v4773 = vadd.f32 %v4765, -1.4531521
    %v4774 = vmul.f32 %v4766, %v4743
    %v4775 = vmul.f32 %v4767, %v4745
    %v4776 = vmul.f32 %v4768, %v4747
    %v4777 = vmul.f32 %v4769, %v4749
    %v4778 = vmul.f32 %v4770, %v4751
    %v4779 = vmul.f32 %v4771, %v4753
    %v4780 = vmul.f32 %v4772, %v4755
    %v4781 = vmul.f32 %v4773, %v4757
    %v4782 = vadd.f32 %v4774, 1.4214138
    %v4783 = vadd.f32 %v4775, 1.4214138
    %v4784 = vadd.f32 %v4776, 1.4214138
    %v4785 = vadd.f32 %v4777, 1.4214138
    %v4786 = vadd.f32 %v4778, 1.4214138
    %v4787 = vadd.f32 %v4779, 1.4214138
    %v4788 = vadd.f32 %v4780, 1.4214138
    %v4789 = vadd.f32 %v4781, 1.4214138
    %v4790 = vmul.f32 %v4782, %v4743
    %v4791 = vmul.f32 %v4783, %v4745
    %v4792 = vmul.f32 %v4784, %v4747
    %v4793 = vmul.f32 %v4785, %v4749
    %v4794 = vmul.f32 %v4786, %v4751
    %v4795 = vmul.f32 %v4787, %v4753
    %v4796 = vmul.f32 %v4788, %v4755
    %v4797 = vmul.f32 %v4789, %v4757
    %v4798 = vadd.f32 %v4790, -0.28449672
    %v4799 = vadd.f32 %v4791, -0.28449672
    %v4800 = vadd.f32 %v4792, -0.28449672
    %v4801 = vadd.f32 %v4793, -0.28449672
    %v4802 = vadd.f32 %v4794, -0.28449672
    %v4803 = vadd.f32 %v4795, -0.28449672
    %v4804 = vadd.f32 %v4796, -0.28449672
    %v4805 = vadd.f32 %v4797, -0.28449672
    %v4806 = vmul.f32 %v4798, %v4743
    %v4807 = vmul.f32 %v4799, %v4745
    %v4808 = vmul.f32 %v4800, %v4747
    %v4809 = vmul.f32 %v4801, %v4749
    %v4810 = vmul.f32 %v4802, %v4751
    %v4811 = vmul.f32 %v4803, %v4753
    %v4812 = vmul.f32 %v4804, %v4755
    %v4813 = vmul.f32 %v4805, %v4757
    %v4814 = vadd.f32 %v4806, 0.2548296
    %v4815 = vadd.f32 %v4807, 0.2548296
    %v4816 = vadd.f32 %v4808, 0.2548296
    %v4817 = vadd.f32 %v4809, 0.2548296
    %v4818 = vadd.f32 %v4810, 0.2548296
    %v4819 = vadd.f32 %v4811, 0.2548296
    %v4820 = vadd.f32 %v4812, 0.2548296
    %v4821 = vadd.f32 %v4813, 0.2548296
    %v4822 = vmul.f32 %v4814, %v4743
    %v4823 = vmul.f32 %v4815, %v4745
    %v4824 = vmul.f32 %v4816, %v4747
    %v4825 = vmul.f32 %v4817, %v4749
    %v4826 = vmul.f32 %v4818, %v4751
    %v4827 = vmul.f32 %v4819, %v4753
    %v4828 = vmul.f32 %v4820, %v4755
    %v4829 = vmul.f32 %v4821, %v4757
    %v4830 = vsub.f32 0.0, %v4718
    %v4831 = vsub.f32 0.0, %v4719
    %v4832 = vsub.f32 0.0, %v4720
    %v4833 = vsub.f32 0.0, %v4721
    %v4834 = vsub.f32 0.0, %v4722
    %v4835 = vsub.f32 0.0, %v4723
    %v4836 = vsub.f32 0.0, %v4724
    %v4837 = vsub.f32 0.0, %v4725
    %v4838 = vmul.f32 %v4830, %v4718
    %v4839 = vmul.f32 %v4831, %v4719
    %v4840 = vmul.f32 %v4832, %v4720
    %v4841 = vmul.f32 %v4833, %v4721
    %v4842 = vmul.f32 %v4834, %v4722
    %v4843 = vmul.f32 %v4835, %v4723
    %v4844 = vmul.f32 %v4836, %v4724
    %v4845 = vmul.f32 %v4837, %v4725
    %v4846 = vmul.f32 %v4838, 1.442695
    %v4847 = vpow.pop %v4846
    %v4848 = vmul.f32 %v4839, 1.442695
    %v4849 = vpow.pop %v4848
    %v4850 = vmul.f32 %v4840, 1.442695
    %v4851 = vpow.pop %v4850
    %v4852 = vmul.f32 %v4841, 1.442695
    %v4853 = vpow.pop %v4852
    %v4854 = vmul.f32 %v4842, 1.442695
    %v4855 = vpow.pop %v4854
    %v4856 = vmul.f32 %v4843, 1.442695
    %v4857 = vpow.pop %v4856
    %v4858 = vmul.f32 %v4844, 1.442695
    %v4859 = vpow.pop %v4858
    %v4860 = vmul.f32 %v4845, 1.442695
    %v4861 = vpow.pop %v4860
    %v4862 = vmul.f32 %v4822, %v4847
    %v4863 = vmul.f32 %v4823, %v4849
    %v4864 = vmul.f32 %v4824, %v4851
    %v4865 = vmul.f32 %v4825, %v4853
    %v4866 = vmul.f32 %v4826, %v4855
    %v4867 = vmul.f32 %v4827, %v4857
    %v4868 = vmul.f32 %v4828, %v4859
    %v4869 = vmul.f32 %v4829, %v4861
    %v4870 = vsub.f32 1.0, %v4862
    %v4871 = vsub.f32 1.0, %v4863
    %v4872 = vsub.f32 1.0, %v4864
    %v4873 = vsub.f32 1.0, %v4865
    %v4874 = vsub.f32 1.0, %v4866
    %v4875 = vsub.f32 1.0, %v4867
    %v4876 = vsub.f32 1.0, %v4868
    %v4877 = vsub.f32 1.0, %v4869
    %v4878 = vmul.f32 %v4710, %v4870
    %v4879 = vmul.f32 %v4711, %v4871
    %v4880 = vmul.f32 %v4712, %v4872
    %v4881 = vmul.f32 %v4713, %v4873
    %v4882 = vmul.f32 %v4714, %v4874
    %v4883 = vmul.f32 %v4715, %v4875
    %v4884 = vmul.f32 %v4716, %v4876
    %v4885 = vmul.f32 %v4717, %v4877
    %v4886 = vadd.f32 %v4878, 1.0
    %v4887 = vadd.f32 %v4879, 1.0
    %v4888 = vadd.f32 %v4880, 1.0
    %v4889 = vadd.f32 %v4881, 1.0
    %v4890 = vadd.f32 %v4882, 1.0
    %v4891 = vadd.f32 %v4883, 1.0
    %v4892 = vadd.f32 %v4884, 1.0
    %v4893 = vadd.f32 %v4885, 1.0
    %v4894 = vmul.f32 %v4686, %v4886
    %v4895 = vmul.f32 %v4687, %v4887
    %v4896 = vmul.f32 %v4688, %v4888
    %v4897 = vmul.f32 %v4689, %v4889
    %v4898 = vmul.f32 %v4690, %v4890
    %v4899 = vmul.f32 %v4691, %v4891
    %v4900 = vmul.f32 %v4692, %v4892
    %v4901 = vmul.f32 %v4693, %v4893
    %s4902 = scalar_lea.vmem %s15, 256
    %v4903 = vld [vmem:[%s4902] sm:$0xf]
    %v4904 = vld [vmem:[%s4902 + $0x4] sm:$0xf]
    %v4905 = vld [vmem:[%s4902 + $0x8] sm:$0xf]
    %v4906 = vld [vmem:[%s4902 + $0xc] sm:$0xf]
    %v4907 = vld [vmem:[%s4902 + $0x10] sm:$0xf]
    %v4908 = vld [vmem:[%s4902 + $0x14] sm:$0xf]
    %v4909 = vld [vmem:[%s4902 + $0x18] sm:$0xf]
    %v4910 = vld [vmem:[%s4902 + $0x1c] sm:$0xf]
    %v4911 = vld [vmem:[%s4902 + $0x20] sm:$0xf]
    %v4912 = vld [vmem:[%s4902 + $0x24] sm:$0xf]
    %v4913 = vld [vmem:[%s4902 + $0x28] sm:$0xf]
    %v4914 = vld [vmem:[%s4902 + $0x2c] sm:$0xf]
    %v4915 = vld [vmem:[%s4902 + $0x30] sm:$0xf]
    %v4916 = vld [vmem:[%s4902 + $0x34] sm:$0xf]
    %v4917 = vld [vmem:[%s4902 + $0x38] sm:$0xf]
    %v4918 = vld [vmem:[%s4902 + $0x3c] sm:$0xf]
    %v4919 = vld [vmem:[%s4902 + $0x40] sm:$0xf]
    %v4920 = vld [vmem:[%s4902 + $0x44] sm:$0xf]
    %v4921 = vld [vmem:[%s4902 + $0x48] sm:$0xf]
    %v4922 = vld [vmem:[%s4902 + $0x4c] sm:$0xf]
    %v4923 = vld [vmem:[%s4902 + $0x50] sm:$0xf]
    %v4924 = vld [vmem:[%s4902 + $0x54] sm:$0xf]
    %v4925 = vld [vmem:[%s4902 + $0x58] sm:$0xf]
    %v4926 = vld [vmem:[%s4902 + $0x5c] sm:$0xf]
    %v4927 = vld [vmem:[%s4902 + $0x60] sm:$0xf]
    %v4928 = vld [vmem:[%s4902 + $0x64] sm:$0xf]
    %v4929 = vld [vmem:[%s4902 + $0x68] sm:$0xf]
    %v4930 = vld [vmem:[%s4902 + $0x6c] sm:$0xf]
    %v4931 = vld [vmem:[%s4902 + $0x70] sm:$0xf]
    %v4932 = vld [vmem:[%s4902 + $0x74] sm:$0xf]
    %v4933 = vld [vmem:[%s4902 + $0x78] sm:$0xf]
    %v4934 = vld [vmem:[%s4902 + $0x7c] sm:$0xf]
    %v4935 = vld [vmem:[%s4902 + $0x80] sm:$0xf]
    %v4936 = vld [vmem:[%s4902 + $0x84] sm:$0xf]
    %v4937 = vld [vmem:[%s4902 + $0x88] sm:$0xf]
    %v4938 = vld [vmem:[%s4902 + $0x8c] sm:$0xf]
    %v4939 = vld [vmem:[%s4902 + $0x90] sm:$0xf]
    %v4940 = vld [vmem:[%s4902 + $0x94] sm:$0xf]
    %v4941 = vld [vmem:[%s4902 + $0x98] sm:$0xf]
    %v4942 = vld [vmem:[%s4902 + $0x9c] sm:$0xf]
    %v4943 = vld [vmem:[%s4902 + $0xa0] sm:$0xf]
    %v4944 = vld [vmem:[%s4902 + $0xa4] sm:$0xf]
    %v4945 = vld [vmem:[%s4902 + $0xa8] sm:$0xf]
    %v4946 = vld [vmem:[%s4902 + $0xac] sm:$0xf]
    %v4947 = vld [vmem:[%s4902 + $0xb0] sm:$0xf]
    %v4948 = vld [vmem:[%s4902 + $0xb4] sm:$0xf]
    %v4949 = vld [vmem:[%s4902 + $0xb8] sm:$0xf]
    %v4950 = vld [vmem:[%s4902 + $0xbc] sm:$0xf]
    %v4951 = vld [vmem:[%s4902 + $0xc0] sm:$0xf]
    %v4952 = vld [vmem:[%s4902 + $0xc4] sm:$0xf]
    %v4953 = vld [vmem:[%s4902 + $0xc8] sm:$0xf]
    %v4954 = vld [vmem:[%s4902 + $0xcc] sm:$0xf]
    %v4955 = vld [vmem:[%s4902 + $0xd0] sm:$0xf]
    %v4956 = vld [vmem:[%s4902 + $0xd4] sm:$0xf]
    %v4957 = vld [vmem:[%s4902 + $0xd8] sm:$0xf]
    %v4958 = vld [vmem:[%s4902 + $0xdc] sm:$0xf]
    %v4959 = vld [vmem:[%s4902 + $0xe0] sm:$0xf]
    %v4960 = vld [vmem:[%s4902 + $0xe4] sm:$0xf]
    %v4961 = vld [vmem:[%s4902 + $0xe8] sm:$0xf]
    %v4962 = vld [vmem:[%s4902 + $0xec] sm:$0xf]
    %v4963 = vld [vmem:[%s4902 + $0xf0] sm:$0xf]
    %v4964 = vld [vmem:[%s4902 + $0xf4] sm:$0xf]
    %v4965 = vld [vmem:[%s4902 + $0xf8] sm:$0xf]
    %v4966 = vld [vmem:[%s4902 + $0xfc] sm:$0xf]
    %v4967 = vpack.c.bf16 %v4898, %v4894
    %v4968 = vpack.c.bf16 %v4899, %v4895
    %v4969 = vpack.c.bf16 %v4900, %v4896
    %v4970 = vpack.c.bf16 %v4901, %v4897
    %v5035 = vunpack.c.l.b16 %v4903
    %v5036 = vunpack.c.l.b16 %v4904
    %v5037 = vunpack.c.l.b16 %v4905
    %v5038 = vunpack.c.l.b16 %v4906
    %v5039 = vunpack.c.l.b16 %v4907
    %v5040 = vunpack.c.l.b16 %v4908
    %v5041 = vunpack.c.l.b16 %v4909
    %v5042 = vunpack.c.l.b16 %v4910
    %v5043 = vunpack.c.l.b16 %v4911
    %v5044 = vunpack.c.l.b16 %v4912
    %v5045 = vunpack.c.l.b16 %v4913
    %v5046 = vunpack.c.l.b16 %v4914
    %v5047 = vunpack.c.l.b16 %v4915
    %v5048 = vunpack.c.l.b16 %v4916
    %v5049 = vunpack.c.l.b16 %v4917
    %v5050 = vunpack.c.l.b16 %v4918
    %v5051 = vunpack.c.l.b16 %v4919
    %v5052 = vunpack.c.l.b16 %v4920
    %v5053 = vunpack.c.l.b16 %v4921
    %v5054 = vunpack.c.l.b16 %v4922
    %v5055 = vunpack.c.l.b16 %v4923
    %v5056 = vunpack.c.l.b16 %v4924
    %v5057 = vunpack.c.l.b16 %v4925
    %v5058 = vunpack.c.l.b16 %v4926
    %v5059 = vunpack.c.l.b16 %v4927
    %v5060 = vunpack.c.l.b16 %v4928
    %v5061 = vunpack.c.l.b16 %v4929
    %v5062 = vunpack.c.l.b16 %v4930
    %v5063 = vunpack.c.l.b16 %v4931
    %v5064 = vunpack.c.l.b16 %v4932
    %v5065 = vunpack.c.l.b16 %v4933
    %v5066 = vunpack.c.l.b16 %v4934
    %v5067 = vunpack.c.l.b16 %v4935
    %v5068 = vunpack.c.l.b16 %v4936
    %v5069 = vunpack.c.l.b16 %v4937
    %v5070 = vunpack.c.l.b16 %v4938
    %v5071 = vunpack.c.l.b16 %v4939
    %v5072 = vunpack.c.l.b16 %v4940
    %v5073 = vunpack.c.l.b16 %v4941
    %v5074 = vunpack.c.l.b16 %v4942
    %v5075 = vunpack.c.l.b16 %v4943
    %v5076 = vunpack.c.l.b16 %v4944
    %v5077 = vunpack.c.l.b16 %v4945
    %v5078 = vunpack.c.l.b16 %v4946
    %v5079 = vunpack.c.l.b16 %v4947
    %v5080 = vunpack.c.l.b16 %v4948
    %v5081 = vunpack.c.l.b16 %v4949
    %v5082 = vunpack.c.l.b16 %v4950
    %v5083 = vunpack.c.l.b16 %v4951
    %v5084 = vunpack.c.l.b16 %v4952
    %v5085 = vunpack.c.l.b16 %v4953
    %v5086 = vunpack.c.l.b16 %v4954
    %v5087 = vunpack.c.l.b16 %v4955
    %v5088 = vunpack.c.l.b16 %v4956
    %v5089 = vunpack.c.l.b16 %v4957
    %v5090 = vunpack.c.l.b16 %v4958
    %v5091 = vunpack.c.l.b16 %v4959
    %v5092 = vunpack.c.l.b16 %v4960
    %v5093 = vunpack.c.l.b16 %v4961
    %v5094 = vunpack.c.l.b16 %v4962
    %v5095 = vunpack.c.l.b16 %v4963
    %v5096 = vunpack.c.l.b16 %v4964
    %v5097 = vunpack.c.l.b16 %v4965
    %v5098 = vunpack.c.l.b16 %v4966
    %v5099 = vpack.c.b16 %v5036, %v5035
    %v5100 = vpack.c.b16 %v5038, %v5037
    %v5101 = vpack.c.b16 %v5040, %v5039
    %v5102 = vpack.c.b16 %v5042, %v5041
    %v5103 = vpack.c.b16 %v5044, %v5043
    %v5104 = vpack.c.b16 %v5046, %v5045
    %v5105 = vpack.c.b16 %v5048, %v5047
    %v5106 = vpack.c.b16 %v5050, %v5049
    %v5107 = vpack.c.b16 %v5052, %v5051
    %v5108 = vpack.c.b16 %v5054, %v5053
    %v5109 = vpack.c.b16 %v5056, %v5055
    %v5110 = vpack.c.b16 %v5058, %v5057
    %v5111 = vpack.c.b16 %v5060, %v5059
    %v5112 = vpack.c.b16 %v5062, %v5061
    %v5113 = vpack.c.b16 %v5064, %v5063
    %v5114 = vpack.c.b16 %v5066, %v5065
    %v5115 = vpack.c.b16 %v5068, %v5067
    %v5116 = vpack.c.b16 %v5070, %v5069
    %v5117 = vpack.c.b16 %v5072, %v5071
    %v5118 = vpack.c.b16 %v5074, %v5073
    %v5119 = vpack.c.b16 %v5076, %v5075
    %v5120 = vpack.c.b16 %v5078, %v5077
    %v5121 = vpack.c.b16 %v5080, %v5079
    %v5122 = vpack.c.b16 %v5082, %v5081
    %v5123 = vpack.c.b16 %v5084, %v5083
    %v5124 = vpack.c.b16 %v5086, %v5085
    %v5125 = vpack.c.b16 %v5088, %v5087
    %v5126 = vpack.c.b16 %v5090, %v5089
    %v5127 = vpack.c.b16 %v5092, %v5091
    %v5128 = vpack.c.b16 %v5094, %v5093
    %v5129 = vpack.c.b16 %v5096, %v5095
    %v5130 = vpack.c.b16 %v5098, %v5097
    %5163 = vmatprep.subr.bf16.mxu0 0
    %5164 = vmatpush1.bf16.msra.mxu0 %v5099
    %5165 = vmatprep.subr.bf16.mxu0 0
    %5166 = vmatpush1.bf16.msra.mxu0 %v5100
    %5167 = vmatprep.subr.bf16.mxu0 0
    %5168 = vmatpush1.bf16.msra.mxu0 %v5101
    %5169 = vmatprep.subr.bf16.mxu0 0
    %5170 = vmatpush1.bf16.msra.mxu0 %v5102
    %5171 = vmatprep.subr.bf16.mxu0 0
    %5172 = vmatpush1.bf16.msra.mxu0 %v5103
    %5173 = vmatprep.subr.bf16.mxu0 0
    %5174 = vmatpush1.bf16.msra.mxu0 %v5104
    %5175 = vmatprep.subr.bf16.mxu0 0
    %5176 = vmatpush1.bf16.msra.mxu0 %v5105
    %5177 = vmatprep.subr.bf16.mxu0 0
    %5178 = vmatpush1.bf16.msra.mxu0 %v5106
    %5179 = vmatprep.subr.bf16.mxu0 0
    %5180 = vmatpush1.bf16.msra.mxu0 %v5107
    %5181 = vmatprep.subr.bf16.mxu0 0
    %5182 = vmatpush1.bf16.msra.mxu0 %v5108
    %5183 = vmatprep.subr.bf16.mxu0 0
    %5184 = vmatpush1.bf16.msra.mxu0 %v5109
    %5185 = vmatprep.subr.bf16.mxu0 0
    %5186 = vmatpush1.bf16.msra.mxu0 %v5110
    %5187 = vmatprep.subr.bf16.mxu0 0
    %5188 = vmatpush1.bf16.msra.mxu0 %v5111
    %5189 = vmatprep.subr.bf16.mxu0 0
    %5190 = vmatpush1.bf16.msra.mxu0 %v5112
    %5191 = vmatprep.subr.bf16.mxu0 0
    %5192 = vmatpush1.bf16.msra.mxu0 %v5113
    %5193 = vmatprep.subr.bf16.mxu0 0
    %5194 = vmatpush1.bf16.msra.mxu0 %v5114
    %5195 = vmatprep.mubr.bf16.mxu0 %v4968
    %5196 = vmatmul.mubr.bf16.gmra.mrb[0].mxu0 %v4967
    %v5197 = vpop.f32.mrb[0].mxu0
    %v5198 = vadd.f32 0.0, %v5197
    %v5199 = vpop.f32.mrb[0].mxu0
    %v5200 = vpop.f32.mrb[0].mxu0
    %v5201 = vadd.f32 0.0, %v5200
    %v5202 = vpop.f32.mrb[0].mxu0
    %5203 = vdwg.mxu0
    %5204 = vmatprep.subr.bf16.mxu0 0
    %5205 = vmatpush1.bf16.msra.mxu0 %v5115
    %5206 = vmatprep.subr.bf16.mxu0 0
    %5207 = vmatpush1.bf16.msra.mxu0 %v5116
    %5208 = vmatprep.subr.bf16.mxu0 0
    %5209 = vmatpush1.bf16.msra.mxu0 %v5117
    %5210 = vmatprep.subr.bf16.mxu0 0
    %5211 = vmatpush1.bf16.msra.mxu0 %v5118
    %5212 = vmatprep.subr.bf16.mxu0 0
    %5213 = vmatpush1.bf16.msra.mxu0 %v5119
    %5214 = vmatprep.subr.bf16.mxu0 0
    %5215 = vmatpush1.bf16.msra.mxu0 %v5120
    %5216 = vmatprep.subr.bf16.mxu0 0
    %5217 = vmatpush1.bf16.msra.mxu0 %v5121
    %5218 = vmatprep.subr.bf16.mxu0 0
    %5219 = vmatpush1.bf16.msra.mxu0 %v5122
    %5220 = vmatprep.subr.bf16.mxu0 0
    %5221 = vmatpush1.bf16.msra.mxu0 %v5123
    %5222 = vmatprep.subr.bf16.mxu0 0
    %5223 = vmatpush1.bf16.msra.mxu0 %v5124
    %5224 = vmatprep.subr.bf16.mxu0 0
    %5225 = vmatpush1.bf16.msra.mxu0 %v5125
    %5226 = vmatprep.subr.bf16.mxu0 0
    %5227 = vmatpush1.bf16.msra.mxu0 %v5126
    %5228 = vmatprep.subr.bf16.mxu0 0
    %5229 = vmatpush1.bf16.msra.mxu0 %v5127
    %5230 = vmatprep.subr.bf16.mxu0 0
    %5231 = vmatpush1.bf16.msra.mxu0 %v5128
    %5232 = vmatprep.subr.bf16.mxu0 0
    %5233 = vmatpush1.bf16.msra.mxu0 %v5129
    %5234 = vmatprep.subr.bf16.mxu0 0
    %5235 = vmatpush1.bf16.msra.mxu0 %v5130
    %5236 = vmatprep.mubr.bf16.mxu0 %v4970
    %5237 = vmatmul.mubr.bf16.gmra.mrb[0].mxu0 %v4969
    %v5238 = vpop.f32.mrb[0].mxu0
    %v5239 = vadd.f32 %v5198, %v5238
    %v5240 = vpop.f32.mrb[0].mxu0
    %v5241 = vpop.f32.mrb[0].mxu0
    %v5242 = vadd.f32 %v5201, %v5241
    %v5243 = vpop.f32.mrb[0].mxu0
    %5244 = vdwg.mxu0
    %v5245 = vadd.f32 %v4345, %v5239
    %v5246 = vadd.f32 %v4346, %v5242
    %v5248 = vlaneseq
    %v5249 = vshrl.u32 %v5248, 7
    %v5250 = vsub.s32 0, %v5249
    %v5251 = vrot.slane %v3003, %v5250
    %v5253 = vadd.f32 %v5245, %v5251
    %v5254 = vadd.f32 %v5246, %v5251
    %v5256 = vrot.slane %v5254, 7
    %v5258 = vsel %vm718, %v5253, %v5256
    %v5259 = vld [vmem:[%s17] sm:$0x1]
    %v5260 = vld [vmem:[%s18] sm:$0x1]
    %vm5261 = vcmask 1041408
    %v5262 = vsel %vm5261, %v5258, 0.0
    %5263 = vadd.xlane.f32.xlu0 %v5262
    %v5264 = vpop.xlane.xlu0 %5263
    %v5265 = vmul.f32 %v5264, %v739
    %v5266 = vsub.f32 %v5258, %v5265
    %v5267 = vmul.f32 %v5266, %v5266
    %v5268 = vsel %vm5261, %v5267, 0.0
    %5269 = vadd.xlane.f32.xlu0 %v5268
    %v5270 = vpop.xlane.xlu0 %5269
    %v5271 = vmul.f32 %v5270, %v739
    %v5272 = vadd.f32 %v5271, 1e-06
    %v5273 = vrsqrt.pop %v5272
    %v5274 = vmul.f32 %v5266, %v5273
    %v5276 = vlaneseq
    %v5277 = vshrl.u32 %v5276, 7
    %v5278 = vsub.s32 0, %v5277
    %v5279 = vrot.slane %v5259, %v5278
    %v5281 = vmul.f32 %v5274, %v5279
    %v5283 = vlaneseq
    %v5284 = vshrl.u32 %v5283, 7
    %v5285 = vsub.s32 0, %v5284
    %v5286 = vrot.slane %v5260, %v5285
    %v5288 = vadd.f32 %v5281, %v5286
    %v5289 = vld [vmem:[#allocation14] sm:$0xf]
    %v5290 = vld [vmem:[#allocation14 + $0x4] sm:$0xf]
    %v5291 = vld [vmem:[#allocation14 + $0x8] sm:$0xf]
    %v5292 = vld [vmem:[#allocation14 + $0xc] sm:$0xf]
    %v5293 = vld [vmem:[#allocation14 + $0x10] sm:$0xf]
    %v5294 = vld [vmem:[#allocation14 + $0x14] sm:$0xf]
    %v5295 = vld [vmem:[#allocation14 + $0x18] sm:$0xf]
    %v5296 = vld [vmem:[#allocation14 + $0x1c] sm:$0xf]
    %v5297 = vld [vmem:[#allocation14 + $0x20] sm:$0xf]
    %v5298 = vld [vmem:[#allocation14 + $0x24] sm:$0xf]
    %v5299 = vld [vmem:[#allocation14 + $0x28] sm:$0xf]
    %v5300 = vld [vmem:[#allocation14 + $0x2c] sm:$0xf]
    %v5301 = vld [vmem:[#allocation14 + $0x30] sm:$0xf]
    %v5302 = vld [vmem:[#allocation14 + $0x34] sm:$0xf]
    %v5303 = vld [vmem:[#allocation14 + $0x38] sm:$0xf]
    %v5304 = vld [vmem:[#allocation14 + $0x3c] sm:$0xf]
    %v5305 = vpack.c.bf16 %v5288, %v5288
    %v5306 = vld [vmem:[%s20] sm:$0x1]
    %v5308 = vlaneseq
    %v5309 = vshrl.u32 %v5308, 7
    %v5310 = vsub.s32 0, %v5309
    %v5311 = vrot.slane %v5306, %v5310
    %v5329 = vunpack.c.l.b16 %v5289
    %v5330 = vunpack.c.l.b16 %v5290
    %v5331 = vunpack.c.l.b16 %v5291
    %v5332 = vunpack.c.l.b16 %v5292
    %v5333 = vunpack.c.l.b16 %v5293
    %v5334 = vunpack.c.l.b16 %v5294
    %v5335 = vunpack.c.l.b16 %v5295
    %v5336 = vunpack.c.l.b16 %v5296
    %v5337 = vunpack.c.l.b16 %v5297
    %v5338 = vunpack.c.l.b16 %v5298
    %v5339 = vunpack.c.l.b16 %v5299
    %v5340 = vunpack.c.l.b16 %v5300
    %v5341 = vunpack.c.l.b16 %v5301
    %v5342 = vunpack.c.l.b16 %v5302
    %v5343 = vunpack.c.l.b16 %v5303
    %v5344 = vunpack.c.l.b16 %v5304
    %v5345 = vpack.c.b16 %v5330, %v5329
    %v5346 = vpack.c.b16 %v5332, %v5331
    %v5347 = vpack.c.b16 %v5334, %v5333
    %v5348 = vpack.c.b16 %v5336, %v5335
    %v5349 = vpack.c.b16 %v5338, %v5337
    %v5350 = vpack.c.b16 %v5340, %v5339
    %v5351 = vpack.c.b16 %v5342, %v5341
    %v5352 = vpack.c.b16 %v5344, %v5343
    %5361 = vmatprep.subr.bf16.mxu0 0
    %5362 = vmatpush1.bf16.msra.mxu0 %v5345
    %5363 = vmatprep.subr.bf16.mxu0 0
    %5364 = vmatpush1.bf16.msra.mxu0 %v5346
    %5365 = vmatprep.subr.bf16.mxu0 0
    %5366 = vmatpush1.bf16.msra.mxu0 %v5347
    %5367 = vmatprep.subr.bf16.mxu0 0
    %5368 = vmatpush1.bf16.msra.mxu0 %v5348
    %5369 = vmatprep.subr.bf16.mxu0 0
    %5370 = vmatpush1.bf16.msra.mxu0 %v5349
    %5371 = vmatprep.subr.bf16.mxu0 0
    %5372 = vmatpush1.bf16.msra.mxu0 %v5350
    %5373 = vmatprep.subr.bf16.mxu0 0
    %5374 = vmatpush1.bf16.msra.mxu0 %v5351
    %5375 = vmatprep.subr.bf16.mxu0 0
    %5376 = vmatpush1.bf16.msra.mxu0 %v5352
    %5377 = vmatprep.subr.bf16.mxu0 0
    %5378 = vmatpush1.bf16.msra.mxu0 0
    %5379 = vmatprep.subr.bf16.mxu0 0
    %5380 = vmatpush1.bf16.msra.mxu0 0
    %5381 = vmatprep.subr.bf16.mxu0 0
    %5382 = vmatpush1.bf16.msra.mxu0 0
    %5383 = vmatprep.subr.bf16.mxu0 0
    %5384 = vmatpush1.bf16.msra.mxu0 0
    %5385 = vmatprep.subr.bf16.mxu0 0
    %5386 = vmatpush1.bf16.msra.mxu0 0
    %5387 = vmatprep.subr.bf16.mxu0 0
    %5388 = vmatpush1.bf16.msra.mxu0 0
    %5389 = vmatprep.subr.bf16.mxu0 0
    %5390 = vmatpush1.bf16.msra.mxu0 0
    %5391 = vmatprep.subr.bf16.mxu0 0
    %5392 = vmatpush1.bf16.msra.mxu0 0
    %5393 = vmatprep.mubr.bf16.mxu0 0
    %5394 = vmatmul.mubr.bf16.gmra.mrb[0].mxu0 %v5305
    %v5395 = vpop.f32.mrb[0].mxu0
    %v5396 = vadd.f32 %v5311, %v5395
    %v5397 = vpop.f32.mrb[0].mxu0
    %v5398 = vpop.f32.mrb[0].mxu0
    %v5399 = vpop.f32.mrb[0].mxu0
    %5400 = vdwg.mxu0
    %5401 = vst [vmem:[#allocation16] sm:$0x3] %v5396
    // Predicated region
    $region118: #{medvit_forward.1} parent=1 // pred_check
      _
    $region119: #{medvit_forward.1} parent=1 // pred_check_branch
      %5403 = sbr.rel (0) target = $region121
    $region120: #{medvit_forward.1} parent=1 // pred_region
      %s5405 = ssub.s32 32, 32
      %5406 = vsyncadd [#allocation4], %s5405
      %s5408 = sshll.u32 [#allocation16], 4
      %s5409 = int_to_ptr.vmem [resolvable:$true] %s5408
      %5411 = dma.vmem_to_hbm [thread:$0]  %s5409, 32, %s21, [#allocation4]
    $region121: #{medvit_forward.1} parent=1 // pred_fallthru
      _
    // Predicated region
    $region122: #{medvit_forward.1} parent=1 // pred_check
      _
    $region123: #{medvit_forward.1} parent=1 // pred_check_branch
      %5413 = sbr.rel (0) target = $region125
    $region124: #{medvit_forward.1} parent=1 // pred_region
      %5414 = dma.done [#allocation4], 32
    $region125: #{medvit_forward.1} parent=1 // pred_fallthru
      _
    %5415 = vsyncpa [#allocation3], 1
    %5416 = vsyncpa [#allocation6], 1
    %5417 = vsyncpa [#allocation9], 1
    %5418 = vsyncpa [#allocation12], 1
    %5419 = vsyncpa [#allocation15], 1
    %5420 = vsyncpa [#allocation4], 1

</llo_original>
